<compile_context>
chip_gen: v5e
topology: v5e:2x2
jax: 0.10.0
libtpu: 0.0.40
codegen_flags: <defaults>
</compile_context>

<pallas_src>
import functools

import jax
import jax.numpy as jnp
from jax.experimental import pallas as pl
from jax.experimental.pallas import tpu as pltpu

LANE = 128        # pad feature dims to a full 128-lane vreg
_EPS_DEG = 1e-12  # guard against isolated (zero-degree) nodes after pooling
_LN_EPS = 1e-5    # PyTorch LayerNorm default eps


# ----------------------------- spec helpers -----------------------------

def _spec_for(x, batched):
    """Per-array BlockSpec for a grid=(B,) batched call."""
    if batched:
        return pl.BlockSpec((1,) + tuple(x.shape[1:]),
                            lambda b: (b,) + (0,) * (x.ndim - 1))
    return pl.BlockSpec(tuple(x.shape), lambda b: (0,) * x.ndim)


def _out_spec(shape):
    nd = len(shape)
    return pl.BlockSpec((1,) + tuple(shape[1:]),
                        lambda b: (b,) + (0,) * (nd - 1))


def _cost(B, n, dp):
    flops = 2 * B * (n * n * dp + n * dp * dp + n * n * n)
    return pl.CostEstimate(flops=int(flops),
                           transcendentals=int(B * n * dp),
                           bytes_accessed=int(4 * B * (3 * n * n + 4 * n * dp)))


_PARALLEL = pltpu.CompilerParams(dimension_semantics=("parallel",))


# -------------------------- in-kernel building blocks --------------------------

def _elu(z):
    # safe ELU: never evaluates exp on large positives
    return jnp.where(z > 0.0, z, jnp.exp(jnp.minimum(z, 0.0)) - 1.0)


def _layer_norm(x, gamma, beta, d_true):
    # x is zero-padded beyond d_true, so padded columns contribute 0 to both
    # sums -> the moments over the true dim are exact.
    mu = jnp.sum(x, axis=-1, keepdims=True) / d_true
    var = jnp.sum(x * x, axis=-1, keepdims=True) / d_true - mu * mu
    return (x - mu) * jax.lax.rsqrt(var + _LN_EPS) * gamma + beta


def _gcn(g, h, w, b):
    # (g / deg_row) @ h == g @ (h * (1/deg)); deg = row sums of g (N,1).
    deg = jnp.maximum(jnp.sum(g, axis=-1, keepdims=True), _EPS_DEG)
    hs = h * pl.reciprocal(deg, approx=True)
    gh = jnp.dot(g, hs, preferred_element_type=jnp.float32)
    z = jnp.dot(gh, w, preferred_element_type=jnp.float32) + b
    return _elu(z)


def _norm_g(g):
    # norm_g(g)[i, j] = g[i, j] / deg[j], deg[j] = sum_k g[j, k].
    # deg_row (1,N) via one MXU contraction of a ones row with g's last dim.
    ones = jnp.ones((1, g.shape[0]), jnp.float32)
    deg_row = jax.lax.dot_general(ones, g, (((1,), (1,)), ((), ())),
                                  preferred_element_type=jnp.float32)
    return g / jnp.maximum(deg_row, _EPS_DEG)


def _sigmoid(x):
    return 1.0 / (1.0 + jnp.exp(-x))


# ----------------------------- Pallas kernels -----------------------------

def _start_kernel(d_true, g_ref, h_ref, w_ref, b_ref, gm_ref, bt_ref,
                  ho_ref, gn_ref):
    # h = LN(ELU(W(norm_g(g) @ h) + b));  also emit norm_g(g) for the encoder.
    g = g_ref[0]
    a = _gcn(g, h_ref[0], w_ref[...], b_ref[...])
    ho_ref[0] = _layer_norm(a, gm_ref[...], bt_ref[...], d_true)
    gn_ref[0] = _norm_g(g)


def _bot_kernel(d_true, g_ref, h_ref, w_ref, b_ref, gm_ref, bt_ref, ho_ref):
    # bottom GCN + LayerNorm (no residual, no g output needed afterwards).
    a = _gcn(g_ref[0], h_ref[0], w_ref[...], b_ref[...])
    ho_ref[0] = _layer_norm(a, gm_ref[...], bt_ref[...], d_true)


def _enc_level_kernel(d_true, g_ref, h_ref, w_ref, b_ref, gm_ref, bt_ref,
                      wp_ref, bp_ref, ho_ref, gn_ref, g2_ref, sc_ref):
    # fused encoder level: GCN(norm(g), h) -> LN(h + h1) -> pool scores,
    # plus the normalized adjacency (adj_ms) and the binarized 2-hop pattern.
    g = g_ref[0]
    h = h_ref[0]
    h1 = _gcn(g, h, w_ref[...], b_ref[...])
    hn = _layer_norm(h + h1, gm_ref[...], bt_ref[...], d_true)
    ho_ref[0] = hn
    gn_ref[0] = _norm_g(g)
    # 2-hop connectivity (pattern only; normalization does not change it)
    u = (g != 0.0).astype(jnp.float32)
    g2_ref[0] = (jnp.dot(u, u, preferred_element_type=jnp.float32) > 0.0
                 ).astype(jnp.float32)
    # pool projection + sigmoid on the post-LN features
    logits = (jnp.dot(hn, wp_ref[...], preferred_element_type=jnp.float32)
              + bp_ref[...])
    sc_ref[0] = _sigmoid(logits)


def _dec_level_kernel(d_true, g_ref, hup_ref, dwn_ref, w_ref, b_ref,
                      gi_ref, bi_ref, gl_ref, bl_ref, ho_ref):
    # fused decoder level: h1 = LN(down + unpool(h)); h = LN(GCN(norm(g),h1)+h1)
    h1 = _layer_norm(dwn_ref[0] + hup_ref[0], gi_ref[...], bi_ref[...], d_true)
    h2 = _gcn(g_ref[0], h1, w_ref[...], b_ref[...])
    ho_ref[0] = _layer_norm(h2 + h1, gl_ref[...], bl_ref[...], d_true)


def _head_kernel(d_true, h1_ref, h2_ref, ori_ref, g1_ref, b1_ref, g2_ref,
                 b2_ref, w1_ref, c1_ref, w2_ref, c2_ref, og_ref):
    # fused: out_ln1/2(h + ori_h) -> reduce1/2 -> sigmoid(r1 @ r2.T)
    ori = ori_ref[0]
    a1 = _layer_norm(h1_ref[0] + ori, g1_ref[...], b1_ref[...], d_true)
    a2 = _layer_norm(h2_ref[0] + ori, g2_ref[...], b2_ref[...], d_true)
    r1 = jnp.dot(a1, w1_ref[...], preferred_element_type=jnp.float32) + c1_ref[...]
    r2 = jnp.dot(a2, w2_ref[...], preferred_element_type=jnp.float32) + c2_ref[...]
    s = jax.lax.dot_general(r1, r2, (((1,), (1,)), ((), ())),
                            preferred_element_type=jnp.float32)  # r1 @ r2.T
    og_ref[0] = _sigmoid(s)


def _bce_kernel(og_ref, g_ref, o_ref):
    # customBCE per graph: mean( w * BCE(og, g) ), class-balanced weights.
    og = og_ref[0]
    g = g_ref[0]
    tn = jnp.float32(og.shape[0] * og.shape[1])
    ones = jnp.maximum(jnp.sum(g, keepdims=True), 1.0)      # (1,1), guarded
    zeros = jnp.maximum(tn - ones, 1.0)
    one_w = tn / 2.0 / ones
    zero_w = tn / 2.0 / zeros
    w = jnp.where(g == 0.0, zero_w, one_w)
    log_p = jnp.maximum(jnp.log(og), -100.0)                 # torch BCE clamp
    log_1mp = jnp.maximum(jnp.log(1.0 - og), -100.0)
    bce = -(g * log_p + (1.0 - g) * log_1mp)
    o_ref[0] = jnp.sum(w * bce, keepdims=True) / tn


# ----------------------------- kernel wrappers -----------------------------

def start_gcn_ln(g, h, p_gcn, p_ln, d_true):
    B, n, _ = g.shape
    dp = p_gcn["w"].shape[1]
    ins = (g, h, p_gcn["w"], p_gcn["b"], p_ln["gamma"], p_ln["beta"])
    out_shape = (jax.ShapeDtypeStruct((B, n, dp), jnp.float32),
                 jax.ShapeDtypeStruct((B, n, n), jnp.float32))
    return pl.pallas_call(
        functools.partial(_start_kernel, float(d_true)),
        out_shape=out_shape,
        grid=(B,),
        in_specs=[_spec_for(x, x.ndim == 3) for x in ins],
        out_specs=tuple(_out_spec(s.shape) for s in out_shape),
        compiler_params=_PARALLEL,
        cost_estimate=_cost(B, n, dp),
    )(*ins)


def bot_gcn_ln(g, h, p_gcn, p_ln, d_true):
    B, n, _ = g.shape
    dp = p_gcn["w"].shape[1]
    ins = (g, h, p_gcn["w"], p_gcn["b"], p_ln["gamma"], p_ln["beta"])
    return pl.pallas_call(
        functools.partial(_bot_kernel, float(d_true)),
        out_shape=jax.ShapeDtypeStruct((B, n, dp), jnp.float32),
        grid=(B,),
        in_specs=[_spec_for(x, x.ndim == 3) for x in ins],
        out_specs=_out_spec((B, n, dp)),
        compiler_params=_PARALLEL,
        cost_estimate=_cost(B, n, dp),
    )(*ins)


def enc_level(g, h, pe, d_true):
    B, n, _ = g.shape
    dp = pe["gcn"]["w"].shape[1]
    ins = (g, h, pe["gcn"]["w"], pe["gcn"]["b"],
           pe["ln"]["gamma"], pe["ln"]["beta"],
           pe["pool"]["w"], pe["pool"]["b"])
    out_shape = (jax.ShapeDtypeStruct((B, n, dp), jnp.float32),   # h (post-LN)
                 jax.ShapeDtypeStruct((B, n, n), jnp.float32),    # norm_g(g)
                 jax.ShapeDtypeStruct((B, n, n), jnp.float32),    # 2-hop pattern
                 jax.ShapeDtypeStruct((B, n, 1), jnp.float32))    # pool scores
    return pl.pallas_call(
        functools.partial(_enc_level_kernel, float(d_true)),
        out_shape=out_shape,
        grid=(B,),
        in_specs=[_spec_for(x, x.ndim == 3) for x in ins],
        out_specs=tuple(_out_spec(s.shape) for s in out_shape),
        compiler_params=_PARALLEL,
        cost_estimate=_cost(B, n, dp),
    )(*ins)


def dec_level(g, h_up, down, lvl, d_true):
    B, n, _ = g.shape
    dp = lvl["gcn"]["w"].shape[1]
    ins = (g, h_up, down, lvl["gcn"]["w"], lvl["gcn"]["b"],
           lvl["inp_ln"]["gamma"], lvl["inp_ln"]["beta"],
           lvl["ln"]["gamma"], lvl["ln"]["beta"])
    return pl.pallas_call(
        functools.partial(_dec_level_kernel, float(d_true)),
        out_shape=jax.ShapeDtypeStruct((B, n, dp), jnp.float32),
        grid=(B,),
        in_specs=[_spec_for(x, x.ndim == 3) for x in ins],
        out_specs=_out_spec((B, n, dp)),
        compiler_params=_PARALLEL,
        cost_estimate=_cost(B, n, dp),
    )(*ins)


def head(h1, h2, ori, params, d_true):
    B, n, dp = h1.shape
    ins = (h1, h2, ori,
           params["dec1"]["out_ln"]["gamma"], params["dec1"]["out_ln"]["beta"],
           params["dec2"]["out_ln"]["gamma"], params["dec2"]["out_ln"]["beta"],
           params["reduce1"]["w"], params["reduce1"]["b"],
           params["reduce2"]["w"], params["reduce2"]["b"])
    return pl.pallas_call(
        functools.partial(_head_kernel, float(d_true)),
        out_shape=jax.ShapeDtypeStruct((B, n, n), jnp.float32),
        grid=(B,),
        in_specs=[_spec_for(x, x.ndim == 3) for x in ins],
        out_specs=_out_spec((B, n, n)),
        compiler_params=_PARALLEL,
        cost_estimate=_cost(B, n, dp),
    )(*ins)


def weighted_bce(o_gs, gs):
    B, n, _ = gs.shape
    out = pl.pallas_call(
        _bce_kernel,
        out_shape=jax.ShapeDtypeStruct((B, 1, 1), jnp.float32),
        grid=(B,),
        in_specs=[_spec_for(o_gs, True), _spec_for(gs, True)],
        out_specs=_out_spec((B, 1, 1)),
        compiler_params=_PARALLEL,
    )(o_gs, gs)
    return out[:, 0, 0]           # per-graph losses (B,)


# ------------------------ data-dependent glue (plain JAX) ------------------------
# TODO(synk): top-k node selection + gather/scatter unpool are data-dependent;
# kept in plain JAX (vmapped-style batched indexing) rather than in Pallas.

def pool_glue(scores, h, two_hop, k_frac):
    B, n = scores.shape
    k = max(2, int(k_frac * n))
    values, idx = jax.lax.top_k(scores, k)                              # (B,k)
    new_h = jnp.take_along_axis(h, idx[:, :, None], axis=1) * values[:, :, None]
    sub = jnp.take_along_axis(two_hop, idx[:, :, None], axis=1)
    sub = jnp.take_along_axis(sub, idx[:, None, :], axis=2)             # (B,k,k)
    deg = jnp.maximum(jnp.sum(sub, axis=-1), _EPS_DEG)                  # row sums
    g_new = sub / deg[:, None, :]                                       # norm_g
    return g_new, new_h, idx


def unpool_glue(n_up, h, idx):
    B, _, d = h.shape
    out = jnp.zeros((B, n_up, d), h.dtype)
    return out.at[jnp.arange(B)[:, None], idx].set(h)


# ----------------------- parameter init (deterministic) -----------------------

def _init_linear(key, fan_in, fan_out, pad_in, pad_out, scale=0.1):
    kw, kb = jax.random.split(key)
    w = scale * jax.random.normal(kw, (fan_in, fan_out), jnp.float32)
    b = scale * jax.random.normal(kb, (1, fan_out), jnp.float32)
    return {"w": jnp.pad(w, ((0, pad_in - fan_in), (0, pad_out - fan_out))),
            "b": jnp.pad(b, ((0, 0), (0, pad_out - fan_out)))}


def _init_ln(dim, dpad):
    # PyTorch LayerNorm default init (weight=1, bias=0); zero in the pad lanes.
    gamma = jnp.zeros((1, dpad), jnp.float32).at[:, :dim].set(1.0)
    return {"gamma": gamma, "beta": jnp.zeros((1, dpad), jnp.float32)}


def init_unet_params(key, in_dim, dim, ks, dpad=LANE):
    L = len(ks)
    keys = iter(jax.random.split(key, 4 * L + 4))

    def lin(fi, fo, po):
        return _init_linear(next(keys), fi, fo, dpad, po)

    def dec():
        return {"levels": [{"inp_ln": _init_ln(dim, dpad),
                            "gcn": lin(dim, dim, dpad),
                            "ln": _init_ln(dim, dpad)} for _ in range(L)],
                "out_ln": _init_ln(dim, dpad)}

    return {
        "s_gcn": lin(in_dim, dim, dpad),
        "s_ln": _init_ln(dim, dpad),
        "enc": [{"gcn": lin(dim, dim, dpad),
                 "ln": _init_ln(dim, dpad),
                 "pool": lin(dim, 1, 1)} for _ in range(L)],
        "bot_gcn": lin(dim, dim, dpad),
        "bot_ln": _init_ln(dim, dpad),
        "dec1": dec(),
        "dec2": dec(),
        "reduce1": lin(dim, dim, dpad),
        "reduce2": lin(dim, dim, dpad),
    }


# ------------------------------ forward pass ------------------------------

def decoder_levels(p_dec, h, down_outs, adj_ms, idx_list, dim):
    L = len(p_dec["levels"])
    for i in range(L):
        up = L - 1 - i
        lvl = p_dec["levels"][i]
        g_stored = adj_ms[up]
        h_up = unpool_glue(g_stored.shape[1], h, idx_list[up])
        h = dec_level(g_stored, h_up, down_outs[up], lvl, dim)
    return h


def embed_batch(params, ks, g_raw, h_feat, dim):
    h, g = start_gcn_ln(g_raw, h_feat, params["s_gcn"], params["s_ln"], dim)
    ori_h = h
    adj_ms, down_outs, idx_list = [], [], []
    for i, kf in enumerate(ks):
        pe = params["enc"][i]
        h, g_norm, two_hop, scores = enc_level(g, h, pe, dim)
        down_outs.append(h)
        adj_ms.append(g_norm)
        g, h, idx = pool_glue(scores[:, :, 0], h, two_hop, kf)
        idx_list.append(idx)
    h = bot_gcn_ln(g, h, params["bot_gcn"], params["bot_ln"], dim)
    h1 = decoder_levels(params["dec1"], h, down_outs, adj_ms, idx_list, dim)
    h2 = decoder_levels(params["dec2"], h, down_outs, adj_ms, idx_list, dim)
    return head(h1, h2, ori_h, params, dim)


def unet_forward(params, ks, gs, hs, dim):
    # gs: (B, N, N) raw adjacency; hs: (B, N, in_dim) node features.
    h_pad = jnp.pad(hs, ((0, 0), (0, 0), (0, LANE - hs.shape[-1])))
    o_gs = embed_batch(params, ks, gs, h_pad, dim)          # (B, N, N)
    loss = jnp.mean(weighted_bce(o_gs, gs))
    return loss, o_gs


# ---------------------------------- main ----------------------------------

if __name__ == "__main__":
    B, N, IN_DIM, DIM = 2, 16, 8, 32
    KS = (0.8, 0.6)   # args.ks

    key = jax.random.PRNGKey(0)
    k_params, k_adj, k_feat = jax.random.split(key, 3)
    params = init_unet_params(k_params, IN_DIM, DIM, KS)

    u = jax.random.uniform(k_adj, (B, N, N))
    a = (u < 0.3).astype(jnp.float32)
    a = jnp.maximum(a, jnp.transpose(a, (0, 2, 1)))                 # symmetric
    eye = jnp.broadcast_to(jnp.eye(N, dtype=jnp.float32), (B, N, N))
    gs = jnp.maximum(a, eye)                                        # self-loops
    hs = jax.random.normal(k_feat, (B, N, IN_DIM), jnp.float32)

    fwd = jax.jit(lambda p, g, h: unet_forward(p, KS, g, h, DIM))
    loss, o_gs = fwd(params, gs, hs)
    jax.block_until_ready((loss, o_gs))

    assert bool(jnp.isfinite(loss)), "loss is not finite"
    assert o_gs.shape == (B, N, N)
    assert bool(jnp.all(jnp.isfinite(o_gs)))
    print("KERNEL_OK")
</pallas_src>

<mosaic_0001>
module attributes {stable_mosaic.version = 11 : i64} {
  func.func @_start_kernel(%arg0: i32, %arg1: memref<1x16x16xf32, #tpu.memory_space<vmem>>, %arg2: memref<1x16x128xf32, #tpu.memory_space<vmem>>, %arg3: memref<128x128xf32, #tpu.memory_space<vmem>>, %arg4: memref<1x128xf32, #tpu.memory_space<vmem>>, %arg5: memref<1x128xf32, #tpu.memory_space<vmem>>, %arg6: memref<1x128xf32, #tpu.memory_space<vmem>>, %arg7: memref<1x16x128xf32, #tpu.memory_space<vmem>>, %arg8: memref<1x16x16xf32, #tpu.memory_space<vmem>>) attributes {dimension_semantics = [#tpu.dimension_semantics<parallel>], iteration_bounds = array<i64: 2>, scalar_prefetch = 0 : i64, scratch_operands = 0 : i64, tpu.core_type = #tpu.core_type<tc>, window_params = [{transform_indices = @transform_0, window_bounds = array<i64: 1, 16, 16>}, {transform_indices = @transform_1, window_bounds = array<i64: 1, 16, 128>}, {pipeline_mode = #tpu.pipeline_mode<synchronous>, transform_indices = @transform_2, window_bounds = array<i64: 128, 128>}, {pipeline_mode = #tpu.pipeline_mode<synchronous>, transform_indices = @transform_3, window_bounds = array<i64: 1, 128>}, {pipeline_mode = #tpu.pipeline_mode<synchronous>, transform_indices = @transform_4, window_bounds = array<i64: 1, 128>}, {pipeline_mode = #tpu.pipeline_mode<synchronous>, transform_indices = @transform_5, window_bounds = array<i64: 1, 128>}, {transform_indices = @transform_6, window_bounds = array<i64: 1, 16, 128>}, {transform_indices = @transform_7, window_bounds = array<i64: 1, 16, 16>}]} {
    %c0 = arith.constant 0 : index
    %c0_0 = arith.constant 0 : index
    %c0_1 = arith.constant 0 : index
    %0 = vector.load %arg1[%c0, %c0_0, %c0_1] : memref<1x16x16xf32, #tpu.memory_space<vmem>>, vector<1x16x16xf32>
    %1 = vector.shape_cast %0 : vector<1x16x16xf32> to vector<16x16xf32>
    %c0_2 = arith.constant 0 : index
    %c0_3 = arith.constant 0 : index
    %c0_4 = arith.constant 0 : index
    %2 = vector.load %arg2[%c0_2, %c0_3, %c0_4] : memref<1x16x128xf32, #tpu.memory_space<vmem>>, vector<1x16x128xf32>
    %3 = vector.shape_cast %2 : vector<1x16x128xf32> to vector<16x128xf32>
    %c0_5 = arith.constant 0 : index
    %c0_6 = arith.constant 0 : index
    %4 = vector.load %arg3[%c0_5, %c0_6] : memref<128x128xf32, #tpu.memory_space<vmem>>, vector<128x128xf32>
    %c0_7 = arith.constant 0 : index
    %c0_8 = arith.constant 0 : index
    %5 = vector.load %arg4[%c0_7, %c0_8] : memref<1x128xf32, #tpu.memory_space<vmem>>, vector<1x128xf32>
    %cst = arith.constant dense<0.000000e+00> : vector<16xf32>
    %6 = vector.multi_reduction <add>, %1, %cst [1] : vector<16x16xf32> to vector<16xf32>
    %7 = vector.shape_cast %6 : vector<16xf32> to vector<16x1xf32>
    %cst_9 = arith.constant 9.99999996E-13 : f32
    %8 = vector.broadcast %cst_9 : f32 to vector<16x1xf32>
    %9 = arith.maximumf %7, %8 : vector<16x1xf32>
    %10 = tpu.reciprocal %9 {approx = true} : vector<16x1xf32> -> vector<16x1xf32>
    %11 = vector.broadcast %10 : vector<16x1xf32> to vector<16x128xf32>
    %12 = arith.mulf %3, %11 : vector<16x128xf32>
    %cst_10 = arith.constant dense<0.000000e+00> : vector<16x128xf32>
    %13 = tpu.matmul %1, %12, %cst_10 {dimension_numbers = #tpu.dot_dimension_numbers<[1], [0], [0], [1], [0, 0, 1, 1], [], []>} : vector<16x16xf32>, vector<16x128xf32>, vector<16x128xf32> -> vector<16x128xf32>
    %cst_11 = arith.constant dense<0.000000e+00> : vector<16x128xf32>
    %14 = tpu.matmul %13, %4, %cst_11 {dimension_numbers = #tpu.dot_dimension_numbers<[1], [0], [0], [1], [0, 0, 1, 1], [], []>} : vector<16x128xf32>, vector<128x128xf32>, vector<16x128xf32> -> vector<16x128xf32>
    %15 = vector.broadcast %5 : vector<1x128xf32> to vector<16x128xf32>
    %16 = arith.addf %14, %15 : vector<16x128xf32>
    %cst_12 = arith.constant 0.000000e+00 : f32
    %17 = vector.broadcast %cst_12 : f32 to vector<16x128xf32>
    %18 = arith.cmpf ogt, %16, %17 : vector<16x128xf32>
    %cst_13 = arith.constant 0.000000e+00 : f32
    %19 = vector.broadcast %cst_13 : f32 to vector<16x128xf32>
    %20 = arith.minimumf %16, %19 : vector<16x128xf32>
    %21 = math.exp %20 : vector<16x128xf32>
    %cst_14 = arith.constant 1.000000e+00 : f32
    %22 = vector.broadcast %cst_14 : f32 to vector<16x128xf32>
    %23 = arith.subf %21, %22 : vector<16x128xf32>
    %24 = arith.select %18, %16, %23 : vector<16x128xi1>, vector<16x128xf32>
    %c0_15 = arith.constant 0 : index
    %c0_16 = arith.constant 0 : index
    %25 = vector.load %arg5[%c0_15, %c0_16] : memref<1x128xf32, #tpu.memory_space<vmem>>, vector<1x128xf32>
    %c0_17 = arith.constant 0 : index
    %c0_18 = arith.constant 0 : index
    %26 = vector.load %arg6[%c0_17, %c0_18] : memref<1x128xf32, #tpu.memory_space<vmem>>, vector<1x128xf32>
    %cst_19 = arith.constant dense<0.000000e+00> : vector<16xf32>
    %27 = vector.multi_reduction <add>, %24, %cst_19 [1] : vector<16x128xf32> to vector<16xf32>
    %28 = vector.shape_cast %27 : vector<16xf32> to vector<16x1xf32>
    %cst_20 = arith.constant 3.200000e+01 : f32
    %29 = vector.broadcast %cst_20 : f32 to vector<16x1xf32>
    %30 = arith.divf %28, %29 : vector<16x1xf32>
    %31 = arith.mulf %24, %24 : vector<16x128xf32>
    %cst_21 = arith.constant dense<0.000000e+00> : vector<16xf32>
    %32 = vector.multi_reduction <add>, %31, %cst_21 [1] : vector<16x128xf32> to vector<16xf32>
    %33 = vector.shape_cast %32 : vector<16xf32> to vector<16x1xf32>
    %cst_22 = arith.constant 3.200000e+01 : f32
    %34 = vector.broadcast %cst_22 : f32 to vector<16x1xf32>
    %35 = arith.divf %33, %34 : vector<16x1xf32>
    %36 = arith.mulf %30, %30 : vector<16x1xf32>
    %37 = arith.subf %35, %36 : vector<16x1xf32>
    %38 = vector.broadcast %30 : vector<16x1xf32> to vector<16x128xf32>
    %39 = arith.subf %24, %38 : vector<16x128xf32>
    %cst_23 = arith.constant 9.99999974E-6 : f32
    %40 = vector.broadcast %cst_23 : f32 to vector<16x1xf32>
    %41 = arith.addf %37, %40 : vector<16x1xf32>
    %42 = math.rsqrt %41 : vector<16x1xf32>
    %43 = vector.broadcast %42 : vector<16x1xf32> to vector<16x128xf32>
    %44 = arith.mulf %39, %43 : vector<16x128xf32>
    %45 = vector.broadcast %25 : vector<1x128xf32> to vector<16x128xf32>
    %46 = arith.mulf %44, %45 : vector<16x128xf32>
    %47 = vector.broadcast %26 : vector<1x128xf32> to vector<16x128xf32>
    %48 = arith.addf %46, %47 : vector<16x128xf32>
    %c0_24 = arith.constant 0 : index
    %c0_25 = arith.constant 0 : index
    %c0_26 = arith.constant 0 : index
    %49 = vector.load %arg7[%c0_24, %c0_25, %c0_26] : memref<1x16x128xf32, #tpu.memory_space<vmem>>, vector<1x16x128xf32>
    %50 = vector.shape_cast %49 : vector<1x16x128xf32> to vector<16x128xf32>
    %51 = vector.shape_cast %48 : vector<16x128xf32> to vector<1x16x128xf32>
    tpu.vector_store %arg7[%c0_24, %c0_25, %c0_26], %51 {strides = array<i32>} : memref<1x16x128xf32, #tpu.memory_space<vmem>>, vector<1x16x128xf32>,
    %cst_27 = arith.constant 1.000000e+00 : f32
    %52 = vector.broadcast %cst_27 : f32 to vector<1x16xf32>
    %cst_28 = arith.constant dense<0.000000e+00> : vector<1x16xf32>
    %53 = tpu.matmul %52, %1, %cst_28 {dimension_numbers = #tpu.dot_dimension_numbers<[1], [1], [0], [0], [0, 0, 1, 0], [], []>} : vector<1x16xf32>, vector<16x16xf32>, vector<1x16xf32> -> vector<1x16xf32>
    %cst_29 = arith.constant 9.99999996E-13 : f32
    %54 = vector.broadcast %cst_29 : f32 to vector<1x16xf32>
    %55 = arith.maximumf %53, %54 : vector<1x16xf32>
    %56 = vector.broadcast %55 : vector<1x16xf32> to vector<16x16xf32>
    %57 = arith.divf %1, %56 : vector<16x16xf32>
    %c0_30 = arith.constant 0 : index
    %c0_31 = arith.constant 0 : index
    %c0_32 = arith.constant 0 : index
    %58 = vector.load %arg8[%c0_30, %c0_31, %c0_32] : memref<1x16x16xf32, #tpu.memory_space<vmem>>, vector<1x16x16xf32>
    %59 = vector.shape_cast %58 : vector<1x16x16xf32> to vector<16x16xf32>
    %60 = vector.shape_cast %57 : vector<16x16xf32> to vector<1x16x16xf32>
    tpu.vector_store %arg8[%c0_30, %c0_31, %c0_32], %60 {strides = array<i32>} : memref<1x16x16xf32, #tpu.memory_space<vmem>>, vector<1x16x16xf32>,
    return
  }
  func.func @transform_0(%arg0: i32) -> (i32, i32, i32) {
    %c0_i32 = arith.constant 0 : i32
    %c0_i32_0 = arith.constant 0 : i32
    %c0_i32_1 = arith.constant 0 : i32
    return %arg0, %c0_i32, %c0_i32_0 : i32, i32, i32
  }
  func.func @transform_1(%arg0: i32) -> (i32, i32, i32) {
    %c0_i32 = arith.constant 0 : i32
    %c0_i32_0 = arith.constant 0 : i32
    %c0_i32_1 = arith.constant 0 : i32
    return %arg0, %c0_i32, %c0_i32_0 : i32, i32, i32
  }
  func.func @transform_2(%arg0: i32) -> (i32, i32) {
    %c0_i32 = arith.constant 0 : i32
    %c0_i32_0 = arith.constant 0 : i32
    %c0_i32_1 = arith.constant 0 : i32
    return %c0_i32, %c0_i32_0 : i32, i32
  }
  func.func @transform_3(%arg0: i32) -> (i32, i32) {
    %c0_i32 = arith.constant 0 : i32
    %c0_i32_0 = arith.constant 0 : i32
    %c0_i32_1 = arith.constant 0 : i32
    return %c0_i32, %c0_i32_0 : i32, i32
  }
  func.func @transform_4(%arg0: i32) -> (i32, i32) {
    %c0_i32 = arith.constant 0 : i32
    %c0_i32_0 = arith.constant 0 : i32
    %c0_i32_1 = arith.constant 0 : i32
    return %c0_i32, %c0_i32_0 : i32, i32
  }
  func.func @transform_5(%arg0: i32) -> (i32, i32) {
    %c0_i32 = arith.constant 0 : i32
    %c0_i32_0 = arith.constant 0 : i32
    %c0_i32_1 = arith.constant 0 : i32
    return %c0_i32, %c0_i32_0 : i32, i32
  }
  func.func @transform_6(%arg0: i32) -> (i32, i32, i32) {
    %c0_i32 = arith.constant 0 : i32
    %c0_i32_0 = arith.constant 0 : i32
    %c0_i32_1 = arith.constant 0 : i32
    return %arg0, %c0_i32, %c0_i32_0 : i32, i32, i32
  }
  func.func @transform_7(%arg0: i32) -> (i32, i32, i32) {
    %c0_i32 = arith.constant 0 : i32
    %c0_i32_0 = arith.constant 0 : i32
    %c0_i32_1 = arith.constant 0 : i32
    return %arg0, %c0_i32, %c0_i32_0 : i32, i32, i32
  }
}

module attributes {stable_mosaic.version = 11 : i64} {
  func.func @_enc_level_kernel(%arg0: i32, %arg1: memref<1x16x16xf32, #tpu.memory_space<vmem>>, %arg2: memref<1x16x128xf32, #tpu.memory_space<vmem>>, %arg3: memref<128x128xf32, #tpu.memory_space<vmem>>, %arg4: memref<1x128xf32, #tpu.memory_space<vmem>>, %arg5: memref<1x128xf32, #tpu.memory_space<vmem>>, %arg6: memref<1x128xf32, #tpu.memory_space<vmem>>, %arg7: memref<128x1xf32, #tpu.memory_space<vmem>>, %arg8: memref<1x1xf32, #tpu.memory_space<vmem>>, %arg9: memref<1x16x128xf32, #tpu.memory_space<vmem>>, %arg10: memref<1x16x16xf32, #tpu.memory_space<vmem>>, %arg11: memref<1x16x16xf32, #tpu.memory_space<vmem>>, %arg12: memref<1x16x1xf32, #tpu.memory_space<vmem>>) attributes {dimension_semantics = [#tpu.dimension_semantics<parallel>], iteration_bounds = array<i64: 2>, scalar_prefetch = 0 : i64, scratch_operands = 0 : i64, tpu.core_type = #tpu.core_type<tc>, window_params = [{transform_indices = @transform_0, window_bounds = array<i64: 1, 16, 16>}, {transform_indices = @transform_1, window_bounds = array<i64: 1, 16, 128>}, {pipeline_mode = #tpu.pipeline_mode<synchronous>, transform_indices = @transform_2, window_bounds = array<i64: 128, 128>}, {pipeline_mode = #tpu.pipeline_mode<synchronous>, transform_indices = @transform_3, window_bounds = array<i64: 1, 128>}, {pipeline_mode = #tpu.pipeline_mode<synchronous>, transform_indices = @transform_4, window_bounds = array<i64: 1, 128>}, {pipeline_mode = #tpu.pipeline_mode<synchronous>, transform_indices = @transform_5, window_bounds = array<i64: 1, 128>}, {pipeline_mode = #tpu.pipeline_mode<synchronous>, transform_indices = @transform_6, window_bounds = array<i64: 128, 1>}, {pipeline_mode = #tpu.pipeline_mode<synchronous>, transform_indices = @transform_7, window_bounds = array<i64: 1, 1>}, {transform_indices = @transform_8, window_bounds = array<i64: 1, 16, 128>}, {transform_indices = @transform_9, window_bounds = array<i64: 1, 16, 16>}, {transform_indices = @transform_10, window_bounds = array<i64: 1, 16, 16>}, {transform_indices = @transform_11, window_bounds = array<i64: 1, 16, 1>}]} {
    %c0 = arith.constant 0 : index
    %c0_0 = arith.constant 0 : index
    %c0_1 = arith.constant 0 : index
    %0 = vector.load %arg1[%c0, %c0_0, %c0_1] : memref<1x16x16xf32, #tpu.memory_space<vmem>>, vector<1x16x16xf32>
    %1 = vector.shape_cast %0 : vector<1x16x16xf32> to vector<16x16xf32>
    %c0_2 = arith.constant 0 : index
    %c0_3 = arith.constant 0 : index
    %c0_4 = arith.constant 0 : index
    %2 = vector.load %arg2[%c0_2, %c0_3, %c0_4] : memref<1x16x128xf32, #tpu.memory_space<vmem>>, vector<1x16x128xf32>
    %3 = vector.shape_cast %2 : vector<1x16x128xf32> to vector<16x128xf32>
    %c0_5 = arith.constant 0 : index
    %c0_6 = arith.constant 0 : index
    %4 = vector.load %arg3[%c0_5, %c0_6] : memref<128x128xf32, #tpu.memory_space<vmem>>, vector<128x128xf32>
    %c0_7 = arith.constant 0 : index
    %c0_8 = arith.constant 0 : index
    %5 = vector.load %arg4[%c0_7, %c0_8] : memref<1x128xf32, #tpu.memory_space<vmem>>, vector<1x128xf32>
    %cst = arith.constant dense<0.000000e+00> : vector<16xf32>
    %6 = vector.multi_reduction <add>, %1, %cst [1] : vector<16x16xf32> to vector<16xf32>
    %7 = vector.shape_cast %6 : vector<16xf32> to vector<16x1xf32>
    %cst_9 = arith.constant 9.99999996E-13 : f32
    %8 = vector.broadcast %cst_9 : f32 to vector<16x1xf32>
    %9 = arith.maximumf %7, %8 : vector<16x1xf32>
    %10 = tpu.reciprocal %9 {approx = true} : vector<16x1xf32> -> vector<16x1xf32>
    %11 = vector.broadcast %10 : vector<16x1xf32> to vector<16x128xf32>
    %12 = arith.mulf %3, %11 : vector<16x128xf32>
    %cst_10 = arith.constant dense<0.000000e+00> : vector<16x128xf32>
    %13 = tpu.matmul %1, %12, %cst_10 {dimension_numbers = #tpu.dot_dimension_numbers<[1], [0], [0], [1], [0, 0, 1, 1], [], []>} : vector<16x16xf32>, vector<16x128xf32>, vector<16x128xf32> -> vector<16x128xf32>
    %cst_11 = arith.constant dense<0.000000e+00> : vector<16x128xf32>
    %14 = tpu.matmul %13, %4, %cst_11 {dimension_numbers = #tpu.dot_dimension_numbers<[1], [0], [0], [1], [0, 0, 1, 1], [], []>} : vector<16x128xf32>, vector<128x128xf32>, vector<16x128xf32> -> vector<16x128xf32>
    %15 = vector.broadcast %5 : vector<1x128xf32> to vector<16x128xf32>
    %16 = arith.addf %14, %15 : vector<16x128xf32>
    %cst_12 = arith.constant 0.000000e+00 : f32
    %17 = vector.broadcast %cst_12 : f32 to vector<16x128xf32>
    %18 = arith.cmpf ogt, %16, %17 : vector<16x128xf32>
    %cst_13 = arith.constant 0.000000e+00 : f32
    %19 = vector.broadcast %cst_13 : f32 to vector<16x128xf32>
    %20 = arith.minimumf %16, %19 : vector<16x128xf32>
    %21 = math.exp %20 : vector<16x128xf32>
    %cst_14 = arith.constant 1.000000e+00 : f32
    %22 = vector.broadcast %cst_14 : f32 to vector<16x128xf32>
    %23 = arith.subf %21, %22 : vector<16x128xf32>
    %24 = arith.select %18, %16, %23 : vector<16x128xi1>, vector<16x128xf32>
    %25 = arith.addf %3, %24 : vector<16x128xf32>
    %c0_15 = arith.constant 0 : index
    %c0_16 = arith.constant 0 : index
    %26 = vector.load %arg5[%c0_15, %c0_16] : memref<1x128xf32, #tpu.memory_space<vmem>>, vector<1x128xf32>
    %c0_17 = arith.constant 0 : index
    %c0_18 = arith.constant 0 : index
    %27 = vector.load %arg6[%c0_17, %c0_18] : memref<1x128xf32, #tpu.memory_space<vmem>>, vector<1x128xf32>
    %cst_19 = arith.constant dense<0.000000e+00> : vector<16xf32>
    %28 = vector.multi_reduction <add>, %25, %cst_19 [1] : vector<16x128xf32> to vector<16xf32>
    %29 = vector.shape_cast %28 : vector<16xf32> to vector<16x1xf32>
    %cst_20 = arith.constant 3.200000e+01 : f32
    %30 = vector.broadcast %cst_20 : f32 to vector<16x1xf32>
    %31 = arith.divf %29, %30 : vector<16x1xf32>
    %32 = arith.mulf %25, %25 : vector<16x128xf32>
    %cst_21 = arith.constant dense<0.000000e+00> : vector<16xf32>
    %33 = vector.multi_reduction <add>, %32, %cst_21 [1] : vector<16x128xf32> to vector<16xf32>
    %34 = vector.shape_cast %33 : vector<16xf32> to vector<16x1xf32>
    %cst_22 = arith.constant 3.200000e+01 : f32
    %35 = vector.broadcast %cst_22 : f32 to vector<16x1xf32>
    %36 = arith.divf %34, %35 : vector<16x1xf32>
    %37 = arith.mulf %31, %31 : vector<16x1xf32>
    %38 = arith.subf %36, %37 : vector<16x1xf32>
    %39 = vector.broadcast %31 : vector<16x1xf32> to vector<16x128xf32>
    %40 = arith.subf %25, %39 : vector<16x128xf32>
    %cst_23 = arith.constant 9.99999974E-6 : f32
    %41 = vector.broadcast %cst_23 : f32 to vector<16x1xf32>
    %42 = arith.addf %38, %41 : vector<16x1xf32>
    %43 = math.rsqrt %42 : vector<16x1xf32>
    %44 = vector.broadcast %43 : vector<16x1xf32> to vector<16x128xf32>
    %45 = arith.mulf %40, %44 : vector<16x128xf32>
    %46 = vector.broadcast %26 : vector<1x128xf32> to vector<16x128xf32>
    %47 = arith.mulf %45, %46 : vector<16x128xf32>
    %48 = vector.broadcast %27 : vector<1x128xf32> to vector<16x128xf32>
    %49 = arith.addf %47, %48 : vector<16x128xf32>
    %c0_24 = arith.constant 0 : index
    %c0_25 = arith.constant 0 : index
    %c0_26 = arith.constant 0 : index
    %50 = vector.load %arg9[%c0_24, %c0_25, %c0_26] : memref<1x16x128xf32, #tpu.memory_space<vmem>>, vector<1x16x128xf32>
    %51 = vector.shape_cast %50 : vector<1x16x128xf32> to vector<16x128xf32>
    %52 = vector.shape_cast %49 : vector<16x128xf32> to vector<1x16x128xf32>
    tpu.vector_store %arg9[%c0_24, %c0_25, %c0_26], %52 {strides = array<i32>} : memref<1x16x128xf32, #tpu.memory_space<vmem>>, vector<1x16x128xf32>,
    %cst_27 = arith.constant 1.000000e+00 : f32
    %53 = vector.broadcast %cst_27 : f32 to vector<1x16xf32>
    %cst_28 = arith.constant dense<0.000000e+00> : vector<1x16xf32>
    %54 = tpu.matmul %53, %1, %cst_28 {dimension_numbers = #tpu.dot_dimension_numbers<[1], [1], [0], [0], [0, 0, 1, 0], [], []>} : vector<1x16xf32>, vector<16x16xf32>, vector<1x16xf32> -> vector<1x16xf32>
    %cst_29 = arith.constant 9.99999996E-13 : f32
    %55 = vector.broadcast %cst_29 : f32 to vector<1x16xf32>
    %56 = arith.maximumf %54, %55 : vector<1x16xf32>
    %57 = vector.broadcast %56 : vector<1x16xf32> to vector<16x16xf32>
    %58 = arith.divf %1, %57 : vector<16x16xf32>
    %c0_30 = arith.constant 0 : index
    %c0_31 = arith.constant 0 : index
    %c0_32 = arith.constant 0 : index
    %59 = vector.load %arg10[%c0_30, %c0_31, %c0_32] : memref<1x16x16xf32, #tpu.memory_space<vmem>>, vector<1x16x16xf32>
    %60 = vector.shape_cast %59 : vector<1x16x16xf32> to vector<16x16xf32>
    %61 = vector.shape_cast %58 : vector<16x16xf32> to vector<1x16x16xf32>
    tpu.vector_store %arg10[%c0_30, %c0_31, %c0_32], %61 {strides = array<i32>} : memref<1x16x16xf32, #tpu.memory_space<vmem>>, vector<1x16x16xf32>,
    %cst_33 = arith.constant 0.000000e+00 : f32
    %62 = vector.broadcast %cst_33 : f32 to vector<16x16xf32>
    %63 = arith.cmpf one, %1, %62 : vector<16x16xf32>
    %64 = arith.extui %63 : vector<16x16xi1> to vector<16x16xi32>
    %65 = arith.sitofp %64 : vector<16x16xi32> to vector<16x16xf32>
    %cst_34 = arith.constant dense<0.000000e+00> : vector<16x16xf32>
    %66 = tpu.matmul %65, %65, %cst_34 {dimension_numbers = #tpu.dot_dimension_numbers<[1], [0], [0], [1], [0, 0, 1, 1], [], []>} : vector<16x16xf32>, vector<16x16xf32>, vector<16x16xf32> -> vector<16x16xf32>
    %cst_35 = arith.constant 0.000000e+00 : f32
    %67 = vector.broadcast %cst_35 : f32 to vector<16x16xf32>
    %68 = arith.cmpf ogt, %66, %67 : vector<16x16xf32>
    %69 = arith.extui %68 : vector<16x16xi1> to vector<16x16xi32>
    %70 = arith.sitofp %69 : vector<16x16xi32> to vector<16x16xf32>
    %c0_36 = arith.constant 0 : index
    %c0_37 = arith.constant 0 : index
    %c0_38 = arith.constant 0 : index
    %71 = vector.load %arg11[%c0_36, %c0_37, %c0_38] : memref<1x16x16xf32, #tpu.memory_space<vmem>>, vector<1x16x16xf32>
    %72 = vector.shape_cast %71 : vector<1x16x16xf32> to vector<16x16xf32>
    %73 = vector.shape_cast %70 : vector<16x16xf32> to vector<1x16x16xf32>
    tpu.vector_store %arg11[%c0_36, %c0_37, %c0_38], %73 {strides = array<i32>} : memref<1x16x16xf32, #tpu.memory_space<vmem>>, vector<1x16x16xf32>,
    %c0_39 = arith.constant 0 : index
    %c0_40 = arith.constant 0 : index
    %74 = vector.load %arg7[%c0_39, %c0_40] : memref<128x1xf32, #tpu.memory_space<vmem>>, vector<128x1xf32>
    %cst_41 = arith.constant dense<0.000000e+00> : vector<16x1xf32>
    %75 = tpu.matmul %49, %74, %cst_41 {dimension_numbers = #tpu.dot_dimension_numbers<[1], [0], [0], [1], [0, 0, 1, 1], [], []>} : vector<16x128xf32>, vector<128x1xf32>, vector<16x1xf32> -> vector<16x1xf32>
    %c0_42 = arith.constant 0 : index
    %c0_43 = arith.constant 0 : index
    %76 = vector.load %arg8[%c0_42, %c0_43] : memref<1x1xf32, #tpu.memory_space<vmem>>, vector<1x1xf32>
    %77 = vector.broadcast %76 : vector<1x1xf32> to vector<16x1xf32>
    %78 = arith.addf %75, %77 : vector<16x1xf32>
    %cst_44 = arith.constant 0.000000e+00 : f32
    %79 = vector.broadcast %cst_44 : f32 to vector<16x1xf32>
    %80 = arith.subf %79, %78 : vector<16x1xf32>
    %81 = math.exp %80 : vector<16x1xf32>
    %cst_45 = arith.constant 1.000000e+00 : f32
    %82 = vector.broadcast %cst_45 : f32 to vector<16x1xf32>
    %83 = arith.addf %82, %81 : vector<16x1xf32>
    %cst_46 = arith.constant 1.000000e+00 : f32
    %84 = vector.broadcast %cst_46 : f32 to vector<16x1xf32>
    %85 = arith.divf %84, %83 : vector<16x1xf32>
    %c0_47 = arith.constant 0 : index
    %c0_48 = arith.constant 0 : index
    %c0_49 = arith.constant 0 : index
    %86 = vector.load %arg12[%c0_47, %c0_48, %c0_49] : memref<1x16x1xf32, #tpu.memory_space<vmem>>, vector<1x16x1xf32>
    %87 = vector.shape_cast %86 : vector<1x16x1xf32> to vector<16x1xf32>
    %88 = vector.shape_cast %85 : vector<16x1xf32> to vector<1x16x1xf32>
    tpu.vector_store %arg12[%c0_47, %c0_48, %c0_49], %88 {strides = array<i32>} : memref<1x16x1xf32, #tpu.memory_space<vmem>>, vector<1x16x1xf32>,
    return
  }
  func.func @transform_0(%arg0: i32) -> (i32, i32, i32) {
    %c0_i32 = arith.constant 0 : i32
    %c0_i32_0 = arith.constant 0 : i32
    %c0_i32_1 = arith.constant 0 : i32
    return %arg0, %c0_i32, %c0_i32_0 : i32, i32, i32
  }
  func.func @transform_1(%arg0: i32) -> (i32, i32, i32) {
    %c0_i32 = arith.constant 0 : i32
    %c0_i32_0 = arith.constant 0 : i32
    %c0_i32_1 = arith.constant 0 : i32
    return %arg0, %c0_i32, %c0_i32_0 : i32, i32, i32
  }
  func.func @transform_2(%arg0: i32) -> (i32, i32) {
    %c0_i32 = arith.constant 0 : i32
    %c0_i32_0 = arith.constant 0 : i32
    %c0_i32_1 = arith.constant 0 : i32
    return %c0_i32, %c0_i32_0 : i32, i32
  }
  func.func @transform_3(%arg0: i32) -> (i32, i32) {
    %c0_i32 = arith.constant 0 : i32
    %c0_i32_0 = arith.constant 0 : i32
    %c0_i32_1 = arith.constant 0 : i32
    return %c0_i32, %c0_i32_0 : i32, i32
  }
  func.func @transform_4(%arg0: i32) -> (i32, i32) {
    %c0_i32 = arith.constant 0 : i32
    %c0_i32_0 = arith.constant 0 : i32
    %c0_i32_1 = arith.constant 0 : i32
    return %c0_i32, %c0_i32_0 : i32, i32
  }
  func.func @transform_5(%arg0: i32) -> (i32, i32) {
    %c0_i32 = arith.constant 0 : i32
    %c0_i32_0 = arith.constant 0 : i32
    %c0_i32_1 = arith.constant 0 : i32
    return %c0_i32, %c0_i32_0 : i32, i32
  }
  func.func @transform_6(%arg0: i32) -> (i32, i32) {
    %c0_i32 = arith.constant 0 : i32
    %c0_i32_0 = arith.constant 0 : i32
    %c0_i32_1 = arith.constant 0 : i32
    return %c0_i32, %c0_i32_0 : i32, i32
  }
  func.func @transform_7(%arg0: i32) -> (i32, i32) {
    %c0_i32 = arith.constant 0 : i32
    %c0_i32_0 = arith.constant 0 : i32
    %c0_i32_1 = arith.constant 0 : i32
    return %c0_i32, %c0_i32_0 : i32, i32
  }
  func.func @transform_8(%arg0: i32) -> (i32, i32, i32) {
    %c0_i32 = arith.constant 0 : i32
    %c0_i32_0 = arith.constant 0 : i32
    %c0_i32_1 = arith.constant 0 : i32
    return %arg0, %c0_i32, %c0_i32_0 : i32, i32, i32
  }
  func.func @transform_9(%arg0: i32) -> (i32, i32, i32) {
    %c0_i32 = arith.constant 0 : i32
    %c0_i32_0 = arith.constant 0 : i32
    %c0_i32_1 = arith.constant 0 : i32
    return %arg0, %c0_i32, %c0_i32_0 : i32, i32, i32
  }
  func.func @transform_10(%arg0: i32) -> (i32, i32, i32) {
    %c0_i32 = arith.constant 0 : i32
    %c0_i32_0 = arith.constant 0 : i32
    %c0_i32_1 = arith.constant 0 : i32
    return %arg0, %c0_i32, %c0_i32_0 : i32, i32, i32
  }
  func.func @transform_11(%arg0: i32) -> (i32, i32, i32) {
    %c0_i32 = arith.constant 0 : i32
    %c0_i32_0 = arith.constant 0 : i32
    %c0_i32_1 = arith.constant 0 : i32
    return %arg0, %c0_i32, %c0_i32_0 : i32, i32, i32
  }
}

module attributes {stable_mosaic.version = 11 : i64} {
  func.func @_enc_level_kernel(%arg0: i32, %arg1: memref<1x12x12xf32, #tpu.memory_space<vmem>>, %arg2: memref<1x12x128xf32, #tpu.memory_space<vmem>>, %arg3: memref<128x128xf32, #tpu.memory_space<vmem>>, %arg4: memref<1x128xf32, #tpu.memory_space<vmem>>, %arg5: memref<1x128xf32, #tpu.memory_space<vmem>>, %arg6: memref<1x128xf32, #tpu.memory_space<vmem>>, %arg7: memref<128x1xf32, #tpu.memory_space<vmem>>, %arg8: memref<1x1xf32, #tpu.memory_space<vmem>>, %arg9: memref<1x12x128xf32, #tpu.memory_space<vmem>>, %arg10: memref<1x12x12xf32, #tpu.memory_space<vmem>>, %arg11: memref<1x12x12xf32, #tpu.memory_space<vmem>>, %arg12: memref<1x12x1xf32, #tpu.memory_space<vmem>>) attributes {dimension_semantics = [#tpu.dimension_semantics<parallel>], iteration_bounds = array<i64: 2>, scalar_prefetch = 0 : i64, scratch_operands = 0 : i64, tpu.core_type = #tpu.core_type<tc>, window_params = [{transform_indices = @transform_0, window_bounds = array<i64: 1, 12, 12>}, {transform_indices = @transform_1, window_bounds = array<i64: 1, 12, 128>}, {pipeline_mode = #tpu.pipeline_mode<synchronous>, transform_indices = @transform_2, window_bounds = array<i64: 128, 128>}, {pipeline_mode = #tpu.pipeline_mode<synchronous>, transform_indices = @transform_3, window_bounds = array<i64: 1, 128>}, {pipeline_mode = #tpu.pipeline_mode<synchronous>, transform_indices = @transform_4, window_bounds = array<i64: 1, 128>}, {pipeline_mode = #tpu.pipeline_mode<synchronous>, transform_indices = @transform_5, window_bounds = array<i64: 1, 128>}, {pipeline_mode = #tpu.pipeline_mode<synchronous>, transform_indices = @transform_6, window_bounds = array<i64: 128, 1>}, {pipeline_mode = #tpu.pipeline_mode<synchronous>, transform_indices = @transform_7, window_bounds = array<i64: 1, 1>}, {transform_indices = @transform_8, window_bounds = array<i64: 1, 12, 128>}, {transform_indices = @transform_9, window_bounds = array<i64: 1, 12, 12>}, {transform_indices = @transform_10, window_bounds = array<i64: 1, 12, 12>}, {transform_indices = @transform_11, window_bounds = array<i64: 1, 12, 1>}]} {
    %c0 = arith.constant 0 : index
    %c0_0 = arith.constant 0 : index
    %c0_1 = arith.constant 0 : index
    %0 = vector.load %arg1[%c0, %c0_0, %c0_1] : memref<1x12x12xf32, #tpu.memory_space<vmem>>, vector<1x12x12xf32>
    %1 = vector.shape_cast %0 : vector<1x12x12xf32> to vector<12x12xf32>
    %c0_2 = arith.constant 0 : index
    %c0_3 = arith.constant 0 : index
    %c0_4 = arith.constant 0 : index
    %2 = vector.load %arg2[%c0_2, %c0_3, %c0_4] : memref<1x12x128xf32, #tpu.memory_space<vmem>>, vector<1x12x128xf32>
    %3 = vector.shape_cast %2 : vector<1x12x128xf32> to vector<12x128xf32>
    %c0_5 = arith.constant 0 : index
    %c0_6 = arith.constant 0 : index
    %4 = vector.load %arg3[%c0_5, %c0_6] : memref<128x128xf32, #tpu.memory_space<vmem>>, vector<128x128xf32>
    %c0_7 = arith.constant 0 : index
    %c0_8 = arith.constant 0 : index
    %5 = vector.load %arg4[%c0_7, %c0_8] : memref<1x128xf32, #tpu.memory_space<vmem>>, vector<1x128xf32>
    %cst = arith.constant dense<0.000000e+00> : vector<12xf32>
    %6 = vector.multi_reduction <add>, %1, %cst [1] : vector<12x12xf32> to vector<12xf32>
    %7 = vector.shape_cast %6 : vector<12xf32> to vector<12x1xf32>
    %cst_9 = arith.constant 9.99999996E-13 : f32
    %8 = vector.broadcast %cst_9 : f32 to vector<12x1xf32>
    %9 = arith.maximumf %7, %8 : vector<12x1xf32>
    %10 = tpu.reciprocal %9 {approx = true} : vector<12x1xf32> -> vector<12x1xf32>
    %11 = vector.broadcast %10 : vector<12x1xf32> to vector<12x128xf32>
    %12 = arith.mulf %3, %11 : vector<12x128xf32>
    %cst_10 = arith.constant dense<0.000000e+00> : vector<12x128xf32>
    %13 = tpu.matmul %1, %12, %cst_10 {dimension_numbers = #tpu.dot_dimension_numbers<[1], [0], [0], [1], [0, 0, 1, 1], [], []>} : vector<12x12xf32>, vector<12x128xf32>, vector<12x128xf32> -> vector<12x128xf32>
    %cst_11 = arith.constant dense<0.000000e+00> : vector<12x128xf32>
    %14 = tpu.matmul %13, %4, %cst_11 {dimension_numbers = #tpu.dot_dimension_numbers<[1], [0], [0], [1], [0, 0, 1, 1], [], []>} : vector<12x128xf32>, vector<128x128xf32>, vector<12x128xf32> -> vector<12x128xf32>
    %15 = vector.broadcast %5 : vector<1x128xf32> to vector<12x128xf32>
    %16 = arith.addf %14, %15 : vector<12x128xf32>
    %cst_12 = arith.constant 0.000000e+00 : f32
    %17 = vector.broadcast %cst_12 : f32 to vector<12x128xf32>
    %18 = arith.cmpf ogt, %16, %17 : vector<12x128xf32>
    %cst_13 = arith.constant 0.000000e+00 : f32
    %19 = vector.broadcast %cst_13 : f32 to vector<12x128xf32>
    %20 = arith.minimumf %16, %19 : vector<12x128xf32>
    %21 = math.exp %20 : vector<12x128xf32>
    %cst_14 = arith.constant 1.000000e+00 : f32
    %22 = vector.broadcast %cst_14 : f32 to vector<12x128xf32>
    %23 = arith.subf %21, %22 : vector<12x128xf32>
    %24 = arith.select %18, %16, %23 : vector<12x128xi1>, vector<12x128xf32>
    %25 = arith.addf %3, %24 : vector<12x128xf32>
    %c0_15 = arith.constant 0 : index
    %c0_16 = arith.constant 0 : index
    %26 = vector.load %arg5[%c0_15, %c0_16] : memref<1x128xf32, #tpu.memory_space<vmem>>, vector<1x128xf32>
    %c0_17 = arith.constant 0 : index
    %c0_18 = arith.constant 0 : index
    %27 = vector.load %arg6[%c0_17, %c0_18] : memref<1x128xf32, #tpu.memory_space<vmem>>, vector<1x128xf32>
    %cst_19 = arith.constant dense<0.000000e+00> : vector<12xf32>
    %28 = vector.multi_reduction <add>, %25, %cst_19 [1] : vector<12x128xf32> to vector<12xf32>
    %29 = vector.shape_cast %28 : vector<12xf32> to vector<12x1xf32>
    %cst_20 = arith.constant 3.200000e+01 : f32
    %30 = vector.broadcast %cst_20 : f32 to vector<12x1xf32>
    %31 = arith.divf %29, %30 : vector<12x1xf32>
    %32 = arith.mulf %25, %25 : vector<12x128xf32>
    %cst_21 = arith.constant dense<0.000000e+00> : vector<12xf32>
    %33 = vector.multi_reduction <add>, %32, %cst_21 [1] : vector<12x128xf32> to vector<12xf32>
    %34 = vector.shape_cast %33 : vector<12xf32> to vector<12x1xf32>
    %cst_22 = arith.constant 3.200000e+01 : f32
    %35 = vector.broadcast %cst_22 : f32 to vector<12x1xf32>
    %36 = arith.divf %34, %35 : vector<12x1xf32>
    %37 = arith.mulf %31, %31 : vector<12x1xf32>
    %38 = arith.subf %36, %37 : vector<12x1xf32>
    %39 = vector.broadcast %31 : vector<12x1xf32> to vector<12x128xf32>
    %40 = arith.subf %25, %39 : vector<12x128xf32>
    %cst_23 = arith.constant 9.99999974E-6 : f32
    %41 = vector.broadcast %cst_23 : f32 to vector<12x1xf32>
    %42 = arith.addf %38, %41 : vector<12x1xf32>
    %43 = math.rsqrt %42 : vector<12x1xf32>
    %44 = vector.broadcast %43 : vector<12x1xf32> to vector<12x128xf32>
    %45 = arith.mulf %40, %44 : vector<12x128xf32>
    %46 = vector.broadcast %26 : vector<1x128xf32> to vector<12x128xf32>
    %47 = arith.mulf %45, %46 : vector<12x128xf32>
    %48 = vector.broadcast %27 : vector<1x128xf32> to vector<12x128xf32>
    %49 = arith.addf %47, %48 : vector<12x128xf32>
    %c0_24 = arith.constant 0 : index
    %c0_25 = arith.constant 0 : index
    %c0_26 = arith.constant 0 : index
    %50 = vector.load %arg9[%c0_24, %c0_25, %c0_26] : memref<1x12x128xf32, #tpu.memory_space<vmem>>, vector<1x12x128xf32>
    %51 = vector.shape_cast %50 : vector<1x12x128xf32> to vector<12x128xf32>
    %52 = vector.shape_cast %49 : vector<12x128xf32> to vector<1x12x128xf32>
    tpu.vector_store %arg9[%c0_24, %c0_25, %c0_26], %52 {strides = array<i32>} : memref<1x12x128xf32, #tpu.memory_space<vmem>>, vector<1x12x128xf32>,
    %cst_27 = arith.constant 1.000000e+00 : f32
    %53 = vector.broadcast %cst_27 : f32 to vector<1x12xf32>
    %cst_28 = arith.constant dense<0.000000e+00> : vector<1x12xf32>
    %54 = tpu.matmul %53, %1, %cst_28 {dimension_numbers = #tpu.dot_dimension_numbers<[1], [1], [0], [0], [0, 0, 1, 0], [], []>} : vector<1x12xf32>, vector<12x12xf32>, vector<1x12xf32> -> vector<1x12xf32>
    %cst_29 = arith.constant 9.99999996E-13 : f32
    %55 = vector.broadcast %cst_29 : f32 to vector<1x12xf32>
    %56 = arith.maximumf %54, %55 : vector<1x12xf32>
    %57 = vector.broadcast %56 : vector<1x12xf32> to vector<12x12xf32>
    %58 = arith.divf %1, %57 : vector<12x12xf32>
    %c0_30 = arith.constant 0 : index
    %c0_31 = arith.constant 0 : index
    %c0_32 = arith.constant 0 : index
    %59 = vector.load %arg10[%c0_30, %c0_31, %c0_32] : memref<1x12x12xf32, #tpu.memory_space<vmem>>, vector<1x12x12xf32>
    %60 = vector.shape_cast %59 : vector<1x12x12xf32> to vector<12x12xf32>
    %61 = vector.shape_cast %58 : vector<12x12xf32> to vector<1x12x12xf32>
    tpu.vector_store %arg10[%c0_30, %c0_31, %c0_32], %61 {strides = array<i32>} : memref<1x12x12xf32, #tpu.memory_space<vmem>>, vector<1x12x12xf32>,
    %cst_33 = arith.constant 0.000000e+00 : f32
    %62 = vector.broadcast %cst_33 : f32 to vector<12x12xf32>
    %63 = arith.cmpf one, %1, %62 : vector<12x12xf32>
    %64 = arith.extui %63 : vector<12x12xi1> to vector<12x12xi32>
    %65 = arith.sitofp %64 : vector<12x12xi32> to vector<12x12xf32>
    %cst_34 = arith.constant dense<0.000000e+00> : vector<12x12xf32>
    %66 = tpu.matmul %65, %65, %cst_34 {dimension_numbers = #tpu.dot_dimension_numbers<[1], [0], [0], [1], [0, 0, 1, 1], [], []>} : vector<12x12xf32>, vector<12x12xf32>, vector<12x12xf32> -> vector<12x12xf32>
    %cst_35 = arith.constant 0.000000e+00 : f32
    %67 = vector.broadcast %cst_35 : f32 to vector<12x12xf32>
    %68 = arith.cmpf ogt, %66, %67 : vector<12x12xf32>
    %69 = arith.extui %68 : vector<12x12xi1> to vector<12x12xi32>
    %70 = arith.sitofp %69 : vector<12x12xi32> to vector<12x12xf32>
    %c0_36 = arith.constant 0 : index
    %c0_37 = arith.constant 0 : index
    %c0_38 = arith.constant 0 : index
    %71 = vector.load %arg11[%c0_36, %c0_37, %c0_38] : memref<1x12x12xf32, #tpu.memory_space<vmem>>, vector<1x12x12xf32>
    %72 = vector.shape_cast %71 : vector<1x12x12xf32> to vector<12x12xf32>
    %73 = vector.shape_cast %70 : vector<12x12xf32> to vector<1x12x12xf32>
    tpu.vector_store %arg11[%c0_36, %c0_37, %c0_38], %73 {strides = array<i32>} : memref<1x12x12xf32, #tpu.memory_space<vmem>>, vector<1x12x12xf32>,
    %c0_39 = arith.constant 0 : index
    %c0_40 = arith.constant 0 : index
    %74 = vector.load %arg7[%c0_39, %c0_40] : memref<128x1xf32, #tpu.memory_space<vmem>>, vector<128x1xf32>
    %cst_41 = arith.constant dense<0.000000e+00> : vector<12x1xf32>
    %75 = tpu.matmul %49, %74, %cst_41 {dimension_numbers = #tpu.dot_dimension_numbers<[1], [0], [0], [1], [0, 0, 1, 1], [], []>} : vector<12x128xf32>, vector<128x1xf32>, vector<12x1xf32> -> vector<12x1xf32>
    %c0_42 = arith.constant 0 : index
    %c0_43 = arith.constant 0 : index
    %76 = vector.load %arg8[%c0_42, %c0_43] : memref<1x1xf32, #tpu.memory_space<vmem>>, vector<1x1xf32>
    %77 = vector.broadcast %76 : vector<1x1xf32> to vector<12x1xf32>
    %78 = arith.addf %75, %77 : vector<12x1xf32>
    %cst_44 = arith.constant 0.000000e+00 : f32
    %79 = vector.broadcast %cst_44 : f32 to vector<12x1xf32>
    %80 = arith.subf %79, %78 : vector<12x1xf32>
    %81 = math.exp %80 : vector<12x1xf32>
    %cst_45 = arith.constant 1.000000e+00 : f32
    %82 = vector.broadcast %cst_45 : f32 to vector<12x1xf32>
    %83 = arith.addf %82, %81 : vector<12x1xf32>
    %cst_46 = arith.constant 1.000000e+00 : f32
    %84 = vector.broadcast %cst_46 : f32 to vector<12x1xf32>
    %85 = arith.divf %84, %83 : vector<12x1xf32>
    %c0_47 = arith.constant 0 : index
    %c0_48 = arith.constant 0 : index
    %c0_49 = arith.constant 0 : index
    %86 = vector.load %arg12[%c0_47, %c0_48, %c0_49] : memref<1x12x1xf32, #tpu.memory_space<vmem>>, vector<1x12x1xf32>
    %87 = vector.shape_cast %86 : vector<1x12x1xf32> to vector<12x1xf32>
    %88 = vector.shape_cast %85 : vector<12x1xf32> to vector<1x12x1xf32>
    tpu.vector_store %arg12[%c0_47, %c0_48, %c0_49], %88 {strides = array<i32>} : memref<1x12x1xf32, #tpu.memory_space<vmem>>, vector<1x12x1xf32>,
    return
  }
  func.func @transform_0(%arg0: i32) -> (i32, i32, i32) {
    %c0_i32 = arith.constant 0 : i32
    %c0_i32_0 = arith.constant 0 : i32
    %c0_i32_1 = arith.constant 0 : i32
    return %arg0, %c0_i32, %c0_i32_0 : i32, i32, i32
  }
  func.func @transform_1(%arg0: i32) -> (i32, i32, i32) {
    %c0_i32 = arith.constant 0 : i32
    %c0_i32_0 = arith.constant 0 : i32
    %c0_i32_1 = arith.constant 0 : i32
    return %arg0, %c0_i32, %c0_i32_0 : i32, i32, i32
  }
  func.func @transform_2(%arg0: i32) -> (i32, i32) {
    %c0_i32 = arith.constant 0 : i32
    %c0_i32_0 = arith.constant 0 : i32
    %c0_i32_1 = arith.constant 0 : i32
    return %c0_i32, %c0_i32_0 : i32, i32
  }
  func.func @transform_3(%arg0: i32) -> (i32, i32) {
    %c0_i32 = arith.constant 0 : i32
    %c0_i32_0 = arith.constant 0 : i32
    %c0_i32_1 = arith.constant 0 : i32
    return %c0_i32, %c0_i32_0 : i32, i32
  }
  func.func @transform_4(%arg0: i32) -> (i32, i32) {
    %c0_i32 = arith.constant 0 : i32
    %c0_i32_0 = arith.constant 0 : i32
    %c0_i32_1 = arith.constant 0 : i32
    return %c0_i32, %c0_i32_0 : i32, i32
  }
  func.func @transform_5(%arg0: i32) -> (i32, i32) {
    %c0_i32 = arith.constant 0 : i32
    %c0_i32_0 = arith.constant 0 : i32
    %c0_i32_1 = arith.constant 0 : i32
    return %c0_i32, %c0_i32_0 : i32, i32
  }
  func.func @transform_6(%arg0: i32) -> (i32, i32) {
    %c0_i32 = arith.constant 0 : i32
    %c0_i32_0 = arith.constant 0 : i32
    %c0_i32_1 = arith.constant 0 : i32
    return %c0_i32, %c0_i32_0 : i32, i32
  }
  func.func @transform_7(%arg0: i32) -> (i32, i32) {
    %c0_i32 = arith.constant 0 : i32
    %c0_i32_0 = arith.constant 0 : i32
    %c0_i32_1 = arith.constant 0 : i32
    return %c0_i32, %c0_i32_0 : i32, i32
  }
  func.func @transform_8(%arg0: i32) -> (i32, i32, i32) {
    %c0_i32 = arith.constant 0 : i32
    %c0_i32_0 = arith.constant 0 : i32
    %c0_i32_1 = arith.constant 0 : i32
    return %arg0, %c0_i32, %c0_i32_0 : i32, i32, i32
  }
  func.func @transform_9(%arg0: i32) -> (i32, i32, i32) {
    %c0_i32 = arith.constant 0 : i32
    %c0_i32_0 = arith.constant 0 : i32
    %c0_i32_1 = arith.constant 0 : i32
    return %arg0, %c0_i32, %c0_i32_0 : i32, i32, i32
  }
  func.func @transform_10(%arg0: i32) -> (i32, i32, i32) {
    %c0_i32 = arith.constant 0 : i32
    %c0_i32_0 = arith.constant 0 : i32
    %c0_i32_1 = arith.constant 0 : i32
    return %arg0, %c0_i32, %c0_i32_0 : i32, i32, i32
  }
  func.func @transform_11(%arg0: i32) -> (i32, i32, i32) {
    %c0_i32 = arith.constant 0 : i32
    %c0_i32_0 = arith.constant 0 : i32
    %c0_i32_1 = arith.constant 0 : i32
    return %arg0, %c0_i32, %c0_i32_0 : i32, i32, i32
  }
}

module attributes {stable_mosaic.version = 11 : i64} {
  func.func @_bot_kernel(%arg0: i32, %arg1: memref<1x7x7xf32, #tpu.memory_space<vmem>>, %arg2: memref<1x7x128xf32, #tpu.memory_space<vmem>>, %arg3: memref<128x128xf32, #tpu.memory_space<vmem>>, %arg4: memref<1x128xf32, #tpu.memory_space<vmem>>, %arg5: memref<1x128xf32, #tpu.memory_space<vmem>>, %arg6: memref<1x128xf32, #tpu.memory_space<vmem>>, %arg7: memref<1x7x128xf32, #tpu.memory_space<vmem>>) attributes {dimension_semantics = [#tpu.dimension_semantics<parallel>], iteration_bounds = array<i64: 2>, scalar_prefetch = 0 : i64, scratch_operands = 0 : i64, tpu.core_type = #tpu.core_type<tc>, window_params = [{transform_indices = @transform_0, window_bounds = array<i64: 1, 7, 7>}, {transform_indices = @transform_1, window_bounds = array<i64: 1, 7, 128>}, {pipeline_mode = #tpu.pipeline_mode<synchronous>, transform_indices = @transform_2, window_bounds = array<i64: 128, 128>}, {pipeline_mode = #tpu.pipeline_mode<synchronous>, transform_indices = @transform_3, window_bounds = array<i64: 1, 128>}, {pipeline_mode = #tpu.pipeline_mode<synchronous>, transform_indices = @transform_4, window_bounds = array<i64: 1, 128>}, {pipeline_mode = #tpu.pipeline_mode<synchronous>, transform_indices = @transform_5, window_bounds = array<i64: 1, 128>}, {transform_indices = @transform_6, window_bounds = array<i64: 1, 7, 128>}]} {
    %c0 = arith.constant 0 : index
    %c0_0 = arith.constant 0 : index
    %c0_1 = arith.constant 0 : index
    %0 = vector.load %arg1[%c0, %c0_0, %c0_1] : memref<1x7x7xf32, #tpu.memory_space<vmem>>, vector<1x7x7xf32>
    %1 = vector.shape_cast %0 : vector<1x7x7xf32> to vector<7x7xf32>
    %c0_2 = arith.constant 0 : index
    %c0_3 = arith.constant 0 : index
    %c0_4 = arith.constant 0 : index
    %2 = vector.load %arg2[%c0_2, %c0_3, %c0_4] : memref<1x7x128xf32, #tpu.memory_space<vmem>>, vector<1x7x128xf32>
    %3 = vector.shape_cast %2 : vector<1x7x128xf32> to vector<7x128xf32>
    %c0_5 = arith.constant 0 : index
    %c0_6 = arith.constant 0 : index
    %4 = vector.load %arg3[%c0_5, %c0_6] : memref<128x128xf32, #tpu.memory_space<vmem>>, vector<128x128xf32>
    %c0_7 = arith.constant 0 : index
    %c0_8 = arith.constant 0 : index
    %5 = vector.load %arg4[%c0_7, %c0_8] : memref<1x128xf32, #tpu.memory_space<vmem>>, vector<1x128xf32>
    %cst = arith.constant dense<0.000000e+00> : vector<7xf32>
    %6 = vector.multi_reduction <add>, %1, %cst [1] : vector<7x7xf32> to vector<7xf32>
    %7 = vector.shape_cast %6 : vector<7xf32> to vector<7x1xf32>
    %cst_9 = arith.constant 9.99999996E-13 : f32
    %8 = vector.broadcast %cst_9 : f32 to vector<7x1xf32>
    %9 = arith.maximumf %7, %8 : vector<7x1xf32>
    %10 = tpu.reciprocal %9 {approx = true} : vector<7x1xf32> -> vector<7x1xf32>
    %11 = vector.broadcast %10 : vector<7x1xf32> to vector<7x128xf32>
    %12 = arith.mulf %3, %11 : vector<7x128xf32>
    %cst_10 = arith.constant dense<0.000000e+00> : vector<7x128xf32>
    %13 = tpu.matmul %1, %12, %cst_10 {dimension_numbers = #tpu.dot_dimension_numbers<[1], [0], [0], [1], [0, 0, 1, 1], [], []>} : vector<7x7xf32>, vector<7x128xf32>, vector<7x128xf32> -> vector<7x128xf32>
    %cst_11 = arith.constant dense<0.000000e+00> : vector<7x128xf32>
    %14 = tpu.matmul %13, %4, %cst_11 {dimension_numbers = #tpu.dot_dimension_numbers<[1], [0], [0], [1], [0, 0, 1, 1], [], []>} : vector<7x128xf32>, vector<128x128xf32>, vector<7x128xf32> -> vector<7x128xf32>
    %15 = vector.broadcast %5 : vector<1x128xf32> to vector<7x128xf32>
    %16 = arith.addf %14, %15 : vector<7x128xf32>
    %cst_12 = arith.constant 0.000000e+00 : f32
    %17 = vector.broadcast %cst_12 : f32 to vector<7x128xf32>
    %18 = arith.cmpf ogt, %16, %17 : vector<7x128xf32>
    %cst_13 = arith.constant 0.000000e+00 : f32
    %19 = vector.broadcast %cst_13 : f32 to vector<7x128xf32>
    %20 = arith.minimumf %16, %19 : vector<7x128xf32>
    %21 = math.exp %20 : vector<7x128xf32>
    %cst_14 = arith.constant 1.000000e+00 : f32
    %22 = vector.broadcast %cst_14 : f32 to vector<7x128xf32>
    %23 = arith.subf %21, %22 : vector<7x128xf32>
    %24 = arith.select %18, %16, %23 : vector<7x128xi1>, vector<7x128xf32>
    %c0_15 = arith.constant 0 : index
    %c0_16 = arith.constant 0 : index
    %25 = vector.load %arg5[%c0_15, %c0_16] : memref<1x128xf32, #tpu.memory_space<vmem>>, vector<1x128xf32>
    %c0_17 = arith.constant 0 : index
    %c0_18 = arith.constant 0 : index
    %26 = vector.load %arg6[%c0_17, %c0_18] : memref<1x128xf32, #tpu.memory_space<vmem>>, vector<1x128xf32>
    %cst_19 = arith.constant dense<0.000000e+00> : vector<7xf32>
    %27 = vector.multi_reduction <add>, %24, %cst_19 [1] : vector<7x128xf32> to vector<7xf32>
    %28 = vector.shape_cast %27 : vector<7xf32> to vector<7x1xf32>
    %cst_20 = arith.constant 3.200000e+01 : f32
    %29 = vector.broadcast %cst_20 : f32 to vector<7x1xf32>
    %30 = arith.divf %28, %29 : vector<7x1xf32>
    %31 = arith.mulf %24, %24 : vector<7x128xf32>
    %cst_21 = arith.constant dense<0.000000e+00> : vector<7xf32>
    %32 = vector.multi_reduction <add>, %31, %cst_21 [1] : vector<7x128xf32> to vector<7xf32>
    %33 = vector.shape_cast %32 : vector<7xf32> to vector<7x1xf32>
    %cst_22 = arith.constant 3.200000e+01 : f32
    %34 = vector.broadcast %cst_22 : f32 to vector<7x1xf32>
    %35 = arith.divf %33, %34 : vector<7x1xf32>
    %36 = arith.mulf %30, %30 : vector<7x1xf32>
    %37 = arith.subf %35, %36 : vector<7x1xf32>
    %38 = vector.broadcast %30 : vector<7x1xf32> to vector<7x128xf32>
    %39 = arith.subf %24, %38 : vector<7x128xf32>
    %cst_23 = arith.constant 9.99999974E-6 : f32
    %40 = vector.broadcast %cst_23 : f32 to vector<7x1xf32>
    %41 = arith.addf %37, %40 : vector<7x1xf32>
    %42 = math.rsqrt %41 : vector<7x1xf32>
    %43 = vector.broadcast %42 : vector<7x1xf32> to vector<7x128xf32>
    %44 = arith.mulf %39, %43 : vector<7x128xf32>
    %45 = vector.broadcast %25 : vector<1x128xf32> to vector<7x128xf32>
    %46 = arith.mulf %44, %45 : vector<7x128xf32>
    %47 = vector.broadcast %26 : vector<1x128xf32> to vector<7x128xf32>
    %48 = arith.addf %46, %47 : vector<7x128xf32>
    %c0_24 = arith.constant 0 : index
    %c0_25 = arith.constant 0 : index
    %c0_26 = arith.constant 0 : index
    %49 = vector.load %arg7[%c0_24, %c0_25, %c0_26] : memref<1x7x128xf32, #tpu.memory_space<vmem>>, vector<1x7x128xf32>
    %50 = vector.shape_cast %49 : vector<1x7x128xf32> to vector<7x128xf32>
    %51 = vector.shape_cast %48 : vector<7x128xf32> to vector<1x7x128xf32>
    tpu.vector_store %arg7[%c0_24, %c0_25, %c0_26], %51 {strides = array<i32>} : memref<1x7x128xf32, #tpu.memory_space<vmem>>, vector<1x7x128xf32>,
    return
  }
  func.func @transform_0(%arg0: i32) -> (i32, i32, i32) {
    %c0_i32 = arith.constant 0 : i32
    %c0_i32_0 = arith.constant 0 : i32
    %c0_i32_1 = arith.constant 0 : i32
    return %arg0, %c0_i32, %c0_i32_0 : i32, i32, i32
  }
  func.func @transform_1(%arg0: i32) -> (i32, i32, i32) {
    %c0_i32 = arith.constant 0 : i32
    %c0_i32_0 = arith.constant 0 : i32
    %c0_i32_1 = arith.constant 0 : i32
    return %arg0, %c0_i32, %c0_i32_0 : i32, i32, i32
  }
  func.func @transform_2(%arg0: i32) -> (i32, i32) {
    %c0_i32 = arith.constant 0 : i32
    %c0_i32_0 = arith.constant 0 : i32
    %c0_i32_1 = arith.constant 0 : i32
    return %c0_i32, %c0_i32_0 : i32, i32
  }
  func.func @transform_3(%arg0: i32) -> (i32, i32) {
    %c0_i32 = arith.constant 0 : i32
    %c0_i32_0 = arith.constant 0 : i32
    %c0_i32_1 = arith.constant 0 : i32
    return %c0_i32, %c0_i32_0 : i32, i32
  }
  func.func @transform_4(%arg0: i32) -> (i32, i32) {
    %c0_i32 = arith.constant 0 : i32
    %c0_i32_0 = arith.constant 0 : i32
    %c0_i32_1 = arith.constant 0 : i32
    return %c0_i32, %c0_i32_0 : i32, i32
  }
  func.func @transform_5(%arg0: i32) -> (i32, i32) {
    %c0_i32 = arith.constant 0 : i32
    %c0_i32_0 = arith.constant 0 : i32
    %c0_i32_1 = arith.constant 0 : i32
    return %c0_i32, %c0_i32_0 : i32, i32
  }
  func.func @transform_6(%arg0: i32) -> (i32, i32, i32) {
    %c0_i32 = arith.constant 0 : i32
    %c0_i32_0 = arith.constant 0 : i32
    %c0_i32_1 = arith.constant 0 : i32
    return %arg0, %c0_i32, %c0_i32_0 : i32, i32, i32
  }
}

module attributes {stable_mosaic.version = 11 : i64} {
  func.func @_dec_level_kernel(%arg0: i32, %arg1: memref<1x12x12xf32, #tpu.memory_space<vmem>>, %arg2: memref<1x12x128xf32, #tpu.memory_space<vmem>>, %arg3: memref<1x12x128xf32, #tpu.memory_space<vmem>>, %arg4: memref<128x128xf32, #tpu.memory_space<vmem>>, %arg5: memref<1x128xf32, #tpu.memory_space<vmem>>, %arg6: memref<1x128xf32, #tpu.memory_space<vmem>>, %arg7: memref<1x128xf32, #tpu.memory_space<vmem>>, %arg8: memref<1x128xf32, #tpu.memory_space<vmem>>, %arg9: memref<1x128xf32, #tpu.memory_space<vmem>>, %arg10: memref<1x12x128xf32, #tpu.memory_space<vmem>>) attributes {dimension_semantics = [#tpu.dimension_semantics<parallel>], iteration_bounds = array<i64: 2>, scalar_prefetch = 0 : i64, scratch_operands = 0 : i64, tpu.core_type = #tpu.core_type<tc>, window_params = [{transform_indices = @transform_0, window_bounds = array<i64: 1, 12, 12>}, {transform_indices = @transform_1, window_bounds = array<i64: 1, 12, 128>}, {transform_indices = @transform_2, window_bounds = array<i64: 1, 12, 128>}, {pipeline_mode = #tpu.pipeline_mode<synchronous>, transform_indices = @transform_3, window_bounds = array<i64: 128, 128>}, {pipeline_mode = #tpu.pipeline_mode<synchronous>, transform_indices = @transform_4, window_bounds = array<i64: 1, 128>}, {pipeline_mode = #tpu.pipeline_mode<synchronous>, transform_indices = @transform_5, window_bounds = array<i64: 1, 128>}, {pipeline_mode = #tpu.pipeline_mode<synchronous>, transform_indices = @transform_6, window_bounds = array<i64: 1, 128>}, {pipeline_mode = #tpu.pipeline_mode<synchronous>, transform_indices = @transform_7, window_bounds = array<i64: 1, 128>}, {pipeline_mode = #tpu.pipeline_mode<synchronous>, transform_indices = @transform_8, window_bounds = array<i64: 1, 128>}, {transform_indices = @transform_9, window_bounds = array<i64: 1, 12, 128>}]} {
    %c0 = arith.constant 0 : index
    %c0_0 = arith.constant 0 : index
    %c0_1 = arith.constant 0 : index
    %0 = vector.load %arg3[%c0, %c0_0, %c0_1] : memref<1x12x128xf32, #tpu.memory_space<vmem>>, vector<1x12x128xf32>
    %1 = vector.shape_cast %0 : vector<1x12x128xf32> to vector<12x128xf32>
    %c0_2 = arith.constant 0 : index
    %c0_3 = arith.constant 0 : index
    %c0_4 = arith.constant 0 : index
    %2 = vector.load %arg2[%c0_2, %c0_3, %c0_4] : memref<1x12x128xf32, #tpu.memory_space<vmem>>, vector<1x12x128xf32>
    %3 = vector.shape_cast %2 : vector<1x12x128xf32> to vector<12x128xf32>
    %4 = arith.addf %1, %3 : vector<12x128xf32>
    %c0_5 = arith.constant 0 : index
    %c0_6 = arith.constant 0 : index
    %5 = vector.load %arg6[%c0_5, %c0_6] : memref<1x128xf32, #tpu.memory_space<vmem>>, vector<1x128xf32>
    %c0_7 = arith.constant 0 : index
    %c0_8 = arith.constant 0 : index
    %6 = vector.load %arg7[%c0_7, %c0_8] : memref<1x128xf32, #tpu.memory_space<vmem>>, vector<1x128xf32>
    %cst = arith.constant dense<0.000000e+00> : vector<12xf32>
    %7 = vector.multi_reduction <add>, %4, %cst [1] : vector<12x128xf32> to vector<12xf32>
    %8 = vector.shape_cast %7 : vector<12xf32> to vector<12x1xf32>
    %cst_9 = arith.constant 3.200000e+01 : f32
    %9 = vector.broadcast %cst_9 : f32 to vector<12x1xf32>
    %10 = arith.divf %8, %9 : vector<12x1xf32>
    %11 = arith.mulf %4, %4 : vector<12x128xf32>
    %cst_10 = arith.constant dense<0.000000e+00> : vector<12xf32>
    %12 = vector.multi_reduction <add>, %11, %cst_10 [1] : vector<12x128xf32> to vector<12xf32>
    %13 = vector.shape_cast %12 : vector<12xf32> to vector<12x1xf32>
    %cst_11 = arith.constant 3.200000e+01 : f32
    %14 = vector.broadcast %cst_11 : f32 to vector<12x1xf32>
    %15 = arith.divf %13, %14 : vector<12x1xf32>
    %16 = arith.mulf %10, %10 : vector<12x1xf32>
    %17 = arith.subf %15, %16 : vector<12x1xf32>
    %18 = vector.broadcast %10 : vector<12x1xf32> to vector<12x128xf32>
    %19 = arith.subf %4, %18 : vector<12x128xf32>
    %cst_12 = arith.constant 9.99999974E-6 : f32
    %20 = vector.broadcast %cst_12 : f32 to vector<12x1xf32>
    %21 = arith.addf %17, %20 : vector<12x1xf32>
    %22 = math.rsqrt %21 : vector<12x1xf32>
    %23 = vector.broadcast %22 : vector<12x1xf32> to vector<12x128xf32>
    %24 = arith.mulf %19, %23 : vector<12x128xf32>
    %25 = vector.broadcast %5 : vector<1x128xf32> to vector<12x128xf32>
    %26 = arith.mulf %24, %25 : vector<12x128xf32>
    %27 = vector.broadcast %6 : vector<1x128xf32> to vector<12x128xf32>
    %28 = arith.addf %26, %27 : vector<12x128xf32>
    %c0_13 = arith.constant 0 : index
    %c0_14 = arith.constant 0 : index
    %c0_15 = arith.constant 0 : index
    %29 = vector.load %arg1[%c0_13, %c0_14, %c0_15] : memref<1x12x12xf32, #tpu.memory_space<vmem>>, vector<1x12x12xf32>
    %30 = vector.shape_cast %29 : vector<1x12x12xf32> to vector<12x12xf32>
    %c0_16 = arith.constant 0 : index
    %c0_17 = arith.constant 0 : index
    %31 = vector.load %arg4[%c0_16, %c0_17] : memref<128x128xf32, #tpu.memory_space<vmem>>, vector<128x128xf32>
    %c0_18 = arith.constant 0 : index
    %c0_19 = arith.constant 0 : index
    %32 = vector.load %arg5[%c0_18, %c0_19] : memref<1x128xf32, #tpu.memory_space<vmem>>, vector<1x128xf32>
    %cst_20 = arith.constant dense<0.000000e+00> : vector<12xf32>
    %33 = vector.multi_reduction <add>, %30, %cst_20 [1] : vector<12x12xf32> to vector<12xf32>
    %34 = vector.shape_cast %33 : vector<12xf32> to vector<12x1xf32>
    %cst_21 = arith.constant 9.99999996E-13 : f32
    %35 = vector.broadcast %cst_21 : f32 to vector<12x1xf32>
    %36 = arith.maximumf %34, %35 : vector<12x1xf32>
    %37 = tpu.reciprocal %36 {approx = true} : vector<12x1xf32> -> vector<12x1xf32>
    %38 = vector.broadcast %37 : vector<12x1xf32> to vector<12x128xf32>
    %39 = arith.mulf %28, %38 : vector<12x128xf32>
    %cst_22 = arith.constant dense<0.000000e+00> : vector<12x128xf32>
    %40 = tpu.matmul %30, %39, %cst_22 {dimension_numbers = #tpu.dot_dimension_numbers<[1], [0], [0], [1], [0, 0, 1, 1], [], []>} : vector<12x12xf32>, vector<12x128xf32>, vector<12x128xf32> -> vector<12x128xf32>
    %cst_23 = arith.constant dense<0.000000e+00> : vector<12x128xf32>
    %41 = tpu.matmul %40, %31, %cst_23 {dimension_numbers = #tpu.dot_dimension_numbers<[1], [0], [0], [1], [0, 0, 1, 1], [], []>} : vector<12x128xf32>, vector<128x128xf32>, vector<12x128xf32> -> vector<12x128xf32>
    %42 = vector.broadcast %32 : vector<1x128xf32> to vector<12x128xf32>
    %43 = arith.addf %41, %42 : vector<12x128xf32>
    %cst_24 = arith.constant 0.000000e+00 : f32
    %44 = vector.broadcast %cst_24 : f32 to vector<12x128xf32>
    %45 = arith.cmpf ogt, %43, %44 : vector<12x128xf32>
    %cst_25 = arith.constant 0.000000e+00 : f32
    %46 = vector.broadcast %cst_25 : f32 to vector<12x128xf32>
    %47 = arith.minimumf %43, %46 : vector<12x128xf32>
    %48 = math.exp %47 : vector<12x128xf32>
    %cst_26 = arith.constant 1.000000e+00 : f32
    %49 = vector.broadcast %cst_26 : f32 to vector<12x128xf32>
    %50 = arith.subf %48, %49 : vector<12x128xf32>
    %51 = arith.select %45, %43, %50 : vector<12x128xi1>, vector<12x128xf32>
    %52 = arith.addf %51, %28 : vector<12x128xf32>
    %c0_27 = arith.constant 0 : index
    %c0_28 = arith.constant 0 : index
    %53 = vector.load %arg8[%c0_27, %c0_28] : memref<1x128xf32, #tpu.memory_space<vmem>>, vector<1x128xf32>
    %c0_29 = arith.constant 0 : index
    %c0_30 = arith.constant 0 : index
    %54 = vector.load %arg9[%c0_29, %c0_30] : memref<1x128xf32, #tpu.memory_space<vmem>>, vector<1x128xf32>
    %cst_31 = arith.constant dense<0.000000e+00> : vector<12xf32>
    %55 = vector.multi_reduction <add>, %52, %cst_31 [1] : vector<12x128xf32> to vector<12xf32>
    %56 = vector.shape_cast %55 : vector<12xf32> to vector<12x1xf32>
    %cst_32 = arith.constant 3.200000e+01 : f32
    %57 = vector.broadcast %cst_32 : f32 to vector<12x1xf32>
    %58 = arith.divf %56, %57 : vector<12x1xf32>
    %59 = arith.mulf %52, %52 : vector<12x128xf32>
    %cst_33 = arith.constant dense<0.000000e+00> : vector<12xf32>
    %60 = vector.multi_reduction <add>, %59, %cst_33 [1] : vector<12x128xf32> to vector<12xf32>
    %61 = vector.shape_cast %60 : vector<12xf32> to vector<12x1xf32>
    %cst_34 = arith.constant 3.200000e+01 : f32
    %62 = vector.broadcast %cst_34 : f32 to vector<12x1xf32>
    %63 = arith.divf %61, %62 : vector<12x1xf32>
    %64 = arith.mulf %58, %58 : vector<12x1xf32>
    %65 = arith.subf %63, %64 : vector<12x1xf32>
    %66 = vector.broadcast %58 : vector<12x1xf32> to vector<12x128xf32>
    %67 = arith.subf %52, %66 : vector<12x128xf32>
    %cst_35 = arith.constant 9.99999974E-6 : f32
    %68 = vector.broadcast %cst_35 : f32 to vector<12x1xf32>
    %69 = arith.addf %65, %68 : vector<12x1xf32>
    %70 = math.rsqrt %69 : vector<12x1xf32>
    %71 = vector.broadcast %70 : vector<12x1xf32> to vector<12x128xf32>
    %72 = arith.mulf %67, %71 : vector<12x128xf32>
    %73 = vector.broadcast %53 : vector<1x128xf32> to vector<12x128xf32>
    %74 = arith.mulf %72, %73 : vector<12x128xf32>
    %75 = vector.broadcast %54 : vector<1x128xf32> to vector<12x128xf32>
    %76 = arith.addf %74, %75 : vector<12x128xf32>
    %c0_36 = arith.constant 0 : index
    %c0_37 = arith.constant 0 : index
    %c0_38 = arith.constant 0 : index
    %77 = vector.load %arg10[%c0_36, %c0_37, %c0_38] : memref<1x12x128xf32, #tpu.memory_space<vmem>>, vector<1x12x128xf32>
    %78 = vector.shape_cast %77 : vector<1x12x128xf32> to vector<12x128xf32>
    %79 = vector.shape_cast %76 : vector<12x128xf32> to vector<1x12x128xf32>
    tpu.vector_store %arg10[%c0_36, %c0_37, %c0_38], %79 {strides = array<i32>} : memref<1x12x128xf32, #tpu.memory_space<vmem>>, vector<1x12x128xf32>,
    return
  }
  func.func @transform_0(%arg0: i32) -> (i32, i32, i32) {
    %c0_i32 = arith.constant 0 : i32
    %c0_i32_0 = arith.constant 0 : i32
    %c0_i32_1 = arith.constant 0 : i32
    return %arg0, %c0_i32, %c0_i32_0 : i32, i32, i32
  }
  func.func @transform_1(%arg0: i32) -> (i32, i32, i32) {
    %c0_i32 = arith.constant 0 : i32
    %c0_i32_0 = arith.constant 0 : i32
    %c0_i32_1 = arith.constant 0 : i32
    return %arg0, %c0_i32, %c0_i32_0 : i32, i32, i32
  }
  func.func @transform_2(%arg0: i32) -> (i32, i32, i32) {
    %c0_i32 = arith.constant 0 : i32
    %c0_i32_0 = arith.constant 0 : i32
    %c0_i32_1 = arith.constant 0 : i32
    return %arg0, %c0_i32, %c0_i32_0 : i32, i32, i32
  }
  func.func @transform_3(%arg0: i32) -> (i32, i32) {
    %c0_i32 = arith.constant 0 : i32
    %c0_i32_0 = arith.constant 0 : i32
    %c0_i32_1 = arith.constant 0 : i32
    return %c0_i32, %c0_i32_0 : i32, i32
  }
  func.func @transform_4(%arg0: i32) -> (i32, i32) {
    %c0_i32 = arith.constant 0 : i32
    %c0_i32_0 = arith.constant 0 : i32
    %c0_i32_1 = arith.constant 0 : i32
    return %c0_i32, %c0_i32_0 : i32, i32
  }
  func.func @transform_5(%arg0: i32) -> (i32, i32) {
    %c0_i32 = arith.constant 0 : i32
    %c0_i32_0 = arith.constant 0 : i32
    %c0_i32_1 = arith.constant 0 : i32
    return %c0_i32, %c0_i32_0 : i32, i32
  }
  func.func @transform_6(%arg0: i32) -> (i32, i32) {
    %c0_i32 = arith.constant 0 : i32
    %c0_i32_0 = arith.constant 0 : i32
    %c0_i32_1 = arith.constant 0 : i32
    return %c0_i32, %c0_i32_0 : i32, i32
  }
  func.func @transform_7(%arg0: i32) -> (i32, i32) {
    %c0_i32 = arith.constant 0 : i32
    %c0_i32_0 = arith.constant 0 : i32
    %c0_i32_1 = arith.constant 0 : i32
    return %c0_i32, %c0_i32_0 : i32, i32
  }
  func.func @transform_8(%arg0: i32) -> (i32, i32) {
    %c0_i32 = arith.constant 0 : i32
    %c0_i32_0 = arith.constant 0 : i32
    %c0_i32_1 = arith.constant 0 : i32
    return %c0_i32, %c0_i32_0 : i32, i32
  }
  func.func @transform_9(%arg0: i32) -> (i32, i32, i32) {
    %c0_i32 = arith.constant 0 : i32
    %c0_i32_0 = arith.constant 0 : i32
    %c0_i32_1 = arith.constant 0 : i32
    return %arg0, %c0_i32, %c0_i32_0 : i32, i32, i32
  }
}

module attributes {stable_mosaic.version = 11 : i64} {
  func.func @_dec_level_kernel(%arg0: i32, %arg1: memref<1x16x16xf32, #tpu.memory_space<vmem>>, %arg2: memref<1x16x128xf32, #tpu.memory_space<vmem>>, %arg3: memref<1x16x128xf32, #tpu.memory_space<vmem>>, %arg4: memref<128x128xf32, #tpu.memory_space<vmem>>, %arg5: memref<1x128xf32, #tpu.memory_space<vmem>>, %arg6: memref<1x128xf32, #tpu.memory_space<vmem>>, %arg7: memref<1x128xf32, #tpu.memory_space<vmem>>, %arg8: memref<1x128xf32, #tpu.memory_space<vmem>>, %arg9: memref<1x128xf32, #tpu.memory_space<vmem>>, %arg10: memref<1x16x128xf32, #tpu.memory_space<vmem>>) attributes {dimension_semantics = [#tpu.dimension_semantics<parallel>], iteration_bounds = array<i64: 2>, scalar_prefetch = 0 : i64, scratch_operands = 0 : i64, tpu.core_type = #tpu.core_type<tc>, window_params = [{transform_indices = @transform_0, window_bounds = array<i64: 1, 16, 16>}, {transform_indices = @transform_1, window_bounds = array<i64: 1, 16, 128>}, {transform_indices = @transform_2, window_bounds = array<i64: 1, 16, 128>}, {pipeline_mode = #tpu.pipeline_mode<synchronous>, transform_indices = @transform_3, window_bounds = array<i64: 128, 128>}, {pipeline_mode = #tpu.pipeline_mode<synchronous>, transform_indices = @transform_4, window_bounds = array<i64: 1, 128>}, {pipeline_mode = #tpu.pipeline_mode<synchronous>, transform_indices = @transform_5, window_bounds = array<i64: 1, 128>}, {pipeline_mode = #tpu.pipeline_mode<synchronous>, transform_indices = @transform_6, window_bounds = array<i64: 1, 128>}, {pipeline_mode = #tpu.pipeline_mode<synchronous>, transform_indices = @transform_7, window_bounds = array<i64: 1, 128>}, {pipeline_mode = #tpu.pipeline_mode<synchronous>, transform_indices = @transform_8, window_bounds = array<i64: 1, 128>}, {transform_indices = @transform_9, window_bounds = array<i64: 1, 16, 128>}]} {
    %c0 = arith.constant 0 : index
    %c0_0 = arith.constant 0 : index
    %c0_1 = arith.constant 0 : index
    %0 = vector.load %arg3[%c0, %c0_0, %c0_1] : memref<1x16x128xf32, #tpu.memory_space<vmem>>, vector<1x16x128xf32>
    %1 = vector.shape_cast %0 : vector<1x16x128xf32> to vector<16x128xf32>
    %c0_2 = arith.constant 0 : index
    %c0_3 = arith.constant 0 : index
    %c0_4 = arith.constant 0 : index
    %2 = vector.load %arg2[%c0_2, %c0_3, %c0_4] : memref<1x16x128xf32, #tpu.memory_space<vmem>>, vector<1x16x128xf32>
    %3 = vector.shape_cast %2 : vector<1x16x128xf32> to vector<16x128xf32>
    %4 = arith.addf %1, %3 : vector<16x128xf32>
    %c0_5 = arith.constant 0 : index
    %c0_6 = arith.constant 0 : index
    %5 = vector.load %arg6[%c0_5, %c0_6] : memref<1x128xf32, #tpu.memory_space<vmem>>, vector<1x128xf32>
    %c0_7 = arith.constant 0 : index
    %c0_8 = arith.constant 0 : index
    %6 = vector.load %arg7[%c0_7, %c0_8] : memref<1x128xf32, #tpu.memory_space<vmem>>, vector<1x128xf32>
    %cst = arith.constant dense<0.000000e+00> : vector<16xf32>
    %7 = vector.multi_reduction <add>, %4, %cst [1] : vector<16x128xf32> to vector<16xf32>
    %8 = vector.shape_cast %7 : vector<16xf32> to vector<16x1xf32>
    %cst_9 = arith.constant 3.200000e+01 : f32
    %9 = vector.broadcast %cst_9 : f32 to vector<16x1xf32>
    %10 = arith.divf %8, %9 : vector<16x1xf32>
    %11 = arith.mulf %4, %4 : vector<16x128xf32>
    %cst_10 = arith.constant dense<0.000000e+00> : vector<16xf32>
    %12 = vector.multi_reduction <add>, %11, %cst_10 [1] : vector<16x128xf32> to vector<16xf32>
    %13 = vector.shape_cast %12 : vector<16xf32> to vector<16x1xf32>
    %cst_11 = arith.constant 3.200000e+01 : f32
    %14 = vector.broadcast %cst_11 : f32 to vector<16x1xf32>
    %15 = arith.divf %13, %14 : vector<16x1xf32>
    %16 = arith.mulf %10, %10 : vector<16x1xf32>
    %17 = arith.subf %15, %16 : vector<16x1xf32>
    %18 = vector.broadcast %10 : vector<16x1xf32> to vector<16x128xf32>
    %19 = arith.subf %4, %18 : vector<16x128xf32>
    %cst_12 = arith.constant 9.99999974E-6 : f32
    %20 = vector.broadcast %cst_12 : f32 to vector<16x1xf32>
    %21 = arith.addf %17, %20 : vector<16x1xf32>
    %22 = math.rsqrt %21 : vector<16x1xf32>
    %23 = vector.broadcast %22 : vector<16x1xf32> to vector<16x128xf32>
    %24 = arith.mulf %19, %23 : vector<16x128xf32>
    %25 = vector.broadcast %5 : vector<1x128xf32> to vector<16x128xf32>
    %26 = arith.mulf %24, %25 : vector<16x128xf32>
    %27 = vector.broadcast %6 : vector<1x128xf32> to vector<16x128xf32>
    %28 = arith.addf %26, %27 : vector<16x128xf32>
    %c0_13 = arith.constant 0 : index
    %c0_14 = arith.constant 0 : index
    %c0_15 = arith.constant 0 : index
    %29 = vector.load %arg1[%c0_13, %c0_14, %c0_15] : memref<1x16x16xf32, #tpu.memory_space<vmem>>, vector<1x16x16xf32>
    %30 = vector.shape_cast %29 : vector<1x16x16xf32> to vector<16x16xf32>
    %c0_16 = arith.constant 0 : index
    %c0_17 = arith.constant 0 : index
    %31 = vector.load %arg4[%c0_16, %c0_17] : memref<128x128xf32, #tpu.memory_space<vmem>>, vector<128x128xf32>
    %c0_18 = arith.constant 0 : index
    %c0_19 = arith.constant 0 : index
    %32 = vector.load %arg5[%c0_18, %c0_19] : memref<1x128xf32, #tpu.memory_space<vmem>>, vector<1x128xf32>
    %cst_20 = arith.constant dense<0.000000e+00> : vector<16xf32>
    %33 = vector.multi_reduction <add>, %30, %cst_20 [1] : vector<16x16xf32> to vector<16xf32>
    %34 = vector.shape_cast %33 : vector<16xf32> to vector<16x1xf32>
    %cst_21 = arith.constant 9.99999996E-13 : f32
    %35 = vector.broadcast %cst_21 : f32 to vector<16x1xf32>
    %36 = arith.maximumf %34, %35 : vector<16x1xf32>
    %37 = tpu.reciprocal %36 {approx = true} : vector<16x1xf32> -> vector<16x1xf32>
    %38 = vector.broadcast %37 : vector<16x1xf32> to vector<16x128xf32>
    %39 = arith.mulf %28, %38 : vector<16x128xf32>
    %cst_22 = arith.constant dense<0.000000e+00> : vector<16x128xf32>
    %40 = tpu.matmul %30, %39, %cst_22 {dimension_numbers = #tpu.dot_dimension_numbers<[1], [0], [0], [1], [0, 0, 1, 1], [], []>} : vector<16x16xf32>, vector<16x128xf32>, vector<16x128xf32> -> vector<16x128xf32>
    %cst_23 = arith.constant dense<0.000000e+00> : vector<16x128xf32>
    %41 = tpu.matmul %40, %31, %cst_23 {dimension_numbers = #tpu.dot_dimension_numbers<[1], [0], [0], [1], [0, 0, 1, 1], [], []>} : vector<16x128xf32>, vector<128x128xf32>, vector<16x128xf32> -> vector<16x128xf32>
    %42 = vector.broadcast %32 : vector<1x128xf32> to vector<16x128xf32>
    %43 = arith.addf %41, %42 : vector<16x128xf32>
    %cst_24 = arith.constant 0.000000e+00 : f32
    %44 = vector.broadcast %cst_24 : f32 to vector<16x128xf32>
    %45 = arith.cmpf ogt, %43, %44 : vector<16x128xf32>
    %cst_25 = arith.constant 0.000000e+00 : f32
    %46 = vector.broadcast %cst_25 : f32 to vector<16x128xf32>
    %47 = arith.minimumf %43, %46 : vector<16x128xf32>
    %48 = math.exp %47 : vector<16x128xf32>
    %cst_26 = arith.constant 1.000000e+00 : f32
    %49 = vector.broadcast %cst_26 : f32 to vector<16x128xf32>
    %50 = arith.subf %48, %49 : vector<16x128xf32>
    %51 = arith.select %45, %43, %50 : vector<16x128xi1>, vector<16x128xf32>
    %52 = arith.addf %51, %28 : vector<16x128xf32>
    %c0_27 = arith.constant 0 : index
    %c0_28 = arith.constant 0 : index
    %53 = vector.load %arg8[%c0_27, %c0_28] : memref<1x128xf32, #tpu.memory_space<vmem>>, vector<1x128xf32>
    %c0_29 = arith.constant 0 : index
    %c0_30 = arith.constant 0 : index
    %54 = vector.load %arg9[%c0_29, %c0_30] : memref<1x128xf32, #tpu.memory_space<vmem>>, vector<1x128xf32>
    %cst_31 = arith.constant dense<0.000000e+00> : vector<16xf32>
    %55 = vector.multi_reduction <add>, %52, %cst_31 [1] : vector<16x128xf32> to vector<16xf32>
    %56 = vector.shape_cast %55 : vector<16xf32> to vector<16x1xf32>
    %cst_32 = arith.constant 3.200000e+01 : f32
    %57 = vector.broadcast %cst_32 : f32 to vector<16x1xf32>
    %58 = arith.divf %56, %57 : vector<16x1xf32>
    %59 = arith.mulf %52, %52 : vector<16x128xf32>
    %cst_33 = arith.constant dense<0.000000e+00> : vector<16xf32>
    %60 = vector.multi_reduction <add>, %59, %cst_33 [1] : vector<16x128xf32> to vector<16xf32>
    %61 = vector.shape_cast %60 : vector<16xf32> to vector<16x1xf32>
    %cst_34 = arith.constant 3.200000e+01 : f32
    %62 = vector.broadcast %cst_34 : f32 to vector<16x1xf32>
    %63 = arith.divf %61, %62 : vector<16x1xf32>
    %64 = arith.mulf %58, %58 : vector<16x1xf32>
    %65 = arith.subf %63, %64 : vector<16x1xf32>
    %66 = vector.broadcast %58 : vector<16x1xf32> to vector<16x128xf32>
    %67 = arith.subf %52, %66 : vector<16x128xf32>
    %cst_35 = arith.constant 9.99999974E-6 : f32
    %68 = vector.broadcast %cst_35 : f32 to vector<16x1xf32>
    %69 = arith.addf %65, %68 : vector<16x1xf32>
    %70 = math.rsqrt %69 : vector<16x1xf32>
    %71 = vector.broadcast %70 : vector<16x1xf32> to vector<16x128xf32>
    %72 = arith.mulf %67, %71 : vector<16x128xf32>
    %73 = vector.broadcast %53 : vector<1x128xf32> to vector<16x128xf32>
    %74 = arith.mulf %72, %73 : vector<16x128xf32>
    %75 = vector.broadcast %54 : vector<1x128xf32> to vector<16x128xf32>
    %76 = arith.addf %74, %75 : vector<16x128xf32>
    %c0_36 = arith.constant 0 : index
    %c0_37 = arith.constant 0 : index
    %c0_38 = arith.constant 0 : index
    %77 = vector.load %arg10[%c0_36, %c0_37, %c0_38] : memref<1x16x128xf32, #tpu.memory_space<vmem>>, vector<1x16x128xf32>
    %78 = vector.shape_cast %77 : vector<1x16x128xf32> to vector<16x128xf32>
    %79 = vector.shape_cast %76 : vector<16x128xf32> to vector<1x16x128xf32>
    tpu.vector_store %arg10[%c0_36, %c0_37, %c0_38], %79 {strides = array<i32>} : memref<1x16x128xf32, #tpu.memory_space<vmem>>, vector<1x16x128xf32>,
    return
  }
  func.func @transform_0(%arg0: i32) -> (i32, i32, i32) {
    %c0_i32 = arith.constant 0 : i32
    %c0_i32_0 = arith.constant 0 : i32
    %c0_i32_1 = arith.constant 0 : i32
    return %arg0, %c0_i32, %c0_i32_0 : i32, i32, i32
  }
  func.func @transform_1(%arg0: i32) -> (i32, i32, i32) {
    %c0_i32 = arith.constant 0 : i32
    %c0_i32_0 = arith.constant 0 : i32
    %c0_i32_1 = arith.constant 0 : i32
    return %arg0, %c0_i32, %c0_i32_0 : i32, i32, i32
  }
  func.func @transform_2(%arg0: i32) -> (i32, i32, i32) {
    %c0_i32 = arith.constant 0 : i32
    %c0_i32_0 = arith.constant 0 : i32
    %c0_i32_1 = arith.constant 0 : i32
    return %arg0, %c0_i32, %c0_i32_0 : i32, i32, i32
  }
  func.func @transform_3(%arg0: i32) -> (i32, i32) {
    %c0_i32 = arith.constant 0 : i32
    %c0_i32_0 = arith.constant 0 : i32
    %c0_i32_1 = arith.constant 0 : i32
    return %c0_i32, %c0_i32_0 : i32, i32
  }
  func.func @transform_4(%arg0: i32) -> (i32, i32) {
    %c0_i32 = arith.constant 0 : i32
    %c0_i32_0 = arith.constant 0 : i32
    %c0_i32_1 = arith.constant 0 : i32
    return %c0_i32, %c0_i32_0 : i32, i32
  }
  func.func @transform_5(%arg0: i32) -> (i32, i32) {
    %c0_i32 = arith.constant 0 : i32
    %c0_i32_0 = arith.constant 0 : i32
    %c0_i32_1 = arith.constant 0 : i32
    return %c0_i32, %c0_i32_0 : i32, i32
  }
  func.func @transform_6(%arg0: i32) -> (i32, i32) {
    %c0_i32 = arith.constant 0 : i32
    %c0_i32_0 = arith.constant 0 : i32
    %c0_i32_1 = arith.constant 0 : i32
    return %c0_i32, %c0_i32_0 : i32, i32
  }
  func.func @transform_7(%arg0: i32) -> (i32, i32) {
    %c0_i32 = arith.constant 0 : i32
    %c0_i32_0 = arith.constant 0 : i32
    %c0_i32_1 = arith.constant 0 : i32
    return %c0_i32, %c0_i32_0 : i32, i32
  }
  func.func @transform_8(%arg0: i32) -> (i32, i32) {
    %c0_i32 = arith.constant 0 : i32
    %c0_i32_0 = arith.constant 0 : i32
    %c0_i32_1 = arith.constant 0 : i32
    return %c0_i32, %c0_i32_0 : i32, i32
  }
  func.func @transform_9(%arg0: i32) -> (i32, i32, i32) {
    %c0_i32 = arith.constant 0 : i32
    %c0_i32_0 = arith.constant 0 : i32
    %c0_i32_1 = arith.constant 0 : i32
    return %arg0, %c0_i32, %c0_i32_0 : i32, i32, i32
  }
}

module attributes {stable_mosaic.version = 11 : i64} {
  func.func @_bce_kernel(%arg0: i32, %arg1: memref<1x16x16xf32, #tpu.memory_space<vmem>>, %arg2: memref<1x16x16xf32, #tpu.memory_space<vmem>>, %arg3: memref<1x1x1xf32, #tpu.memory_space<vmem>>) attributes {dimension_semantics = [#tpu.dimension_semantics<parallel>], iteration_bounds = array<i64: 2>, scalar_prefetch = 0 : i64, scratch_operands = 0 : i64, tpu.core_type = #tpu.core_type<tc>, window_params = [{transform_indices = @transform_0, window_bounds = array<i64: 1, 16, 16>}, {transform_indices = @transform_1, window_bounds = array<i64: 1, 16, 16>}, {transform_indices = @transform_2, window_bounds = array<i64: 1, 1, 1>}]} {
    %c0 = arith.constant 0 : index
    %c0_0 = arith.constant 0 : index
    %c0_1 = arith.constant 0 : index
    %0 = vector.load %arg1[%c0, %c0_0, %c0_1] : memref<1x16x16xf32, #tpu.memory_space<vmem>>, vector<1x16x16xf32>
    %1 = vector.shape_cast %0 : vector<1x16x16xf32> to vector<16x16xf32>
    %c0_2 = arith.constant 0 : index
    %c0_3 = arith.constant 0 : index
    %c0_4 = arith.constant 0 : index
    %2 = vector.load %arg2[%c0_2, %c0_3, %c0_4] : memref<1x16x16xf32, #tpu.memory_space<vmem>>, vector<1x16x16xf32>
    %3 = vector.shape_cast %2 : vector<1x16x16xf32> to vector<16x16xf32>
    %4 = vector.shape_cast %3 : vector<16x16xf32> to vector<1x16x16xf32>
    %cst = arith.constant dense<0.000000e+00> : vector<1xf32>
    %5 = vector.multi_reduction <add>, %4, %cst [1, 2] : vector<1x16x16xf32> to vector<1xf32>
    %6 = vector.shape_cast %5 : vector<1xf32> to vector<1x1x1xf32>
    %7 = vector.extract %6[0, 0, 0] : f32 from vector<1x1x1xf32>
    %8 = vector.broadcast %7 : f32 to vector<1x1xf32>
    %cst_5 = arith.constant 1.000000e+00 : f32
    %9 = vector.broadcast %cst_5 : f32 to vector<1x1xf32>
    %10 = arith.maximumf %8, %9 : vector<1x1xf32>
    %cst_6 = arith.constant 2.560000e+02 : f32
    %11 = vector.broadcast %cst_6 : f32 to vector<1x1xf32>
    %12 = arith.subf %11, %10 : vector<1x1xf32>
    %cst_7 = arith.constant 1.000000e+00 : f32
    %13 = vector.broadcast %cst_7 : f32 to vector<1x1xf32>
    %14 = arith.maximumf %12, %13 : vector<1x1xf32>
    %cst_8 = arith.constant 2.560000e+02 : f32
    %cst_9 = arith.constant 2.000000e+00 : f32
    %15 = arith.divf %cst_8, %cst_9 : f32
    %16 = vector.broadcast %15 : f32 to vector<1x1xf32>
    %17 = arith.divf %16, %10 : vector<1x1xf32>
    %cst_10 = arith.constant 2.560000e+02 : f32
    %cst_11 = arith.constant 2.000000e+00 : f32
    %18 = arith.divf %cst_10, %cst_11 : f32
    %19 = vector.broadcast %18 : f32 to vector<1x1xf32>
    %20 = arith.divf %19, %14 : vector<1x1xf32>
    %cst_12 = arith.constant 0.000000e+00 : f32
    %21 = vector.broadcast %cst_12 : f32 to vector<16x16xf32>
    %22 = arith.cmpf oeq, %3, %21 : vector<16x16xf32>
    %23 = vector.shape_cast %20 : vector<1x1xf32> to vector<1x1xf32>
    %24 = vector.broadcast %23 : vector<1x1xf32> to vector<16x16xf32>
    %25 = vector.shape_cast %17 : vector<1x1xf32> to vector<1x1xf32>
    %26 = vector.broadcast %25 : vector<1x1xf32> to vector<16x16xf32>
    %27 = arith.select %22, %24, %26 : vector<16x16xi1>, vector<16x16xf32>
    %28 = math.log %1 : vector<16x16xf32>
    %cst_13 = arith.constant -1.000000e+02 : f32
    %29 = vector.broadcast %cst_13 : f32 to vector<16x16xf32>
    %30 = arith.maximumf %28, %29 : vector<16x16xf32>
    %cst_14 = arith.constant 1.000000e+00 : f32
    %31 = vector.broadcast %cst_14 : f32 to vector<16x16xf32>
    %32 = arith.subf %31, %1 : vector<16x16xf32>
    %33 = math.log %32 : vector<16x16xf32>
    %cst_15 = arith.constant -1.000000e+02 : f32
    %34 = vector.broadcast %cst_15 : f32 to vector<16x16xf32>
    %35 = arith.maximumf %33, %34 : vector<16x16xf32>
    %36 = arith.mulf %3, %30 : vector<16x16xf32>
    %cst_16 = arith.constant 1.000000e+00 : f32
    %37 = vector.broadcast %cst_16 : f32 to vector<16x16xf32>
    %38 = arith.subf %37, %3 : vector<16x16xf32>
    %39 = arith.mulf %38, %35 : vector<16x16xf32>
    %40 = arith.addf %36, %39 : vector<16x16xf32>
    %cst_17 = arith.constant 0.000000e+00 : f32
    %41 = vector.broadcast %cst_17 : f32 to vector<16x16xf32>
    %42 = arith.subf %41, %40 : vector<16x16xf32>
    %43 = arith.mulf %27, %42 : vector<16x16xf32>
    %44 = vector.shape_cast %43 : vector<16x16xf32> to vector<1x16x16xf32>
    %cst_18 = arith.constant dense<0.000000e+00> : vector<1xf32>
    %45 = vector.multi_reduction <add>, %44, %cst_18 [1, 2] : vector<1x16x16xf32> to vector<1xf32>
    %46 = vector.shape_cast %45 : vector<1xf32> to vector<1x1x1xf32>
    %47 = vector.extract %46[0, 0, 0] : f32 from vector<1x1x1xf32>
    %48 = vector.broadcast %47 : f32 to vector<1x1xf32>
    %cst_19 = arith.constant 2.560000e+02 : f32
    %49 = vector.broadcast %cst_19 : f32 to vector<1x1xf32>
    %50 = arith.divf %48, %49 : vector<1x1xf32>
    %c0_20 = arith.constant 0 : index
    %c0_21 = arith.constant 0 : index
    %c0_22 = arith.constant 0 : index
    %51 = vector.load %arg3[%c0_20, %c0_21, %c0_22] : memref<1x1x1xf32, #tpu.memory_space<vmem>>, vector<1x1x1xf32>
    %52 = vector.shape_cast %51 : vector<1x1x1xf32> to vector<1x1xf32>
    %53 = vector.shape_cast %50 : vector<1x1xf32> to vector<1x1x1xf32>
    tpu.vector_store %arg3[%c0_20, %c0_21, %c0_22], %53 {strides = array<i32>} : memref<1x1x1xf32, #tpu.memory_space<vmem>>, vector<1x1x1xf32>,
    return
  }
  func.func @transform_0(%arg0: i32) -> (i32, i32, i32) {
    %c0_i32 = arith.constant 0 : i32
    %c0_i32_0 = arith.constant 0 : i32
    %c0_i32_1 = arith.constant 0 : i32
    return %arg0, %c0_i32, %c0_i32_0 : i32, i32, i32
  }
  func.func @transform_1(%arg0: i32) -> (i32, i32, i32) {
    %c0_i32 = arith.constant 0 : i32
    %c0_i32_0 = arith.constant 0 : i32
    %c0_i32_1 = arith.constant 0 : i32
    return %arg0, %c0_i32, %c0_i32_0 : i32, i32, i32
  }
  func.func @transform_2(%arg0: i32) -> (i32, i32, i32) {
    %c0_i32 = arith.constant 0 : i32
    %c0_i32_0 = arith.constant 0 : i32
    %c0_i32_1 = arith.constant 0 : i32
    return %arg0, %c0_i32, %c0_i32_0 : i32, i32, i32
  }
}

module attributes {stable_mosaic.version = 11 : i64} {
  func.func @_head_kernel(%arg0: i32, %arg1: memref<1x16x128xf32, #tpu.memory_space<vmem>>, %arg2: memref<1x16x128xf32, #tpu.memory_space<vmem>>, %arg3: memref<1x16x128xf32, #tpu.memory_space<vmem>>, %arg4: memref<1x128xf32, #tpu.memory_space<vmem>>, %arg5: memref<1x128xf32, #tpu.memory_space<vmem>>, %arg6: memref<1x128xf32, #tpu.memory_space<vmem>>, %arg7: memref<1x128xf32, #tpu.memory_space<vmem>>, %arg8: memref<128x128xf32, #tpu.memory_space<vmem>>, %arg9: memref<1x128xf32, #tpu.memory_space<vmem>>, %arg10: memref<128x128xf32, #tpu.memory_space<vmem>>, %arg11: memref<1x128xf32, #tpu.memory_space<vmem>>, %arg12: memref<1x16x16xf32, #tpu.memory_space<vmem>>) attributes {dimension_semantics = [#tpu.dimension_semantics<parallel>], iteration_bounds = array<i64: 2>, scalar_prefetch = 0 : i64, scratch_operands = 0 : i64, tpu.core_type = #tpu.core_type<tc>, window_params = [{transform_indices = @transform_0, window_bounds = array<i64: 1, 16, 128>}, {transform_indices = @transform_1, window_bounds = array<i64: 1, 16, 128>}, {transform_indices = @transform_2, window_bounds = array<i64: 1, 16, 128>}, {pipeline_mode = #tpu.pipeline_mode<synchronous>, transform_indices = @transform_3, window_bounds = array<i64: 1, 128>}, {pipeline_mode = #tpu.pipeline_mode<synchronous>, transform_indices = @transform_4, window_bounds = array<i64: 1, 128>}, {pipeline_mode = #tpu.pipeline_mode<synchronous>, transform_indices = @transform_5, window_bounds = array<i64: 1, 128>}, {pipeline_mode = #tpu.pipeline_mode<synchronous>, transform_indices = @transform_6, window_bounds = array<i64: 1, 128>}, {pipeline_mode = #tpu.pipeline_mode<synchronous>, transform_indices = @transform_7, window_bounds = array<i64: 128, 128>}, {pipeline_mode = #tpu.pipeline_mode<synchronous>, transform_indices = @transform_8, window_bounds = array<i64: 1, 128>}, {pipeline_mode = #tpu.pipeline_mode<synchronous>, transform_indices = @transform_9, window_bounds = array<i64: 128, 128>}, {pipeline_mode = #tpu.pipeline_mode<synchronous>, transform_indices = @transform_10, window_bounds = array<i64: 1, 128>}, {transform_indices = @transform_11, window_bounds = array<i64: 1, 16, 16>}]} {
    %c0 = arith.constant 0 : index
    %c0_0 = arith.constant 0 : index
    %c0_1 = arith.constant 0 : index
    %0 = vector.load %arg3[%c0, %c0_0, %c0_1] : memref<1x16x128xf32, #tpu.memory_space<vmem>>, vector<1x16x128xf32>
    %1 = vector.shape_cast %0 : vector<1x16x128xf32> to vector<16x128xf32>
    %c0_2 = arith.constant 0 : index
    %c0_3 = arith.constant 0 : index
    %c0_4 = arith.constant 0 : index
    %2 = vector.load %arg1[%c0_2, %c0_3, %c0_4] : memref<1x16x128xf32, #tpu.memory_space<vmem>>, vector<1x16x128xf32>
    %3 = vector.shape_cast %2 : vector<1x16x128xf32> to vector<16x128xf32>
    %4 = arith.addf %3, %1 : vector<16x128xf32>
    %c0_5 = arith.constant 0 : index
    %c0_6 = arith.constant 0 : index
    %5 = vector.load %arg4[%c0_5, %c0_6] : memref<1x128xf32, #tpu.memory_space<vmem>>, vector<1x128xf32>
    %c0_7 = arith.constant 0 : index
    %c0_8 = arith.constant 0 : index
    %6 = vector.load %arg5[%c0_7, %c0_8] : memref<1x128xf32, #tpu.memory_space<vmem>>, vector<1x128xf32>
    %cst = arith.constant dense<0.000000e+00> : vector<16xf32>
    %7 = vector.multi_reduction <add>, %4, %cst [1] : vector<16x128xf32> to vector<16xf32>
    %8 = vector.shape_cast %7 : vector<16xf32> to vector<16x1xf32>
    %cst_9 = arith.constant 3.200000e+01 : f32
    %9 = vector.broadcast %cst_9 : f32 to vector<16x1xf32>
    %10 = arith.divf %8, %9 : vector<16x1xf32>
    %11 = arith.mulf %4, %4 : vector<16x128xf32>
    %cst_10 = arith.constant dense<0.000000e+00> : vector<16xf32>
    %12 = vector.multi_reduction <add>, %11, %cst_10 [1] : vector<16x128xf32> to vector<16xf32>
    %13 = vector.shape_cast %12 : vector<16xf32> to vector<16x1xf32>
    %cst_11 = arith.constant 3.200000e+01 : f32
    %14 = vector.broadcast %cst_11 : f32 to vector<16x1xf32>
    %15 = arith.divf %13, %14 : vector<16x1xf32>
    %16 = arith.mulf %10, %10 : vector<16x1xf32>
    %17 = arith.subf %15, %16 : vector<16x1xf32>
    %18 = vector.broadcast %10 : vector<16x1xf32> to vector<16x128xf32>
    %19 = arith.subf %4, %18 : vector<16x128xf32>
    %cst_12 = arith.constant 9.99999974E-6 : f32
    %20 = vector.broadcast %cst_12 : f32 to vector<16x1xf32>
    %21 = arith.addf %17, %20 : vector<16x1xf32>
    %22 = math.rsqrt %21 : vector<16x1xf32>
    %23 = vector.broadcast %22 : vector<16x1xf32> to vector<16x128xf32>
    %24 = arith.mulf %19, %23 : vector<16x128xf32>
    %25 = vector.broadcast %5 : vector<1x128xf32> to vector<16x128xf32>
    %26 = arith.mulf %24, %25 : vector<16x128xf32>
    %27 = vector.broadcast %6 : vector<1x128xf32> to vector<16x128xf32>
    %28 = arith.addf %26, %27 : vector<16x128xf32>
    %c0_13 = arith.constant 0 : index
    %c0_14 = arith.constant 0 : index
    %c0_15 = arith.constant 0 : index
    %29 = vector.load %arg2[%c0_13, %c0_14, %c0_15] : memref<1x16x128xf32, #tpu.memory_space<vmem>>, vector<1x16x128xf32>
    %30 = vector.shape_cast %29 : vector<1x16x128xf32> to vector<16x128xf32>
    %31 = arith.addf %30, %1 : vector<16x128xf32>
    %c0_16 = arith.constant 0 : index
    %c0_17 = arith.constant 0 : index
    %32 = vector.load %arg6[%c0_16, %c0_17] : memref<1x128xf32, #tpu.memory_space<vmem>>, vector<1x128xf32>
    %c0_18 = arith.constant 0 : index
    %c0_19 = arith.constant 0 : index
    %33 = vector.load %arg7[%c0_18, %c0_19] : memref<1x128xf32, #tpu.memory_space<vmem>>, vector<1x128xf32>
    %cst_20 = arith.constant dense<0.000000e+00> : vector<16xf32>
    %34 = vector.multi_reduction <add>, %31, %cst_20 [1] : vector<16x128xf32> to vector<16xf32>
    %35 = vector.shape_cast %34 : vector<16xf32> to vector<16x1xf32>
    %cst_21 = arith.constant 3.200000e+01 : f32
    %36 = vector.broadcast %cst_21 : f32 to vector<16x1xf32>
    %37 = arith.divf %35, %36 : vector<16x1xf32>
    %38 = arith.mulf %31, %31 : vector<16x128xf32>
    %cst_22 = arith.constant dense<0.000000e+00> : vector<16xf32>
    %39 = vector.multi_reduction <add>, %38, %cst_22 [1] : vector<16x128xf32> to vector<16xf32>
    %40 = vector.shape_cast %39 : vector<16xf32> to vector<16x1xf32>
    %cst_23 = arith.constant 3.200000e+01 : f32
    %41 = vector.broadcast %cst_23 : f32 to vector<16x1xf32>
    %42 = arith.divf %40, %41 : vector<16x1xf32>
    %43 = arith.mulf %37, %37 : vector<16x1xf32>
    %44 = arith.subf %42, %43 : vector<16x1xf32>
    %45 = vector.broadcast %37 : vector<16x1xf32> to vector<16x128xf32>
    %46 = arith.subf %31, %45 : vector<16x128xf32>
    %cst_24 = arith.constant 9.99999974E-6 : f32
    %47 = vector.broadcast %cst_24 : f32 to vector<16x1xf32>
    %48 = arith.addf %44, %47 : vector<16x1xf32>
    %49 = math.rsqrt %48 : vector<16x1xf32>
    %50 = vector.broadcast %49 : vector<16x1xf32> to vector<16x128xf32>
    %51 = arith.mulf %46, %50 : vector<16x128xf32>
    %52 = vector.broadcast %32 : vector<1x128xf32> to vector<16x128xf32>
    %53 = arith.mulf %51, %52 : vector<16x128xf32>
    %54 = vector.broadcast %33 : vector<1x128xf32> to vector<16x128xf32>
    %55 = arith.addf %53, %54 : vector<16x128xf32>
    %c0_25 = arith.constant 0 : index
    %c0_26 = arith.constant 0 : index
    %56 = vector.load %arg8[%c0_25, %c0_26] : memref<128x128xf32, #tpu.memory_space<vmem>>, vector<128x128xf32>
    %cst_27 = arith.constant dense<0.000000e+00> : vector<16x128xf32>
    %57 = tpu.matmul %28, %56, %cst_27 {dimension_numbers = #tpu.dot_dimension_numbers<[1], [0], [0], [1], [0, 0, 1, 1], [], []>} : vector<16x128xf32>, vector<128x128xf32>, vector<16x128xf32> -> vector<16x128xf32>
    %c0_28 = arith.constant 0 : index
    %c0_29 = arith.constant 0 : index
    %58 = vector.load %arg9[%c0_28, %c0_29] : memref<1x128xf32, #tpu.memory_space<vmem>>, vector<1x128xf32>
    %59 = vector.broadcast %58 : vector<1x128xf32> to vector<16x128xf32>
    %60 = arith.addf %57, %59 : vector<16x128xf32>
    %c0_30 = arith.constant 0 : index
    %c0_31 = arith.constant 0 : index
    %61 = vector.load %arg10[%c0_30, %c0_31] : memref<128x128xf32, #tpu.memory_space<vmem>>, vector<128x128xf32>
    %cst_32 = arith.constant dense<0.000000e+00> : vector<16x128xf32>
    %62 = tpu.matmul %55, %61, %cst_32 {dimension_numbers = #tpu.dot_dimension_numbers<[1], [0], [0], [1], [0, 0, 1, 1], [], []>} : vector<16x128xf32>, vector<128x128xf32>, vector<16x128xf32> -> vector<16x128xf32>
    %c0_33 = arith.constant 0 : index
    %c0_34 = arith.constant 0 : index
    %63 = vector.load %arg11[%c0_33, %c0_34] : memref<1x128xf32, #tpu.memory_space<vmem>>, vector<1x128xf32>
    %64 = vector.broadcast %63 : vector<1x128xf32> to vector<16x128xf32>
    %65 = arith.addf %62, %64 : vector<16x128xf32>
    %cst_35 = arith.constant dense<0.000000e+00> : vector<16x16xf32>
    %66 = tpu.matmul %60, %65, %cst_35 {dimension_numbers = #tpu.dot_dimension_numbers<[1], [1], [0], [0], [0, 0, 1, 0], [], []>} : vector<16x128xf32>, vector<16x128xf32>, vector<16x16xf32> -> vector<16x16xf32>
    %cst_36 = arith.constant 0.000000e+00 : f32
    %67 = vector.broadcast %cst_36 : f32 to vector<16x16xf32>
    %68 = arith.subf %67, %66 : vector<16x16xf32>
    %69 = math.exp %68 : vector<16x16xf32>
    %cst_37 = arith.constant 1.000000e+00 : f32
    %70 = vector.broadcast %cst_37 : f32 to vector<16x16xf32>
    %71 = arith.addf %70, %69 : vector<16x16xf32>
    %cst_38 = arith.constant 1.000000e+00 : f32
    %72 = vector.broadcast %cst_38 : f32 to vector<16x16xf32>
    %73 = arith.divf %72, %71 : vector<16x16xf32>
    %c0_39 = arith.constant 0 : index
    %c0_40 = arith.constant 0 : index
    %c0_41 = arith.constant 0 : index
    %74 = vector.load %arg12[%c0_39, %c0_40, %c0_41] : memref<1x16x16xf32, #tpu.memory_space<vmem>>, vector<1x16x16xf32>
    %75 = vector.shape_cast %74 : vector<1x16x16xf32> to vector<16x16xf32>
    %76 = vector.shape_cast %73 : vector<16x16xf32> to vector<1x16x16xf32>
    tpu.vector_store %arg12[%c0_39, %c0_40, %c0_41], %76 {strides = array<i32>} : memref<1x16x16xf32, #tpu.memory_space<vmem>>, vector<1x16x16xf32>,
    return
  }
  func.func @transform_0(%arg0: i32) -> (i32, i32, i32) {
    %c0_i32 = arith.constant 0 : i32
    %c0_i32_0 = arith.constant 0 : i32
    %c0_i32_1 = arith.constant 0 : i32
    return %arg0, %c0_i32, %c0_i32_0 : i32, i32, i32
  }
  func.func @transform_1(%arg0: i32) -> (i32, i32, i32) {
    %c0_i32 = arith.constant 0 : i32
    %c0_i32_0 = arith.constant 0 : i32
    %c0_i32_1 = arith.constant 0 : i32
    return %arg0, %c0_i32, %c0_i32_0 : i32, i32, i32
  }
  func.func @transform_2(%arg0: i32) -> (i32, i32, i32) {
    %c0_i32 = arith.constant 0 : i32
    %c0_i32_0 = arith.constant 0 : i32
    %c0_i32_1 = arith.constant 0 : i32
    return %arg0, %c0_i32, %c0_i32_0 : i32, i32, i32
  }
  func.func @transform_3(%arg0: i32) -> (i32, i32) {
    %c0_i32 = arith.constant 0 : i32
    %c0_i32_0 = arith.constant 0 : i32
    %c0_i32_1 = arith.constant 0 : i32
    return %c0_i32, %c0_i32_0 : i32, i32
  }
  func.func @transform_4(%arg0: i32) -> (i32, i32) {
    %c0_i32 = arith.constant 0 : i32
    %c0_i32_0 = arith.constant 0 : i32
    %c0_i32_1 = arith.constant 0 : i32
    return %c0_i32, %c0_i32_0 : i32, i32
  }
  func.func @transform_5(%arg0: i32) -> (i32, i32) {
    %c0_i32 = arith.constant 0 : i32
    %c0_i32_0 = arith.constant 0 : i32
    %c0_i32_1 = arith.constant 0 : i32
    return %c0_i32, %c0_i32_0 : i32, i32
  }
  func.func @transform_6(%arg0: i32) -> (i32, i32) {
    %c0_i32 = arith.constant 0 : i32
    %c0_i32_0 = arith.constant 0 : i32
    %c0_i32_1 = arith.constant 0 : i32
    return %c0_i32, %c0_i32_0 : i32, i32
  }
  func.func @transform_7(%arg0: i32) -> (i32, i32) {
    %c0_i32 = arith.constant 0 : i32
    %c0_i32_0 = arith.constant 0 : i32
    %c0_i32_1 = arith.constant 0 : i32
    return %c0_i32, %c0_i32_0 : i32, i32
  }
  func.func @transform_8(%arg0: i32) -> (i32, i32) {
    %c0_i32 = arith.constant 0 : i32
    %c0_i32_0 = arith.constant 0 : i32
    %c0_i32_1 = arith.constant 0 : i32
    return %c0_i32, %c0_i32_0 : i32, i32
  }
  func.func @transform_9(%arg0: i32) -> (i32, i32) {
    %c0_i32 = arith.constant 0 : i32
    %c0_i32_0 = arith.constant 0 : i32
    %c0_i32_1 = arith.constant 0 : i32
    return %c0_i32, %c0_i32_0 : i32, i32
  }
  func.func @transform_10(%arg0: i32) -> (i32, i32) {
    %c0_i32 = arith.constant 0 : i32
    %c0_i32_0 = arith.constant 0 : i32
    %c0_i32_1 = arith.constant 0 : i32
    return %c0_i32, %c0_i32_0 : i32, i32
  }
  func.func @transform_11(%arg0: i32) -> (i32, i32, i32) {
    %c0_i32 = arith.constant 0 : i32
    %c0_i32_0 = arith.constant 0 : i32
    %c0_i32_1 = arith.constant 0 : i32
    return %arg0, %c0_i32, %c0_i32_0 : i32, i32, i32
  }
}

</mosaic_0001>

<llo_original>
// kernel: _lambda_.10
$region0: #{_lambda_.10}
  #allocation0 [shape = 'u32[]', space=smem, size = 0x4, offset = 0x4, fixed_abs, tag = 'smem constant byte address 0x4 - core index']
  #allocation1 [shape = 'u32[72,128]{1,0:T(1,128)}', space=vmem, size = 0x9000, scoped, tag = 'internal scratch']
  %s0 = inlined_call_operand.vmem [shape: f32[2,16,16], index: 0, kind: input, shape index: {}]
  %s1 = inlined_call_operand.vmem [shape: f32[2,16,128], index: 1, kind: input, shape index: {}]
  %s2 = inlined_call_operand.vmem [shape: f32[128,128], index: 2, kind: input, shape index: {}]
  %s3 = inlined_call_operand.vmem [shape: f32[1,128], index: 3, kind: input, shape index: {}]
  %s4 = inlined_call_operand.hbm [shape: f32[1,128], index: 4, kind: input, shape index: {}]
  %s5 = inlined_call_operand.hbm [shape: f32[1,128], index: 5, kind: input, shape index: {}]
  %s6 = inlined_call_operand.vmem [shape: f32[2,16,128], index: 6, kind: output, shape index: {0}]
  %s7 = inlined_call_operand.vmem [shape: f32[2,16,16], index: 7, kind: output, shape index: {1}]
  %8 = xla_tuple %s6, %s7
  %s9 = sld [smem:[#allocation0]]
  $region73: #{_lambda_.10} parent=0
    _
  %s11 = ssub.s32 1, %s9
  %s12 = scalar_select 0, %s11, %s9
  $region1: #{_lambda_.10} parent=0
    #allocation2 [shape = 'u8[512]{0}', space=vmem, size = 0x400, scoped, tag = 'input window, operand 4, single buffered']
    #allocation3 [shape = 's32[2]{0}', space=sflag, size = 0x8, scoped, tag = 'scoped memory for _lambda_.10']
    #allocation4 [shape = 'u8[512]{0}', space=vmem, size = 0x400, scoped, tag = 'input window, operand 5, single buffered']
    #allocation5 [shape = 's32[1]{0}', space=sflag, size = 0x4, scoped, tag = 'scoped memory for _lambda_.10']
    %13 = vsyncpa [#allocation3], 0
    %14 = vsyncpa [#allocation5], 0
    loop: start=0, step=1, limit=4
    $region2: #{_lambda_.10} parent=1 // loop_pre_header
      _
    $region3: #{_lambda_.10} parent=1 // loop_header
      %s16 = sphi 0, %s20
      %p17 = scmp.ge.s32.totalorder %s16, 4
      %s26 = sphi 0, %s28
      %s29 = sphi 0, %s26
      %s30 = sphi 0, %s29
      %s46 = sphi 0, %s30
      %s52 = sphi 0, %s54
      %s55 = sphi 0, %s52
      %s56 = sphi 0, %s55
      %s72 = sphi 0, %s56
      %s76 = sphi 0, %s76
      %s78 = sphi 0, %s76
      %s79 = sphi 0, %s78
      %s93 = sphi 0, %s79
      %s97 = sphi 0, %s97
      %s99 = sphi 0, %s97
      %s100 = sphi 0, %s99
      %s114 = sphi 0, %s100
      %s118 = sphi 0, %s118
      %s120 = sphi 0, %s118
      %s121 = sphi 0, %s120
      %s135 = sphi 0, %s121
      %s139 = sphi 0, %s139
      %s141 = sphi 0, %s139
      %s142 = sphi 0, %s141
      %s156 = sphi 0, %s142
      %s162 = sphi 0, %s164
      %s165 = sphi 0, %s162
      %s166 = sphi 0, %s165
      %s182 = sphi 0, %s166
      %s188 = sphi 0, %s190
      %s191 = sphi 0, %s188
      %s192 = sphi 0, %s191
      %s208 = sphi 0, %s192
    $region4: #{_lambda_.10} parent=1 // loop_header_branch
      %19 = sbr.rel (%p17) target = $region8
    $region5: #{_lambda_.10} parent=1 // loop_body
      %s21 = ssub.s32 %s16, 1
      %s22 = ssub.s32 %s16, 2
      %s23 = sadd.s32 %s16, 1
      %s24 = ssub.s32 %s16, %s23
      %p25 = scmp.eq.s32.totalorder %s24, 0
      %s27 = sadd.s32 %s26, 1
      %s28 = scalar_select %p25, %s26, %s27
      %p31 = pneg %p25
      %p32 = scmp.eq.s32.totalorder %s16, 1
      %p33 = por %p31, %p32
      %p34 = scmp.ne.s32.totalorder %s26, %s29
      %p35 = scmp.eq.s32.totalorder %s16, 0
      %p36 = por %p34, %p35
      %p37 = scmp.ne.s32.totalorder %s26, %s29
      %p38 = scmp.eq.s32.totalorder %s21, 1
      %p39 = por %p37, %p38
      %p40 = scmp.ne.s32.totalorder %s29, %s30
      %p41 = scmp.eq.s32.totalorder %s21, 0
      %p42 = por %p40, %p41
      %p43 = scmp.ne.s32.totalorder %s29, %s30
      %p44 = scmp.eq.s32.totalorder %s22, 1
      %p45 = por %p43, %p44
      %p47 = scmp.ne.s32.totalorder %s30, %s46
      %p48 = scmp.eq.s32.totalorder %s22, 0
      %p49 = por %p47, %p48
      %s50 = ssub.s32 %s16, %s23
      %p51 = scmp.eq.s32.totalorder %s50, 0
      %s53 = sadd.s32 %s52, 1
      %s54 = scalar_select %p51, %s52, %s53
      %p57 = pneg %p51
      %p58 = scmp.eq.s32.totalorder %s16, 1
      %p59 = por %p57, %p58
      %p60 = scmp.ne.s32.totalorder %s52, %s55
      %p61 = scmp.eq.s32.totalorder %s16, 0
      %p62 = por %p60, %p61
      %p63 = scmp.ne.s32.totalorder %s52, %s55
      %p64 = scmp.eq.s32.totalorder %s21, 1
      %p65 = por %p63, %p64
      %p66 = scmp.ne.s32.totalorder %s55, %s56
      %p67 = scmp.eq.s32.totalorder %s21, 0
      %p68 = por %p66, %p67
      %p69 = scmp.ne.s32.totalorder %s55, %s56
      %p70 = scmp.eq.s32.totalorder %s22, 1
      %p71 = por %p69, %p70
      %p73 = scmp.ne.s32.totalorder %s56, %s72
      %p74 = scmp.eq.s32.totalorder %s22, 0
      %p75 = por %p73, %p74
      %s77 = sadd.s32 %s76, 1
      %p80 = scmp.eq.s32.totalorder %s16, 1
      %p81 = scmp.ne.s32.totalorder %s76, %s78
      %p82 = scmp.eq.s32.totalorder %s16, 0
      %p83 = por %p81, %p82
      %p84 = scmp.ne.s32.totalorder %s76, %s78
      %p85 = scmp.eq.s32.totalorder %s21, 1
      %p86 = por %p84, %p85
      %p87 = scmp.ne.s32.totalorder %s78, %s79
      %p88 = scmp.eq.s32.totalorder %s21, 0
      %p89 = por %p87, %p88
      %p90 = scmp.ne.s32.totalorder %s78, %s79
      %p91 = scmp.eq.s32.totalorder %s22, 1
      %p92 = por %p90, %p91
      %p94 = scmp.ne.s32.totalorder %s79, %s93
      %p95 = scmp.eq.s32.totalorder %s22, 0
      %p96 = por %p94, %p95
      %s98 = sadd.s32 %s97, 1
      %p101 = scmp.eq.s32.totalorder %s16, 1
      %p102 = scmp.ne.s32.totalorder %s97, %s99
      %p103 = scmp.eq.s32.totalorder %s16, 0
      %p104 = por %p102, %p103
      %p105 = scmp.ne.s32.totalorder %s97, %s99
      %p106 = scmp.eq.s32.totalorder %s21, 1
      %p107 = por %p105, %p106
      %p108 = scmp.ne.s32.totalorder %s99, %s100
      %p109 = scmp.eq.s32.totalorder %s21, 0
      %p110 = por %p108, %p109
      %p111 = scmp.ne.s32.totalorder %s99, %s100
      %p112 = scmp.eq.s32.totalorder %s22, 1
      %p113 = por %p111, %p112
      %p115 = scmp.ne.s32.totalorder %s100, %s114
      %p116 = scmp.eq.s32.totalorder %s22, 0
      %p117 = por %p115, %p116
      %s119 = sadd.s32 %s118, 1
      %p122 = scmp.eq.s32.totalorder %s16, 1
      %p123 = scmp.ne.s32.totalorder %s118, %s120
      %p124 = scmp.eq.s32.totalorder %s16, 0
      %p125 = por %p123, %p124
      %p126 = scmp.ne.s32.totalorder %s118, %s120
      %p127 = scmp.eq.s32.totalorder %s21, 1
      %p128 = por %p126, %p127
      %p129 = scmp.ne.s32.totalorder %s120, %s121
      %p130 = scmp.eq.s32.totalorder %s21, 0
      %p131 = por %p129, %p130
      %p132 = scmp.ne.s32.totalorder %s120, %s121
      %p133 = scmp.eq.s32.totalorder %s22, 1
      %p134 = por %p132, %p133
      %p136 = scmp.ne.s32.totalorder %s121, %s135
      %p137 = scmp.eq.s32.totalorder %s22, 0
      %p138 = por %p136, %p137
      %s140 = sadd.s32 %s139, 1
      %p143 = scmp.eq.s32.totalorder %s16, 1
      %p144 = scmp.ne.s32.totalorder %s139, %s141
      %p145 = scmp.eq.s32.totalorder %s16, 0
      %p146 = por %p144, %p145
      %p147 = scmp.ne.s32.totalorder %s139, %s141
      %p148 = scmp.eq.s32.totalorder %s21, 1
      %p149 = por %p147, %p148
      %p150 = scmp.ne.s32.totalorder %s141, %s142
      %p151 = scmp.eq.s32.totalorder %s21, 0
      %p152 = por %p150, %p151
      %p153 = scmp.ne.s32.totalorder %s141, %s142
      %p154 = scmp.eq.s32.totalorder %s22, 1
      %p155 = por %p153, %p154
      %p157 = scmp.ne.s32.totalorder %s142, %s156
      %p158 = scmp.eq.s32.totalorder %s22, 0
      %p159 = por %p157, %p158
      %s160 = ssub.s32 %s16, %s23
      %p161 = scmp.eq.s32.totalorder %s160, 0
      %s163 = sadd.s32 %s162, 1
      %s164 = scalar_select %p161, %s162, %s163
      %p167 = pneg %p161
      %p168 = scmp.eq.s32.totalorder %s16, 1
      %p169 = por %p167, %p168
      %p170 = scmp.ne.s32.totalorder %s162, %s165
      %p171 = scmp.eq.s32.totalorder %s16, 0
      %p172 = por %p170, %p171
      %p173 = scmp.ne.s32.totalorder %s162, %s165
      %p174 = scmp.eq.s32.totalorder %s21, 1
      %p175 = por %p173, %p174
      %p176 = scmp.ne.s32.totalorder %s165, %s166
      %p177 = scmp.eq.s32.totalorder %s21, 0
      %p178 = por %p176, %p177
      %p179 = scmp.ne.s32.totalorder %s165, %s166
      %p180 = scmp.eq.s32.totalorder %s22, 1
      %p181 = por %p179, %p180
      %p183 = scmp.ne.s32.totalorder %s166, %s182
      %p184 = scmp.eq.s32.totalorder %s22, 0
      %p185 = por %p183, %p184
      %s186 = ssub.s32 %s16, %s23
      %p187 = scmp.eq.s32.totalorder %s186, 0
      %s189 = sadd.s32 %s188, 1
      %s190 = scalar_select %p187, %s188, %s189
      %p193 = pneg %p187
      %p194 = scmp.eq.s32.totalorder %s16, 1
      %p195 = por %p193, %p194
      %p196 = scmp.ne.s32.totalorder %s188, %s191
      %p197 = scmp.eq.s32.totalorder %s16, 0
      %p198 = por %p196, %p197
      %p199 = scmp.ne.s32.totalorder %s188, %s191
      %p200 = scmp.eq.s32.totalorder %s21, 1
      %p201 = por %p199, %p200
      %p202 = scmp.ne.s32.totalorder %s191, %s192
      %p203 = scmp.eq.s32.totalorder %s21, 0
      %p204 = por %p202, %p203
      %p205 = scmp.ne.s32.totalorder %s191, %s192
      %p206 = scmp.eq.s32.totalorder %s22, 1
      %p207 = por %p205, %p206
      %p209 = scmp.ne.s32.totalorder %s192, %s208
      %p210 = scmp.eq.s32.totalorder %s22, 0
      %p211 = por %p209, %p210
      %p212 = scmp.le.s32.totalorder 1, %s16
      %p213 = scmp.lt.s32.totalorder %s16, 3
      %p214 = pnand %p212, %p213
      %p215 = pneg %p214
      // Predicated region
      $region9: #{_lambda_.10} parent=5 // pred_check
        _
      $region10: #{_lambda_.10} parent=5 // pred_check_branch
        %217 = sbr.rel (%p214) target = $region12
      $region11: #{_lambda_.10} parent=5 // pred_region
        %s218 = ssub.s32 %s16, 1
        // Predicated region
        $region13: #{_lambda_.10} parent=11 // pred_check
          %p219 = pneg %p89
        $region14: #{_lambda_.10} parent=11 // pred_check_branch
          %221 = sbr.rel (%p219) target = $region16
        $region15: #{_lambda_.10} parent=11 // pred_region
          _
        $region16: #{_lambda_.10} parent=11 // pred_fallthru
          _
        // Predicated region
        $region17: #{_lambda_.10} parent=11 // pred_check
          %p222 = pneg %p110
        $region18: #{_lambda_.10} parent=11 // pred_check_branch
          %224 = sbr.rel (%p222) target = $region20
        $region19: #{_lambda_.10} parent=11 // pred_region
          _
        $region20: #{_lambda_.10} parent=11 // pred_fallthru
          _
        // Predicated region
        $region21: #{_lambda_.10} parent=11 // pred_check
          %p225 = pneg %p131
        $region22: #{_lambda_.10} parent=11 // pred_check_branch
          %227 = sbr.rel (%p225) target = $region24
        $region23: #{_lambda_.10} parent=11 // pred_region
          %229 = vsyncadd [#allocation3], 0
          %s231 = sshll.u32 %s4, 4
          %s232 = int_to_ptr.hbm [resolvable:$true] %s231
          %s233 = sshll.u32 [#allocation2], 4
          %s234 = int_to_ptr.vmem [resolvable:$true] %s233
          %236 = dma.hbm_to_vmem [thread:$0]  %s232, 16, %s234, [#allocation3]
        $region24: #{_lambda_.10} parent=11 // pred_fallthru
          _
        // Predicated region
        $region25: #{_lambda_.10} parent=11 // pred_check
          %p237 = pneg %p152
        $region26: #{_lambda_.10} parent=11 // pred_check_branch
          %239 = sbr.rel (%p237) target = $region28
        $region27: #{_lambda_.10} parent=11 // pred_region
          %241 = vsyncadd [#allocation5], 0
          %s243 = sshll.u32 %s5, 4
          %s244 = int_to_ptr.hbm [resolvable:$true] %s243
          %s245 = sshll.u32 [#allocation4], 4
          %s246 = int_to_ptr.vmem [resolvable:$true] %s245
          %248 = dma.hbm_to_vmem [thread:$0]  %s244, 16, %s246, [#allocation5]
        $region28: #{_lambda_.10} parent=11 // pred_fallthru
          _
      $region12: #{_lambda_.10} parent=5 // pred_fallthru
        _
      %p249 = scmp.lt.s32.totalorder %s16, 2
      // Predicated region
      $region29: #{_lambda_.10} parent=5 // pred_check
        %p250 = pneg %p249
      $region30: #{_lambda_.10} parent=5 // pred_check_branch
        %252 = sbr.rel (%p250) target = $region32
      $region31: #{_lambda_.10} parent=5 // pred_region
        // Predicated region
        $region33: #{_lambda_.10} parent=31 // pred_check
          %p253 = pneg %p36
        $region34: #{_lambda_.10} parent=31 // pred_check_branch
          %255 = sbr.rel (%p253) target = $region36
        $region35: #{_lambda_.10} parent=31 // pred_region
          %p256 = scmp.lt.s32.totalorder %s16, 1
          %s257 = scalar_select %p256, %s16, 1
          %s258 = smul.addr %s257, 2
          %s259 = smul.addr %s258, 8
          %s260 = scalar_lea.vmem %s0, %s259
        $region36: #{_lambda_.10} parent=31 // pred_fallthru
          _
        // Predicated region
        $region37: #{_lambda_.10} parent=31 // pred_check
          %p261 = pneg %p62
        $region38: #{_lambda_.10} parent=31 // pred_check_branch
          %263 = sbr.rel (%p261) target = $region40
        $region39: #{_lambda_.10} parent=31 // pred_region
          %p264 = scmp.lt.s32.totalorder %s16, 1
          %s265 = scalar_select %p264, %s16, 1
          %s266 = smul.addr %s265, 2
          %s267 = smul.addr %s266, 8
          %s268 = scalar_lea.vmem %s1, %s267
        $region40: #{_lambda_.10} parent=31 // pred_fallthru
          _
      $region32: #{_lambda_.10} parent=5 // pred_fallthru
        _
      %p269 = scmp.le.s32.totalorder 1, %s16
      %p270 = scmp.lt.s32.totalorder %s16, 3
      %p271 = pnand %p269, %p270
      %p272 = pneg %p271
      // Predicated region
      $region41: #{_lambda_.10} parent=5 // pred_check
        _
      $region42: #{_lambda_.10} parent=5 // pred_check_branch
        %274 = sbr.rel (%p271) target = $region44
      $region43: #{_lambda_.10} parent=5 // pred_region
        %s275 = ssub.s32 %s16, 1
        // Predicated region
        $region45: #{_lambda_.10} parent=43 // pred_check
          %p276 = pneg %p131
        $region46: #{_lambda_.10} parent=43 // pred_check_branch
          %278 = sbr.rel (%p276) target = $region48
        $region47: #{_lambda_.10} parent=43 // pred_region
          %280 = dma.done [#allocation3], 16
        $region48: #{_lambda_.10} parent=43 // pred_fallthru
          _
        // Predicated region
        $region49: #{_lambda_.10} parent=43 // pred_check
          %p281 = pneg %p152
        $region50: #{_lambda_.10} parent=43 // pred_check_branch
          %283 = sbr.rel (%p281) target = $region52
        $region51: #{_lambda_.10} parent=43 // pred_region
          %285 = dma.done [#allocation5], 16
        $region52: #{_lambda_.10} parent=43 // pred_fallthru
          _
        %p286 = scmp.lt.s32.totalorder %s21, 1
        %s287 = scalar_select %p286, %s21, 1
        %s288 = smul.addr %s287, 2
        %s289 = smul.addr %s288, 8
        %s290 = scalar_lea.vmem %s0, %s289
        %p291 = pneg %p42
        %p292 = pneg %p39
        %p293 = scmp.lt.s32.totalorder %s21, 1
        %s294 = scalar_select %p293, %s21, 1
        %s295 = smul.addr %s294, 2
        %s296 = smul.addr %s295, 8
        %s297 = scalar_lea.vmem %s1, %s296
        %p298 = pneg %p68
        %p299 = pneg %p65
        %p300 = pneg %p89
        %p301 = pneg %p86
        %p302 = pneg %p110
        %p303 = pneg %p107
        %p304 = pneg %p131
        %p305 = pneg %p128
        %p306 = pneg %p152
        %p307 = pneg %p149
        %p308 = pneg %p178
        %p309 = pneg %p175
        %p310 = scmp.lt.s32.totalorder %s21, 1
        %s311 = scalar_select %p310, %s21, 1
        %s312 = smul.addr %s311, 2
        %s313 = smul.addr %s312, 8
        %s314 = scalar_lea.vmem %s6, %s313
        %p315 = pneg %p204
        %p316 = pneg %p201
        %p317 = scmp.lt.s32.totalorder %s21, 1
        %s318 = scalar_select %p317, %s21, 1
        %s319 = smul.addr %s318, 2
        %s320 = smul.addr %s319, 8
        %s321 = scalar_lea.vmem %s7, %s320
        %p322 = scmp.lt.s32.totalorder %s21, 1
        %s323 = scalar_select %p322, %s21, 1
        %s324 = smul.addr %s323, 2
        %s325 = smul.addr %s324, 8
        %s326 = scalar_lea.vmem %s0, %s325
        %p327 = scmp.lt.s32.totalorder %s21, 1
        %s328 = scalar_select %p327, %s21, 1
        %s329 = smul.addr %s328, 2
        %s330 = smul.addr %s329, 8
        %s331 = scalar_lea.vmem %s1, %s330
        %p332 = scmp.lt.s32.totalorder %s21, 1
        %s333 = scalar_select %p332, %s21, 1
        %s334 = smul.addr %s333, 2
        %s335 = smul.addr %s334, 8
        %s336 = scalar_lea.vmem %s6, %s335
        %p337 = scmp.lt.s32.totalorder %s21, 1
        %s338 = scalar_select %p337, %s21, 1
        %s339 = smul.addr %s338, 2
        %s340 = smul.addr %s339, 8
        %s341 = scalar_lea.vmem %s7, %s340
        %v342 = vld [vmem:[%s326] sm:$0xff]
        %v343 = vld [vmem:[%s326 + $0x8] sm:$0xff]
        %v344 = vld [vmem:[%s331] sm:$0xff]
        %v345 = vld [vmem:[%s331 + $0x8] sm:$0xff]
        %v346 = vld [vmem:[%s2] sm:$0xff]
        %v347 = vld [vmem:[%s2 + $0x8] sm:$0xff]
        %v348 = vld [vmem:[%s2 + $0x10] sm:$0xff]
        %v349 = vld [vmem:[%s2 + $0x18] sm:$0xff]
        %v350 = vld [vmem:[%s2 + $0x20] sm:$0xff]
        %v351 = vld [vmem:[%s2 + $0x28] sm:$0xff]
        %v352 = vld [vmem:[%s2 + $0x30] sm:$0xff]
        %v353 = vld [vmem:[%s2 + $0x38] sm:$0xff]
        %v354 = vld [vmem:[%s2 + $0x40] sm:$0xff]
        %v355 = vld [vmem:[%s2 + $0x48] sm:$0xff]
        %v356 = vld [vmem:[%s2 + $0x50] sm:$0xff]
        %v357 = vld [vmem:[%s2 + $0x58] sm:$0xff]
        %v358 = vld [vmem:[%s2 + $0x60] sm:$0xff]
        %v359 = vld [vmem:[%s2 + $0x68] sm:$0xff]
        %v360 = vld [vmem:[%s2 + $0x70] sm:$0xff]
        %v361 = vld [vmem:[%s2 + $0x78] sm:$0xff]
        %v362 = vld [vmem:[%s3] sm:$0x1]
        %vm363 = vcmask 130048
        %v364 = vsel %vm363, %v342, 0.0
        %365 = vadd.xlane.f32.xlu0 %v364
        %v366 = vpop.xlane.xlu0 %365
        %v367 = vsel %vm363, %v343, 0.0
        %368 = vadd.xlane.f32.xlu0 %v367
        %v369 = vpop.xlane.xlu0 %368
        %v370 = vmax.f32 %v366, 1e-12
        %v371 = vmax.f32 %v369, 1e-12
        %v372 = vrcp.pop %v370
        %v373 = vrcp.pop %v371
        %v374 = vmul.f32 %v344, %v372
        %v375 = vmul.f32 %v345, %v373
        %v377 = vsel %vm363, %v342, 0
        %v380 = vsel %vm363, %v343, 0
        %382 = vmatpush.msra.mxu0 0.0
        %383 = vmatpush.msra.mxu0 0.0
        %384 = vmatpush.msra.mxu0 0.0
        %385 = vmatpush.msra.mxu0 0.0
        %386 = vmatpush.msra.mxu0 0.0
        %387 = vmatpush.msra.mxu0 0.0
        %388 = vmatpush.msra.mxu0 0.0
        %389 = vmatpush.msra.mxu0 0.0
        %390 = vmatpush.msra.mxu0 0.0
        %391 = vmatpush.msra.mxu0 0.0
        %392 = vmatpush.msra.mxu0 0.0
        %393 = vmatpush.msra.mxu0 0.0
        %394 = vmatpush.msra.mxu0 0.0
        %395 = vmatpush.msra.mxu0 0.0
        %396 = vmatpush.msra.mxu0 %v375
        %397 = vmatpush.msra.mxu0 %v374
        %398 = vmatmul.f32.gmra.mxu0 %v377
        %v399 = vpop.f32.mrf.mxu0
        %v400 = vadd.f32 0.0, %v399
        %401 = vmatmul.f32.gmra.mxu0 %v380
        %v402 = vpop.f32.mrf.mxu0
        %v403 = vadd.f32 0.0, %v402
        %404 = vdwg.mxu0
        %v406 = vperm.slane %v362, 0
        %408 = vmatpush.msra.mxu0 %v361
        %409 = vmatpush.msra.mxu0 %v360
        %410 = vmatpush.msra.mxu0 %v359
        %411 = vmatpush.msra.mxu0 %v358
        %412 = vmatpush.msra.mxu0 %v357
        %413 = vmatpush.msra.mxu0 %v356
        %414 = vmatpush.msra.mxu0 %v355
        %415 = vmatpush.msra.mxu0 %v354
        %416 = vmatpush.msra.mxu0 %v353
        %417 = vmatpush.msra.mxu0 %v352
        %418 = vmatpush.msra.mxu0 %v351
        %419 = vmatpush.msra.mxu0 %v350
        %420 = vmatpush.msra.mxu0 %v349
        %421 = vmatpush.msra.mxu0 %v348
        %422 = vmatpush.msra.mxu0 %v347
        %423 = vmatpush.msra.mxu0 %v346
        %424 = vmatmul.f32.gmra.mxu0 %v400
        %v425 = vpop.f32.mrf.mxu0
        %v426 = vadd.f32 %v406, %v425
        %427 = vmatmul.f32.gmra.mxu0 %v403
        %v428 = vpop.f32.mrf.mxu0
        %v429 = vadd.f32 %v406, %v428
        %430 = vdwg.mxu0
        %vm431 = vcmp.gt.f32.partialorder %v426, 0.0
        %vm432 = vcmp.gt.f32.partialorder %v429, 0.0
        %v433 = vmin.f32 %v426, 0.0
        %v434 = vmin.f32 %v429, 0.0
        %v435 = vmul.f32 %v433, 1.442695
        %v436 = vpow.pop %v435
        %v437 = vmul.f32 %v434, 1.442695
        %v438 = vpow.pop %v437
        %v439 = vsub.f32 %v436, 1.0
        %v440 = vsub.f32 %v438, 1.0
        %v441 = vsel %vm431, %v426, %v439
        %v442 = vsel %vm432, %v429, %v440
        %v443 = vld [vmem:[#allocation2] sm:$0x1]
        %v444 = vld [vmem:[#allocation4] sm:$0x1]
        %445 = vadd.xlane.f32.xlu0 %v441
        %v446 = vpop.xlane.xlu0 %445
        %447 = vadd.xlane.f32.xlu0 %v442
        %v448 = vpop.xlane.xlu0 %447
        %v449 = vrcp.pop 32.0
        %v450 = vmul.f32 32.0, %v449
        %v451 = vsub.f32 1.0, %v450
        %v452 = vmul.f32 %v449, %v451
        %v453 = vadd.f32 %v449, %v452
        %vm454 = vweird.f32 %v449
        %v455 = vsel %vm454, %v449, %v453
        %v456 = vmul.f32 %v446, %v455
        %v457 = vmul.f32 %v448, %v455
        %v458 = vmul.f32 %v441, %v441
        %v459 = vmul.f32 %v442, %v442
        %460 = vadd.xlane.f32.xlu0 %v458
        %v461 = vpop.xlane.xlu0 %460
        %462 = vadd.xlane.f32.xlu0 %v459
        %v463 = vpop.xlane.xlu0 %462
        %v464 = vmul.f32 %v461, %v455
        %v465 = vmul.f32 %v463, %v455
        %v466 = vmul.f32 %v456, %v456
        %v467 = vmul.f32 %v457, %v457
        %v468 = vsub.f32 %v464, %v466
        %v469 = vsub.f32 %v465, %v467
        %v470 = vsub.f32 %v441, %v456
        %v471 = vsub.f32 %v442, %v457
        %v472 = vadd.f32 %v468, 1e-05
        %v473 = vadd.f32 %v469, 1e-05
        %v474 = vrsqrt.pop %v472
        %v475 = vmul.f32 %v474, %v472
        %v476 = vmul.f32 %v475, %v474
        %v477 = vmul.f32 0.5, %v476
        %v478 = vsub.f32 1.5, %v477
        %v479 = vmul.f32 %v474, %v478
        %vm480 = vweird.f32 %v472
        %vm481 = vweird.f32 %v474
        %vm482 = vmor %vm480, %vm481
        %v483 = vsel %vm482, %v474, %v479
        %v484 = vrsqrt.pop %v473
        %v485 = vmul.f32 %v484, %v473
        %v486 = vmul.f32 %v485, %v484
        %v487 = vmul.f32 0.5, %v486
        %v488 = vsub.f32 1.5, %v487
        %v489 = vmul.f32 %v484, %v488
        %vm490 = vweird.f32 %v473
        %vm491 = vweird.f32 %v484
        %vm492 = vmor %vm490, %vm491
        %v493 = vsel %vm492, %v484, %v489
        %v494 = vmul.f32 %v470, %v483
        %v495 = vmul.f32 %v471, %v493
        %v497 = vperm.slane %v443, 0
        %v499 = vmul.f32 %v494, %v497
        %v500 = vmul.f32 %v495, %v497
        %v502 = vperm.slane %v444, 0
        %v504 = vadd.f32 %v499, %v502
        %v505 = vadd.f32 %v500, %v502
        %506 = vst [vmem:[%s336] sm:$0xff] %v504
        %507 = vst [vmem:[%s336 + $0x8] sm:$0xff] %v505
        %v509 = vsel %vm363, 1.0, 0
        %511 = vmatpush.xpose.msra.mxu0 0.0
        %512 = vmatpush.xpose.msra.mxu0 0.0
        %513 = vmatpush.xpose.msra.mxu0 0.0
        %514 = vmatpush.xpose.msra.mxu0 0.0
        %515 = vmatpush.xpose.msra.mxu0 0.0
        %516 = vmatpush.xpose.msra.mxu0 0.0
        %517 = vmatpush.xpose.msra.mxu0 0.0
        %518 = vmatpush.xpose.msra.mxu0 0.0
        %519 = vmatpush.xpose.msra.mxu0 0.0
        %520 = vmatpush.xpose.msra.mxu0 0.0
        %521 = vmatpush.xpose.msra.mxu0 0.0
        %522 = vmatpush.xpose.msra.mxu0 0.0
        %523 = vmatpush.xpose.msra.mxu0 0.0
        %524 = vmatpush.xpose.msra.mxu0 0.0
        %525 = vmatpush.xpose.msra.mxu0 %v380
        %526 = vmatpush.xpose.msra.mxu0 %v377
        %527 = vmatmul.f32.gmra.mxu0 %v509
        %v528 = vpop.f32.mrf.mxu0
        %v529 = vadd.f32 0.0, %v528
        %530 = vdwg.mxu0
        %v531 = vmax.f32 %v529, 1e-12
        %v532 = vperm.slane %v531, 0
        %v533 = vrcp.pop %v532
        %v534 = vmul.f32 %v532, %v533
        %v535 = vsub.f32 1.0, %v534
        %v536 = vmul.f32 %v533, %v535
        %v537 = vadd.f32 %v533, %v536
        %vm538 = vweird.f32 %v532
        %vm539 = vweird.f32 %v533
        %vm540 = vmor %vm538, %vm539
        %v541 = vsel %vm540, %v533, %v537
        %v542 = vand.u32 2147483647, %v532
        %vm543 = vcmp.eq.f32.partialorder %v542, 8.507059e+37
        %v544 = vand.u32 %v532, 2147483648
        %v545 = vor.u32 1.1754944e-38, %v544
        %v546 = vsel %vm543, %v545, %v541
        %v547 = vmul.f32 %v342, %v546
        %v548 = vmul.f32 %v343, %v546
        %549 = vst.msk [vmem:[%s341] sm:$0xff] %vm363, %v547
        %550 = vst.msk [vmem:[%s341 + $0x8] sm:$0xff] %vm363, %v548
        %p551 = scmp.lt.s32.totalorder %s21, 1
        %s552 = scalar_select %p551, %s21, 1
        %s553 = smul.addr %s552, 2
        %s554 = smul.addr %s553, 8
        %s555 = scalar_lea.vmem %s6, %s554
        %p556 = scmp.lt.s32.totalorder %s21, 1
        %s557 = scalar_select %p556, %s21, 1
        %s558 = smul.addr %s557, 2
        %s559 = smul.addr %s558, 8
        %s560 = scalar_lea.vmem %s7, %s559
        // Predicated region
        $region53: #{_lambda_.10} parent=43 // pred_check
          %p561 = pneg %p175
        $region54: #{_lambda_.10} parent=43 // pred_check_branch
          %563 = sbr.rel (%p561) target = $region56
        $region55: #{_lambda_.10} parent=43 // pred_region
          _
        $region56: #{_lambda_.10} parent=43 // pred_fallthru
          _
        // Predicated region
        $region57: #{_lambda_.10} parent=43 // pred_check
          %p564 = pneg %p201
        $region58: #{_lambda_.10} parent=43 // pred_check_branch
          %566 = sbr.rel (%p564) target = $region60
        $region59: #{_lambda_.10} parent=43 // pred_region
          _
        $region60: #{_lambda_.10} parent=43 // pred_fallthru
          _
      $region44: #{_lambda_.10} parent=5 // pred_fallthru
        _
      %p567 = scmp.le.s32.totalorder 2, %s16
      // Predicated region
      $region61: #{_lambda_.10} parent=5 // pred_check
        %p568 = pneg %p567
      $region62: #{_lambda_.10} parent=5 // pred_check_branch
        %570 = sbr.rel (%p568) target = $region64
      $region63: #{_lambda_.10} parent=5 // pred_region
        %s571 = ssub.s32 %s16, 2
        // Predicated region
        $region65: #{_lambda_.10} parent=63 // pred_check
          %p572 = pneg %p181
        $region66: #{_lambda_.10} parent=63 // pred_check_branch
          %574 = sbr.rel (%p572) target = $region68
        $region67: #{_lambda_.10} parent=63 // pred_region
          %p575 = scmp.lt.s32.totalorder %s22, 1
          %s576 = scalar_select %p575, %s22, 1
          %s577 = smul.addr %s576, 2
          %s578 = smul.addr %s577, 8
          %s579 = scalar_lea.vmem %s6, %s578
        $region68: #{_lambda_.10} parent=63 // pred_fallthru
          _
        // Predicated region
        $region69: #{_lambda_.10} parent=63 // pred_check
          %p580 = pneg %p207
        $region70: #{_lambda_.10} parent=63 // pred_check_branch
          %582 = sbr.rel (%p580) target = $region72
        $region71: #{_lambda_.10} parent=63 // pred_region
          %p583 = scmp.lt.s32.totalorder %s22, 1
          %s584 = scalar_select %p583, %s22, 1
          %s585 = smul.addr %s584, 2
          %s586 = smul.addr %s585, 8
          %s587 = scalar_lea.vmem %s7, %s586
        $region72: #{_lambda_.10} parent=63 // pred_fallthru
          _
      $region64: #{_lambda_.10} parent=5 // pred_fallthru
        _
    $region6: #{_lambda_.10} parent=1 // loop_footer
      %s20 = sadd.s32 1, %s16
    $region7: #{_lambda_.10} parent=1 // loop_footer_branch
      %15 = sbr.rel target = $region3
    $region8: #{_lambda_.10} parent=1 // loop_exit
      _
    %588 = vsyncpa [#allocation3], 1
    %s589 = scalar_lea.sflag [#allocation3], 1
    %590 = vsyncpa %s589, 1
    %591 = vsyncpa [#allocation5], 1

// kernel: _lambda_.11
$region0: #{_lambda_.11}
  #allocation0 [shape = 'u32[]', space=smem, size = 0x4, offset = 0x4, fixed_abs, tag = 'smem constant byte address 0x4 - core index']
  #allocation1 [shape = 'u32[72,128]{1,0:T(1,128)}', space=vmem, size = 0x9000, scoped, tag = 'internal scratch']
  #allocation2 [shape = 'f32[1,1]{1,0:T(1,128)S(1)}', space=vmem, size = 0x200, scoped, tag = 'scoped memory for _lambda_.11']
  %s0 = inlined_call_operand.vmem [shape: f32[2,16,16], index: 0, kind: input, shape index: {}]
  %s1 = inlined_call_operand.vmem [shape: f32[2,16,128], index: 1, kind: input, shape index: {}]
  %s2 = inlined_call_operand.vmem [shape: f32[128,128], index: 2, kind: input, shape index: {}]
  %s3 = inlined_call_operand.vmem [shape: f32[1,128], index: 3, kind: input, shape index: {}]
  %s4 = inlined_call_operand.vmem [shape: f32[1,128], index: 4, kind: input, shape index: {}]
  %s5 = inlined_call_operand.vmem [shape: f32[1,128], index: 5, kind: input, shape index: {}]
  %s6 = inlined_call_operand.vmem [shape: f32[128,1], index: 6, kind: input, shape index: {}]
  %s7 = inlined_call_operand.<no memory space> [shape: f32[1,1], index: 7, kind: input, shape index: {}]
  %s8 = inlined_call_operand.vmem [shape: f32[2,16,128], index: 8, kind: output, shape index: {0}]
  %s9 = inlined_call_operand.vmem [shape: f32[2,16,16], index: 9, kind: output, shape index: {1}]
  %s10 = inlined_call_operand.vmem [shape: f32[2,16,16], index: 10, kind: output, shape index: {2}]
  %s11 = inlined_call_operand.vmem [shape: f32[2,16,1], index: 11, kind: output, shape index: {3}]
  %12 = xla_tuple %s8, %s9, %s10, %s11
  %s13 = sld [smem:[#allocation0]]
  $region89: #{_lambda_.11} parent=0
    _
  %s15 = ssub.s32 1, %s13
  %s16 = scalar_select 0, %s15, %s13
  %v17 = vstv %s7
  %18 = vst [vmem:[#allocation2] sm:$0x1] %v17
  loop: start=0, step=1, limit=4
  $region2: #{_lambda_.11} parent=0 // loop_pre_header
    _
  $region3: #{_lambda_.11} parent=0 // loop_header
    %s20 = sphi 0, %s24
    %p21 = scmp.ge.s32.totalorder %s20, 4
    %s30 = sphi 0, %s32
    %s33 = sphi 0, %s30
    %s34 = sphi 0, %s33
    %s50 = sphi 0, %s34
    %s56 = sphi 0, %s58
    %s59 = sphi 0, %s56
    %s60 = sphi 0, %s59
    %s76 = sphi 0, %s60
    %s80 = sphi 0, %s80
    %s82 = sphi 0, %s80
    %s83 = sphi 0, %s82
    %s97 = sphi 0, %s83
    %s101 = sphi 0, %s101
    %s103 = sphi 0, %s101
    %s104 = sphi 0, %s103
    %s118 = sphi 0, %s104
    %s122 = sphi 0, %s122
    %s124 = sphi 0, %s122
    %s125 = sphi 0, %s124
    %s139 = sphi 0, %s125
    %s143 = sphi 0, %s143
    %s145 = sphi 0, %s143
    %s146 = sphi 0, %s145
    %s160 = sphi 0, %s146
    %s164 = sphi 0, %s164
    %s166 = sphi 0, %s164
    %s167 = sphi 0, %s166
    %s181 = sphi 0, %s167
    %s185 = sphi 0, %s185
    %s187 = sphi 0, %s185
    %s188 = sphi 0, %s187
    %s202 = sphi 0, %s188
    %s208 = sphi 0, %s210
    %s211 = sphi 0, %s208
    %s212 = sphi 0, %s211
    %s228 = sphi 0, %s212
    %s234 = sphi 0, %s236
    %s237 = sphi 0, %s234
    %s238 = sphi 0, %s237
    %s254 = sphi 0, %s238
    %s260 = sphi 0, %s262
    %s263 = sphi 0, %s260
    %s264 = sphi 0, %s263
    %s280 = sphi 0, %s264
    %s286 = sphi 0, %s288
    %s289 = sphi 0, %s286
    %s290 = sphi 0, %s289
    %s306 = sphi 0, %s290
  $region4: #{_lambda_.11} parent=0 // loop_header_branch
    %23 = sbr.rel (%p21) target = $region8
  $region5: #{_lambda_.11} parent=0 // loop_body
    %s25 = ssub.s32 %s20, 1
    %s26 = ssub.s32 %s20, 2
    %s27 = sadd.s32 %s20, 1
    %s28 = ssub.s32 %s20, %s27
    %p29 = scmp.eq.s32.totalorder %s28, 0
    %s31 = sadd.s32 %s30, 1
    %s32 = scalar_select %p29, %s30, %s31
    %p35 = pneg %p29
    %p36 = scmp.eq.s32.totalorder %s20, 1
    %p37 = por %p35, %p36
    %p38 = scmp.ne.s32.totalorder %s30, %s33
    %p39 = scmp.eq.s32.totalorder %s20, 0
    %p40 = por %p38, %p39
    %p41 = scmp.ne.s32.totalorder %s30, %s33
    %p42 = scmp.eq.s32.totalorder %s25, 1
    %p43 = por %p41, %p42
    %p44 = scmp.ne.s32.totalorder %s33, %s34
    %p45 = scmp.eq.s32.totalorder %s25, 0
    %p46 = por %p44, %p45
    %p47 = scmp.ne.s32.totalorder %s33, %s34
    %p48 = scmp.eq.s32.totalorder %s26, 1
    %p49 = por %p47, %p48
    %p51 = scmp.ne.s32.totalorder %s34, %s50
    %p52 = scmp.eq.s32.totalorder %s26, 0
    %p53 = por %p51, %p52
    %s54 = ssub.s32 %s20, %s27
    %p55 = scmp.eq.s32.totalorder %s54, 0
    %s57 = sadd.s32 %s56, 1
    %s58 = scalar_select %p55, %s56, %s57
    %p61 = pneg %p55
    %p62 = scmp.eq.s32.totalorder %s20, 1
    %p63 = por %p61, %p62
    %p64 = scmp.ne.s32.totalorder %s56, %s59
    %p65 = scmp.eq.s32.totalorder %s20, 0
    %p66 = por %p64, %p65
    %p67 = scmp.ne.s32.totalorder %s56, %s59
    %p68 = scmp.eq.s32.totalorder %s25, 1
    %p69 = por %p67, %p68
    %p70 = scmp.ne.s32.totalorder %s59, %s60
    %p71 = scmp.eq.s32.totalorder %s25, 0
    %p72 = por %p70, %p71
    %p73 = scmp.ne.s32.totalorder %s59, %s60
    %p74 = scmp.eq.s32.totalorder %s26, 1
    %p75 = por %p73, %p74
    %p77 = scmp.ne.s32.totalorder %s60, %s76
    %p78 = scmp.eq.s32.totalorder %s26, 0
    %p79 = por %p77, %p78
    %s81 = sadd.s32 %s80, 1
    %p84 = scmp.eq.s32.totalorder %s20, 1
    %p85 = scmp.ne.s32.totalorder %s80, %s82
    %p86 = scmp.eq.s32.totalorder %s20, 0
    %p87 = por %p85, %p86
    %p88 = scmp.ne.s32.totalorder %s80, %s82
    %p89 = scmp.eq.s32.totalorder %s25, 1
    %p90 = por %p88, %p89
    %p91 = scmp.ne.s32.totalorder %s82, %s83
    %p92 = scmp.eq.s32.totalorder %s25, 0
    %p93 = por %p91, %p92
    %p94 = scmp.ne.s32.totalorder %s82, %s83
    %p95 = scmp.eq.s32.totalorder %s26, 1
    %p96 = por %p94, %p95
    %p98 = scmp.ne.s32.totalorder %s83, %s97
    %p99 = scmp.eq.s32.totalorder %s26, 0
    %p100 = por %p98, %p99
    %s102 = sadd.s32 %s101, 1
    %p105 = scmp.eq.s32.totalorder %s20, 1
    %p106 = scmp.ne.s32.totalorder %s101, %s103
    %p107 = scmp.eq.s32.totalorder %s20, 0
    %p108 = por %p106, %p107
    %p109 = scmp.ne.s32.totalorder %s101, %s103
    %p110 = scmp.eq.s32.totalorder %s25, 1
    %p111 = por %p109, %p110
    %p112 = scmp.ne.s32.totalorder %s103, %s104
    %p113 = scmp.eq.s32.totalorder %s25, 0
    %p114 = por %p112, %p113
    %p115 = scmp.ne.s32.totalorder %s103, %s104
    %p116 = scmp.eq.s32.totalorder %s26, 1
    %p117 = por %p115, %p116
    %p119 = scmp.ne.s32.totalorder %s104, %s118
    %p120 = scmp.eq.s32.totalorder %s26, 0
    %p121 = por %p119, %p120
    %s123 = sadd.s32 %s122, 1
    %p126 = scmp.eq.s32.totalorder %s20, 1
    %p127 = scmp.ne.s32.totalorder %s122, %s124
    %p128 = scmp.eq.s32.totalorder %s20, 0
    %p129 = por %p127, %p128
    %p130 = scmp.ne.s32.totalorder %s122, %s124
    %p131 = scmp.eq.s32.totalorder %s25, 1
    %p132 = por %p130, %p131
    %p133 = scmp.ne.s32.totalorder %s124, %s125
    %p134 = scmp.eq.s32.totalorder %s25, 0
    %p135 = por %p133, %p134
    %p136 = scmp.ne.s32.totalorder %s124, %s125
    %p137 = scmp.eq.s32.totalorder %s26, 1
    %p138 = por %p136, %p137
    %p140 = scmp.ne.s32.totalorder %s125, %s139
    %p141 = scmp.eq.s32.totalorder %s26, 0
    %p142 = por %p140, %p141
    %s144 = sadd.s32 %s143, 1
    %p147 = scmp.eq.s32.totalorder %s20, 1
    %p148 = scmp.ne.s32.totalorder %s143, %s145
    %p149 = scmp.eq.s32.totalorder %s20, 0
    %p150 = por %p148, %p149
    %p151 = scmp.ne.s32.totalorder %s143, %s145
    %p152 = scmp.eq.s32.totalorder %s25, 1
    %p153 = por %p151, %p152
    %p154 = scmp.ne.s32.totalorder %s145, %s146
    %p155 = scmp.eq.s32.totalorder %s25, 0
    %p156 = por %p154, %p155
    %p157 = scmp.ne.s32.totalorder %s145, %s146
    %p158 = scmp.eq.s32.totalorder %s26, 1
    %p159 = por %p157, %p158
    %p161 = scmp.ne.s32.totalorder %s146, %s160
    %p162 = scmp.eq.s32.totalorder %s26, 0
    %p163 = por %p161, %p162
    %s165 = sadd.s32 %s164, 1
    %p168 = scmp.eq.s32.totalorder %s20, 1
    %p169 = scmp.ne.s32.totalorder %s164, %s166
    %p170 = scmp.eq.s32.totalorder %s20, 0
    %p171 = por %p169, %p170
    %p172 = scmp.ne.s32.totalorder %s164, %s166
    %p173 = scmp.eq.s32.totalorder %s25, 1
    %p174 = por %p172, %p173
    %p175 = scmp.ne.s32.totalorder %s166, %s167
    %p176 = scmp.eq.s32.totalorder %s25, 0
    %p177 = por %p175, %p176
    %p178 = scmp.ne.s32.totalorder %s166, %s167
    %p179 = scmp.eq.s32.totalorder %s26, 1
    %p180 = por %p178, %p179
    %p182 = scmp.ne.s32.totalorder %s167, %s181
    %p183 = scmp.eq.s32.totalorder %s26, 0
    %p184 = por %p182, %p183
    %s186 = sadd.s32 %s185, 1
    %p189 = scmp.eq.s32.totalorder %s20, 1
    %p190 = scmp.ne.s32.totalorder %s185, %s187
    %p191 = scmp.eq.s32.totalorder %s20, 0
    %p192 = por %p190, %p191
    %p193 = scmp.ne.s32.totalorder %s185, %s187
    %p194 = scmp.eq.s32.totalorder %s25, 1
    %p195 = por %p193, %p194
    %p196 = scmp.ne.s32.totalorder %s187, %s188
    %p197 = scmp.eq.s32.totalorder %s25, 0
    %p198 = por %p196, %p197
    %p199 = scmp.ne.s32.totalorder %s187, %s188
    %p200 = scmp.eq.s32.totalorder %s26, 1
    %p201 = por %p199, %p200
    %p203 = scmp.ne.s32.totalorder %s188, %s202
    %p204 = scmp.eq.s32.totalorder %s26, 0
    %p205 = por %p203, %p204
    %s206 = ssub.s32 %s20, %s27
    %p207 = scmp.eq.s32.totalorder %s206, 0
    %s209 = sadd.s32 %s208, 1
    %s210 = scalar_select %p207, %s208, %s209
    %p213 = pneg %p207
    %p214 = scmp.eq.s32.totalorder %s20, 1
    %p215 = por %p213, %p214
    %p216 = scmp.ne.s32.totalorder %s208, %s211
    %p217 = scmp.eq.s32.totalorder %s20, 0
    %p218 = por %p216, %p217
    %p219 = scmp.ne.s32.totalorder %s208, %s211
    %p220 = scmp.eq.s32.totalorder %s25, 1
    %p221 = por %p219, %p220
    %p222 = scmp.ne.s32.totalorder %s211, %s212
    %p223 = scmp.eq.s32.totalorder %s25, 0
    %p224 = por %p222, %p223
    %p225 = scmp.ne.s32.totalorder %s211, %s212
    %p226 = scmp.eq.s32.totalorder %s26, 1
    %p227 = por %p225, %p226
    %p229 = scmp.ne.s32.totalorder %s212, %s228
    %p230 = scmp.eq.s32.totalorder %s26, 0
    %p231 = por %p229, %p230
    %s232 = ssub.s32 %s20, %s27
    %p233 = scmp.eq.s32.totalorder %s232, 0
    %s235 = sadd.s32 %s234, 1
    %s236 = scalar_select %p233, %s234, %s235
    %p239 = pneg %p233
    %p240 = scmp.eq.s32.totalorder %s20, 1
    %p241 = por %p239, %p240
    %p242 = scmp.ne.s32.totalorder %s234, %s237
    %p243 = scmp.eq.s32.totalorder %s20, 0
    %p244 = por %p242, %p243
    %p245 = scmp.ne.s32.totalorder %s234, %s237
    %p246 = scmp.eq.s32.totalorder %s25, 1
    %p247 = por %p245, %p246
    %p248 = scmp.ne.s32.totalorder %s237, %s238
    %p249 = scmp.eq.s32.totalorder %s25, 0
    %p250 = por %p248, %p249
    %p251 = scmp.ne.s32.totalorder %s237, %s238
    %p252 = scmp.eq.s32.totalorder %s26, 1
    %p253 = por %p251, %p252
    %p255 = scmp.ne.s32.totalorder %s238, %s254
    %p256 = scmp.eq.s32.totalorder %s26, 0
    %p257 = por %p255, %p256
    %s258 = ssub.s32 %s20, %s27
    %p259 = scmp.eq.s32.totalorder %s258, 0
    %s261 = sadd.s32 %s260, 1
    %s262 = scalar_select %p259, %s260, %s261
    %p265 = pneg %p259
    %p266 = scmp.eq.s32.totalorder %s20, 1
    %p267 = por %p265, %p266
    %p268 = scmp.ne.s32.totalorder %s260, %s263
    %p269 = scmp.eq.s32.totalorder %s20, 0
    %p270 = por %p268, %p269
    %p271 = scmp.ne.s32.totalorder %s260, %s263
    %p272 = scmp.eq.s32.totalorder %s25, 1
    %p273 = por %p271, %p272
    %p274 = scmp.ne.s32.totalorder %s263, %s264
    %p275 = scmp.eq.s32.totalorder %s25, 0
    %p276 = por %p274, %p275
    %p277 = scmp.ne.s32.totalorder %s263, %s264
    %p278 = scmp.eq.s32.totalorder %s26, 1
    %p279 = por %p277, %p278
    %p281 = scmp.ne.s32.totalorder %s264, %s280
    %p282 = scmp.eq.s32.totalorder %s26, 0
    %p283 = por %p281, %p282
    %s284 = ssub.s32 %s20, %s27
    %p285 = scmp.eq.s32.totalorder %s284, 0
    %s287 = sadd.s32 %s286, 1
    %s288 = scalar_select %p285, %s286, %s287
    %p291 = pneg %p285
    %p292 = scmp.eq.s32.totalorder %s20, 1
    %p293 = por %p291, %p292
    %p294 = scmp.ne.s32.totalorder %s286, %s289
    %p295 = scmp.eq.s32.totalorder %s20, 0
    %p296 = por %p294, %p295
    %p297 = scmp.ne.s32.totalorder %s286, %s289
    %p298 = scmp.eq.s32.totalorder %s25, 1
    %p299 = por %p297, %p298
    %p300 = scmp.ne.s32.totalorder %s289, %s290
    %p301 = scmp.eq.s32.totalorder %s25, 0
    %p302 = por %p300, %p301
    %p303 = scmp.ne.s32.totalorder %s289, %s290
    %p304 = scmp.eq.s32.totalorder %s26, 1
    %p305 = por %p303, %p304
    %p307 = scmp.ne.s32.totalorder %s290, %s306
    %p308 = scmp.eq.s32.totalorder %s26, 0
    %p309 = por %p307, %p308
    %p310 = scmp.le.s32.totalorder 1, %s20
    %p311 = scmp.lt.s32.totalorder %s20, 3
    %p312 = pnand %p310, %p311
    %p313 = pneg %p312
    // Predicated region
    $region9: #{_lambda_.11} parent=5 // pred_check
      _
    $region10: #{_lambda_.11} parent=5 // pred_check_branch
      %315 = sbr.rel (%p312) target = $region12
    $region11: #{_lambda_.11} parent=5 // pred_region
      %s316 = ssub.s32 %s20, 1
      // Predicated region
      $region13: #{_lambda_.11} parent=11 // pred_check
        %p317 = pneg %p93
      $region14: #{_lambda_.11} parent=11 // pred_check_branch
        %319 = sbr.rel (%p317) target = $region16
      $region15: #{_lambda_.11} parent=11 // pred_region
        _
      $region16: #{_lambda_.11} parent=11 // pred_fallthru
        _
      // Predicated region
      $region17: #{_lambda_.11} parent=11 // pred_check
        %p320 = pneg %p114
      $region18: #{_lambda_.11} parent=11 // pred_check_branch
        %322 = sbr.rel (%p320) target = $region20
      $region19: #{_lambda_.11} parent=11 // pred_region
        _
      $region20: #{_lambda_.11} parent=11 // pred_fallthru
        _
      // Predicated region
      $region21: #{_lambda_.11} parent=11 // pred_check
        %p323 = pneg %p135
      $region22: #{_lambda_.11} parent=11 // pred_check_branch
        %325 = sbr.rel (%p323) target = $region24
      $region23: #{_lambda_.11} parent=11 // pred_region
        _
      $region24: #{_lambda_.11} parent=11 // pred_fallthru
        _
      // Predicated region
      $region25: #{_lambda_.11} parent=11 // pred_check
        %p326 = pneg %p156
      $region26: #{_lambda_.11} parent=11 // pred_check_branch
        %328 = sbr.rel (%p326) target = $region28
      $region27: #{_lambda_.11} parent=11 // pred_region
        _
      $region28: #{_lambda_.11} parent=11 // pred_fallthru
        _
      // Predicated region
      $region29: #{_lambda_.11} parent=11 // pred_check
        %p329 = pneg %p177
      $region30: #{_lambda_.11} parent=11 // pred_check_branch
        %331 = sbr.rel (%p329) target = $region32
      $region31: #{_lambda_.11} parent=11 // pred_region
        _
      $region32: #{_lambda_.11} parent=11 // pred_fallthru
        _
      // Predicated region
      $region33: #{_lambda_.11} parent=11 // pred_check
        %p332 = pneg %p198
      $region34: #{_lambda_.11} parent=11 // pred_check_branch
        %334 = sbr.rel (%p332) target = $region36
      $region35: #{_lambda_.11} parent=11 // pred_region
        _
      $region36: #{_lambda_.11} parent=11 // pred_fallthru
        _
    $region12: #{_lambda_.11} parent=5 // pred_fallthru
      _
    %p335 = scmp.lt.s32.totalorder %s20, 2
    // Predicated region
    $region37: #{_lambda_.11} parent=5 // pred_check
      %p336 = pneg %p335
    $region38: #{_lambda_.11} parent=5 // pred_check_branch
      %338 = sbr.rel (%p336) target = $region40
    $region39: #{_lambda_.11} parent=5 // pred_region
      // Predicated region
      $region41: #{_lambda_.11} parent=39 // pred_check
        %p339 = pneg %p40
      $region42: #{_lambda_.11} parent=39 // pred_check_branch
        %341 = sbr.rel (%p339) target = $region44
      $region43: #{_lambda_.11} parent=39 // pred_region
        %p342 = scmp.lt.s32.totalorder %s20, 1
        %s343 = scalar_select %p342, %s20, 1
        %s344 = smul.addr %s343, 2
        %s345 = smul.addr %s344, 8
        %s346 = scalar_lea.vmem %s0, %s345
      $region44: #{_lambda_.11} parent=39 // pred_fallthru
        _
      // Predicated region
      $region45: #{_lambda_.11} parent=39 // pred_check
        %p347 = pneg %p66
      $region46: #{_lambda_.11} parent=39 // pred_check_branch
        %349 = sbr.rel (%p347) target = $region48
      $region47: #{_lambda_.11} parent=39 // pred_region
        %p350 = scmp.lt.s32.totalorder %s20, 1
        %s351 = scalar_select %p350, %s20, 1
        %s352 = smul.addr %s351, 2
        %s353 = smul.addr %s352, 8
        %s354 = scalar_lea.vmem %s1, %s353
      $region48: #{_lambda_.11} parent=39 // pred_fallthru
        _
    $region40: #{_lambda_.11} parent=5 // pred_fallthru
      _
    %p355 = scmp.le.s32.totalorder 1, %s20
    %p356 = scmp.lt.s32.totalorder %s20, 3
    %p357 = pnand %p355, %p356
    %p358 = pneg %p357
    // Predicated region
    $region49: #{_lambda_.11} parent=5 // pred_check
      _
    $region50: #{_lambda_.11} parent=5 // pred_check_branch
      %360 = sbr.rel (%p357) target = $region52
    $region51: #{_lambda_.11} parent=5 // pred_region
      %s361 = ssub.s32 %s20, 1
      %p362 = scmp.lt.s32.totalorder %s25, 1
      %s363 = scalar_select %p362, %s25, 1
      %s364 = smul.addr %s363, 2
      %s365 = smul.addr %s364, 8
      %s366 = scalar_lea.vmem %s0, %s365
      %p367 = pneg %p46
      %p368 = pneg %p43
      %p369 = scmp.lt.s32.totalorder %s25, 1
      %s370 = scalar_select %p369, %s25, 1
      %s371 = smul.addr %s370, 2
      %s372 = smul.addr %s371, 8
      %s373 = scalar_lea.vmem %s1, %s372
      %p374 = pneg %p72
      %p375 = pneg %p69
      %p376 = pneg %p93
      %p377 = pneg %p90
      %p378 = pneg %p114
      %p379 = pneg %p111
      %p380 = pneg %p135
      %p381 = pneg %p132
      %p382 = pneg %p156
      %p383 = pneg %p153
      %p384 = pneg %p177
      %p385 = pneg %p174
      %p386 = pneg %p198
      %p387 = pneg %p195
      %p388 = pneg %p224
      %p389 = pneg %p221
      %p390 = scmp.lt.s32.totalorder %s25, 1
      %s391 = scalar_select %p390, %s25, 1
      %s392 = smul.addr %s391, 2
      %s393 = smul.addr %s392, 8
      %s394 = scalar_lea.vmem %s8, %s393
      %p395 = pneg %p250
      %p396 = pneg %p247
      %p397 = scmp.lt.s32.totalorder %s25, 1
      %s398 = scalar_select %p397, %s25, 1
      %s399 = smul.addr %s398, 2
      %s400 = smul.addr %s399, 8
      %s401 = scalar_lea.vmem %s9, %s400
      %p402 = pneg %p276
      %p403 = pneg %p273
      %p404 = scmp.lt.s32.totalorder %s25, 1
      %s405 = scalar_select %p404, %s25, 1
      %s406 = smul.addr %s405, 2
      %s407 = smul.addr %s406, 8
      %s408 = scalar_lea.vmem %s10, %s407
      %p409 = pneg %p302
      %p410 = pneg %p299
      %p411 = scmp.lt.s32.totalorder %s25, 1
      %s412 = scalar_select %p411, %s25, 1
      %s413 = smul.addr %s412, 2
      %s414 = smul.addr %s413, 8
      %s415 = scalar_lea.vmem %s11, %s414
      %p416 = scmp.lt.s32.totalorder %s25, 1
      %s417 = scalar_select %p416, %s25, 1
      %s418 = smul.addr %s417, 2
      %s419 = smul.addr %s418, 8
      %s420 = scalar_lea.vmem %s0, %s419
      %p421 = scmp.lt.s32.totalorder %s25, 1
      %s422 = scalar_select %p421, %s25, 1
      %s423 = smul.addr %s422, 2
      %s424 = smul.addr %s423, 8
      %s425 = scalar_lea.vmem %s1, %s424
      %p426 = scmp.lt.s32.totalorder %s25, 1
      %s427 = scalar_select %p426, %s25, 1
      %s428 = smul.addr %s427, 2
      %s429 = smul.addr %s428, 8
      %s430 = scalar_lea.vmem %s8, %s429
      %p431 = scmp.lt.s32.totalorder %s25, 1
      %s432 = scalar_select %p431, %s25, 1
      %s433 = smul.addr %s432, 2
      %s434 = smul.addr %s433, 8
      %s435 = scalar_lea.vmem %s9, %s434
      %p436 = scmp.lt.s32.totalorder %s25, 1
      %s437 = scalar_select %p436, %s25, 1
      %s438 = smul.addr %s437, 2
      %s439 = smul.addr %s438, 8
      %s440 = scalar_lea.vmem %s10, %s439
      %p441 = scmp.lt.s32.totalorder %s25, 1
      %s442 = scalar_select %p441, %s25, 1
      %s443 = smul.addr %s442, 2
      %s444 = smul.addr %s443, 8
      %s445 = scalar_lea.vmem %s11, %s444
      %v446 = vld [vmem:[%s420] sm:$0xff]
      %v447 = vld [vmem:[%s420 + $0x8] sm:$0xff]
      %v448 = vld [vmem:[%s425] sm:$0xff]
      %v449 = vld [vmem:[%s425 + $0x8] sm:$0xff]
      %v450 = vld [vmem:[%s2] sm:$0xff]
      %v451 = vld [vmem:[%s2 + $0x8] sm:$0xff]
      %v452 = vld [vmem:[%s2 + $0x10] sm:$0xff]
      %v453 = vld [vmem:[%s2 + $0x18] sm:$0xff]
      %v454 = vld [vmem:[%s2 + $0x20] sm:$0xff]
      %v455 = vld [vmem:[%s2 + $0x28] sm:$0xff]
      %v456 = vld [vmem:[%s2 + $0x30] sm:$0xff]
      %v457 = vld [vmem:[%s2 + $0x38] sm:$0xff]
      %v458 = vld [vmem:[%s2 + $0x40] sm:$0xff]
      %v459 = vld [vmem:[%s2 + $0x48] sm:$0xff]
      %v460 = vld [vmem:[%s2 + $0x50] sm:$0xff]
      %v461 = vld [vmem:[%s2 + $0x58] sm:$0xff]
      %v462 = vld [vmem:[%s2 + $0x60] sm:$0xff]
      %v463 = vld [vmem:[%s2 + $0x68] sm:$0xff]
      %v464 = vld [vmem:[%s2 + $0x70] sm:$0xff]
      %v465 = vld [vmem:[%s2 + $0x78] sm:$0xff]
      %v466 = vld [vmem:[%s3] sm:$0x1]
      %vm467 = vcmask 130048
      %v468 = vsel %vm467, %v446, 0.0
      %469 = vadd.xlane.f32.xlu0 %v468
      %v470 = vpop.xlane.xlu0 %469
      %v471 = vsel %vm467, %v447, 0.0
      %472 = vadd.xlane.f32.xlu0 %v471
      %v473 = vpop.xlane.xlu0 %472
      %v474 = vmax.f32 %v470, 1e-12
      %v475 = vmax.f32 %v473, 1e-12
      %v476 = vrcp.pop %v474
      %v477 = vrcp.pop %v475
      %v478 = vmul.f32 %v448, %v476
      %v479 = vmul.f32 %v449, %v477
      %v481 = vsel %vm467, %v446, 0
      %v484 = vsel %vm467, %v447, 0
      %486 = vmatpush.msra.mxu0 0.0
      %487 = vmatpush.msra.mxu0 0.0
      %488 = vmatpush.msra.mxu0 0.0
      %489 = vmatpush.msra.mxu0 0.0
      %490 = vmatpush.msra.mxu0 0.0
      %491 = vmatpush.msra.mxu0 0.0
      %492 = vmatpush.msra.mxu0 0.0
      %493 = vmatpush.msra.mxu0 0.0
      %494 = vmatpush.msra.mxu0 0.0
      %495 = vmatpush.msra.mxu0 0.0
      %496 = vmatpush.msra.mxu0 0.0
      %497 = vmatpush.msra.mxu0 0.0
      %498 = vmatpush.msra.mxu0 0.0
      %499 = vmatpush.msra.mxu0 0.0
      %500 = vmatpush.msra.mxu0 %v479
      %501 = vmatpush.msra.mxu0 %v478
      %502 = vmatmul.f32.gmra.mxu0 %v481
      %v503 = vpop.f32.mrf.mxu0
      %v504 = vadd.f32 0.0, %v503
      %505 = vmatmul.f32.gmra.mxu0 %v484
      %v506 = vpop.f32.mrf.mxu0
      %v507 = vadd.f32 0.0, %v506
      %508 = vdwg.mxu0
      %v510 = vperm.slane %v466, 0
      %512 = vmatpush.msra.mxu0 %v465
      %513 = vmatpush.msra.mxu0 %v464
      %514 = vmatpush.msra.mxu0 %v463
      %515 = vmatpush.msra.mxu0 %v462
      %516 = vmatpush.msra.mxu0 %v461
      %517 = vmatpush.msra.mxu0 %v460
      %518 = vmatpush.msra.mxu0 %v459
      %519 = vmatpush.msra.mxu0 %v458
      %520 = vmatpush.msra.mxu0 %v457
      %521 = vmatpush.msra.mxu0 %v456
      %522 = vmatpush.msra.mxu0 %v455
      %523 = vmatpush.msra.mxu0 %v454
      %524 = vmatpush.msra.mxu0 %v453
      %525 = vmatpush.msra.mxu0 %v452
      %526 = vmatpush.msra.mxu0 %v451
      %527 = vmatpush.msra.mxu0 %v450
      %528 = vmatmul.f32.gmra.mxu0 %v504
      %v529 = vpop.f32.mrf.mxu0
      %v530 = vadd.f32 %v510, %v529
      %531 = vmatmul.f32.gmra.mxu0 %v507
      %v532 = vpop.f32.mrf.mxu0
      %v533 = vadd.f32 %v510, %v532
      %534 = vdwg.mxu0
      %vm535 = vcmp.gt.f32.partialorder %v530, 0.0
      %vm536 = vcmp.gt.f32.partialorder %v533, 0.0
      %v537 = vmin.f32 %v530, 0.0
      %v538 = vmin.f32 %v533, 0.0
      %v539 = vmul.f32 %v537, 1.442695
      %v540 = vpow.pop %v539
      %v541 = vmul.f32 %v538, 1.442695
      %v542 = vpow.pop %v541
      %v543 = vsub.f32 %v540, 1.0
      %v544 = vsub.f32 %v542, 1.0
      %v545 = vsel %vm535, %v530, %v543
      %v546 = vsel %vm536, %v533, %v544
      %v547 = vadd.f32 %v448, %v545
      %v548 = vadd.f32 %v449, %v546
      %v549 = vld [vmem:[%s4] sm:$0x1]
      %v550 = vld [vmem:[%s5] sm:$0x1]
      %551 = vadd.xlane.f32.xlu0 %v547
      %v552 = vpop.xlane.xlu0 %551
      %553 = vadd.xlane.f32.xlu0 %v548
      %v554 = vpop.xlane.xlu0 %553
      %v555 = vrcp.pop 32.0
      %v556 = vmul.f32 32.0, %v555
      %v557 = vsub.f32 1.0, %v556
      %v558 = vmul.f32 %v555, %v557
      %v559 = vadd.f32 %v555, %v558
      %vm560 = vweird.f32 %v555
      %v561 = vsel %vm560, %v555, %v559
      %v562 = vmul.f32 %v552, %v561
      %v563 = vmul.f32 %v554, %v561
      %v564 = vmul.f32 %v547, %v547
      %v565 = vmul.f32 %v548, %v548
      %566 = vadd.xlane.f32.xlu0 %v564
      %v567 = vpop.xlane.xlu0 %566
      %568 = vadd.xlane.f32.xlu0 %v565
      %v569 = vpop.xlane.xlu0 %568
      %v570 = vmul.f32 %v567, %v561
      %v571 = vmul.f32 %v569, %v561
      %v572 = vmul.f32 %v562, %v562
      %v573 = vmul.f32 %v563, %v563
      %v574 = vsub.f32 %v570, %v572
      %v575 = vsub.f32 %v571, %v573
      %v576 = vsub.f32 %v547, %v562
      %v577 = vsub.f32 %v548, %v563
      %v578 = vadd.f32 %v574, 1e-05
      %v579 = vadd.f32 %v575, 1e-05
      %v580 = vrsqrt.pop %v578
      %v581 = vmul.f32 %v580, %v578
      %v582 = vmul.f32 %v581, %v580
      %v583 = vmul.f32 0.5, %v582
      %v584 = vsub.f32 1.5, %v583
      %v585 = vmul.f32 %v580, %v584
      %vm586 = vweird.f32 %v578
      %vm587 = vweird.f32 %v580
      %vm588 = vmor %vm586, %vm587
      %v589 = vsel %vm588, %v580, %v585
      %v590 = vrsqrt.pop %v579
      %v591 = vmul.f32 %v590, %v579
      %v592 = vmul.f32 %v591, %v590
      %v593 = vmul.f32 0.5, %v592
      %v594 = vsub.f32 1.5, %v593
      %v595 = vmul.f32 %v590, %v594
      %vm596 = vweird.f32 %v579
      %vm597 = vweird.f32 %v590
      %vm598 = vmor %vm596, %vm597
      %v599 = vsel %vm598, %v590, %v595
      %v600 = vmul.f32 %v576, %v589
      %v601 = vmul.f32 %v577, %v599
      %v603 = vperm.slane %v549, 0
      %v605 = vmul.f32 %v600, %v603
      %v606 = vmul.f32 %v601, %v603
      %v608 = vperm.slane %v550, 0
      %v610 = vadd.f32 %v605, %v608
      %v611 = vadd.f32 %v606, %v608
      %612 = vst [vmem:[%s430] sm:$0xff] %v610
      %613 = vst [vmem:[%s430 + $0x8] sm:$0xff] %v611
      %v615 = vsel %vm467, 1.0, 0
      %617 = vmatpush.xpose.msra.mxu0 0.0
      %618 = vmatpush.xpose.msra.mxu0 0.0
      %619 = vmatpush.xpose.msra.mxu0 0.0
      %620 = vmatpush.xpose.msra.mxu0 0.0
      %621 = vmatpush.xpose.msra.mxu0 0.0
      %622 = vmatpush.xpose.msra.mxu0 0.0
      %623 = vmatpush.xpose.msra.mxu0 0.0
      %624 = vmatpush.xpose.msra.mxu0 0.0
      %625 = vmatpush.xpose.msra.mxu0 0.0
      %626 = vmatpush.xpose.msra.mxu0 0.0
      %627 = vmatpush.xpose.msra.mxu0 0.0
      %628 = vmatpush.xpose.msra.mxu0 0.0
      %629 = vmatpush.xpose.msra.mxu0 0.0
      %630 = vmatpush.xpose.msra.mxu0 0.0
      %631 = vmatpush.xpose.msra.mxu0 %v484
      %632 = vmatpush.xpose.msra.mxu0 %v481
      %633 = vmatmul.f32.gmra.mxu0 %v615
      %v634 = vpop.f32.mrf.mxu0
      %v635 = vadd.f32 0.0, %v634
      %636 = vdwg.mxu0
      %v637 = vmax.f32 %v635, 1e-12
      %v638 = vperm.slane %v637, 0
      %v639 = vrcp.pop %v638
      %v640 = vmul.f32 %v638, %v639
      %v641 = vsub.f32 1.0, %v640
      %v642 = vmul.f32 %v639, %v641
      %v643 = vadd.f32 %v639, %v642
      %vm644 = vweird.f32 %v638
      %vm645 = vweird.f32 %v639
      %vm646 = vmor %vm644, %vm645
      %v647 = vsel %vm646, %v639, %v643
      %v648 = vand.u32 2147483647, %v638
      %vm649 = vcmp.eq.f32.partialorder %v648, 8.507059e+37
      %v650 = vand.u32 %v638, 2147483648
      %v651 = vor.u32 1.1754944e-38, %v650
      %v652 = vsel %vm649, %v651, %v647
      %v653 = vmul.f32 %v446, %v652
      %v654 = vmul.f32 %v447, %v652
      %655 = vst.msk [vmem:[%s435] sm:$0xff] %vm467, %v653
      %656 = vst.msk [vmem:[%s435 + $0x8] sm:$0xff] %vm467, %v654
      %vm657 = vcmp.ne.f32.partialorder %v446, 0.0
      %vm658 = vcmp.ne.f32.partialorder %v447, 0.0
      %v659 = vsel %vm657, 1, 0
      %v660 = vsel %vm658, 1, 0
      %v661 = vcvt.s32.f32 %v659
      %v662 = vcvt.s32.f32 %v660
      %v664 = vsel %vm467, %v661, 0
      %v667 = vsel %vm467, %v662, 0
      %669 = vmatpush.msra.mxu0 0.0
      %670 = vmatpush.msra.mxu0 0.0
      %671 = vmatpush.msra.mxu0 0.0
      %672 = vmatpush.msra.mxu0 0.0
      %673 = vmatpush.msra.mxu0 0.0
      %674 = vmatpush.msra.mxu0 0.0
      %675 = vmatpush.msra.mxu0 0.0
      %676 = vmatpush.msra.mxu0 0.0
      %677 = vmatpush.msra.mxu0 0.0
      %678 = vmatpush.msra.mxu0 0.0
      %679 = vmatpush.msra.mxu0 0.0
      %680 = vmatpush.msra.mxu0 0.0
      %681 = vmatpush.msra.mxu0 0.0
      %682 = vmatpush.msra.mxu0 0.0
      %683 = vmatpush.msra.mxu0 %v662
      %684 = vmatpush.msra.mxu0 %v661
      %685 = vmatmul.f32.gmra.mxu0 %v664
      %v686 = vpop.f32.mrf.mxu0
      %v687 = vadd.f32 0.0, %v686
      %688 = vmatmul.f32.gmra.mxu0 %v667
      %v689 = vpop.f32.mrf.mxu0
      %v690 = vadd.f32 0.0, %v689
      %691 = vdwg.mxu0
      %vm692 = vcmp.gt.f32.partialorder %v687, 0.0
      %vm693 = vcmp.gt.f32.partialorder %v690, 0.0
      %v694 = vsel %vm692, 1, 0
      %v695 = vsel %vm693, 1, 0
      %v696 = vcvt.s32.f32 %v694
      %v697 = vcvt.s32.f32 %v695
      %698 = vst.msk [vmem:[%s440] sm:$0xff] %vm467, %v696
      %699 = vst.msk [vmem:[%s440 + $0x8] sm:$0xff] %vm467, %v697
      %v700 = vld [vmem:[%s6] sm:$0xff]
      %v701 = vld [vmem:[%s6 + $0x8] sm:$0xff]
      %v702 = vld [vmem:[%s6 + $0x10] sm:$0xff]
      %v703 = vld [vmem:[%s6 + $0x18] sm:$0xff]
      %v704 = vld [vmem:[%s6 + $0x20] sm:$0xff]
      %v705 = vld [vmem:[%s6 + $0x28] sm:$0xff]
      %v706 = vld [vmem:[%s6 + $0x30] sm:$0xff]
      %v707 = vld [vmem:[%s6 + $0x38] sm:$0xff]
      %v708 = vld [vmem:[%s6 + $0x40] sm:$0xff]
      %v709 = vld [vmem:[%s6 + $0x48] sm:$0xff]
      %v710 = vld [vmem:[%s6 + $0x50] sm:$0xff]
      %v711 = vld [vmem:[%s6 + $0x58] sm:$0xff]
      %v712 = vld [vmem:[%s6 + $0x60] sm:$0xff]
      %v713 = vld [vmem:[%s6 + $0x68] sm:$0xff]
      %v714 = vld [vmem:[%s6 + $0x70] sm:$0xff]
      %v715 = vld [vmem:[%s6 + $0x78] sm:$0xff]
      %v716 = vld [vmem:[#allocation2] sm:$0x1]
      %v718 = vperm.slane %v716, 0
      %720 = vmatpush.msra.mxu0 %v715
      %721 = vmatpush.msra.mxu0 %v714
      %722 = vmatpush.msra.mxu0 %v713
      %723 = vmatpush.msra.mxu0 %v712
      %724 = vmatpush.msra.mxu0 %v711
      %725 = vmatpush.msra.mxu0 %v710
      %726 = vmatpush.msra.mxu0 %v709
      %727 = vmatpush.msra.mxu0 %v708
      %728 = vmatpush.msra.mxu0 %v707
      %729 = vmatpush.msra.mxu0 %v706
      %730 = vmatpush.msra.mxu0 %v705
      %731 = vmatpush.msra.mxu0 %v704
      %732 = vmatpush.msra.mxu0 %v703
      %733 = vmatpush.msra.mxu0 %v702
      %734 = vmatpush.msra.mxu0 %v701
      %735 = vmatpush.msra.mxu0 %v700
      %736 = vmatmul.f32.gmra.mxu0 %v610
      %v737 = vpop.f32.mrf.mxu0
      %v738 = vadd.f32 %v718, %v737
      %739 = vmatmul.f32.gmra.mxu0 %v611
      %v740 = vpop.f32.mrf.mxu0
      %v741 = vadd.f32 %v718, %v740
      %742 = vdwg.mxu0
      %v743 = vsub.f32 0.0, %v738
      %v744 = vsub.f32 0.0, %v741
      %v745 = vmul.f32 %v743, 1.442695
      %v746 = vpow.pop %v745
      %v747 = vmul.f32 %v744, 1.442695
      %v748 = vpow.pop %v747
      %v749 = vadd.f32 %v746, 1.0
      %v750 = vadd.f32 %v748, 1.0
      %v751 = vrcp.pop %v749
      %v752 = vmul.f32 %v749, %v751
      %v753 = vsub.f32 1.0, %v752
      %v754 = vmul.f32 %v751, %v753
      %v755 = vadd.f32 %v751, %v754
      %vm756 = vweird.f32 %v749
      %vm757 = vweird.f32 %v751
      %vm758 = vmor %vm756, %vm757
      %v759 = vsel %vm758, %v751, %v755
      %v760 = vand.u32 2147483647, %v749
      %vm761 = vcmp.eq.f32.partialorder %v760, 8.507059e+37
      %v762 = vand.u32 %v749, 2147483648
      %v763 = vor.u32 1.1754944e-38, %v762
      %v764 = vsel %vm761, %v763, %v759
      %v765 = vmul.f32 1.0, %v764
      %v766 = vrcp.pop %v750
      %v767 = vmul.f32 %v750, %v766
      %v768 = vsub.f32 1.0, %v767
      %v769 = vmul.f32 %v766, %v768
      %v770 = vadd.f32 %v766, %v769
      %vm771 = vweird.f32 %v750
      %vm772 = vweird.f32 %v766
      %vm773 = vmor %vm771, %vm772
      %v774 = vsel %vm773, %v766, %v770
      %v775 = vand.u32 2147483647, %v750
      %vm776 = vcmp.eq.f32.partialorder %v775, 8.507059e+37
      %v777 = vand.u32 %v750, 2147483648
      %v778 = vor.u32 1.1754944e-38, %v777
      %v779 = vsel %vm776, %v778, %v774
      %v780 = vmul.f32 1.0, %v779
      %vm781 = vcmask 7168
      %782 = vst.msk [vmem:[%s445] sm:$0xff] %vm781, %v765
      %783 = vst.msk [vmem:[%s445 + $0x8] sm:$0xff] %vm781, %v780
      %p784 = scmp.lt.s32.totalorder %s25, 1
      %s785 = scalar_select %p784, %s25, 1
      %s786 = smul.addr %s785, 2
      %s787 = smul.addr %s786, 8
      %s788 = scalar_lea.vmem %s8, %s787
      %p789 = scmp.lt.s32.totalorder %s25, 1
      %s790 = scalar_select %p789, %s25, 1
      %s791 = smul.addr %s790, 2
      %s792 = smul.addr %s791, 8
      %s793 = scalar_lea.vmem %s9, %s792
      %p794 = scmp.lt.s32.totalorder %s25, 1
      %s795 = scalar_select %p794, %s25, 1
      %s796 = smul.addr %s795, 2
      %s797 = smul.addr %s796, 8
      %s798 = scalar_lea.vmem %s10, %s797
      %p799 = scmp.lt.s32.totalorder %s25, 1
      %s800 = scalar_select %p799, %s25, 1
      %s801 = smul.addr %s800, 2
      %s802 = smul.addr %s801, 8
      %s803 = scalar_lea.vmem %s11, %s802
      // Predicated region
      $region53: #{_lambda_.11} parent=51 // pred_check
        %p804 = pneg %p221
      $region54: #{_lambda_.11} parent=51 // pred_check_branch
        %806 = sbr.rel (%p804) target = $region56
      $region55: #{_lambda_.11} parent=51 // pred_region
        _
      $region56: #{_lambda_.11} parent=51 // pred_fallthru
        _
      // Predicated region
      $region57: #{_lambda_.11} parent=51 // pred_check
        %p807 = pneg %p247
      $region58: #{_lambda_.11} parent=51 // pred_check_branch
        %809 = sbr.rel (%p807) target = $region60
      $region59: #{_lambda_.11} parent=51 // pred_region
        _
      $region60: #{_lambda_.11} parent=51 // pred_fallthru
        _
      // Predicated region
      $region61: #{_lambda_.11} parent=51 // pred_check
        %p810 = pneg %p273
      $region62: #{_lambda_.11} parent=51 // pred_check_branch
        %812 = sbr.rel (%p810) target = $region64
      $region63: #{_lambda_.11} parent=51 // pred_region
        _
      $region64: #{_lambda_.11} parent=51 // pred_fallthru
        _
      // Predicated region
      $region65: #{_lambda_.11} parent=51 // pred_check
        %p813 = pneg %p299
      $region66: #{_lambda_.11} parent=51 // pred_check_branch
        %815 = sbr.rel (%p813) target = $region68
      $region67: #{_lambda_.11} parent=51 // pred_region
        _
      $region68: #{_lambda_.11} parent=51 // pred_fallthru
        _
    $region52: #{_lambda_.11} parent=5 // pred_fallthru
      _
    %p816 = scmp.le.s32.totalorder 2, %s20
    // Predicated region
    $region69: #{_lambda_.11} parent=5 // pred_check
      %p817 = pneg %p816
    $region70: #{_lambda_.11} parent=5 // pred_check_branch
      %819 = sbr.rel (%p817) target = $region72
    $region71: #{_lambda_.11} parent=5 // pred_region
      %s820 = ssub.s32 %s20, 2
      // Predicated region
      $region73: #{_lambda_.11} parent=71 // pred_check
        %p821 = pneg %p227
      $region74: #{_lambda_.11} parent=71 // pred_check_branch
        %823 = sbr.rel (%p821) target = $region76
      $region75: #{_lambda_.11} parent=71 // pred_region
        %p824 = scmp.lt.s32.totalorder %s26, 1
        %s825 = scalar_select %p824, %s26, 1
        %s826 = smul.addr %s825, 2
        %s827 = smul.addr %s826, 8
        %s828 = scalar_lea.vmem %s8, %s827
      $region76: #{_lambda_.11} parent=71 // pred_fallthru
        _
      // Predicated region
      $region77: #{_lambda_.11} parent=71 // pred_check
        %p829 = pneg %p253
      $region78: #{_lambda_.11} parent=71 // pred_check_branch
        %831 = sbr.rel (%p829) target = $region80
      $region79: #{_lambda_.11} parent=71 // pred_region
        %p832 = scmp.lt.s32.totalorder %s26, 1
        %s833 = scalar_select %p832, %s26, 1
        %s834 = smul.addr %s833, 2
        %s835 = smul.addr %s834, 8
        %s836 = scalar_lea.vmem %s9, %s835
      $region80: #{_lambda_.11} parent=71 // pred_fallthru
        _
      // Predicated region
      $region81: #{_lambda_.11} parent=71 // pred_check
        %p837 = pneg %p279
      $region82: #{_lambda_.11} parent=71 // pred_check_branch
        %839 = sbr.rel (%p837) target = $region84
      $region83: #{_lambda_.11} parent=71 // pred_region
        %p840 = scmp.lt.s32.totalorder %s26, 1
        %s841 = scalar_select %p840, %s26, 1
        %s842 = smul.addr %s841, 2
        %s843 = smul.addr %s842, 8
        %s844 = scalar_lea.vmem %s10, %s843
      $region84: #{_lambda_.11} parent=71 // pred_fallthru
        _
      // Predicated region
      $region85: #{_lambda_.11} parent=71 // pred_check
        %p845 = pneg %p305
      $region86: #{_lambda_.11} parent=71 // pred_check_branch
        %847 = sbr.rel (%p845) target = $region88
      $region87: #{_lambda_.11} parent=71 // pred_region
        %p848 = scmp.lt.s32.totalorder %s26, 1
        %s849 = scalar_select %p848, %s26, 1
        %s850 = smul.addr %s849, 2
        %s851 = smul.addr %s850, 8
        %s852 = scalar_lea.vmem %s11, %s851
      $region88: #{_lambda_.11} parent=71 // pred_fallthru
        _
    $region72: #{_lambda_.11} parent=5 // pred_fallthru
      _
  $region6: #{_lambda_.11} parent=0 // loop_footer
    %s24 = sadd.s32 1, %s20
  $region7: #{_lambda_.11} parent=0 // loop_footer_branch
    %19 = sbr.rel target = $region3
  $region8: #{_lambda_.11} parent=0 // loop_exit
    _

// kernel: _lambda_.12
$region0: #{_lambda_.12}
  #allocation0 [shape = 'u32[]', space=smem, size = 0x4, offset = 0x4, fixed_abs, tag = 'smem constant byte address 0x4 - core index']
  #allocation1 [shape = 'u32[72,128]{1,0:T(1,128)}', space=vmem, size = 0x9000, scoped, tag = 'internal scratch']
  #allocation2 [shape = 'f32[1,1]{1,0:T(1,128)S(1)}', space=vmem, size = 0x200, scoped, tag = 'scoped memory for _lambda_.12']
  %s0 = inlined_call_operand.vmem [shape: f32[2,12,12], index: 0, kind: input, shape index: {}]
  %s1 = inlined_call_operand.vmem [shape: f32[2,12,128], index: 1, kind: input, shape index: {}]
  %s2 = inlined_call_operand.vmem [shape: f32[128,128], index: 2, kind: input, shape index: {}]
  %s3 = inlined_call_operand.vmem [shape: f32[1,128], index: 3, kind: input, shape index: {}]
  %s4 = inlined_call_operand.vmem [shape: f32[1,128], index: 4, kind: input, shape index: {}]
  %s5 = inlined_call_operand.vmem [shape: f32[1,128], index: 5, kind: input, shape index: {}]
  %s6 = inlined_call_operand.vmem [shape: f32[128,1], index: 6, kind: input, shape index: {}]
  %s7 = inlined_call_operand.<no memory space> [shape: f32[1,1], index: 7, kind: input, shape index: {}]
  %s8 = inlined_call_operand.vmem [shape: f32[2,12,128], index: 8, kind: output, shape index: {0}]
  %s9 = inlined_call_operand.vmem [shape: f32[2,12,12], index: 9, kind: output, shape index: {1}]
  %s10 = inlined_call_operand.vmem [shape: f32[2,12,12], index: 10, kind: output, shape index: {2}]
  %s11 = inlined_call_operand.vmem [shape: f32[2,12,1], index: 11, kind: output, shape index: {3}]
  %12 = xla_tuple %s8, %s9, %s10, %s11
  %s13 = sld [smem:[#allocation0]]
  $region89: #{_lambda_.12} parent=0
    _
  %s15 = ssub.s32 1, %s13
  %s16 = scalar_select 0, %s15, %s13
  %v17 = vstv %s7
  %18 = vst [vmem:[#allocation2] sm:$0x1] %v17
  loop: start=0, step=1, limit=4
  $region2: #{_lambda_.12} parent=0 // loop_pre_header
    _
  $region3: #{_lambda_.12} parent=0 // loop_header
    %s20 = sphi 0, %s24
    %p21 = scmp.ge.s32.totalorder %s20, 4
    %s30 = sphi 0, %s32
    %s33 = sphi 0, %s30
    %s34 = sphi 0, %s33
    %s50 = sphi 0, %s34
    %s56 = sphi 0, %s58
    %s59 = sphi 0, %s56
    %s60 = sphi 0, %s59
    %s76 = sphi 0, %s60
    %s80 = sphi 0, %s80
    %s82 = sphi 0, %s80
    %s83 = sphi 0, %s82
    %s97 = sphi 0, %s83
    %s101 = sphi 0, %s101
    %s103 = sphi 0, %s101
    %s104 = sphi 0, %s103
    %s118 = sphi 0, %s104
    %s122 = sphi 0, %s122
    %s124 = sphi 0, %s122
    %s125 = sphi 0, %s124
    %s139 = sphi 0, %s125
    %s143 = sphi 0, %s143
    %s145 = sphi 0, %s143
    %s146 = sphi 0, %s145
    %s160 = sphi 0, %s146
    %s164 = sphi 0, %s164
    %s166 = sphi 0, %s164
    %s167 = sphi 0, %s166
    %s181 = sphi 0, %s167
    %s185 = sphi 0, %s185
    %s187 = sphi 0, %s185
    %s188 = sphi 0, %s187
    %s202 = sphi 0, %s188
    %s208 = sphi 0, %s210
    %s211 = sphi 0, %s208
    %s212 = sphi 0, %s211
    %s228 = sphi 0, %s212
    %s234 = sphi 0, %s236
    %s237 = sphi 0, %s234
    %s238 = sphi 0, %s237
    %s254 = sphi 0, %s238
    %s260 = sphi 0, %s262
    %s263 = sphi 0, %s260
    %s264 = sphi 0, %s263
    %s280 = sphi 0, %s264
    %s286 = sphi 0, %s288
    %s289 = sphi 0, %s286
    %s290 = sphi 0, %s289
    %s306 = sphi 0, %s290
  $region4: #{_lambda_.12} parent=0 // loop_header_branch
    %23 = sbr.rel (%p21) target = $region8
  $region5: #{_lambda_.12} parent=0 // loop_body
    %s25 = ssub.s32 %s20, 1
    %s26 = ssub.s32 %s20, 2
    %s27 = sadd.s32 %s20, 1
    %s28 = ssub.s32 %s20, %s27
    %p29 = scmp.eq.s32.totalorder %s28, 0
    %s31 = sadd.s32 %s30, 1
    %s32 = scalar_select %p29, %s30, %s31
    %p35 = pneg %p29
    %p36 = scmp.eq.s32.totalorder %s20, 1
    %p37 = por %p35, %p36
    %p38 = scmp.ne.s32.totalorder %s30, %s33
    %p39 = scmp.eq.s32.totalorder %s20, 0
    %p40 = por %p38, %p39
    %p41 = scmp.ne.s32.totalorder %s30, %s33
    %p42 = scmp.eq.s32.totalorder %s25, 1
    %p43 = por %p41, %p42
    %p44 = scmp.ne.s32.totalorder %s33, %s34
    %p45 = scmp.eq.s32.totalorder %s25, 0
    %p46 = por %p44, %p45
    %p47 = scmp.ne.s32.totalorder %s33, %s34
    %p48 = scmp.eq.s32.totalorder %s26, 1
    %p49 = por %p47, %p48
    %p51 = scmp.ne.s32.totalorder %s34, %s50
    %p52 = scmp.eq.s32.totalorder %s26, 0
    %p53 = por %p51, %p52
    %s54 = ssub.s32 %s20, %s27
    %p55 = scmp.eq.s32.totalorder %s54, 0
    %s57 = sadd.s32 %s56, 1
    %s58 = scalar_select %p55, %s56, %s57
    %p61 = pneg %p55
    %p62 = scmp.eq.s32.totalorder %s20, 1
    %p63 = por %p61, %p62
    %p64 = scmp.ne.s32.totalorder %s56, %s59
    %p65 = scmp.eq.s32.totalorder %s20, 0
    %p66 = por %p64, %p65
    %p67 = scmp.ne.s32.totalorder %s56, %s59
    %p68 = scmp.eq.s32.totalorder %s25, 1
    %p69 = por %p67, %p68
    %p70 = scmp.ne.s32.totalorder %s59, %s60
    %p71 = scmp.eq.s32.totalorder %s25, 0
    %p72 = por %p70, %p71
    %p73 = scmp.ne.s32.totalorder %s59, %s60
    %p74 = scmp.eq.s32.totalorder %s26, 1
    %p75 = por %p73, %p74
    %p77 = scmp.ne.s32.totalorder %s60, %s76
    %p78 = scmp.eq.s32.totalorder %s26, 0
    %p79 = por %p77, %p78
    %s81 = sadd.s32 %s80, 1
    %p84 = scmp.eq.s32.totalorder %s20, 1
    %p85 = scmp.ne.s32.totalorder %s80, %s82
    %p86 = scmp.eq.s32.totalorder %s20, 0
    %p87 = por %p85, %p86
    %p88 = scmp.ne.s32.totalorder %s80, %s82
    %p89 = scmp.eq.s32.totalorder %s25, 1
    %p90 = por %p88, %p89
    %p91 = scmp.ne.s32.totalorder %s82, %s83
    %p92 = scmp.eq.s32.totalorder %s25, 0
    %p93 = por %p91, %p92
    %p94 = scmp.ne.s32.totalorder %s82, %s83
    %p95 = scmp.eq.s32.totalorder %s26, 1
    %p96 = por %p94, %p95
    %p98 = scmp.ne.s32.totalorder %s83, %s97
    %p99 = scmp.eq.s32.totalorder %s26, 0
    %p100 = por %p98, %p99
    %s102 = sadd.s32 %s101, 1
    %p105 = scmp.eq.s32.totalorder %s20, 1
    %p106 = scmp.ne.s32.totalorder %s101, %s103
    %p107 = scmp.eq.s32.totalorder %s20, 0
    %p108 = por %p106, %p107
    %p109 = scmp.ne.s32.totalorder %s101, %s103
    %p110 = scmp.eq.s32.totalorder %s25, 1
    %p111 = por %p109, %p110
    %p112 = scmp.ne.s32.totalorder %s103, %s104
    %p113 = scmp.eq.s32.totalorder %s25, 0
    %p114 = por %p112, %p113
    %p115 = scmp.ne.s32.totalorder %s103, %s104
    %p116 = scmp.eq.s32.totalorder %s26, 1
    %p117 = por %p115, %p116
    %p119 = scmp.ne.s32.totalorder %s104, %s118
    %p120 = scmp.eq.s32.totalorder %s26, 0
    %p121 = por %p119, %p120
    %s123 = sadd.s32 %s122, 1
    %p126 = scmp.eq.s32.totalorder %s20, 1
    %p127 = scmp.ne.s32.totalorder %s122, %s124
    %p128 = scmp.eq.s32.totalorder %s20, 0
    %p129 = por %p127, %p128
    %p130 = scmp.ne.s32.totalorder %s122, %s124
    %p131 = scmp.eq.s32.totalorder %s25, 1
    %p132 = por %p130, %p131
    %p133 = scmp.ne.s32.totalorder %s124, %s125
    %p134 = scmp.eq.s32.totalorder %s25, 0
    %p135 = por %p133, %p134
    %p136 = scmp.ne.s32.totalorder %s124, %s125
    %p137 = scmp.eq.s32.totalorder %s26, 1
    %p138 = por %p136, %p137
    %p140 = scmp.ne.s32.totalorder %s125, %s139
    %p141 = scmp.eq.s32.totalorder %s26, 0
    %p142 = por %p140, %p141
    %s144 = sadd.s32 %s143, 1
    %p147 = scmp.eq.s32.totalorder %s20, 1
    %p148 = scmp.ne.s32.totalorder %s143, %s145
    %p149 = scmp.eq.s32.totalorder %s20, 0
    %p150 = por %p148, %p149
    %p151 = scmp.ne.s32.totalorder %s143, %s145
    %p152 = scmp.eq.s32.totalorder %s25, 1
    %p153 = por %p151, %p152
    %p154 = scmp.ne.s32.totalorder %s145, %s146
    %p155 = scmp.eq.s32.totalorder %s25, 0
    %p156 = por %p154, %p155
    %p157 = scmp.ne.s32.totalorder %s145, %s146
    %p158 = scmp.eq.s32.totalorder %s26, 1
    %p159 = por %p157, %p158
    %p161 = scmp.ne.s32.totalorder %s146, %s160
    %p162 = scmp.eq.s32.totalorder %s26, 0
    %p163 = por %p161, %p162
    %s165 = sadd.s32 %s164, 1
    %p168 = scmp.eq.s32.totalorder %s20, 1
    %p169 = scmp.ne.s32.totalorder %s164, %s166
    %p170 = scmp.eq.s32.totalorder %s20, 0
    %p171 = por %p169, %p170
    %p172 = scmp.ne.s32.totalorder %s164, %s166
    %p173 = scmp.eq.s32.totalorder %s25, 1
    %p174 = por %p172, %p173
    %p175 = scmp.ne.s32.totalorder %s166, %s167
    %p176 = scmp.eq.s32.totalorder %s25, 0
    %p177 = por %p175, %p176
    %p178 = scmp.ne.s32.totalorder %s166, %s167
    %p179 = scmp.eq.s32.totalorder %s26, 1
    %p180 = por %p178, %p179
    %p182 = scmp.ne.s32.totalorder %s167, %s181
    %p183 = scmp.eq.s32.totalorder %s26, 0
    %p184 = por %p182, %p183
    %s186 = sadd.s32 %s185, 1
    %p189 = scmp.eq.s32.totalorder %s20, 1
    %p190 = scmp.ne.s32.totalorder %s185, %s187
    %p191 = scmp.eq.s32.totalorder %s20, 0
    %p192 = por %p190, %p191
    %p193 = scmp.ne.s32.totalorder %s185, %s187
    %p194 = scmp.eq.s32.totalorder %s25, 1
    %p195 = por %p193, %p194
    %p196 = scmp.ne.s32.totalorder %s187, %s188
    %p197 = scmp.eq.s32.totalorder %s25, 0
    %p198 = por %p196, %p197
    %p199 = scmp.ne.s32.totalorder %s187, %s188
    %p200 = scmp.eq.s32.totalorder %s26, 1
    %p201 = por %p199, %p200
    %p203 = scmp.ne.s32.totalorder %s188, %s202
    %p204 = scmp.eq.s32.totalorder %s26, 0
    %p205 = por %p203, %p204
    %s206 = ssub.s32 %s20, %s27
    %p207 = scmp.eq.s32.totalorder %s206, 0
    %s209 = sadd.s32 %s208, 1
    %s210 = scalar_select %p207, %s208, %s209
    %p213 = pneg %p207
    %p214 = scmp.eq.s32.totalorder %s20, 1
    %p215 = por %p213, %p214
    %p216 = scmp.ne.s32.totalorder %s208, %s211
    %p217 = scmp.eq.s32.totalorder %s20, 0
    %p218 = por %p216, %p217
    %p219 = scmp.ne.s32.totalorder %s208, %s211
    %p220 = scmp.eq.s32.totalorder %s25, 1
    %p221 = por %p219, %p220
    %p222 = scmp.ne.s32.totalorder %s211, %s212
    %p223 = scmp.eq.s32.totalorder %s25, 0
    %p224 = por %p222, %p223
    %p225 = scmp.ne.s32.totalorder %s211, %s212
    %p226 = scmp.eq.s32.totalorder %s26, 1
    %p227 = por %p225, %p226
    %p229 = scmp.ne.s32.totalorder %s212, %s228
    %p230 = scmp.eq.s32.totalorder %s26, 0
    %p231 = por %p229, %p230
    %s232 = ssub.s32 %s20, %s27
    %p233 = scmp.eq.s32.totalorder %s232, 0
    %s235 = sadd.s32 %s234, 1
    %s236 = scalar_select %p233, %s234, %s235
    %p239 = pneg %p233
    %p240 = scmp.eq.s32.totalorder %s20, 1
    %p241 = por %p239, %p240
    %p242 = scmp.ne.s32.totalorder %s234, %s237
    %p243 = scmp.eq.s32.totalorder %s20, 0
    %p244 = por %p242, %p243
    %p245 = scmp.ne.s32.totalorder %s234, %s237
    %p246 = scmp.eq.s32.totalorder %s25, 1
    %p247 = por %p245, %p246
    %p248 = scmp.ne.s32.totalorder %s237, %s238
    %p249 = scmp.eq.s32.totalorder %s25, 0
    %p250 = por %p248, %p249
    %p251 = scmp.ne.s32.totalorder %s237, %s238
    %p252 = scmp.eq.s32.totalorder %s26, 1
    %p253 = por %p251, %p252
    %p255 = scmp.ne.s32.totalorder %s238, %s254
    %p256 = scmp.eq.s32.totalorder %s26, 0
    %p257 = por %p255, %p256
    %s258 = ssub.s32 %s20, %s27
    %p259 = scmp.eq.s32.totalorder %s258, 0
    %s261 = sadd.s32 %s260, 1
    %s262 = scalar_select %p259, %s260, %s261
    %p265 = pneg %p259
    %p266 = scmp.eq.s32.totalorder %s20, 1
    %p267 = por %p265, %p266
    %p268 = scmp.ne.s32.totalorder %s260, %s263
    %p269 = scmp.eq.s32.totalorder %s20, 0
    %p270 = por %p268, %p269
    %p271 = scmp.ne.s32.totalorder %s260, %s263
    %p272 = scmp.eq.s32.totalorder %s25, 1
    %p273 = por %p271, %p272
    %p274 = scmp.ne.s32.totalorder %s263, %s264
    %p275 = scmp.eq.s32.totalorder %s25, 0
    %p276 = por %p274, %p275
    %p277 = scmp.ne.s32.totalorder %s263, %s264
    %p278 = scmp.eq.s32.totalorder %s26, 1
    %p279 = por %p277, %p278
    %p281 = scmp.ne.s32.totalorder %s264, %s280
    %p282 = scmp.eq.s32.totalorder %s26, 0
    %p283 = por %p281, %p282
    %s284 = ssub.s32 %s20, %s27
    %p285 = scmp.eq.s32.totalorder %s284, 0
    %s287 = sadd.s32 %s286, 1
    %s288 = scalar_select %p285, %s286, %s287
    %p291 = pneg %p285
    %p292 = scmp.eq.s32.totalorder %s20, 1
    %p293 = por %p291, %p292
    %p294 = scmp.ne.s32.totalorder %s286, %s289
    %p295 = scmp.eq.s32.totalorder %s20, 0
    %p296 = por %p294, %p295
    %p297 = scmp.ne.s32.totalorder %s286, %s289
    %p298 = scmp.eq.s32.totalorder %s25, 1
    %p299 = por %p297, %p298
    %p300 = scmp.ne.s32.totalorder %s289, %s290
    %p301 = scmp.eq.s32.totalorder %s25, 0
    %p302 = por %p300, %p301
    %p303 = scmp.ne.s32.totalorder %s289, %s290
    %p304 = scmp.eq.s32.totalorder %s26, 1
    %p305 = por %p303, %p304
    %p307 = scmp.ne.s32.totalorder %s290, %s306
    %p308 = scmp.eq.s32.totalorder %s26, 0
    %p309 = por %p307, %p308
    %p310 = scmp.le.s32.totalorder 1, %s20
    %p311 = scmp.lt.s32.totalorder %s20, 3
    %p312 = pnand %p310, %p311
    %p313 = pneg %p312
    // Predicated region
    $region9: #{_lambda_.12} parent=5 // pred_check
      _
    $region10: #{_lambda_.12} parent=5 // pred_check_branch
      %315 = sbr.rel (%p312) target = $region12
    $region11: #{_lambda_.12} parent=5 // pred_region
      %s316 = ssub.s32 %s20, 1
      // Predicated region
      $region13: #{_lambda_.12} parent=11 // pred_check
        %p317 = pneg %p93
      $region14: #{_lambda_.12} parent=11 // pred_check_branch
        %319 = sbr.rel (%p317) target = $region16
      $region15: #{_lambda_.12} parent=11 // pred_region
        _
      $region16: #{_lambda_.12} parent=11 // pred_fallthru
        _
      // Predicated region
      $region17: #{_lambda_.12} parent=11 // pred_check
        %p320 = pneg %p114
      $region18: #{_lambda_.12} parent=11 // pred_check_branch
        %322 = sbr.rel (%p320) target = $region20
      $region19: #{_lambda_.12} parent=11 // pred_region
        _
      $region20: #{_lambda_.12} parent=11 // pred_fallthru
        _
      // Predicated region
      $region21: #{_lambda_.12} parent=11 // pred_check
        %p323 = pneg %p135
      $region22: #{_lambda_.12} parent=11 // pred_check_branch
        %325 = sbr.rel (%p323) target = $region24
      $region23: #{_lambda_.12} parent=11 // pred_region
        _
      $region24: #{_lambda_.12} parent=11 // pred_fallthru
        _
      // Predicated region
      $region25: #{_lambda_.12} parent=11 // pred_check
        %p326 = pneg %p156
      $region26: #{_lambda_.12} parent=11 // pred_check_branch
        %328 = sbr.rel (%p326) target = $region28
      $region27: #{_lambda_.12} parent=11 // pred_region
        _
      $region28: #{_lambda_.12} parent=11 // pred_fallthru
        _
      // Predicated region
      $region29: #{_lambda_.12} parent=11 // pred_check
        %p329 = pneg %p177
      $region30: #{_lambda_.12} parent=11 // pred_check_branch
        %331 = sbr.rel (%p329) target = $region32
      $region31: #{_lambda_.12} parent=11 // pred_region
        _
      $region32: #{_lambda_.12} parent=11 // pred_fallthru
        _
      // Predicated region
      $region33: #{_lambda_.12} parent=11 // pred_check
        %p332 = pneg %p198
      $region34: #{_lambda_.12} parent=11 // pred_check_branch
        %334 = sbr.rel (%p332) target = $region36
      $region35: #{_lambda_.12} parent=11 // pred_region
        _
      $region36: #{_lambda_.12} parent=11 // pred_fallthru
        _
    $region12: #{_lambda_.12} parent=5 // pred_fallthru
      _
    %p335 = scmp.lt.s32.totalorder %s20, 2
    // Predicated region
    $region37: #{_lambda_.12} parent=5 // pred_check
      %p336 = pneg %p335
    $region38: #{_lambda_.12} parent=5 // pred_check_branch
      %338 = sbr.rel (%p336) target = $region40
    $region39: #{_lambda_.12} parent=5 // pred_region
      // Predicated region
      $region41: #{_lambda_.12} parent=39 // pred_check
        %p339 = pneg %p40
      $region42: #{_lambda_.12} parent=39 // pred_check_branch
        %341 = sbr.rel (%p339) target = $region44
      $region43: #{_lambda_.12} parent=39 // pred_region
        %p342 = scmp.lt.s32.totalorder %s20, 1
        %s343 = scalar_select %p342, %s20, 1
        %s344 = smul.addr %s343, 2
        %s345 = smul.addr %s344, 8
        %s346 = scalar_lea.vmem %s0, %s345
      $region44: #{_lambda_.12} parent=39 // pred_fallthru
        _
      // Predicated region
      $region45: #{_lambda_.12} parent=39 // pred_check
        %p347 = pneg %p66
      $region46: #{_lambda_.12} parent=39 // pred_check_branch
        %349 = sbr.rel (%p347) target = $region48
      $region47: #{_lambda_.12} parent=39 // pred_region
        %p350 = scmp.lt.s32.totalorder %s20, 1
        %s351 = scalar_select %p350, %s20, 1
        %s352 = smul.addr %s351, 2
        %s353 = smul.addr %s352, 8
        %s354 = scalar_lea.vmem %s1, %s353
      $region48: #{_lambda_.12} parent=39 // pred_fallthru
        _
    $region40: #{_lambda_.12} parent=5 // pred_fallthru
      _
    %p355 = scmp.le.s32.totalorder 1, %s20
    %p356 = scmp.lt.s32.totalorder %s20, 3
    %p357 = pnand %p355, %p356
    %p358 = pneg %p357
    // Predicated region
    $region49: #{_lambda_.12} parent=5 // pred_check
      _
    $region50: #{_lambda_.12} parent=5 // pred_check_branch
      %360 = sbr.rel (%p357) target = $region52
    $region51: #{_lambda_.12} parent=5 // pred_region
      %s361 = ssub.s32 %s20, 1
      %p362 = scmp.lt.s32.totalorder %s25, 1
      %s363 = scalar_select %p362, %s25, 1
      %s364 = smul.addr %s363, 2
      %s365 = smul.addr %s364, 8
      %s366 = scalar_lea.vmem %s0, %s365
      %p367 = pneg %p46
      %p368 = pneg %p43
      %p369 = scmp.lt.s32.totalorder %s25, 1
      %s370 = scalar_select %p369, %s25, 1
      %s371 = smul.addr %s370, 2
      %s372 = smul.addr %s371, 8
      %s373 = scalar_lea.vmem %s1, %s372
      %p374 = pneg %p72
      %p375 = pneg %p69
      %p376 = pneg %p93
      %p377 = pneg %p90
      %p378 = pneg %p114
      %p379 = pneg %p111
      %p380 = pneg %p135
      %p381 = pneg %p132
      %p382 = pneg %p156
      %p383 = pneg %p153
      %p384 = pneg %p177
      %p385 = pneg %p174
      %p386 = pneg %p198
      %p387 = pneg %p195
      %p388 = pneg %p224
      %p389 = pneg %p221
      %p390 = scmp.lt.s32.totalorder %s25, 1
      %s391 = scalar_select %p390, %s25, 1
      %s392 = smul.addr %s391, 2
      %s393 = smul.addr %s392, 8
      %s394 = scalar_lea.vmem %s8, %s393
      %p395 = pneg %p250
      %p396 = pneg %p247
      %p397 = scmp.lt.s32.totalorder %s25, 1
      %s398 = scalar_select %p397, %s25, 1
      %s399 = smul.addr %s398, 2
      %s400 = smul.addr %s399, 8
      %s401 = scalar_lea.vmem %s9, %s400
      %p402 = pneg %p276
      %p403 = pneg %p273
      %p404 = scmp.lt.s32.totalorder %s25, 1
      %s405 = scalar_select %p404, %s25, 1
      %s406 = smul.addr %s405, 2
      %s407 = smul.addr %s406, 8
      %s408 = scalar_lea.vmem %s10, %s407
      %p409 = pneg %p302
      %p410 = pneg %p299
      %p411 = scmp.lt.s32.totalorder %s25, 1
      %s412 = scalar_select %p411, %s25, 1
      %s413 = smul.addr %s412, 2
      %s414 = smul.addr %s413, 8
      %s415 = scalar_lea.vmem %s11, %s414
      %p416 = scmp.lt.s32.totalorder %s25, 1
      %s417 = scalar_select %p416, %s25, 1
      %s418 = smul.addr %s417, 2
      %s419 = smul.addr %s418, 8
      %s420 = scalar_lea.vmem %s0, %s419
      %p421 = scmp.lt.s32.totalorder %s25, 1
      %s422 = scalar_select %p421, %s25, 1
      %s423 = smul.addr %s422, 2
      %s424 = smul.addr %s423, 8
      %s425 = scalar_lea.vmem %s1, %s424
      %p426 = scmp.lt.s32.totalorder %s25, 1
      %s427 = scalar_select %p426, %s25, 1
      %s428 = smul.addr %s427, 2
      %s429 = smul.addr %s428, 8
      %s430 = scalar_lea.vmem %s8, %s429
      %p431 = scmp.lt.s32.totalorder %s25, 1
      %s432 = scalar_select %p431, %s25, 1
      %s433 = smul.addr %s432, 2
      %s434 = smul.addr %s433, 8
      %s435 = scalar_lea.vmem %s9, %s434
      %p436 = scmp.lt.s32.totalorder %s25, 1
      %s437 = scalar_select %p436, %s25, 1
      %s438 = smul.addr %s437, 2
      %s439 = smul.addr %s438, 8
      %s440 = scalar_lea.vmem %s10, %s439
      %p441 = scmp.lt.s32.totalorder %s25, 1
      %s442 = scalar_select %p441, %s25, 1
      %s443 = smul.addr %s442, 2
      %s444 = smul.addr %s443, 8
      %s445 = scalar_lea.vmem %s11, %s444
      %v446 = vld [vmem:[%s420] sm:$0xff]
      %v447 = vld [vmem:[%s420 + $0x8] sm:$0xf]
      %v448 = vld [vmem:[%s425] sm:$0xff]
      %v449 = vld [vmem:[%s425 + $0x8] sm:$0xf]
      %v450 = vld [vmem:[%s2] sm:$0xff]
      %v451 = vld [vmem:[%s2 + $0x8] sm:$0xff]
      %v452 = vld [vmem:[%s2 + $0x10] sm:$0xff]
      %v453 = vld [vmem:[%s2 + $0x18] sm:$0xff]
      %v454 = vld [vmem:[%s2 + $0x20] sm:$0xff]
      %v455 = vld [vmem:[%s2 + $0x28] sm:$0xff]
      %v456 = vld [vmem:[%s2 + $0x30] sm:$0xff]
      %v457 = vld [vmem:[%s2 + $0x38] sm:$0xff]
      %v458 = vld [vmem:[%s2 + $0x40] sm:$0xff]
      %v459 = vld [vmem:[%s2 + $0x48] sm:$0xff]
      %v460 = vld [vmem:[%s2 + $0x50] sm:$0xff]
      %v461 = vld [vmem:[%s2 + $0x58] sm:$0xff]
      %v462 = vld [vmem:[%s2 + $0x60] sm:$0xff]
      %v463 = vld [vmem:[%s2 + $0x68] sm:$0xff]
      %v464 = vld [vmem:[%s2 + $0x70] sm:$0xff]
      %v465 = vld [vmem:[%s2 + $0x78] sm:$0xff]
      %v466 = vld [vmem:[%s3] sm:$0x1]
      %vm467 = vcmask 97280
      %v468 = vsel %vm467, %v446, 0.0
      %469 = vadd.xlane.f32.xlu0 %v468
      %v470 = vpop.xlane.xlu0 %469
      %vm471 = vcmask 93184
      %v472 = vsel %vm471, %v447, 0.0
      %473 = vadd.xlane.f32.xlu0 %v472
      %v474 = vpop.xlane.xlu0 %473
      %v475 = vmax.f32 %v470, 1e-12
      %v476 = vmax.f32 %v474, 1e-12
      %v477 = vrcp.pop %v475
      %v478 = vrcp.pop %v476
      %v479 = vmul.f32 %v448, %v477
      %v480 = vmul.f32 %v449, %v478
      %v482 = vsel %vm467, %v446, 0
      %v485 = vsel %vm467, %v447, 0
      %vm487 = vcmask 1043456
      %v489 = vsel %vm487, %v480, 0
      %491 = vmatpush.msra.mxu0 0.0
      %492 = vmatpush.msra.mxu0 0.0
      %493 = vmatpush.msra.mxu0 0.0
      %494 = vmatpush.msra.mxu0 0.0
      %495 = vmatpush.msra.mxu0 0.0
      %496 = vmatpush.msra.mxu0 0.0
      %497 = vmatpush.msra.mxu0 0.0
      %498 = vmatpush.msra.mxu0 0.0
      %499 = vmatpush.msra.mxu0 0.0
      %500 = vmatpush.msra.mxu0 0.0
      %501 = vmatpush.msra.mxu0 0.0
      %502 = vmatpush.msra.mxu0 0.0
      %503 = vmatpush.msra.mxu0 0.0
      %504 = vmatpush.msra.mxu0 0.0
      %505 = vmatpush.msra.mxu0 %v489
      %506 = vmatpush.msra.mxu0 %v479
      %507 = vmatmul.f32.gmra.mxu0 %v482
      %v508 = vpop.f32.mrf.mxu0
      %v509 = vadd.f32 0.0, %v508
      %510 = vmatmul.f32.gmra.mxu0 %v485
      %v511 = vpop.f32.mrf.mxu0
      %v512 = vadd.f32 0.0, %v511
      %513 = vdwg.mxu0
      %v515 = vperm.slane %v466, 0
      %517 = vmatpush.msra.mxu0 %v465
      %518 = vmatpush.msra.mxu0 %v464
      %519 = vmatpush.msra.mxu0 %v463
      %520 = vmatpush.msra.mxu0 %v462
      %521 = vmatpush.msra.mxu0 %v461
      %522 = vmatpush.msra.mxu0 %v460
      %523 = vmatpush.msra.mxu0 %v459
      %524 = vmatpush.msra.mxu0 %v458
      %525 = vmatpush.msra.mxu0 %v457
      %526 = vmatpush.msra.mxu0 %v456
      %527 = vmatpush.msra.mxu0 %v455
      %528 = vmatpush.msra.mxu0 %v454
      %529 = vmatpush.msra.mxu0 %v453
      %530 = vmatpush.msra.mxu0 %v452
      %531 = vmatpush.msra.mxu0 %v451
      %532 = vmatpush.msra.mxu0 %v450
      %533 = vmatmul.f32.gmra.mxu0 %v509
      %v534 = vpop.f32.mrf.mxu0
      %v535 = vadd.f32 %v515, %v534
      %536 = vmatmul.f32.gmra.mxu0 %v512
      %v537 = vpop.f32.mrf.mxu0
      %v538 = vadd.f32 %v515, %v537
      %539 = vdwg.mxu0
      %vm540 = vcmp.gt.f32.partialorder %v535, 0.0
      %vm541 = vcmp.gt.f32.partialorder %v538, 0.0
      %v542 = vmin.f32 %v535, 0.0
      %v543 = vmin.f32 %v538, 0.0
      %v544 = vmul.f32 %v542, 1.442695
      %v545 = vpow.pop %v544
      %v546 = vmul.f32 %v543, 1.442695
      %v547 = vpow.pop %v546
      %v548 = vsub.f32 %v545, 1.0
      %v549 = vsub.f32 %v547, 1.0
      %v550 = vsel %vm540, %v535, %v548
      %v551 = vsel %vm541, %v538, %v549
      %v552 = vadd.f32 %v448, %v550
      %v553 = vadd.f32 %v449, %v551
      %v554 = vld [vmem:[%s4] sm:$0x1]
      %v555 = vld [vmem:[%s5] sm:$0x1]
      %556 = vadd.xlane.f32.xlu0 %v552
      %v557 = vpop.xlane.xlu0 %556
      %v558 = vsel %vm487, %v553, 0.0
      %559 = vadd.xlane.f32.xlu0 %v558
      %v560 = vpop.xlane.xlu0 %559
      %v561 = vrcp.pop 32.0
      %v562 = vmul.f32 32.0, %v561
      %v563 = vsub.f32 1.0, %v562
      %v564 = vmul.f32 %v561, %v563
      %v565 = vadd.f32 %v561, %v564
      %vm566 = vweird.f32 %v561
      %v567 = vsel %vm566, %v561, %v565
      %v568 = vmul.f32 %v557, %v567
      %v569 = vmul.f32 %v560, %v567
      %v570 = vmul.f32 %v552, %v552
      %v571 = vmul.f32 %v553, %v553
      %572 = vadd.xlane.f32.xlu0 %v570
      %v573 = vpop.xlane.xlu0 %572
      %v574 = vsel %vm487, %v571, 0.0
      %575 = vadd.xlane.f32.xlu0 %v574
      %v576 = vpop.xlane.xlu0 %575
      %v577 = vmul.f32 %v573, %v567
      %v578 = vmul.f32 %v576, %v567
      %v579 = vmul.f32 %v568, %v568
      %v580 = vmul.f32 %v569, %v569
      %v581 = vsub.f32 %v577, %v579
      %v582 = vsub.f32 %v578, %v580
      %v583 = vsub.f32 %v552, %v568
      %v584 = vsub.f32 %v553, %v569
      %v585 = vadd.f32 %v581, 1e-05
      %v586 = vadd.f32 %v582, 1e-05
      %v587 = vrsqrt.pop %v585
      %v588 = vmul.f32 %v587, %v585
      %v589 = vmul.f32 %v588, %v587
      %v590 = vmul.f32 0.5, %v589
      %v591 = vsub.f32 1.5, %v590
      %v592 = vmul.f32 %v587, %v591
      %vm593 = vweird.f32 %v585
      %vm594 = vweird.f32 %v587
      %vm595 = vmor %vm593, %vm594
      %v596 = vsel %vm595, %v587, %v592
      %v597 = vrsqrt.pop %v586
      %v598 = vmul.f32 %v597, %v586
      %v599 = vmul.f32 %v598, %v597
      %v600 = vmul.f32 0.5, %v599
      %v601 = vsub.f32 1.5, %v600
      %v602 = vmul.f32 %v597, %v601
      %vm603 = vweird.f32 %v586
      %vm604 = vweird.f32 %v597
      %vm605 = vmor %vm603, %vm604
      %v606 = vsel %vm605, %v597, %v602
      %v607 = vmul.f32 %v583, %v596
      %v608 = vmul.f32 %v584, %v606
      %v610 = vperm.slane %v554, 0
      %v612 = vmul.f32 %v607, %v610
      %v613 = vmul.f32 %v608, %v610
      %v615 = vperm.slane %v555, 0
      %v617 = vadd.f32 %v612, %v615
      %v618 = vadd.f32 %v613, %v615
      %619 = vst [vmem:[%s430] sm:$0xff] %v617
      %620 = vst [vmem:[%s430 + $0x8] sm:$0xf] %v618
      %v622 = vsel %vm467, 1.0, 0
      %624 = vmatpush.xpose.msra.mxu0 0.0
      %625 = vmatpush.xpose.msra.mxu0 0.0
      %626 = vmatpush.xpose.msra.mxu0 0.0
      %627 = vmatpush.xpose.msra.mxu0 0.0
      %628 = vmatpush.xpose.msra.mxu0 0.0
      %629 = vmatpush.xpose.msra.mxu0 0.0
      %630 = vmatpush.xpose.msra.mxu0 0.0
      %631 = vmatpush.xpose.msra.mxu0 0.0
      %632 = vmatpush.xpose.msra.mxu0 0.0
      %633 = vmatpush.xpose.msra.mxu0 0.0
      %634 = vmatpush.xpose.msra.mxu0 0.0
      %635 = vmatpush.xpose.msra.mxu0 0.0
      %636 = vmatpush.xpose.msra.mxu0 0.0
      %637 = vmatpush.xpose.msra.mxu0 0.0
      %638 = vmatpush.xpose.msra.mxu0 %v485
      %639 = vmatpush.xpose.msra.mxu0 %v482
      %640 = vmatmul.f32.gmra.mxu0 %v622
      %v641 = vpop.f32.mrf.mxu0
      %v642 = vadd.f32 0.0, %v641
      %643 = vdwg.mxu0
      %v644 = vmax.f32 %v642, 1e-12
      %v645 = vperm.slane %v644, 0
      %v646 = vrcp.pop %v645
      %v647 = vmul.f32 %v645, %v646
      %v648 = vsub.f32 1.0, %v647
      %v649 = vmul.f32 %v646, %v648
      %v650 = vadd.f32 %v646, %v649
      %vm651 = vweird.f32 %v645
      %vm652 = vweird.f32 %v646
      %vm653 = vmor %vm651, %vm652
      %v654 = vsel %vm653, %v646, %v650
      %v655 = vand.u32 2147483647, %v645
      %vm656 = vcmp.eq.f32.partialorder %v655, 8.507059e+37
      %v657 = vand.u32 %v645, 2147483648
      %v658 = vor.u32 1.1754944e-38, %v657
      %v659 = vsel %vm656, %v658, %v654
      %v660 = vmul.f32 %v446, %v659
      %v661 = vmul.f32 %v447, %v659
      %662 = vst.msk [vmem:[%s435] sm:$0xff] %vm467, %v660
      %663 = vst.msk [vmem:[%s435 + $0x8] sm:$0xf] %vm471, %v661
      %vm664 = vcmp.ne.f32.partialorder %v446, 0.0
      %vm665 = vcmp.ne.f32.partialorder %v447, 0.0
      %v666 = vsel %vm664, 1, 0
      %v667 = vsel %vm665, 1, 0
      %v668 = vcvt.s32.f32 %v666
      %v669 = vcvt.s32.f32 %v667
      %v671 = vsel %vm467, %v668, 0
      %v674 = vsel %vm467, %v669, 0
      %v676 = vsel %vm487, %v669, 0
      %678 = vmatpush.msra.mxu0 0.0
      %679 = vmatpush.msra.mxu0 0.0
      %680 = vmatpush.msra.mxu0 0.0
      %681 = vmatpush.msra.mxu0 0.0
      %682 = vmatpush.msra.mxu0 0.0
      %683 = vmatpush.msra.mxu0 0.0
      %684 = vmatpush.msra.mxu0 0.0
      %685 = vmatpush.msra.mxu0 0.0
      %686 = vmatpush.msra.mxu0 0.0
      %687 = vmatpush.msra.mxu0 0.0
      %688 = vmatpush.msra.mxu0 0.0
      %689 = vmatpush.msra.mxu0 0.0
      %690 = vmatpush.msra.mxu0 0.0
      %691 = vmatpush.msra.mxu0 0.0
      %692 = vmatpush.msra.mxu0 %v676
      %693 = vmatpush.msra.mxu0 %v668
      %694 = vmatmul.f32.gmra.mxu0 %v671
      %v695 = vpop.f32.mrf.mxu0
      %v696 = vadd.f32 0.0, %v695
      %697 = vmatmul.f32.gmra.mxu0 %v674
      %v698 = vpop.f32.mrf.mxu0
      %v699 = vadd.f32 0.0, %v698
      %700 = vdwg.mxu0
      %vm701 = vcmp.gt.f32.partialorder %v696, 0.0
      %vm702 = vcmp.gt.f32.partialorder %v699, 0.0
      %v703 = vsel %vm701, 1, 0
      %v704 = vsel %vm702, 1, 0
      %v705 = vcvt.s32.f32 %v703
      %v706 = vcvt.s32.f32 %v704
      %707 = vst.msk [vmem:[%s440] sm:$0xff] %vm467, %v705
      %708 = vst.msk [vmem:[%s440 + $0x8] sm:$0xf] %vm471, %v706
      %v709 = vld [vmem:[%s6] sm:$0xff]
      %v710 = vld [vmem:[%s6 + $0x8] sm:$0xff]
      %v711 = vld [vmem:[%s6 + $0x10] sm:$0xff]
      %v712 = vld [vmem:[%s6 + $0x18] sm:$0xff]
      %v713 = vld [vmem:[%s6 + $0x20] sm:$0xff]
      %v714 = vld [vmem:[%s6 + $0x28] sm:$0xff]
      %v715 = vld [vmem:[%s6 + $0x30] sm:$0xff]
      %v716 = vld [vmem:[%s6 + $0x38] sm:$0xff]
      %v717 = vld [vmem:[%s6 + $0x40] sm:$0xff]
      %v718 = vld [vmem:[%s6 + $0x48] sm:$0xff]
      %v719 = vld [vmem:[%s6 + $0x50] sm:$0xff]
      %v720 = vld [vmem:[%s6 + $0x58] sm:$0xff]
      %v721 = vld [vmem:[%s6 + $0x60] sm:$0xff]
      %v722 = vld [vmem:[%s6 + $0x68] sm:$0xff]
      %v723 = vld [vmem:[%s6 + $0x70] sm:$0xff]
      %v724 = vld [vmem:[%s6 + $0x78] sm:$0xff]
      %v725 = vld [vmem:[#allocation2] sm:$0x1]
      %v727 = vperm.slane %v725, 0
      %729 = vmatpush.msra.mxu0 %v724
      %730 = vmatpush.msra.mxu0 %v723
      %731 = vmatpush.msra.mxu0 %v722
      %732 = vmatpush.msra.mxu0 %v721
      %733 = vmatpush.msra.mxu0 %v720
      %734 = vmatpush.msra.mxu0 %v719
      %735 = vmatpush.msra.mxu0 %v718
      %736 = vmatpush.msra.mxu0 %v717
      %737 = vmatpush.msra.mxu0 %v716
      %738 = vmatpush.msra.mxu0 %v715
      %739 = vmatpush.msra.mxu0 %v714
      %740 = vmatpush.msra.mxu0 %v713
      %741 = vmatpush.msra.mxu0 %v712
      %742 = vmatpush.msra.mxu0 %v711
      %743 = vmatpush.msra.mxu0 %v710
      %744 = vmatpush.msra.mxu0 %v709
      %745 = vmatmul.f32.gmra.mxu0 %v617
      %v746 = vpop.f32.mrf.mxu0
      %v747 = vadd.f32 %v727, %v746
      %748 = vmatmul.f32.gmra.mxu0 %v618
      %v749 = vpop.f32.mrf.mxu0
      %v750 = vadd.f32 %v727, %v749
      %751 = vdwg.mxu0
      %v752 = vsub.f32 0.0, %v747
      %v753 = vsub.f32 0.0, %v750
      %v754 = vmul.f32 %v752, 1.442695
      %v755 = vpow.pop %v754
      %v756 = vmul.f32 %v753, 1.442695
      %v757 = vpow.pop %v756
      %v758 = vadd.f32 %v755, 1.0
      %v759 = vadd.f32 %v757, 1.0
      %v760 = vrcp.pop %v758
      %v761 = vmul.f32 %v758, %v760
      %v762 = vsub.f32 1.0, %v761
      %v763 = vmul.f32 %v760, %v762
      %v764 = vadd.f32 %v760, %v763
      %vm765 = vweird.f32 %v758
      %vm766 = vweird.f32 %v760
      %vm767 = vmor %vm765, %vm766
      %v768 = vsel %vm767, %v760, %v764
      %v769 = vand.u32 2147483647, %v758
      %vm770 = vcmp.eq.f32.partialorder %v769, 8.507059e+37
      %v771 = vand.u32 %v758, 2147483648
      %v772 = vor.u32 1.1754944e-38, %v771
      %v773 = vsel %vm770, %v772, %v768
      %v774 = vmul.f32 1.0, %v773
      %v775 = vrcp.pop %v759
      %v776 = vmul.f32 %v759, %v775
      %v777 = vsub.f32 1.0, %v776
      %v778 = vmul.f32 %v775, %v777
      %v779 = vadd.f32 %v775, %v778
      %vm780 = vweird.f32 %v759
      %vm781 = vweird.f32 %v775
      %vm782 = vmor %vm780, %vm781
      %v783 = vsel %vm782, %v775, %v779
      %v784 = vand.u32 2147483647, %v759
      %vm785 = vcmp.eq.f32.partialorder %v784, 8.507059e+37
      %v786 = vand.u32 %v759, 2147483648
      %v787 = vor.u32 1.1754944e-38, %v786
      %v788 = vsel %vm785, %v787, %v783
      %v789 = vmul.f32 1.0, %v788
      %vm790 = vcmask 7168
      %791 = vst.msk [vmem:[%s445] sm:$0xff] %vm790, %v774
      %vm792 = vcmask 3072
      %793 = vst.msk [vmem:[%s445 + $0x8] sm:$0xf] %vm792, %v789
      %p794 = scmp.lt.s32.totalorder %s25, 1
      %s795 = scalar_select %p794, %s25, 1
      %s796 = smul.addr %s795, 2
      %s797 = smul.addr %s796, 8
      %s798 = scalar_lea.vmem %s8, %s797
      %p799 = scmp.lt.s32.totalorder %s25, 1
      %s800 = scalar_select %p799, %s25, 1
      %s801 = smul.addr %s800, 2
      %s802 = smul.addr %s801, 8
      %s803 = scalar_lea.vmem %s9, %s802
      %p804 = scmp.lt.s32.totalorder %s25, 1
      %s805 = scalar_select %p804, %s25, 1
      %s806 = smul.addr %s805, 2
      %s807 = smul.addr %s806, 8
      %s808 = scalar_lea.vmem %s10, %s807
      %p809 = scmp.lt.s32.totalorder %s25, 1
      %s810 = scalar_select %p809, %s25, 1
      %s811 = smul.addr %s810, 2
      %s812 = smul.addr %s811, 8
      %s813 = scalar_lea.vmem %s11, %s812
      // Predicated region
      $region53: #{_lambda_.12} parent=51 // pred_check
        %p814 = pneg %p221
      $region54: #{_lambda_.12} parent=51 // pred_check_branch
        %816 = sbr.rel (%p814) target = $region56
      $region55: #{_lambda_.12} parent=51 // pred_region
        _
      $region56: #{_lambda_.12} parent=51 // pred_fallthru
        _
      // Predicated region
      $region57: #{_lambda_.12} parent=51 // pred_check
        %p817 = pneg %p247
      $region58: #{_lambda_.12} parent=51 // pred_check_branch
        %819 = sbr.rel (%p817) target = $region60
      $region59: #{_lambda_.12} parent=51 // pred_region
        _
      $region60: #{_lambda_.12} parent=51 // pred_fallthru
        _
      // Predicated region
      $region61: #{_lambda_.12} parent=51 // pred_check
        %p820 = pneg %p273
      $region62: #{_lambda_.12} parent=51 // pred_check_branch
        %822 = sbr.rel (%p820) target = $region64
      $region63: #{_lambda_.12} parent=51 // pred_region
        _
      $region64: #{_lambda_.12} parent=51 // pred_fallthru
        _
      // Predicated region
      $region65: #{_lambda_.12} parent=51 // pred_check
        %p823 = pneg %p299
      $region66: #{_lambda_.12} parent=51 // pred_check_branch
        %825 = sbr.rel (%p823) target = $region68
      $region67: #{_lambda_.12} parent=51 // pred_region
        _
      $region68: #{_lambda_.12} parent=51 // pred_fallthru
        _
    $region52: #{_lambda_.12} parent=5 // pred_fallthru
      _
    %p826 = scmp.le.s32.totalorder 2, %s20
    // Predicated region
    $region69: #{_lambda_.12} parent=5 // pred_check
      %p827 = pneg %p826
    $region70: #{_lambda_.12} parent=5 // pred_check_branch
      %829 = sbr.rel (%p827) target = $region72
    $region71: #{_lambda_.12} parent=5 // pred_region
      %s830 = ssub.s32 %s20, 2
      // Predicated region
      $region73: #{_lambda_.12} parent=71 // pred_check
        %p831 = pneg %p227
      $region74: #{_lambda_.12} parent=71 // pred_check_branch
        %833 = sbr.rel (%p831) target = $region76
      $region75: #{_lambda_.12} parent=71 // pred_region
        %p834 = scmp.lt.s32.totalorder %s26, 1
        %s835 = scalar_select %p834, %s26, 1
        %s836 = smul.addr %s835, 2
        %s837 = smul.addr %s836, 8
        %s838 = scalar_lea.vmem %s8, %s837
      $region76: #{_lambda_.12} parent=71 // pred_fallthru
        _
      // Predicated region
      $region77: #{_lambda_.12} parent=71 // pred_check
        %p839 = pneg %p253
      $region78: #{_lambda_.12} parent=71 // pred_check_branch
        %841 = sbr.rel (%p839) target = $region80
      $region79: #{_lambda_.12} parent=71 // pred_region
        %p842 = scmp.lt.s32.totalorder %s26, 1
        %s843 = scalar_select %p842, %s26, 1
        %s844 = smul.addr %s843, 2
        %s845 = smul.addr %s844, 8
        %s846 = scalar_lea.vmem %s9, %s845
      $region80: #{_lambda_.12} parent=71 // pred_fallthru
        _
      // Predicated region
      $region81: #{_lambda_.12} parent=71 // pred_check
        %p847 = pneg %p279
      $region82: #{_lambda_.12} parent=71 // pred_check_branch
        %849 = sbr.rel (%p847) target = $region84
      $region83: #{_lambda_.12} parent=71 // pred_region
        %p850 = scmp.lt.s32.totalorder %s26, 1
        %s851 = scalar_select %p850, %s26, 1
        %s852 = smul.addr %s851, 2
        %s853 = smul.addr %s852, 8
        %s854 = scalar_lea.vmem %s10, %s853
      $region84: #{_lambda_.12} parent=71 // pred_fallthru
        _
      // Predicated region
      $region85: #{_lambda_.12} parent=71 // pred_check
        %p855 = pneg %p305
      $region86: #{_lambda_.12} parent=71 // pred_check_branch
        %857 = sbr.rel (%p855) target = $region88
      $region87: #{_lambda_.12} parent=71 // pred_region
        %p858 = scmp.lt.s32.totalorder %s26, 1
        %s859 = scalar_select %p858, %s26, 1
        %s860 = smul.addr %s859, 2
        %s861 = smul.addr %s860, 8
        %s862 = scalar_lea.vmem %s11, %s861
      $region88: #{_lambda_.12} parent=71 // pred_fallthru
        _
    $region72: #{_lambda_.12} parent=5 // pred_fallthru
      _
  $region6: #{_lambda_.12} parent=0 // loop_footer
    %s24 = sadd.s32 1, %s20
  $region7: #{_lambda_.12} parent=0 // loop_footer_branch
    %19 = sbr.rel target = $region3
  $region8: #{_lambda_.12} parent=0 // loop_exit
    _

// kernel: _lambda_.13
$region0: #{_lambda_.13}
  #allocation0 [shape = 'u32[]', space=smem, size = 0x4, offset = 0x4, fixed_abs, tag = 'smem constant byte address 0x4 - core index']
  #allocation1 [shape = 'u32[72,128]{1,0:T(1,128)}', space=vmem, size = 0x9000, scoped, tag = 'internal scratch']
  %s0 = inlined_call_operand.vmem [shape: f32[2,7,7], index: 0, kind: input, shape index: {}]
  %s1 = inlined_call_operand.vmem [shape: f32[2,7,128], index: 1, kind: input, shape index: {}]
  %s2 = inlined_call_operand.vmem [shape: f32[128,128], index: 2, kind: input, shape index: {}]
  %s3 = inlined_call_operand.vmem [shape: f32[1,128], index: 3, kind: input, shape index: {}]
  %s4 = inlined_call_operand.vmem [shape: f32[1,128], index: 4, kind: input, shape index: {}]
  %s5 = inlined_call_operand.vmem [shape: f32[1,128], index: 5, kind: input, shape index: {}]
  %s6 = inlined_call_operand.vmem [shape: f32[2,7,128], index: 6, kind: output, shape index: {}]
  %s7 = sld [smem:[#allocation0]]
  $region57: #{_lambda_.13} parent=0
    _
  %s9 = ssub.s32 1, %s7
  %s10 = scalar_select 0, %s9, %s7
  loop: start=0, step=1, limit=4
  $region2: #{_lambda_.13} parent=0 // loop_pre_header
    _
  $region3: #{_lambda_.13} parent=0 // loop_header
    %s12 = sphi 0, %s16
    %p13 = scmp.ge.s32.totalorder %s12, 4
    %s22 = sphi 0, %s24
    %s25 = sphi 0, %s22
    %s26 = sphi 0, %s25
    %s42 = sphi 0, %s26
    %s48 = sphi 0, %s50
    %s51 = sphi 0, %s48
    %s52 = sphi 0, %s51
    %s68 = sphi 0, %s52
    %s72 = sphi 0, %s72
    %s74 = sphi 0, %s72
    %s75 = sphi 0, %s74
    %s89 = sphi 0, %s75
    %s93 = sphi 0, %s93
    %s95 = sphi 0, %s93
    %s96 = sphi 0, %s95
    %s110 = sphi 0, %s96
    %s114 = sphi 0, %s114
    %s116 = sphi 0, %s114
    %s117 = sphi 0, %s116
    %s131 = sphi 0, %s117
    %s135 = sphi 0, %s135
    %s137 = sphi 0, %s135
    %s138 = sphi 0, %s137
    %s152 = sphi 0, %s138
    %s158 = sphi 0, %s160
    %s161 = sphi 0, %s158
    %s162 = sphi 0, %s161
    %s178 = sphi 0, %s162
  $region4: #{_lambda_.13} parent=0 // loop_header_branch
    %15 = sbr.rel (%p13) target = $region8
  $region5: #{_lambda_.13} parent=0 // loop_body
    %s17 = ssub.s32 %s12, 1
    %s18 = ssub.s32 %s12, 2
    %s19 = sadd.s32 %s12, 1
    %s20 = ssub.s32 %s12, %s19
    %p21 = scmp.eq.s32.totalorder %s20, 0
    %s23 = sadd.s32 %s22, 1
    %s24 = scalar_select %p21, %s22, %s23
    %p27 = pneg %p21
    %p28 = scmp.eq.s32.totalorder %s12, 1
    %p29 = por %p27, %p28
    %p30 = scmp.ne.s32.totalorder %s22, %s25
    %p31 = scmp.eq.s32.totalorder %s12, 0
    %p32 = por %p30, %p31
    %p33 = scmp.ne.s32.totalorder %s22, %s25
    %p34 = scmp.eq.s32.totalorder %s17, 1
    %p35 = por %p33, %p34
    %p36 = scmp.ne.s32.totalorder %s25, %s26
    %p37 = scmp.eq.s32.totalorder %s17, 0
    %p38 = por %p36, %p37
    %p39 = scmp.ne.s32.totalorder %s25, %s26
    %p40 = scmp.eq.s32.totalorder %s18, 1
    %p41 = por %p39, %p40
    %p43 = scmp.ne.s32.totalorder %s26, %s42
    %p44 = scmp.eq.s32.totalorder %s18, 0
    %p45 = por %p43, %p44
    %s46 = ssub.s32 %s12, %s19
    %p47 = scmp.eq.s32.totalorder %s46, 0
    %s49 = sadd.s32 %s48, 1
    %s50 = scalar_select %p47, %s48, %s49
    %p53 = pneg %p47
    %p54 = scmp.eq.s32.totalorder %s12, 1
    %p55 = por %p53, %p54
    %p56 = scmp.ne.s32.totalorder %s48, %s51
    %p57 = scmp.eq.s32.totalorder %s12, 0
    %p58 = por %p56, %p57
    %p59 = scmp.ne.s32.totalorder %s48, %s51
    %p60 = scmp.eq.s32.totalorder %s17, 1
    %p61 = por %p59, %p60
    %p62 = scmp.ne.s32.totalorder %s51, %s52
    %p63 = scmp.eq.s32.totalorder %s17, 0
    %p64 = por %p62, %p63
    %p65 = scmp.ne.s32.totalorder %s51, %s52
    %p66 = scmp.eq.s32.totalorder %s18, 1
    %p67 = por %p65, %p66
    %p69 = scmp.ne.s32.totalorder %s52, %s68
    %p70 = scmp.eq.s32.totalorder %s18, 0
    %p71 = por %p69, %p70
    %s73 = sadd.s32 %s72, 1
    %p76 = scmp.eq.s32.totalorder %s12, 1
    %p77 = scmp.ne.s32.totalorder %s72, %s74
    %p78 = scmp.eq.s32.totalorder %s12, 0
    %p79 = por %p77, %p78
    %p80 = scmp.ne.s32.totalorder %s72, %s74
    %p81 = scmp.eq.s32.totalorder %s17, 1
    %p82 = por %p80, %p81
    %p83 = scmp.ne.s32.totalorder %s74, %s75
    %p84 = scmp.eq.s32.totalorder %s17, 0
    %p85 = por %p83, %p84
    %p86 = scmp.ne.s32.totalorder %s74, %s75
    %p87 = scmp.eq.s32.totalorder %s18, 1
    %p88 = por %p86, %p87
    %p90 = scmp.ne.s32.totalorder %s75, %s89
    %p91 = scmp.eq.s32.totalorder %s18, 0
    %p92 = por %p90, %p91
    %s94 = sadd.s32 %s93, 1
    %p97 = scmp.eq.s32.totalorder %s12, 1
    %p98 = scmp.ne.s32.totalorder %s93, %s95
    %p99 = scmp.eq.s32.totalorder %s12, 0
    %p100 = por %p98, %p99
    %p101 = scmp.ne.s32.totalorder %s93, %s95
    %p102 = scmp.eq.s32.totalorder %s17, 1
    %p103 = por %p101, %p102
    %p104 = scmp.ne.s32.totalorder %s95, %s96
    %p105 = scmp.eq.s32.totalorder %s17, 0
    %p106 = por %p104, %p105
    %p107 = scmp.ne.s32.totalorder %s95, %s96
    %p108 = scmp.eq.s32.totalorder %s18, 1
    %p109 = por %p107, %p108
    %p111 = scmp.ne.s32.totalorder %s96, %s110
    %p112 = scmp.eq.s32.totalorder %s18, 0
    %p113 = por %p111, %p112
    %s115 = sadd.s32 %s114, 1
    %p118 = scmp.eq.s32.totalorder %s12, 1
    %p119 = scmp.ne.s32.totalorder %s114, %s116
    %p120 = scmp.eq.s32.totalorder %s12, 0
    %p121 = por %p119, %p120
    %p122 = scmp.ne.s32.totalorder %s114, %s116
    %p123 = scmp.eq.s32.totalorder %s17, 1
    %p124 = por %p122, %p123
    %p125 = scmp.ne.s32.totalorder %s116, %s117
    %p126 = scmp.eq.s32.totalorder %s17, 0
    %p127 = por %p125, %p126
    %p128 = scmp.ne.s32.totalorder %s116, %s117
    %p129 = scmp.eq.s32.totalorder %s18, 1
    %p130 = por %p128, %p129
    %p132 = scmp.ne.s32.totalorder %s117, %s131
    %p133 = scmp.eq.s32.totalorder %s18, 0
    %p134 = por %p132, %p133
    %s136 = sadd.s32 %s135, 1
    %p139 = scmp.eq.s32.totalorder %s12, 1
    %p140 = scmp.ne.s32.totalorder %s135, %s137
    %p141 = scmp.eq.s32.totalorder %s12, 0
    %p142 = por %p140, %p141
    %p143 = scmp.ne.s32.totalorder %s135, %s137
    %p144 = scmp.eq.s32.totalorder %s17, 1
    %p145 = por %p143, %p144
    %p146 = scmp.ne.s32.totalorder %s137, %s138
    %p147 = scmp.eq.s32.totalorder %s17, 0
    %p148 = por %p146, %p147
    %p149 = scmp.ne.s32.totalorder %s137, %s138
    %p150 = scmp.eq.s32.totalorder %s18, 1
    %p151 = por %p149, %p150
    %p153 = scmp.ne.s32.totalorder %s138, %s152
    %p154 = scmp.eq.s32.totalorder %s18, 0
    %p155 = por %p153, %p154
    %s156 = ssub.s32 %s12, %s19
    %p157 = scmp.eq.s32.totalorder %s156, 0
    %s159 = sadd.s32 %s158, 1
    %s160 = scalar_select %p157, %s158, %s159
    %p163 = pneg %p157
    %p164 = scmp.eq.s32.totalorder %s12, 1
    %p165 = por %p163, %p164
    %p166 = scmp.ne.s32.totalorder %s158, %s161
    %p167 = scmp.eq.s32.totalorder %s12, 0
    %p168 = por %p166, %p167
    %p169 = scmp.ne.s32.totalorder %s158, %s161
    %p170 = scmp.eq.s32.totalorder %s17, 1
    %p171 = por %p169, %p170
    %p172 = scmp.ne.s32.totalorder %s161, %s162
    %p173 = scmp.eq.s32.totalorder %s17, 0
    %p174 = por %p172, %p173
    %p175 = scmp.ne.s32.totalorder %s161, %s162
    %p176 = scmp.eq.s32.totalorder %s18, 1
    %p177 = por %p175, %p176
    %p179 = scmp.ne.s32.totalorder %s162, %s178
    %p180 = scmp.eq.s32.totalorder %s18, 0
    %p181 = por %p179, %p180
    %p182 = scmp.le.s32.totalorder 1, %s12
    %p183 = scmp.lt.s32.totalorder %s12, 3
    %p184 = pnand %p182, %p183
    %p185 = pneg %p184
    // Predicated region
    $region9: #{_lambda_.13} parent=5 // pred_check
      _
    $region10: #{_lambda_.13} parent=5 // pred_check_branch
      %187 = sbr.rel (%p184) target = $region12
    $region11: #{_lambda_.13} parent=5 // pred_region
      %s188 = ssub.s32 %s12, 1
      // Predicated region
      $region13: #{_lambda_.13} parent=11 // pred_check
        %p189 = pneg %p85
      $region14: #{_lambda_.13} parent=11 // pred_check_branch
        %191 = sbr.rel (%p189) target = $region16
      $region15: #{_lambda_.13} parent=11 // pred_region
        _
      $region16: #{_lambda_.13} parent=11 // pred_fallthru
        _
      // Predicated region
      $region17: #{_lambda_.13} parent=11 // pred_check
        %p192 = pneg %p106
      $region18: #{_lambda_.13} parent=11 // pred_check_branch
        %194 = sbr.rel (%p192) target = $region20
      $region19: #{_lambda_.13} parent=11 // pred_region
        _
      $region20: #{_lambda_.13} parent=11 // pred_fallthru
        _
      // Predicated region
      $region21: #{_lambda_.13} parent=11 // pred_check
        %p195 = pneg %p127
      $region22: #{_lambda_.13} parent=11 // pred_check_branch
        %197 = sbr.rel (%p195) target = $region24
      $region23: #{_lambda_.13} parent=11 // pred_region
        _
      $region24: #{_lambda_.13} parent=11 // pred_fallthru
        _
      // Predicated region
      $region25: #{_lambda_.13} parent=11 // pred_check
        %p198 = pneg %p148
      $region26: #{_lambda_.13} parent=11 // pred_check_branch
        %200 = sbr.rel (%p198) target = $region28
      $region27: #{_lambda_.13} parent=11 // pred_region
        _
      $region28: #{_lambda_.13} parent=11 // pred_fallthru
        _
    $region12: #{_lambda_.13} parent=5 // pred_fallthru
      _
    %p201 = scmp.lt.s32.totalorder %s12, 2
    // Predicated region
    $region29: #{_lambda_.13} parent=5 // pred_check
      %p202 = pneg %p201
    $region30: #{_lambda_.13} parent=5 // pred_check_branch
      %204 = sbr.rel (%p202) target = $region32
    $region31: #{_lambda_.13} parent=5 // pred_region
      // Predicated region
      $region33: #{_lambda_.13} parent=31 // pred_check
        %p205 = pneg %p32
      $region34: #{_lambda_.13} parent=31 // pred_check_branch
        %207 = sbr.rel (%p205) target = $region36
      $region35: #{_lambda_.13} parent=31 // pred_region
        %p208 = scmp.lt.s32.totalorder %s12, 1
        %s209 = scalar_select %p208, %s12, 1
        %s210 = smul.addr %s209, 8
        %s211 = scalar_lea.vmem %s0, %s210
      $region36: #{_lambda_.13} parent=31 // pred_fallthru
        _
      // Predicated region
      $region37: #{_lambda_.13} parent=31 // pred_check
        %p212 = pneg %p58
      $region38: #{_lambda_.13} parent=31 // pred_check_branch
        %214 = sbr.rel (%p212) target = $region40
      $region39: #{_lambda_.13} parent=31 // pred_region
        %p215 = scmp.lt.s32.totalorder %s12, 1
        %s216 = scalar_select %p215, %s12, 1
        %s217 = smul.addr %s216, 8
        %s218 = scalar_lea.vmem %s1, %s217
      $region40: #{_lambda_.13} parent=31 // pred_fallthru
        _
    $region32: #{_lambda_.13} parent=5 // pred_fallthru
      _
    %p219 = scmp.le.s32.totalorder 1, %s12
    %p220 = scmp.lt.s32.totalorder %s12, 3
    %p221 = pnand %p219, %p220
    %p222 = pneg %p221
    // Predicated region
    $region41: #{_lambda_.13} parent=5 // pred_check
      _
    $region42: #{_lambda_.13} parent=5 // pred_check_branch
      %224 = sbr.rel (%p221) target = $region44
    $region43: #{_lambda_.13} parent=5 // pred_region
      %s225 = ssub.s32 %s12, 1
      %p226 = scmp.lt.s32.totalorder %s17, 1
      %s227 = scalar_select %p226, %s17, 1
      %s228 = smul.addr %s227, 8
      %s229 = scalar_lea.vmem %s0, %s228
      %p230 = pneg %p38
      %p231 = pneg %p35
      %p232 = scmp.lt.s32.totalorder %s17, 1
      %s233 = scalar_select %p232, %s17, 1
      %s234 = smul.addr %s233, 8
      %s235 = scalar_lea.vmem %s1, %s234
      %p236 = pneg %p64
      %p237 = pneg %p61
      %p238 = pneg %p85
      %p239 = pneg %p82
      %p240 = pneg %p106
      %p241 = pneg %p103
      %p242 = pneg %p127
      %p243 = pneg %p124
      %p244 = pneg %p148
      %p245 = pneg %p145
      %p246 = pneg %p174
      %p247 = pneg %p171
      %p248 = scmp.lt.s32.totalorder %s17, 1
      %s249 = scalar_select %p248, %s17, 1
      %s250 = smul.addr %s249, 8
      %s251 = scalar_lea.vmem %s6, %s250
      %p252 = scmp.lt.s32.totalorder %s17, 1
      %s253 = scalar_select %p252, %s17, 1
      %s254 = smul.addr %s253, 8
      %s255 = scalar_lea.vmem %s0, %s254
      %p256 = scmp.lt.s32.totalorder %s17, 1
      %s257 = scalar_select %p256, %s17, 1
      %s258 = smul.addr %s257, 8
      %s259 = scalar_lea.vmem %s1, %s258
      %p260 = scmp.lt.s32.totalorder %s17, 1
      %s261 = scalar_select %p260, %s17, 1
      %s262 = smul.addr %s261, 8
      %s263 = scalar_lea.vmem %s6, %s262
      %v264 = vld [vmem:[%s255] sm:$0x7f]
      %v265 = vld [vmem:[%s259] sm:$0x7f]
      %v266 = vld [vmem:[%s2] sm:$0xff]
      %v267 = vld [vmem:[%s2 + $0x8] sm:$0xff]
      %v268 = vld [vmem:[%s2 + $0x10] sm:$0xff]
      %v269 = vld [vmem:[%s2 + $0x18] sm:$0xff]
      %v270 = vld [vmem:[%s2 + $0x20] sm:$0xff]
      %v271 = vld [vmem:[%s2 + $0x28] sm:$0xff]
      %v272 = vld [vmem:[%s2 + $0x30] sm:$0xff]
      %v273 = vld [vmem:[%s2 + $0x38] sm:$0xff]
      %v274 = vld [vmem:[%s2 + $0x40] sm:$0xff]
      %v275 = vld [vmem:[%s2 + $0x48] sm:$0xff]
      %v276 = vld [vmem:[%s2 + $0x50] sm:$0xff]
      %v277 = vld [vmem:[%s2 + $0x58] sm:$0xff]
      %v278 = vld [vmem:[%s2 + $0x60] sm:$0xff]
      %v279 = vld [vmem:[%s2 + $0x68] sm:$0xff]
      %v280 = vld [vmem:[%s2 + $0x70] sm:$0xff]
      %v281 = vld [vmem:[%s2 + $0x78] sm:$0xff]
      %v282 = vld [vmem:[%s3] sm:$0x1]
      %vm283 = vcmask 55296
      %v284 = vsel %vm283, %v264, 0.0
      %285 = vadd.xlane.f32.xlu0 %v284
      %v286 = vpop.xlane.xlu0 %285
      %v287 = vmax.f32 %v286, 1e-12
      %v288 = vrcp.pop %v287
      %v289 = vmul.f32 %v265, %v288
      %vm290 = vcmask 56320
      %v292 = vsel %vm290, %v264, 0
      %vm294 = vcmask 1046528
      %v296 = vsel %vm294, %v289, 0
      %298 = vmatpush.msra.mxu0 0.0
      %299 = vmatpush.msra.mxu0 0.0
      %300 = vmatpush.msra.mxu0 0.0
      %301 = vmatpush.msra.mxu0 0.0
      %302 = vmatpush.msra.mxu0 0.0
      %303 = vmatpush.msra.mxu0 0.0
      %304 = vmatpush.msra.mxu0 0.0
      %305 = vmatpush.msra.mxu0 0.0
      %306 = vmatpush.msra.mxu0 0.0
      %307 = vmatpush.msra.mxu0 0.0
      %308 = vmatpush.msra.mxu0 0.0
      %309 = vmatpush.msra.mxu0 0.0
      %310 = vmatpush.msra.mxu0 0.0
      %311 = vmatpush.msra.mxu0 0.0
      %312 = vmatpush.msra.mxu0 0.0
      %313 = vmatpush.msra.mxu0 %v296
      %314 = vmatmul.f32.gmra.mxu0 %v292
      %v315 = vpop.f32.mrf.mxu0
      %v316 = vadd.f32 0.0, %v315
      %317 = vdwg.mxu0
      %v319 = vperm.slane %v282, 0
      %321 = vmatpush.msra.mxu0 %v281
      %322 = vmatpush.msra.mxu0 %v280
      %323 = vmatpush.msra.mxu0 %v279
      %324 = vmatpush.msra.mxu0 %v278
      %325 = vmatpush.msra.mxu0 %v277
      %326 = vmatpush.msra.mxu0 %v276
      %327 = vmatpush.msra.mxu0 %v275
      %328 = vmatpush.msra.mxu0 %v274
      %329 = vmatpush.msra.mxu0 %v273
      %330 = vmatpush.msra.mxu0 %v272
      %331 = vmatpush.msra.mxu0 %v271
      %332 = vmatpush.msra.mxu0 %v270
      %333 = vmatpush.msra.mxu0 %v269
      %334 = vmatpush.msra.mxu0 %v268
      %335 = vmatpush.msra.mxu0 %v267
      %336 = vmatpush.msra.mxu0 %v266
      %337 = vmatmul.f32.gmra.mxu0 %v316
      %v338 = vpop.f32.mrf.mxu0
      %v339 = vadd.f32 %v319, %v338
      %340 = vdwg.mxu0
      %vm341 = vcmp.gt.f32.partialorder %v339, 0.0
      %v342 = vmin.f32 %v339, 0.0
      %v343 = vmul.f32 %v342, 1.442695
      %v344 = vpow.pop %v343
      %v345 = vsub.f32 %v344, 1.0
      %v346 = vsel %vm341, %v339, %v345
      %v347 = vld [vmem:[%s4] sm:$0x1]
      %v348 = vld [vmem:[%s5] sm:$0x1]
      %v349 = vsel %vm294, %v346, 0.0
      %350 = vadd.xlane.f32.xlu0 %v349
      %v351 = vpop.xlane.xlu0 %350
      %v352 = vrcp.pop 32.0
      %v353 = vmul.f32 32.0, %v352
      %v354 = vsub.f32 1.0, %v353
      %v355 = vmul.f32 %v352, %v354
      %v356 = vadd.f32 %v352, %v355
      %vm357 = vweird.f32 %v352
      %v358 = vsel %vm357, %v352, %v356
      %v359 = vmul.f32 %v351, %v358
      %v360 = vmul.f32 %v346, %v346
      %v361 = vsel %vm294, %v360, 0.0
      %362 = vadd.xlane.f32.xlu0 %v361
      %v363 = vpop.xlane.xlu0 %362
      %v364 = vmul.f32 %v363, %v358
      %v365 = vmul.f32 %v359, %v359
      %v366 = vsub.f32 %v364, %v365
      %v367 = vsub.f32 %v346, %v359
      %v368 = vadd.f32 %v366, 1e-05
      %v369 = vrsqrt.pop %v368
      %v370 = vmul.f32 %v369, %v368
      %v371 = vmul.f32 %v370, %v369
      %v372 = vmul.f32 0.5, %v371
      %v373 = vsub.f32 1.5, %v372
      %v374 = vmul.f32 %v369, %v373
      %vm375 = vweird.f32 %v368
      %vm376 = vweird.f32 %v369
      %vm377 = vmor %vm375, %vm376
      %v378 = vsel %vm377, %v369, %v374
      %v379 = vmul.f32 %v367, %v378
      %v381 = vperm.slane %v347, 0
      %v383 = vmul.f32 %v379, %v381
      %v385 = vperm.slane %v348, 0
      %v387 = vadd.f32 %v383, %v385
      %388 = vst [vmem:[%s263] sm:$0x7f] %v387
      %p389 = scmp.lt.s32.totalorder %s17, 1
      %s390 = scalar_select %p389, %s17, 1
      %s391 = smul.addr %s390, 8
      %s392 = scalar_lea.vmem %s6, %s391
      // Predicated region
      $region45: #{_lambda_.13} parent=43 // pred_check
        %p393 = pneg %p171
      $region46: #{_lambda_.13} parent=43 // pred_check_branch
        %395 = sbr.rel (%p393) target = $region48
      $region47: #{_lambda_.13} parent=43 // pred_region
        _
      $region48: #{_lambda_.13} parent=43 // pred_fallthru
        _
    $region44: #{_lambda_.13} parent=5 // pred_fallthru
      _
    %p396 = scmp.le.s32.totalorder 2, %s12
    // Predicated region
    $region49: #{_lambda_.13} parent=5 // pred_check
      %p397 = pneg %p396
    $region50: #{_lambda_.13} parent=5 // pred_check_branch
      %399 = sbr.rel (%p397) target = $region52
    $region51: #{_lambda_.13} parent=5 // pred_region
      %s400 = ssub.s32 %s12, 2
      // Predicated region
      $region53: #{_lambda_.13} parent=51 // pred_check
        %p401 = pneg %p177
      $region54: #{_lambda_.13} parent=51 // pred_check_branch
        %403 = sbr.rel (%p401) target = $region56
      $region55: #{_lambda_.13} parent=51 // pred_region
        %p404 = scmp.lt.s32.totalorder %s18, 1
        %s405 = scalar_select %p404, %s18, 1
        %s406 = smul.addr %s405, 8
        %s407 = scalar_lea.vmem %s6, %s406
      $region56: #{_lambda_.13} parent=51 // pred_fallthru
        _
    $region52: #{_lambda_.13} parent=5 // pred_fallthru
      _
  $region6: #{_lambda_.13} parent=0 // loop_footer
    %s16 = sadd.s32 1, %s12
  $region7: #{_lambda_.13} parent=0 // loop_footer_branch
    %11 = sbr.rel target = $region3
  $region8: #{_lambda_.13} parent=0 // loop_exit
    _

// kernel: _lambda_.16
$region0: #{_lambda_.16}
  #allocation0 [shape = 'u32[]', space=smem, size = 0x4, offset = 0x4, fixed_abs, tag = 'smem constant byte address 0x4 - core index']
  #allocation1 [shape = 'u32[72,128]{1,0:T(1,128)}', space=vmem, size = 0x9000, scoped, tag = 'internal scratch']
  %s0 = inlined_call_operand.vmem [shape: f32[2,12,12], index: 0, kind: input, shape index: {}]
  %s1 = inlined_call_operand.vmem [shape: f32[2,12,128], index: 1, kind: input, shape index: {}]
  %s2 = inlined_call_operand.vmem [shape: f32[2,12,128], index: 2, kind: input, shape index: {}]
  %s3 = inlined_call_operand.vmem [shape: f32[128,128], index: 3, kind: input, shape index: {}]
  %s4 = inlined_call_operand.vmem [shape: f32[1,128], index: 4, kind: input, shape index: {}]
  %s5 = inlined_call_operand.vmem [shape: f32[1,128], index: 5, kind: input, shape index: {}]
  %s6 = inlined_call_operand.vmem [shape: f32[1,128], index: 6, kind: input, shape index: {}]
  %s7 = inlined_call_operand.vmem [shape: f32[1,128], index: 7, kind: input, shape index: {}]
  %s8 = inlined_call_operand.vmem [shape: f32[1,128], index: 8, kind: input, shape index: {}]
  %s9 = inlined_call_operand.vmem [shape: f32[2,12,128], index: 9, kind: output, shape index: {}]
  %s10 = sld [smem:[#allocation0]]
  $region69: #{_lambda_.16} parent=0
    _
  %s12 = ssub.s32 1, %s10
  %s13 = scalar_select 0, %s12, %s10
  loop: start=0, step=1, limit=4
  $region2: #{_lambda_.16} parent=0 // loop_pre_header
    _
  $region3: #{_lambda_.16} parent=0 // loop_header
    %s15 = sphi 0, %s19
    %p16 = scmp.ge.s32.totalorder %s15, 4
    %s25 = sphi 0, %s27
    %s28 = sphi 0, %s25
    %s29 = sphi 0, %s28
    %s45 = sphi 0, %s29
    %s51 = sphi 0, %s53
    %s54 = sphi 0, %s51
    %s55 = sphi 0, %s54
    %s71 = sphi 0, %s55
    %s77 = sphi 0, %s79
    %s80 = sphi 0, %s77
    %s81 = sphi 0, %s80
    %s97 = sphi 0, %s81
    %s101 = sphi 0, %s101
    %s103 = sphi 0, %s101
    %s104 = sphi 0, %s103
    %s118 = sphi 0, %s104
    %s122 = sphi 0, %s122
    %s124 = sphi 0, %s122
    %s125 = sphi 0, %s124
    %s139 = sphi 0, %s125
    %s143 = sphi 0, %s143
    %s145 = sphi 0, %s143
    %s146 = sphi 0, %s145
    %s160 = sphi 0, %s146
    %s164 = sphi 0, %s164
    %s166 = sphi 0, %s164
    %s167 = sphi 0, %s166
    %s181 = sphi 0, %s167
    %s185 = sphi 0, %s185
    %s187 = sphi 0, %s185
    %s188 = sphi 0, %s187
    %s202 = sphi 0, %s188
    %s206 = sphi 0, %s206
    %s208 = sphi 0, %s206
    %s209 = sphi 0, %s208
    %s223 = sphi 0, %s209
    %s229 = sphi 0, %s231
    %s232 = sphi 0, %s229
    %s233 = sphi 0, %s232
    %s249 = sphi 0, %s233
  $region4: #{_lambda_.16} parent=0 // loop_header_branch
    %18 = sbr.rel (%p16) target = $region8
  $region5: #{_lambda_.16} parent=0 // loop_body
    %s20 = ssub.s32 %s15, 1
    %s21 = ssub.s32 %s15, 2
    %s22 = sadd.s32 %s15, 1
    %s23 = ssub.s32 %s15, %s22
    %p24 = scmp.eq.s32.totalorder %s23, 0
    %s26 = sadd.s32 %s25, 1
    %s27 = scalar_select %p24, %s25, %s26
    %p30 = pneg %p24
    %p31 = scmp.eq.s32.totalorder %s15, 1
    %p32 = por %p30, %p31
    %p33 = scmp.ne.s32.totalorder %s25, %s28
    %p34 = scmp.eq.s32.totalorder %s15, 0
    %p35 = por %p33, %p34
    %p36 = scmp.ne.s32.totalorder %s25, %s28
    %p37 = scmp.eq.s32.totalorder %s20, 1
    %p38 = por %p36, %p37
    %p39 = scmp.ne.s32.totalorder %s28, %s29
    %p40 = scmp.eq.s32.totalorder %s20, 0
    %p41 = por %p39, %p40
    %p42 = scmp.ne.s32.totalorder %s28, %s29
    %p43 = scmp.eq.s32.totalorder %s21, 1
    %p44 = por %p42, %p43
    %p46 = scmp.ne.s32.totalorder %s29, %s45
    %p47 = scmp.eq.s32.totalorder %s21, 0
    %p48 = por %p46, %p47
    %s49 = ssub.s32 %s15, %s22
    %p50 = scmp.eq.s32.totalorder %s49, 0
    %s52 = sadd.s32 %s51, 1
    %s53 = scalar_select %p50, %s51, %s52
    %p56 = pneg %p50
    %p57 = scmp.eq.s32.totalorder %s15, 1
    %p58 = por %p56, %p57
    %p59 = scmp.ne.s32.totalorder %s51, %s54
    %p60 = scmp.eq.s32.totalorder %s15, 0
    %p61 = por %p59, %p60
    %p62 = scmp.ne.s32.totalorder %s51, %s54
    %p63 = scmp.eq.s32.totalorder %s20, 1
    %p64 = por %p62, %p63
    %p65 = scmp.ne.s32.totalorder %s54, %s55
    %p66 = scmp.eq.s32.totalorder %s20, 0
    %p67 = por %p65, %p66
    %p68 = scmp.ne.s32.totalorder %s54, %s55
    %p69 = scmp.eq.s32.totalorder %s21, 1
    %p70 = por %p68, %p69
    %p72 = scmp.ne.s32.totalorder %s55, %s71
    %p73 = scmp.eq.s32.totalorder %s21, 0
    %p74 = por %p72, %p73
    %s75 = ssub.s32 %s15, %s22
    %p76 = scmp.eq.s32.totalorder %s75, 0
    %s78 = sadd.s32 %s77, 1
    %s79 = scalar_select %p76, %s77, %s78
    %p82 = pneg %p76
    %p83 = scmp.eq.s32.totalorder %s15, 1
    %p84 = por %p82, %p83
    %p85 = scmp.ne.s32.totalorder %s77, %s80
    %p86 = scmp.eq.s32.totalorder %s15, 0
    %p87 = por %p85, %p86
    %p88 = scmp.ne.s32.totalorder %s77, %s80
    %p89 = scmp.eq.s32.totalorder %s20, 1
    %p90 = por %p88, %p89
    %p91 = scmp.ne.s32.totalorder %s80, %s81
    %p92 = scmp.eq.s32.totalorder %s20, 0
    %p93 = por %p91, %p92
    %p94 = scmp.ne.s32.totalorder %s80, %s81
    %p95 = scmp.eq.s32.totalorder %s21, 1
    %p96 = por %p94, %p95
    %p98 = scmp.ne.s32.totalorder %s81, %s97
    %p99 = scmp.eq.s32.totalorder %s21, 0
    %p100 = por %p98, %p99
    %s102 = sadd.s32 %s101, 1
    %p105 = scmp.eq.s32.totalorder %s15, 1
    %p106 = scmp.ne.s32.totalorder %s101, %s103
    %p107 = scmp.eq.s32.totalorder %s15, 0
    %p108 = por %p106, %p107
    %p109 = scmp.ne.s32.totalorder %s101, %s103
    %p110 = scmp.eq.s32.totalorder %s20, 1
    %p111 = por %p109, %p110
    %p112 = scmp.ne.s32.totalorder %s103, %s104
    %p113 = scmp.eq.s32.totalorder %s20, 0
    %p114 = por %p112, %p113
    %p115 = scmp.ne.s32.totalorder %s103, %s104
    %p116 = scmp.eq.s32.totalorder %s21, 1
    %p117 = por %p115, %p116
    %p119 = scmp.ne.s32.totalorder %s104, %s118
    %p120 = scmp.eq.s32.totalorder %s21, 0
    %p121 = por %p119, %p120
    %s123 = sadd.s32 %s122, 1
    %p126 = scmp.eq.s32.totalorder %s15, 1
    %p127 = scmp.ne.s32.totalorder %s122, %s124
    %p128 = scmp.eq.s32.totalorder %s15, 0
    %p129 = por %p127, %p128
    %p130 = scmp.ne.s32.totalorder %s122, %s124
    %p131 = scmp.eq.s32.totalorder %s20, 1
    %p132 = por %p130, %p131
    %p133 = scmp.ne.s32.totalorder %s124, %s125
    %p134 = scmp.eq.s32.totalorder %s20, 0
    %p135 = por %p133, %p134
    %p136 = scmp.ne.s32.totalorder %s124, %s125
    %p137 = scmp.eq.s32.totalorder %s21, 1
    %p138 = por %p136, %p137
    %p140 = scmp.ne.s32.totalorder %s125, %s139
    %p141 = scmp.eq.s32.totalorder %s21, 0
    %p142 = por %p140, %p141
    %s144 = sadd.s32 %s143, 1
    %p147 = scmp.eq.s32.totalorder %s15, 1
    %p148 = scmp.ne.s32.totalorder %s143, %s145
    %p149 = scmp.eq.s32.totalorder %s15, 0
    %p150 = por %p148, %p149
    %p151 = scmp.ne.s32.totalorder %s143, %s145
    %p152 = scmp.eq.s32.totalorder %s20, 1
    %p153 = por %p151, %p152
    %p154 = scmp.ne.s32.totalorder %s145, %s146
    %p155 = scmp.eq.s32.totalorder %s20, 0
    %p156 = por %p154, %p155
    %p157 = scmp.ne.s32.totalorder %s145, %s146
    %p158 = scmp.eq.s32.totalorder %s21, 1
    %p159 = por %p157, %p158
    %p161 = scmp.ne.s32.totalorder %s146, %s160
    %p162 = scmp.eq.s32.totalorder %s21, 0
    %p163 = por %p161, %p162
    %s165 = sadd.s32 %s164, 1
    %p168 = scmp.eq.s32.totalorder %s15, 1
    %p169 = scmp.ne.s32.totalorder %s164, %s166
    %p170 = scmp.eq.s32.totalorder %s15, 0
    %p171 = por %p169, %p170
    %p172 = scmp.ne.s32.totalorder %s164, %s166
    %p173 = scmp.eq.s32.totalorder %s20, 1
    %p174 = por %p172, %p173
    %p175 = scmp.ne.s32.totalorder %s166, %s167
    %p176 = scmp.eq.s32.totalorder %s20, 0
    %p177 = por %p175, %p176
    %p178 = scmp.ne.s32.totalorder %s166, %s167
    %p179 = scmp.eq.s32.totalorder %s21, 1
    %p180 = por %p178, %p179
    %p182 = scmp.ne.s32.totalorder %s167, %s181
    %p183 = scmp.eq.s32.totalorder %s21, 0
    %p184 = por %p182, %p183
    %s186 = sadd.s32 %s185, 1
    %p189 = scmp.eq.s32.totalorder %s15, 1
    %p190 = scmp.ne.s32.totalorder %s185, %s187
    %p191 = scmp.eq.s32.totalorder %s15, 0
    %p192 = por %p190, %p191
    %p193 = scmp.ne.s32.totalorder %s185, %s187
    %p194 = scmp.eq.s32.totalorder %s20, 1
    %p195 = por %p193, %p194
    %p196 = scmp.ne.s32.totalorder %s187, %s188
    %p197 = scmp.eq.s32.totalorder %s20, 0
    %p198 = por %p196, %p197
    %p199 = scmp.ne.s32.totalorder %s187, %s188
    %p200 = scmp.eq.s32.totalorder %s21, 1
    %p201 = por %p199, %p200
    %p203 = scmp.ne.s32.totalorder %s188, %s202
    %p204 = scmp.eq.s32.totalorder %s21, 0
    %p205 = por %p203, %p204
    %s207 = sadd.s32 %s206, 1
    %p210 = scmp.eq.s32.totalorder %s15, 1
    %p211 = scmp.ne.s32.totalorder %s206, %s208
    %p212 = scmp.eq.s32.totalorder %s15, 0
    %p213 = por %p211, %p212
    %p214 = scmp.ne.s32.totalorder %s206, %s208
    %p215 = scmp.eq.s32.totalorder %s20, 1
    %p216 = por %p214, %p215
    %p217 = scmp.ne.s32.totalorder %s208, %s209
    %p218 = scmp.eq.s32.totalorder %s20, 0
    %p219 = por %p217, %p218
    %p220 = scmp.ne.s32.totalorder %s208, %s209
    %p221 = scmp.eq.s32.totalorder %s21, 1
    %p222 = por %p220, %p221
    %p224 = scmp.ne.s32.totalorder %s209, %s223
    %p225 = scmp.eq.s32.totalorder %s21, 0
    %p226 = por %p224, %p225
    %s227 = ssub.s32 %s15, %s22
    %p228 = scmp.eq.s32.totalorder %s227, 0
    %s230 = sadd.s32 %s229, 1
    %s231 = scalar_select %p228, %s229, %s230
    %p234 = pneg %p228
    %p235 = scmp.eq.s32.totalorder %s15, 1
    %p236 = por %p234, %p235
    %p237 = scmp.ne.s32.totalorder %s229, %s232
    %p238 = scmp.eq.s32.totalorder %s15, 0
    %p239 = por %p237, %p238
    %p240 = scmp.ne.s32.totalorder %s229, %s232
    %p241 = scmp.eq.s32.totalorder %s20, 1
    %p242 = por %p240, %p241
    %p243 = scmp.ne.s32.totalorder %s232, %s233
    %p244 = scmp.eq.s32.totalorder %s20, 0
    %p245 = por %p243, %p244
    %p246 = scmp.ne.s32.totalorder %s232, %s233
    %p247 = scmp.eq.s32.totalorder %s21, 1
    %p248 = por %p246, %p247
    %p250 = scmp.ne.s32.totalorder %s233, %s249
    %p251 = scmp.eq.s32.totalorder %s21, 0
    %p252 = por %p250, %p251
    %p253 = scmp.le.s32.totalorder 1, %s15
    %p254 = scmp.lt.s32.totalorder %s15, 3
    %p255 = pnand %p253, %p254
    %p256 = pneg %p255
    // Predicated region
    $region9: #{_lambda_.16} parent=5 // pred_check
      _
    $region10: #{_lambda_.16} parent=5 // pred_check_branch
      %258 = sbr.rel (%p255) target = $region12
    $region11: #{_lambda_.16} parent=5 // pred_region
      %s259 = ssub.s32 %s15, 1
      // Predicated region
      $region13: #{_lambda_.16} parent=11 // pred_check
        %p260 = pneg %p114
      $region14: #{_lambda_.16} parent=11 // pred_check_branch
        %262 = sbr.rel (%p260) target = $region16
      $region15: #{_lambda_.16} parent=11 // pred_region
        _
      $region16: #{_lambda_.16} parent=11 // pred_fallthru
        _
      // Predicated region
      $region17: #{_lambda_.16} parent=11 // pred_check
        %p263 = pneg %p135
      $region18: #{_lambda_.16} parent=11 // pred_check_branch
        %265 = sbr.rel (%p263) target = $region20
      $region19: #{_lambda_.16} parent=11 // pred_region
        _
      $region20: #{_lambda_.16} parent=11 // pred_fallthru
        _
      // Predicated region
      $region21: #{_lambda_.16} parent=11 // pred_check
        %p266 = pneg %p156
      $region22: #{_lambda_.16} parent=11 // pred_check_branch
        %268 = sbr.rel (%p266) target = $region24
      $region23: #{_lambda_.16} parent=11 // pred_region
        _
      $region24: #{_lambda_.16} parent=11 // pred_fallthru
        _
      // Predicated region
      $region25: #{_lambda_.16} parent=11 // pred_check
        %p269 = pneg %p177
      $region26: #{_lambda_.16} parent=11 // pred_check_branch
        %271 = sbr.rel (%p269) target = $region28
      $region27: #{_lambda_.16} parent=11 // pred_region
        _
      $region28: #{_lambda_.16} parent=11 // pred_fallthru
        _
      // Predicated region
      $region29: #{_lambda_.16} parent=11 // pred_check
        %p272 = pneg %p198
      $region30: #{_lambda_.16} parent=11 // pred_check_branch
        %274 = sbr.rel (%p272) target = $region32
      $region31: #{_lambda_.16} parent=11 // pred_region
        _
      $region32: #{_lambda_.16} parent=11 // pred_fallthru
        _
      // Predicated region
      $region33: #{_lambda_.16} parent=11 // pred_check
        %p275 = pneg %p219
      $region34: #{_lambda_.16} parent=11 // pred_check_branch
        %277 = sbr.rel (%p275) target = $region36
      $region35: #{_lambda_.16} parent=11 // pred_region
        _
      $region36: #{_lambda_.16} parent=11 // pred_fallthru
        _
    $region12: #{_lambda_.16} parent=5 // pred_fallthru
      _
    %p278 = scmp.lt.s32.totalorder %s15, 2
    // Predicated region
    $region37: #{_lambda_.16} parent=5 // pred_check
      %p279 = pneg %p278
    $region38: #{_lambda_.16} parent=5 // pred_check_branch
      %281 = sbr.rel (%p279) target = $region40
    $region39: #{_lambda_.16} parent=5 // pred_region
      // Predicated region
      $region41: #{_lambda_.16} parent=39 // pred_check
        %p282 = pneg %p35
      $region42: #{_lambda_.16} parent=39 // pred_check_branch
        %284 = sbr.rel (%p282) target = $region44
      $region43: #{_lambda_.16} parent=39 // pred_region
        %p285 = scmp.lt.s32.totalorder %s15, 1
        %s286 = scalar_select %p285, %s15, 1
        %s287 = smul.addr %s286, 2
        %s288 = smul.addr %s287, 8
        %s289 = scalar_lea.vmem %s0, %s288
      $region44: #{_lambda_.16} parent=39 // pred_fallthru
        _
      // Predicated region
      $region45: #{_lambda_.16} parent=39 // pred_check
        %p290 = pneg %p61
      $region46: #{_lambda_.16} parent=39 // pred_check_branch
        %292 = sbr.rel (%p290) target = $region48
      $region47: #{_lambda_.16} parent=39 // pred_region
        %p293 = scmp.lt.s32.totalorder %s15, 1
        %s294 = scalar_select %p293, %s15, 1
        %s295 = smul.addr %s294, 2
        %s296 = smul.addr %s295, 8
        %s297 = scalar_lea.vmem %s1, %s296
      $region48: #{_lambda_.16} parent=39 // pred_fallthru
        _
      // Predicated region
      $region49: #{_lambda_.16} parent=39 // pred_check
        %p298 = pneg %p87
      $region50: #{_lambda_.16} parent=39 // pred_check_branch
        %300 = sbr.rel (%p298) target = $region52
      $region51: #{_lambda_.16} parent=39 // pred_region
        %p301 = scmp.lt.s32.totalorder %s15, 1
        %s302 = scalar_select %p301, %s15, 1
        %s303 = smul.addr %s302, 2
        %s304 = smul.addr %s303, 8
        %s305 = scalar_lea.vmem %s2, %s304
      $region52: #{_lambda_.16} parent=39 // pred_fallthru
        _
    $region40: #{_lambda_.16} parent=5 // pred_fallthru
      _
    %p306 = scmp.le.s32.totalorder 1, %s15
    %p307 = scmp.lt.s32.totalorder %s15, 3
    %p308 = pnand %p306, %p307
    %p309 = pneg %p308
    // Predicated region
    $region53: #{_lambda_.16} parent=5 // pred_check
      _
    $region54: #{_lambda_.16} parent=5 // pred_check_branch
      %311 = sbr.rel (%p308) target = $region56
    $region55: #{_lambda_.16} parent=5 // pred_region
      %s312 = ssub.s32 %s15, 1
      %p313 = scmp.lt.s32.totalorder %s20, 1
      %s314 = scalar_select %p313, %s20, 1
      %s315 = smul.addr %s314, 2
      %s316 = smul.addr %s315, 8
      %s317 = scalar_lea.vmem %s0, %s316
      %p318 = pneg %p41
      %p319 = pneg %p38
      %p320 = scmp.lt.s32.totalorder %s20, 1
      %s321 = scalar_select %p320, %s20, 1
      %s322 = smul.addr %s321, 2
      %s323 = smul.addr %s322, 8
      %s324 = scalar_lea.vmem %s1, %s323
      %p325 = pneg %p67
      %p326 = pneg %p64
      %p327 = scmp.lt.s32.totalorder %s20, 1
      %s328 = scalar_select %p327, %s20, 1
      %s329 = smul.addr %s328, 2
      %s330 = smul.addr %s329, 8
      %s331 = scalar_lea.vmem %s2, %s330
      %p332 = pneg %p93
      %p333 = pneg %p90
      %p334 = pneg %p114
      %p335 = pneg %p111
      %p336 = pneg %p135
      %p337 = pneg %p132
      %p338 = pneg %p156
      %p339 = pneg %p153
      %p340 = pneg %p177
      %p341 = pneg %p174
      %p342 = pneg %p198
      %p343 = pneg %p195
      %p344 = pneg %p219
      %p345 = pneg %p216
      %p346 = pneg %p245
      %p347 = pneg %p242
      %p348 = scmp.lt.s32.totalorder %s20, 1
      %s349 = scalar_select %p348, %s20, 1
      %s350 = smul.addr %s349, 2
      %s351 = smul.addr %s350, 8
      %s352 = scalar_lea.vmem %s9, %s351
      %p353 = scmp.lt.s32.totalorder %s20, 1
      %s354 = scalar_select %p353, %s20, 1
      %s355 = smul.addr %s354, 2
      %s356 = smul.addr %s355, 8
      %s357 = scalar_lea.vmem %s0, %s356
      %p358 = scmp.lt.s32.totalorder %s20, 1
      %s359 = scalar_select %p358, %s20, 1
      %s360 = smul.addr %s359, 2
      %s361 = smul.addr %s360, 8
      %s362 = scalar_lea.vmem %s1, %s361
      %p363 = scmp.lt.s32.totalorder %s20, 1
      %s364 = scalar_select %p363, %s20, 1
      %s365 = smul.addr %s364, 2
      %s366 = smul.addr %s365, 8
      %s367 = scalar_lea.vmem %s2, %s366
      %p368 = scmp.lt.s32.totalorder %s20, 1
      %s369 = scalar_select %p368, %s20, 1
      %s370 = smul.addr %s369, 2
      %s371 = smul.addr %s370, 8
      %s372 = scalar_lea.vmem %s9, %s371
      %v373 = vld [vmem:[%s367] sm:$0xff]
      %v374 = vld [vmem:[%s367 + $0x8] sm:$0xf]
      %v375 = vld [vmem:[%s362] sm:$0xff]
      %v376 = vld [vmem:[%s362 + $0x8] sm:$0xf]
      %v377 = vadd.f32 %v373, %v375
      %v378 = vadd.f32 %v374, %v376
      %v379 = vld [vmem:[%s5] sm:$0x1]
      %v380 = vld [vmem:[%s6] sm:$0x1]
      %381 = vadd.xlane.f32.xlu0 %v377
      %v382 = vpop.xlane.xlu0 %381
      %vm383 = vcmask 1043456
      %v384 = vsel %vm383, %v378, 0.0
      %385 = vadd.xlane.f32.xlu0 %v384
      %v386 = vpop.xlane.xlu0 %385
      %v387 = vrcp.pop 32.0
      %v388 = vmul.f32 32.0, %v387
      %v389 = vsub.f32 1.0, %v388
      %v390 = vmul.f32 %v387, %v389
      %v391 = vadd.f32 %v387, %v390
      %vm392 = vweird.f32 %v387
      %v393 = vsel %vm392, %v387, %v391
      %v394 = vmul.f32 %v382, %v393
      %v395 = vmul.f32 %v386, %v393
      %v396 = vmul.f32 %v377, %v377
      %v397 = vmul.f32 %v378, %v378
      %398 = vadd.xlane.f32.xlu0 %v396
      %v399 = vpop.xlane.xlu0 %398
      %v400 = vsel %vm383, %v397, 0.0
      %401 = vadd.xlane.f32.xlu0 %v400
      %v402 = vpop.xlane.xlu0 %401
      %v403 = vmul.f32 %v399, %v393
      %v404 = vmul.f32 %v402, %v393
      %v405 = vmul.f32 %v394, %v394
      %v406 = vmul.f32 %v395, %v395
      %v407 = vsub.f32 %v403, %v405
      %v408 = vsub.f32 %v404, %v406
      %v409 = vsub.f32 %v377, %v394
      %v410 = vsub.f32 %v378, %v395
      %v411 = vadd.f32 %v407, 1e-05
      %v412 = vadd.f32 %v408, 1e-05
      %v413 = vrsqrt.pop %v411
      %v414 = vmul.f32 %v413, %v411
      %v415 = vmul.f32 %v414, %v413
      %v416 = vmul.f32 0.5, %v415
      %v417 = vsub.f32 1.5, %v416
      %v418 = vmul.f32 %v413, %v417
      %vm419 = vweird.f32 %v411
      %vm420 = vweird.f32 %v413
      %vm421 = vmor %vm419, %vm420
      %v422 = vsel %vm421, %v413, %v418
      %v423 = vrsqrt.pop %v412
      %v424 = vmul.f32 %v423, %v412
      %v425 = vmul.f32 %v424, %v423
      %v426 = vmul.f32 0.5, %v425
      %v427 = vsub.f32 1.5, %v426
      %v428 = vmul.f32 %v423, %v427
      %vm429 = vweird.f32 %v412
      %vm430 = vweird.f32 %v423
      %vm431 = vmor %vm429, %vm430
      %v432 = vsel %vm431, %v423, %v428
      %v433 = vmul.f32 %v409, %v422
      %v434 = vmul.f32 %v410, %v432
      %v436 = vperm.slane %v379, 0
      %v438 = vmul.f32 %v433, %v436
      %v439 = vmul.f32 %v434, %v436
      %v441 = vperm.slane %v380, 0
      %v443 = vadd.f32 %v438, %v441
      %v444 = vadd.f32 %v439, %v441
      %v445 = vld [vmem:[%s357] sm:$0xff]
      %v446 = vld [vmem:[%s357 + $0x8] sm:$0xf]
      %v447 = vld [vmem:[%s3] sm:$0xff]
      %v448 = vld [vmem:[%s3 + $0x8] sm:$0xff]
      %v449 = vld [vmem:[%s3 + $0x10] sm:$0xff]
      %v450 = vld [vmem:[%s3 + $0x18] sm:$0xff]
      %v451 = vld [vmem:[%s3 + $0x20] sm:$0xff]
      %v452 = vld [vmem:[%s3 + $0x28] sm:$0xff]
      %v453 = vld [vmem:[%s3 + $0x30] sm:$0xff]
      %v454 = vld [vmem:[%s3 + $0x38] sm:$0xff]
      %v455 = vld [vmem:[%s3 + $0x40] sm:$0xff]
      %v456 = vld [vmem:[%s3 + $0x48] sm:$0xff]
      %v457 = vld [vmem:[%s3 + $0x50] sm:$0xff]
      %v458 = vld [vmem:[%s3 + $0x58] sm:$0xff]
      %v459 = vld [vmem:[%s3 + $0x60] sm:$0xff]
      %v460 = vld [vmem:[%s3 + $0x68] sm:$0xff]
      %v461 = vld [vmem:[%s3 + $0x70] sm:$0xff]
      %v462 = vld [vmem:[%s3 + $0x78] sm:$0xff]
      %v463 = vld [vmem:[%s4] sm:$0x1]
      %vm464 = vcmask 97280
      %v465 = vsel %vm464, %v445, 0.0
      %466 = vadd.xlane.f32.xlu0 %v465
      %v467 = vpop.xlane.xlu0 %466
      %vm468 = vcmask 93184
      %v469 = vsel %vm468, %v446, 0.0
      %470 = vadd.xlane.f32.xlu0 %v469
      %v471 = vpop.xlane.xlu0 %470
      %v472 = vmax.f32 %v467, 1e-12
      %v473 = vmax.f32 %v471, 1e-12
      %v474 = vrcp.pop %v472
      %v475 = vrcp.pop %v473
      %v476 = vmul.f32 %v443, %v474
      %v477 = vmul.f32 %v444, %v475
      %v479 = vsel %vm464, %v445, 0
      %v482 = vsel %vm464, %v446, 0
      %v485 = vsel %vm383, %v477, 0
      %487 = vmatpush.msra.mxu0 0.0
      %488 = vmatpush.msra.mxu0 0.0
      %489 = vmatpush.msra.mxu0 0.0
      %490 = vmatpush.msra.mxu0 0.0
      %491 = vmatpush.msra.mxu0 0.0
      %492 = vmatpush.msra.mxu0 0.0
      %493 = vmatpush.msra.mxu0 0.0
      %494 = vmatpush.msra.mxu0 0.0
      %495 = vmatpush.msra.mxu0 0.0
      %496 = vmatpush.msra.mxu0 0.0
      %497 = vmatpush.msra.mxu0 0.0
      %498 = vmatpush.msra.mxu0 0.0
      %499 = vmatpush.msra.mxu0 0.0
      %500 = vmatpush.msra.mxu0 0.0
      %501 = vmatpush.msra.mxu0 %v485
      %502 = vmatpush.msra.mxu0 %v476
      %503 = vmatmul.f32.gmra.mxu0 %v479
      %v504 = vpop.f32.mrf.mxu0
      %v505 = vadd.f32 0.0, %v504
      %506 = vmatmul.f32.gmra.mxu0 %v482
      %v507 = vpop.f32.mrf.mxu0
      %v508 = vadd.f32 0.0, %v507
      %509 = vdwg.mxu0
      %v511 = vperm.slane %v463, 0
      %513 = vmatpush.msra.mxu0 %v462
      %514 = vmatpush.msra.mxu0 %v461
      %515 = vmatpush.msra.mxu0 %v460
      %516 = vmatpush.msra.mxu0 %v459
      %517 = vmatpush.msra.mxu0 %v458
      %518 = vmatpush.msra.mxu0 %v457
      %519 = vmatpush.msra.mxu0 %v456
      %520 = vmatpush.msra.mxu0 %v455
      %521 = vmatpush.msra.mxu0 %v454
      %522 = vmatpush.msra.mxu0 %v453
      %523 = vmatpush.msra.mxu0 %v452
      %524 = vmatpush.msra.mxu0 %v451
      %525 = vmatpush.msra.mxu0 %v450
      %526 = vmatpush.msra.mxu0 %v449
      %527 = vmatpush.msra.mxu0 %v448
      %528 = vmatpush.msra.mxu0 %v447
      %529 = vmatmul.f32.gmra.mxu0 %v505
      %v530 = vpop.f32.mrf.mxu0
      %v531 = vadd.f32 %v511, %v530
      %532 = vmatmul.f32.gmra.mxu0 %v508
      %v533 = vpop.f32.mrf.mxu0
      %v534 = vadd.f32 %v511, %v533
      %535 = vdwg.mxu0
      %vm536 = vcmp.gt.f32.partialorder %v531, 0.0
      %vm537 = vcmp.gt.f32.partialorder %v534, 0.0
      %v538 = vmin.f32 %v531, 0.0
      %v539 = vmin.f32 %v534, 0.0
      %v540 = vmul.f32 %v538, 1.442695
      %v541 = vpow.pop %v540
      %v542 = vmul.f32 %v539, 1.442695
      %v543 = vpow.pop %v542
      %v544 = vsub.f32 %v541, 1.0
      %v545 = vsub.f32 %v543, 1.0
      %v546 = vsel %vm536, %v531, %v544
      %v547 = vsel %vm537, %v534, %v545
      %v548 = vadd.f32 %v546, %v443
      %v549 = vadd.f32 %v547, %v444
      %v550 = vld [vmem:[%s7] sm:$0x1]
      %v551 = vld [vmem:[%s8] sm:$0x1]
      %552 = vadd.xlane.f32.xlu0 %v548
      %v553 = vpop.xlane.xlu0 %552
      %v554 = vsel %vm383, %v549, 0.0
      %555 = vadd.xlane.f32.xlu0 %v554
      %v556 = vpop.xlane.xlu0 %555
      %v557 = vmul.f32 %v553, %v393
      %v558 = vmul.f32 %v556, %v393
      %v559 = vmul.f32 %v548, %v548
      %v560 = vmul.f32 %v549, %v549
      %561 = vadd.xlane.f32.xlu0 %v559
      %v562 = vpop.xlane.xlu0 %561
      %v563 = vsel %vm383, %v560, 0.0
      %564 = vadd.xlane.f32.xlu0 %v563
      %v565 = vpop.xlane.xlu0 %564
      %v566 = vmul.f32 %v562, %v393
      %v567 = vmul.f32 %v565, %v393
      %v568 = vmul.f32 %v557, %v557
      %v569 = vmul.f32 %v558, %v558
      %v570 = vsub.f32 %v566, %v568
      %v571 = vsub.f32 %v567, %v569
      %v572 = vsub.f32 %v548, %v557
      %v573 = vsub.f32 %v549, %v558
      %v574 = vadd.f32 %v570, 1e-05
      %v575 = vadd.f32 %v571, 1e-05
      %v576 = vrsqrt.pop %v574
      %v577 = vmul.f32 %v576, %v574
      %v578 = vmul.f32 %v577, %v576
      %v579 = vmul.f32 0.5, %v578
      %v580 = vsub.f32 1.5, %v579
      %v581 = vmul.f32 %v576, %v580
      %vm582 = vweird.f32 %v574
      %vm583 = vweird.f32 %v576
      %vm584 = vmor %vm582, %vm583
      %v585 = vsel %vm584, %v576, %v581
      %v586 = vrsqrt.pop %v575
      %v587 = vmul.f32 %v586, %v575
      %v588 = vmul.f32 %v587, %v586
      %v589 = vmul.f32 0.5, %v588
      %v590 = vsub.f32 1.5, %v589
      %v591 = vmul.f32 %v586, %v590
      %vm592 = vweird.f32 %v575
      %vm593 = vweird.f32 %v586
      %vm594 = vmor %vm592, %vm593
      %v595 = vsel %vm594, %v586, %v591
      %v596 = vmul.f32 %v572, %v585
      %v597 = vmul.f32 %v573, %v595
      %v599 = vperm.slane %v550, 0
      %v601 = vmul.f32 %v596, %v599
      %v602 = vmul.f32 %v597, %v599
      %v604 = vperm.slane %v551, 0
      %v606 = vadd.f32 %v601, %v604
      %v607 = vadd.f32 %v602, %v604
      %608 = vst [vmem:[%s372] sm:$0xff] %v606
      %609 = vst [vmem:[%s372 + $0x8] sm:$0xf] %v607
      %p610 = scmp.lt.s32.totalorder %s20, 1
      %s611 = scalar_select %p610, %s20, 1
      %s612 = smul.addr %s611, 2
      %s613 = smul.addr %s612, 8
      %s614 = scalar_lea.vmem %s9, %s613
      // Predicated region
      $region57: #{_lambda_.16} parent=55 // pred_check
        %p615 = pneg %p242
      $region58: #{_lambda_.16} parent=55 // pred_check_branch
        %617 = sbr.rel (%p615) target = $region60
      $region59: #{_lambda_.16} parent=55 // pred_region
        _
      $region60: #{_lambda_.16} parent=55 // pred_fallthru
        _
    $region56: #{_lambda_.16} parent=5 // pred_fallthru
      _
    %p618 = scmp.le.s32.totalorder 2, %s15
    // Predicated region
    $region61: #{_lambda_.16} parent=5 // pred_check
      %p619 = pneg %p618
    $region62: #{_lambda_.16} parent=5 // pred_check_branch
      %621 = sbr.rel (%p619) target = $region64
    $region63: #{_lambda_.16} parent=5 // pred_region
      %s622 = ssub.s32 %s15, 2
      // Predicated region
      $region65: #{_lambda_.16} parent=63 // pred_check
        %p623 = pneg %p248
      $region66: #{_lambda_.16} parent=63 // pred_check_branch
        %625 = sbr.rel (%p623) target = $region68
      $region67: #{_lambda_.16} parent=63 // pred_region
        %p626 = scmp.lt.s32.totalorder %s21, 1
        %s627 = scalar_select %p626, %s21, 1
        %s628 = smul.addr %s627, 2
        %s629 = smul.addr %s628, 8
        %s630 = scalar_lea.vmem %s9, %s629
      $region68: #{_lambda_.16} parent=63 // pred_fallthru
        _
    $region64: #{_lambda_.16} parent=5 // pred_fallthru
      _
  $region6: #{_lambda_.16} parent=0 // loop_footer
    %s19 = sadd.s32 1, %s15
  $region7: #{_lambda_.16} parent=0 // loop_footer_branch
    %14 = sbr.rel target = $region3
  $region8: #{_lambda_.16} parent=0 // loop_exit
    _

// kernel: _lambda_.19
$region0: #{_lambda_.19}
  #allocation0 [shape = 'u32[]', space=smem, size = 0x4, offset = 0x4, fixed_abs, tag = 'smem constant byte address 0x4 - core index']
  #allocation1 [shape = 'u32[72,128]{1,0:T(1,128)}', space=vmem, size = 0x9000, scoped, tag = 'internal scratch']
  %s0 = inlined_call_operand.vmem [shape: f32[2,16,16], index: 0, kind: input, shape index: {}]
  %s1 = inlined_call_operand.vmem [shape: f32[2,16,16], index: 1, kind: input, shape index: {}]
  %s2 = inlined_call_operand.vmem [shape: f32[2,1,1], index: 2, kind: output, shape index: {}]
  %s3 = sld [smem:[#allocation0]]
  $region41: #{_lambda_.19} parent=0
    _
  %s5 = ssub.s32 1, %s3
  %s6 = scalar_select 0, %s5, %s3
  loop: start=0, step=1, limit=4
  $region2: #{_lambda_.19} parent=0 // loop_pre_header
    _
  $region3: #{_lambda_.19} parent=0 // loop_header
    %s8 = sphi 0, %s12
    %p9 = scmp.ge.s32.totalorder %s8, 4
    %s18 = sphi 0, %s20
    %s21 = sphi 0, %s18
    %s22 = sphi 0, %s21
    %s38 = sphi 0, %s22
    %s44 = sphi 0, %s46
    %s47 = sphi 0, %s44
    %s48 = sphi 0, %s47
    %s64 = sphi 0, %s48
    %s70 = sphi 0, %s72
    %s73 = sphi 0, %s70
    %s74 = sphi 0, %s73
    %s90 = sphi 0, %s74
  $region4: #{_lambda_.19} parent=0 // loop_header_branch
    %11 = sbr.rel (%p9) target = $region8
  $region5: #{_lambda_.19} parent=0 // loop_body
    %s13 = ssub.s32 %s8, 1
    %s14 = ssub.s32 %s8, 2
    %s15 = sadd.s32 %s8, 1
    %s16 = ssub.s32 %s8, %s15
    %p17 = scmp.eq.s32.totalorder %s16, 0
    %s19 = sadd.s32 %s18, 1
    %s20 = scalar_select %p17, %s18, %s19
    %p23 = pneg %p17
    %p24 = scmp.eq.s32.totalorder %s8, 1
    %p25 = por %p23, %p24
    %p26 = scmp.ne.s32.totalorder %s18, %s21
    %p27 = scmp.eq.s32.totalorder %s8, 0
    %p28 = por %p26, %p27
    %p29 = scmp.ne.s32.totalorder %s18, %s21
    %p30 = scmp.eq.s32.totalorder %s13, 1
    %p31 = por %p29, %p30
    %p32 = scmp.ne.s32.totalorder %s21, %s22
    %p33 = scmp.eq.s32.totalorder %s13, 0
    %p34 = por %p32, %p33
    %p35 = scmp.ne.s32.totalorder %s21, %s22
    %p36 = scmp.eq.s32.totalorder %s14, 1
    %p37 = por %p35, %p36
    %p39 = scmp.ne.s32.totalorder %s22, %s38
    %p40 = scmp.eq.s32.totalorder %s14, 0
    %p41 = por %p39, %p40
    %s42 = ssub.s32 %s8, %s15
    %p43 = scmp.eq.s32.totalorder %s42, 0
    %s45 = sadd.s32 %s44, 1
    %s46 = scalar_select %p43, %s44, %s45
    %p49 = pneg %p43
    %p50 = scmp.eq.s32.totalorder %s8, 1
    %p51 = por %p49, %p50
    %p52 = scmp.ne.s32.totalorder %s44, %s47
    %p53 = scmp.eq.s32.totalorder %s8, 0
    %p54 = por %p52, %p53
    %p55 = scmp.ne.s32.totalorder %s44, %s47
    %p56 = scmp.eq.s32.totalorder %s13, 1
    %p57 = por %p55, %p56
    %p58 = scmp.ne.s32.totalorder %s47, %s48
    %p59 = scmp.eq.s32.totalorder %s13, 0
    %p60 = por %p58, %p59
    %p61 = scmp.ne.s32.totalorder %s47, %s48
    %p62 = scmp.eq.s32.totalorder %s14, 1
    %p63 = por %p61, %p62
    %p65 = scmp.ne.s32.totalorder %s48, %s64
    %p66 = scmp.eq.s32.totalorder %s14, 0
    %p67 = por %p65, %p66
    %s68 = ssub.s32 %s8, %s15
    %p69 = scmp.eq.s32.totalorder %s68, 0
    %s71 = sadd.s32 %s70, 1
    %s72 = scalar_select %p69, %s70, %s71
    %p75 = pneg %p69
    %p76 = scmp.eq.s32.totalorder %s8, 1
    %p77 = por %p75, %p76
    %p78 = scmp.ne.s32.totalorder %s70, %s73
    %p79 = scmp.eq.s32.totalorder %s8, 0
    %p80 = por %p78, %p79
    %p81 = scmp.ne.s32.totalorder %s70, %s73
    %p82 = scmp.eq.s32.totalorder %s13, 1
    %p83 = por %p81, %p82
    %p84 = scmp.ne.s32.totalorder %s73, %s74
    %p85 = scmp.eq.s32.totalorder %s13, 0
    %p86 = por %p84, %p85
    %p87 = scmp.ne.s32.totalorder %s73, %s74
    %p88 = scmp.eq.s32.totalorder %s14, 1
    %p89 = por %p87, %p88
    %p91 = scmp.ne.s32.totalorder %s74, %s90
    %p92 = scmp.eq.s32.totalorder %s14, 0
    %p93 = por %p91, %p92
    %p94 = scmp.le.s32.totalorder 1, %s8
    %p95 = scmp.lt.s32.totalorder %s8, 3
    %p96 = pnand %p94, %p95
    %p97 = pneg %p96
    // Predicated region
    $region9: #{_lambda_.19} parent=5 // pred_check
      _
    $region10: #{_lambda_.19} parent=5 // pred_check_branch
      %99 = sbr.rel (%p96) target = $region12
    $region11: #{_lambda_.19} parent=5 // pred_region
      %s100 = ssub.s32 %s8, 1
    $region12: #{_lambda_.19} parent=5 // pred_fallthru
      _
    %p101 = scmp.lt.s32.totalorder %s8, 2
    // Predicated region
    $region13: #{_lambda_.19} parent=5 // pred_check
      %p102 = pneg %p101
    $region14: #{_lambda_.19} parent=5 // pred_check_branch
      %104 = sbr.rel (%p102) target = $region16
    $region15: #{_lambda_.19} parent=5 // pred_region
      // Predicated region
      $region17: #{_lambda_.19} parent=15 // pred_check
        %p105 = pneg %p28
      $region18: #{_lambda_.19} parent=15 // pred_check_branch
        %107 = sbr.rel (%p105) target = $region20
      $region19: #{_lambda_.19} parent=15 // pred_region
        %p108 = scmp.lt.s32.totalorder %s8, 1
        %s109 = scalar_select %p108, %s8, 1
        %s110 = smul.addr %s109, 2
        %s111 = smul.addr %s110, 8
        %s112 = scalar_lea.vmem %s0, %s111
      $region20: #{_lambda_.19} parent=15 // pred_fallthru
        _
      // Predicated region
      $region21: #{_lambda_.19} parent=15 // pred_check
        %p113 = pneg %p54
      $region22: #{_lambda_.19} parent=15 // pred_check_branch
        %115 = sbr.rel (%p113) target = $region24
      $region23: #{_lambda_.19} parent=15 // pred_region
        %p116 = scmp.lt.s32.totalorder %s8, 1
        %s117 = scalar_select %p116, %s8, 1
        %s118 = smul.addr %s117, 2
        %s119 = smul.addr %s118, 8
        %s120 = scalar_lea.vmem %s1, %s119
      $region24: #{_lambda_.19} parent=15 // pred_fallthru
        _
    $region16: #{_lambda_.19} parent=5 // pred_fallthru
      _
    %p121 = scmp.le.s32.totalorder 1, %s8
    %p122 = scmp.lt.s32.totalorder %s8, 3
    %p123 = pnand %p121, %p122
    %p124 = pneg %p123
    // Predicated region
    $region25: #{_lambda_.19} parent=5 // pred_check
      _
    $region26: #{_lambda_.19} parent=5 // pred_check_branch
      %126 = sbr.rel (%p123) target = $region28
    $region27: #{_lambda_.19} parent=5 // pred_region
      %s127 = ssub.s32 %s8, 1
      %p128 = scmp.lt.s32.totalorder %s13, 1
      %s129 = scalar_select %p128, %s13, 1
      %s130 = smul.addr %s129, 2
      %s131 = smul.addr %s130, 8
      %s132 = scalar_lea.vmem %s0, %s131
      %p133 = pneg %p34
      %p134 = pneg %p31
      %p135 = scmp.lt.s32.totalorder %s13, 1
      %s136 = scalar_select %p135, %s13, 1
      %s137 = smul.addr %s136, 2
      %s138 = smul.addr %s137, 8
      %s139 = scalar_lea.vmem %s1, %s138
      %p140 = pneg %p60
      %p141 = pneg %p57
      %p142 = pneg %p86
      %p143 = pneg %p83
      %p144 = scmp.lt.s32.totalorder %s13, 1
      %s145 = scalar_select %p144, %s13, 1
      %s146 = scalar_lea.vmem %s2, %s145
      %p147 = scmp.lt.s32.totalorder %s13, 1
      %s148 = scalar_select %p147, %s13, 1
      %s149 = smul.addr %s148, 2
      %s150 = smul.addr %s149, 8
      %s151 = scalar_lea.vmem %s0, %s150
      %p152 = scmp.lt.s32.totalorder %s13, 1
      %s153 = scalar_select %p152, %s13, 1
      %s154 = smul.addr %s153, 2
      %s155 = smul.addr %s154, 8
      %s156 = scalar_lea.vmem %s1, %s155
      %p157 = scmp.lt.s32.totalorder %s13, 1
      %s158 = scalar_select %p157, %s13, 1
      %s159 = scalar_lea.vmem %s2, %s158
      %v160 = vld [vmem:[%s151] sm:$0xff]
      %v161 = vld [vmem:[%s151 + $0x8] sm:$0xff]
      %v162 = vld [vmem:[%s156] sm:$0xff]
      %v163 = vld [vmem:[%s156 + $0x8] sm:$0xff]
      %vm164 = vcmask 130048
      %v165 = vsel %vm164, %v162, 0.0
      %v166 = vsel %vm164, %v163, 0.0
      %v167 = vadd.f32 %v165, %v166
      %168 = vadd.xlane.f32.xlu0 %v167
      %v169 = vpop.xlane.xlu0 %168
      %v170 = vrot.slane %v169, 4
      %v171 = vadd.f32 %v169, %v170
      %v172 = vrot.slane %v171, 2
      %v173 = vadd.f32 %v171, %v172
      %v174 = vrot.slane %v173, 1
      %v175 = vadd.f32 %v173, %v174
      %s176 = vtos %v175
      %v177 = vstv %s176
      %v178 = vmax.f32 %v177, 1.0
      %v179 = vsub.f32 256.0, %v178
      %v180 = vmax.f32 %v179, 1.0
      %v181 = vrcp.pop %v178
      %v182 = vmul.f32 %v178, %v181
      %v183 = vsub.f32 1.0, %v182
      %v184 = vmul.f32 %v181, %v183
      %v185 = vadd.f32 %v181, %v184
      %vm186 = vweird.f32 %v178
      %vm187 = vweird.f32 %v181
      %vm188 = vmor %vm186, %vm187
      %v189 = vsel %vm188, %v181, %v185
      %v190 = vand.u32 2147483647, %v178
      %vm191 = vcmp.eq.f32.partialorder %v190, 8.507059e+37
      %v192 = vand.u32 %v178, 2147483648
      %v193 = vor.u32 1.1754944e-38, %v192
      %v194 = vsel %vm191, %v193, %v189
      %v195 = vmul.f32 128.0, %v194
      %v196 = vrcp.pop %v180
      %v197 = vmul.f32 %v180, %v196
      %v198 = vsub.f32 1.0, %v197
      %v199 = vmul.f32 %v196, %v198
      %v200 = vadd.f32 %v196, %v199
      %vm201 = vweird.f32 %v180
      %vm202 = vweird.f32 %v196
      %vm203 = vmor %vm201, %vm202
      %v204 = vsel %vm203, %v196, %v200
      %v205 = vand.u32 2147483647, %v180
      %vm206 = vcmp.eq.f32.partialorder %v205, 8.507059e+37
      %v207 = vand.u32 %v180, 2147483648
      %v208 = vor.u32 1.1754944e-38, %v207
      %v209 = vsel %vm206, %v208, %v204
      %v210 = vmul.f32 128.0, %v209
      %vm211 = vcmp.eq.f32.partialorder %v162, 0.0
      %vm212 = vcmp.eq.f32.partialorder %v163, 0.0
      %v213 = vsel %vm211, %v210, %v195
      %v214 = vsel %vm212, %v210, %v195
      %v215 = vlog2.pop %v160
      %v216 = vmul.f32 %v215, 0.6931472
      %v217 = vlog2.pop %v161
      %v218 = vmul.f32 %v217, 0.6931472
      %v219 = vmax.f32 %v216, -100.0
      %v220 = vmax.f32 %v218, -100.0
      %v221 = vsub.f32 1.0, %v160
      %v222 = vsub.f32 1.0, %v161
      %v223 = vlog2.pop %v221
      %v224 = vmul.f32 %v223, 0.6931472
      %v225 = vlog2.pop %v222
      %v226 = vmul.f32 %v225, 0.6931472
      %v227 = vmax.f32 %v224, -100.0
      %v228 = vmax.f32 %v226, -100.0
      %v229 = vmul.f32 %v162, %v219
      %v230 = vmul.f32 %v163, %v220
      %v231 = vsub.f32 1.0, %v162
      %v232 = vsub.f32 1.0, %v163
      %v233 = vmul.f32 %v231, %v227
      %v234 = vmul.f32 %v232, %v228
      %v235 = vadd.f32 %v229, %v233
      %v236 = vadd.f32 %v230, %v234
      %v237 = vsub.f32 0.0, %v235
      %v238 = vsub.f32 0.0, %v236
      %v239 = vmul.f32 %v213, %v237
      %v240 = vmul.f32 %v214, %v238
      %v241 = vsel %vm164, %v239, 0.0
      %v242 = vsel %vm164, %v240, 0.0
      %v243 = vadd.f32 %v241, %v242
      %244 = vadd.xlane.f32.xlu0 %v243
      %v245 = vpop.xlane.xlu0 %244
      %v246 = vrot.slane %v245, 4
      %v247 = vadd.f32 %v245, %v246
      %v248 = vrot.slane %v247, 2
      %v249 = vadd.f32 %v247, %v248
      %v250 = vrot.slane %v249, 1
      %v251 = vadd.f32 %v249, %v250
      %s252 = vtos %v251
      %v253 = vstv %s252
      %v254 = vrcp.pop 256.0
      %v255 = vmul.f32 256.0, %v254
      %v256 = vsub.f32 1.0, %v255
      %v257 = vmul.f32 %v254, %v256
      %v258 = vadd.f32 %v254, %v257
      %vm259 = vweird.f32 %v254
      %v260 = vsel %vm259, %v254, %v258
      %v261 = vmul.f32 %v253, %v260
      %vm262 = vcmask 0
      %263 = vst.msk [vmem:[%s159] sm:$0x1] %vm262, %v261
      %p264 = scmp.lt.s32.totalorder %s13, 1
      %s265 = scalar_select %p264, %s13, 1
      %s266 = scalar_lea.vmem %s2, %s265
      // Predicated region
      $region29: #{_lambda_.19} parent=27 // pred_check
        %p267 = pneg %p83
      $region30: #{_lambda_.19} parent=27 // pred_check_branch
        %269 = sbr.rel (%p267) target = $region32
      $region31: #{_lambda_.19} parent=27 // pred_region
        _
      $region32: #{_lambda_.19} parent=27 // pred_fallthru
        _
    $region28: #{_lambda_.19} parent=5 // pred_fallthru
      _
    %p270 = scmp.le.s32.totalorder 2, %s8
    // Predicated region
    $region33: #{_lambda_.19} parent=5 // pred_check
      %p271 = pneg %p270
    $region34: #{_lambda_.19} parent=5 // pred_check_branch
      %273 = sbr.rel (%p271) target = $region36
    $region35: #{_lambda_.19} parent=5 // pred_region
      %s274 = ssub.s32 %s8, 2
      // Predicated region
      $region37: #{_lambda_.19} parent=35 // pred_check
        %p275 = pneg %p89
      $region38: #{_lambda_.19} parent=35 // pred_check_branch
        %277 = sbr.rel (%p275) target = $region40
      $region39: #{_lambda_.19} parent=35 // pred_region
        %p278 = scmp.lt.s32.totalorder %s14, 1
        %s279 = scalar_select %p278, %s14, 1
        %s280 = scalar_lea.vmem %s2, %s279
      $region40: #{_lambda_.19} parent=35 // pred_fallthru
        _
    $region36: #{_lambda_.19} parent=5 // pred_fallthru
      _
  $region6: #{_lambda_.19} parent=0 // loop_footer
    %s12 = sadd.s32 1, %s8
  $region7: #{_lambda_.19} parent=0 // loop_footer_branch
    %7 = sbr.rel target = $region3
  $region8: #{_lambda_.19} parent=0 // loop_exit
    _

// kernel: _lambda_.17
$region0: #{_lambda_.17}
  #allocation0 [shape = 'u32[]', space=smem, size = 0x4, offset = 0x4, fixed_abs, tag = 'smem constant byte address 0x4 - core index']
  #allocation1 [shape = 'u32[72,128]{1,0:T(1,128)}', space=vmem, size = 0x9000, scoped, tag = 'internal scratch']
  %s0 = inlined_call_operand.vmem [shape: f32[2,16,16], index: 0, kind: input, shape index: {}]
  %s1 = inlined_call_operand.vmem [shape: f32[2,16,128], index: 1, kind: input, shape index: {}]
  %s2 = inlined_call_operand.vmem [shape: f32[2,16,128], index: 2, kind: input, shape index: {}]
  %s3 = inlined_call_operand.vmem [shape: f32[128,128], index: 3, kind: input, shape index: {}]
  %s4 = inlined_call_operand.vmem [shape: f32[1,128], index: 4, kind: input, shape index: {}]
  %s5 = inlined_call_operand.vmem [shape: f32[1,128], index: 5, kind: input, shape index: {}]
  %s6 = inlined_call_operand.vmem [shape: f32[1,128], index: 6, kind: input, shape index: {}]
  %s7 = inlined_call_operand.vmem [shape: f32[1,128], index: 7, kind: input, shape index: {}]
  %s8 = inlined_call_operand.vmem [shape: f32[1,128], index: 8, kind: input, shape index: {}]
  %s9 = inlined_call_operand.vmem [shape: f32[2,16,128], index: 9, kind: output, shape index: {}]
  %s10 = sld [smem:[#allocation0]]
  $region69: #{_lambda_.17} parent=0
    _
  %s12 = ssub.s32 1, %s10
  %s13 = scalar_select 0, %s12, %s10
  loop: start=0, step=1, limit=4
  $region2: #{_lambda_.17} parent=0 // loop_pre_header
    _
  $region3: #{_lambda_.17} parent=0 // loop_header
    %s15 = sphi 0, %s19
    %p16 = scmp.ge.s32.totalorder %s15, 4
    %s25 = sphi 0, %s27
    %s28 = sphi 0, %s25
    %s29 = sphi 0, %s28
    %s45 = sphi 0, %s29
    %s51 = sphi 0, %s53
    %s54 = sphi 0, %s51
    %s55 = sphi 0, %s54
    %s71 = sphi 0, %s55
    %s77 = sphi 0, %s79
    %s80 = sphi 0, %s77
    %s81 = sphi 0, %s80
    %s97 = sphi 0, %s81
    %s101 = sphi 0, %s101
    %s103 = sphi 0, %s101
    %s104 = sphi 0, %s103
    %s118 = sphi 0, %s104
    %s122 = sphi 0, %s122
    %s124 = sphi 0, %s122
    %s125 = sphi 0, %s124
    %s139 = sphi 0, %s125
    %s143 = sphi 0, %s143
    %s145 = sphi 0, %s143
    %s146 = sphi 0, %s145
    %s160 = sphi 0, %s146
    %s164 = sphi 0, %s164
    %s166 = sphi 0, %s164
    %s167 = sphi 0, %s166
    %s181 = sphi 0, %s167
    %s185 = sphi 0, %s185
    %s187 = sphi 0, %s185
    %s188 = sphi 0, %s187
    %s202 = sphi 0, %s188
    %s206 = sphi 0, %s206
    %s208 = sphi 0, %s206
    %s209 = sphi 0, %s208
    %s223 = sphi 0, %s209
    %s229 = sphi 0, %s231
    %s232 = sphi 0, %s229
    %s233 = sphi 0, %s232
    %s249 = sphi 0, %s233
  $region4: #{_lambda_.17} parent=0 // loop_header_branch
    %18 = sbr.rel (%p16) target = $region8
  $region5: #{_lambda_.17} parent=0 // loop_body
    %s20 = ssub.s32 %s15, 1
    %s21 = ssub.s32 %s15, 2
    %s22 = sadd.s32 %s15, 1
    %s23 = ssub.s32 %s15, %s22
    %p24 = scmp.eq.s32.totalorder %s23, 0
    %s26 = sadd.s32 %s25, 1
    %s27 = scalar_select %p24, %s25, %s26
    %p30 = pneg %p24
    %p31 = scmp.eq.s32.totalorder %s15, 1
    %p32 = por %p30, %p31
    %p33 = scmp.ne.s32.totalorder %s25, %s28
    %p34 = scmp.eq.s32.totalorder %s15, 0
    %p35 = por %p33, %p34
    %p36 = scmp.ne.s32.totalorder %s25, %s28
    %p37 = scmp.eq.s32.totalorder %s20, 1
    %p38 = por %p36, %p37
    %p39 = scmp.ne.s32.totalorder %s28, %s29
    %p40 = scmp.eq.s32.totalorder %s20, 0
    %p41 = por %p39, %p40
    %p42 = scmp.ne.s32.totalorder %s28, %s29
    %p43 = scmp.eq.s32.totalorder %s21, 1
    %p44 = por %p42, %p43
    %p46 = scmp.ne.s32.totalorder %s29, %s45
    %p47 = scmp.eq.s32.totalorder %s21, 0
    %p48 = por %p46, %p47
    %s49 = ssub.s32 %s15, %s22
    %p50 = scmp.eq.s32.totalorder %s49, 0
    %s52 = sadd.s32 %s51, 1
    %s53 = scalar_select %p50, %s51, %s52
    %p56 = pneg %p50
    %p57 = scmp.eq.s32.totalorder %s15, 1
    %p58 = por %p56, %p57
    %p59 = scmp.ne.s32.totalorder %s51, %s54
    %p60 = scmp.eq.s32.totalorder %s15, 0
    %p61 = por %p59, %p60
    %p62 = scmp.ne.s32.totalorder %s51, %s54
    %p63 = scmp.eq.s32.totalorder %s20, 1
    %p64 = por %p62, %p63
    %p65 = scmp.ne.s32.totalorder %s54, %s55
    %p66 = scmp.eq.s32.totalorder %s20, 0
    %p67 = por %p65, %p66
    %p68 = scmp.ne.s32.totalorder %s54, %s55
    %p69 = scmp.eq.s32.totalorder %s21, 1
    %p70 = por %p68, %p69
    %p72 = scmp.ne.s32.totalorder %s55, %s71
    %p73 = scmp.eq.s32.totalorder %s21, 0
    %p74 = por %p72, %p73
    %s75 = ssub.s32 %s15, %s22
    %p76 = scmp.eq.s32.totalorder %s75, 0
    %s78 = sadd.s32 %s77, 1
    %s79 = scalar_select %p76, %s77, %s78
    %p82 = pneg %p76
    %p83 = scmp.eq.s32.totalorder %s15, 1
    %p84 = por %p82, %p83
    %p85 = scmp.ne.s32.totalorder %s77, %s80
    %p86 = scmp.eq.s32.totalorder %s15, 0
    %p87 = por %p85, %p86
    %p88 = scmp.ne.s32.totalorder %s77, %s80
    %p89 = scmp.eq.s32.totalorder %s20, 1
    %p90 = por %p88, %p89
    %p91 = scmp.ne.s32.totalorder %s80, %s81
    %p92 = scmp.eq.s32.totalorder %s20, 0
    %p93 = por %p91, %p92
    %p94 = scmp.ne.s32.totalorder %s80, %s81
    %p95 = scmp.eq.s32.totalorder %s21, 1
    %p96 = por %p94, %p95
    %p98 = scmp.ne.s32.totalorder %s81, %s97
    %p99 = scmp.eq.s32.totalorder %s21, 0
    %p100 = por %p98, %p99
    %s102 = sadd.s32 %s101, 1
    %p105 = scmp.eq.s32.totalorder %s15, 1
    %p106 = scmp.ne.s32.totalorder %s101, %s103
    %p107 = scmp.eq.s32.totalorder %s15, 0
    %p108 = por %p106, %p107
    %p109 = scmp.ne.s32.totalorder %s101, %s103
    %p110 = scmp.eq.s32.totalorder %s20, 1
    %p111 = por %p109, %p110
    %p112 = scmp.ne.s32.totalorder %s103, %s104
    %p113 = scmp.eq.s32.totalorder %s20, 0
    %p114 = por %p112, %p113
    %p115 = scmp.ne.s32.totalorder %s103, %s104
    %p116 = scmp.eq.s32.totalorder %s21, 1
    %p117 = por %p115, %p116
    %p119 = scmp.ne.s32.totalorder %s104, %s118
    %p120 = scmp.eq.s32.totalorder %s21, 0
    %p121 = por %p119, %p120
    %s123 = sadd.s32 %s122, 1
    %p126 = scmp.eq.s32.totalorder %s15, 1
    %p127 = scmp.ne.s32.totalorder %s122, %s124
    %p128 = scmp.eq.s32.totalorder %s15, 0
    %p129 = por %p127, %p128
    %p130 = scmp.ne.s32.totalorder %s122, %s124
    %p131 = scmp.eq.s32.totalorder %s20, 1
    %p132 = por %p130, %p131
    %p133 = scmp.ne.s32.totalorder %s124, %s125
    %p134 = scmp.eq.s32.totalorder %s20, 0
    %p135 = por %p133, %p134
    %p136 = scmp.ne.s32.totalorder %s124, %s125
    %p137 = scmp.eq.s32.totalorder %s21, 1
    %p138 = por %p136, %p137
    %p140 = scmp.ne.s32.totalorder %s125, %s139
    %p141 = scmp.eq.s32.totalorder %s21, 0
    %p142 = por %p140, %p141
    %s144 = sadd.s32 %s143, 1
    %p147 = scmp.eq.s32.totalorder %s15, 1
    %p148 = scmp.ne.s32.totalorder %s143, %s145
    %p149 = scmp.eq.s32.totalorder %s15, 0
    %p150 = por %p148, %p149
    %p151 = scmp.ne.s32.totalorder %s143, %s145
    %p152 = scmp.eq.s32.totalorder %s20, 1
    %p153 = por %p151, %p152
    %p154 = scmp.ne.s32.totalorder %s145, %s146
    %p155 = scmp.eq.s32.totalorder %s20, 0
    %p156 = por %p154, %p155
    %p157 = scmp.ne.s32.totalorder %s145, %s146
    %p158 = scmp.eq.s32.totalorder %s21, 1
    %p159 = por %p157, %p158
    %p161 = scmp.ne.s32.totalorder %s146, %s160
    %p162 = scmp.eq.s32.totalorder %s21, 0
    %p163 = por %p161, %p162
    %s165 = sadd.s32 %s164, 1
    %p168 = scmp.eq.s32.totalorder %s15, 1
    %p169 = scmp.ne.s32.totalorder %s164, %s166
    %p170 = scmp.eq.s32.totalorder %s15, 0
    %p171 = por %p169, %p170
    %p172 = scmp.ne.s32.totalorder %s164, %s166
    %p173 = scmp.eq.s32.totalorder %s20, 1
    %p174 = por %p172, %p173
    %p175 = scmp.ne.s32.totalorder %s166, %s167
    %p176 = scmp.eq.s32.totalorder %s20, 0
    %p177 = por %p175, %p176
    %p178 = scmp.ne.s32.totalorder %s166, %s167
    %p179 = scmp.eq.s32.totalorder %s21, 1
    %p180 = por %p178, %p179
    %p182 = scmp.ne.s32.totalorder %s167, %s181
    %p183 = scmp.eq.s32.totalorder %s21, 0
    %p184 = por %p182, %p183
    %s186 = sadd.s32 %s185, 1
    %p189 = scmp.eq.s32.totalorder %s15, 1
    %p190 = scmp.ne.s32.totalorder %s185, %s187
    %p191 = scmp.eq.s32.totalorder %s15, 0
    %p192 = por %p190, %p191
    %p193 = scmp.ne.s32.totalorder %s185, %s187
    %p194 = scmp.eq.s32.totalorder %s20, 1
    %p195 = por %p193, %p194
    %p196 = scmp.ne.s32.totalorder %s187, %s188
    %p197 = scmp.eq.s32.totalorder %s20, 0
    %p198 = por %p196, %p197
    %p199 = scmp.ne.s32.totalorder %s187, %s188
    %p200 = scmp.eq.s32.totalorder %s21, 1
    %p201 = por %p199, %p200
    %p203 = scmp.ne.s32.totalorder %s188, %s202
    %p204 = scmp.eq.s32.totalorder %s21, 0
    %p205 = por %p203, %p204
    %s207 = sadd.s32 %s206, 1
    %p210 = scmp.eq.s32.totalorder %s15, 1
    %p211 = scmp.ne.s32.totalorder %s206, %s208
    %p212 = scmp.eq.s32.totalorder %s15, 0
    %p213 = por %p211, %p212
    %p214 = scmp.ne.s32.totalorder %s206, %s208
    %p215 = scmp.eq.s32.totalorder %s20, 1
    %p216 = por %p214, %p215
    %p217 = scmp.ne.s32.totalorder %s208, %s209
    %p218 = scmp.eq.s32.totalorder %s20, 0
    %p219 = por %p217, %p218
    %p220 = scmp.ne.s32.totalorder %s208, %s209
    %p221 = scmp.eq.s32.totalorder %s21, 1
    %p222 = por %p220, %p221
    %p224 = scmp.ne.s32.totalorder %s209, %s223
    %p225 = scmp.eq.s32.totalorder %s21, 0
    %p226 = por %p224, %p225
    %s227 = ssub.s32 %s15, %s22
    %p228 = scmp.eq.s32.totalorder %s227, 0
    %s230 = sadd.s32 %s229, 1
    %s231 = scalar_select %p228, %s229, %s230
    %p234 = pneg %p228
    %p235 = scmp.eq.s32.totalorder %s15, 1
    %p236 = por %p234, %p235
    %p237 = scmp.ne.s32.totalorder %s229, %s232
    %p238 = scmp.eq.s32.totalorder %s15, 0
    %p239 = por %p237, %p238
    %p240 = scmp.ne.s32.totalorder %s229, %s232
    %p241 = scmp.eq.s32.totalorder %s20, 1
    %p242 = por %p240, %p241
    %p243 = scmp.ne.s32.totalorder %s232, %s233
    %p244 = scmp.eq.s32.totalorder %s20, 0
    %p245 = por %p243, %p244
    %p246 = scmp.ne.s32.totalorder %s232, %s233
    %p247 = scmp.eq.s32.totalorder %s21, 1
    %p248 = por %p246, %p247
    %p250 = scmp.ne.s32.totalorder %s233, %s249
    %p251 = scmp.eq.s32.totalorder %s21, 0
    %p252 = por %p250, %p251
    %p253 = scmp.le.s32.totalorder 1, %s15
    %p254 = scmp.lt.s32.totalorder %s15, 3
    %p255 = pnand %p253, %p254
    %p256 = pneg %p255
    // Predicated region
    $region9: #{_lambda_.17} parent=5 // pred_check
      _
    $region10: #{_lambda_.17} parent=5 // pred_check_branch
      %258 = sbr.rel (%p255) target = $region12
    $region11: #{_lambda_.17} parent=5 // pred_region
      %s259 = ssub.s32 %s15, 1
      // Predicated region
      $region13: #{_lambda_.17} parent=11 // pred_check
        %p260 = pneg %p114
      $region14: #{_lambda_.17} parent=11 // pred_check_branch
        %262 = sbr.rel (%p260) target = $region16
      $region15: #{_lambda_.17} parent=11 // pred_region
        _
      $region16: #{_lambda_.17} parent=11 // pred_fallthru
        _
      // Predicated region
      $region17: #{_lambda_.17} parent=11 // pred_check
        %p263 = pneg %p135
      $region18: #{_lambda_.17} parent=11 // pred_check_branch
        %265 = sbr.rel (%p263) target = $region20
      $region19: #{_lambda_.17} parent=11 // pred_region
        _
      $region20: #{_lambda_.17} parent=11 // pred_fallthru
        _
      // Predicated region
      $region21: #{_lambda_.17} parent=11 // pred_check
        %p266 = pneg %p156
      $region22: #{_lambda_.17} parent=11 // pred_check_branch
        %268 = sbr.rel (%p266) target = $region24
      $region23: #{_lambda_.17} parent=11 // pred_region
        _
      $region24: #{_lambda_.17} parent=11 // pred_fallthru
        _
      // Predicated region
      $region25: #{_lambda_.17} parent=11 // pred_check
        %p269 = pneg %p177
      $region26: #{_lambda_.17} parent=11 // pred_check_branch
        %271 = sbr.rel (%p269) target = $region28
      $region27: #{_lambda_.17} parent=11 // pred_region
        _
      $region28: #{_lambda_.17} parent=11 // pred_fallthru
        _
      // Predicated region
      $region29: #{_lambda_.17} parent=11 // pred_check
        %p272 = pneg %p198
      $region30: #{_lambda_.17} parent=11 // pred_check_branch
        %274 = sbr.rel (%p272) target = $region32
      $region31: #{_lambda_.17} parent=11 // pred_region
        _
      $region32: #{_lambda_.17} parent=11 // pred_fallthru
        _
      // Predicated region
      $region33: #{_lambda_.17} parent=11 // pred_check
        %p275 = pneg %p219
      $region34: #{_lambda_.17} parent=11 // pred_check_branch
        %277 = sbr.rel (%p275) target = $region36
      $region35: #{_lambda_.17} parent=11 // pred_region
        _
      $region36: #{_lambda_.17} parent=11 // pred_fallthru
        _
    $region12: #{_lambda_.17} parent=5 // pred_fallthru
      _
    %p278 = scmp.lt.s32.totalorder %s15, 2
    // Predicated region
    $region37: #{_lambda_.17} parent=5 // pred_check
      %p279 = pneg %p278
    $region38: #{_lambda_.17} parent=5 // pred_check_branch
      %281 = sbr.rel (%p279) target = $region40
    $region39: #{_lambda_.17} parent=5 // pred_region
      // Predicated region
      $region41: #{_lambda_.17} parent=39 // pred_check
        %p282 = pneg %p35
      $region42: #{_lambda_.17} parent=39 // pred_check_branch
        %284 = sbr.rel (%p282) target = $region44
      $region43: #{_lambda_.17} parent=39 // pred_region
        %p285 = scmp.lt.s32.totalorder %s15, 1
        %s286 = scalar_select %p285, %s15, 1
        %s287 = smul.addr %s286, 2
        %s288 = smul.addr %s287, 8
        %s289 = scalar_lea.vmem %s0, %s288
      $region44: #{_lambda_.17} parent=39 // pred_fallthru
        _
      // Predicated region
      $region45: #{_lambda_.17} parent=39 // pred_check
        %p290 = pneg %p61
      $region46: #{_lambda_.17} parent=39 // pred_check_branch
        %292 = sbr.rel (%p290) target = $region48
      $region47: #{_lambda_.17} parent=39 // pred_region
        %p293 = scmp.lt.s32.totalorder %s15, 1
        %s294 = scalar_select %p293, %s15, 1
        %s295 = smul.addr %s294, 2
        %s296 = smul.addr %s295, 8
        %s297 = scalar_lea.vmem %s1, %s296
      $region48: #{_lambda_.17} parent=39 // pred_fallthru
        _
      // Predicated region
      $region49: #{_lambda_.17} parent=39 // pred_check
        %p298 = pneg %p87
      $region50: #{_lambda_.17} parent=39 // pred_check_branch
        %300 = sbr.rel (%p298) target = $region52
      $region51: #{_lambda_.17} parent=39 // pred_region
        %p301 = scmp.lt.s32.totalorder %s15, 1
        %s302 = scalar_select %p301, %s15, 1
        %s303 = smul.addr %s302, 2
        %s304 = smul.addr %s303, 8
        %s305 = scalar_lea.vmem %s2, %s304
      $region52: #{_lambda_.17} parent=39 // pred_fallthru
        _
    $region40: #{_lambda_.17} parent=5 // pred_fallthru
      _
    %p306 = scmp.le.s32.totalorder 1, %s15
    %p307 = scmp.lt.s32.totalorder %s15, 3
    %p308 = pnand %p306, %p307
    %p309 = pneg %p308
    // Predicated region
    $region53: #{_lambda_.17} parent=5 // pred_check
      _
    $region54: #{_lambda_.17} parent=5 // pred_check_branch
      %311 = sbr.rel (%p308) target = $region56
    $region55: #{_lambda_.17} parent=5 // pred_region
      %s312 = ssub.s32 %s15, 1
      %p313 = scmp.lt.s32.totalorder %s20, 1
      %s314 = scalar_select %p313, %s20, 1
      %s315 = smul.addr %s314, 2
      %s316 = smul.addr %s315, 8
      %s317 = scalar_lea.vmem %s0, %s316
      %p318 = pneg %p41
      %p319 = pneg %p38
      %p320 = scmp.lt.s32.totalorder %s20, 1
      %s321 = scalar_select %p320, %s20, 1
      %s322 = smul.addr %s321, 2
      %s323 = smul.addr %s322, 8
      %s324 = scalar_lea.vmem %s1, %s323
      %p325 = pneg %p67
      %p326 = pneg %p64
      %p327 = scmp.lt.s32.totalorder %s20, 1
      %s328 = scalar_select %p327, %s20, 1
      %s329 = smul.addr %s328, 2
      %s330 = smul.addr %s329, 8
      %s331 = scalar_lea.vmem %s2, %s330
      %p332 = pneg %p93
      %p333 = pneg %p90
      %p334 = pneg %p114
      %p335 = pneg %p111
      %p336 = pneg %p135
      %p337 = pneg %p132
      %p338 = pneg %p156
      %p339 = pneg %p153
      %p340 = pneg %p177
      %p341 = pneg %p174
      %p342 = pneg %p198
      %p343 = pneg %p195
      %p344 = pneg %p219
      %p345 = pneg %p216
      %p346 = pneg %p245
      %p347 = pneg %p242
      %p348 = scmp.lt.s32.totalorder %s20, 1
      %s349 = scalar_select %p348, %s20, 1
      %s350 = smul.addr %s349, 2
      %s351 = smul.addr %s350, 8
      %s352 = scalar_lea.vmem %s9, %s351
      %p353 = scmp.lt.s32.totalorder %s20, 1
      %s354 = scalar_select %p353, %s20, 1
      %s355 = smul.addr %s354, 2
      %s356 = smul.addr %s355, 8
      %s357 = scalar_lea.vmem %s0, %s356
      %p358 = scmp.lt.s32.totalorder %s20, 1
      %s359 = scalar_select %p358, %s20, 1
      %s360 = smul.addr %s359, 2
      %s361 = smul.addr %s360, 8
      %s362 = scalar_lea.vmem %s1, %s361
      %p363 = scmp.lt.s32.totalorder %s20, 1
      %s364 = scalar_select %p363, %s20, 1
      %s365 = smul.addr %s364, 2
      %s366 = smul.addr %s365, 8
      %s367 = scalar_lea.vmem %s2, %s366
      %p368 = scmp.lt.s32.totalorder %s20, 1
      %s369 = scalar_select %p368, %s20, 1
      %s370 = smul.addr %s369, 2
      %s371 = smul.addr %s370, 8
      %s372 = scalar_lea.vmem %s9, %s371
      %v373 = vld [vmem:[%s367] sm:$0xff]
      %v374 = vld [vmem:[%s367 + $0x8] sm:$0xff]
      %v375 = vld [vmem:[%s362] sm:$0xff]
      %v376 = vld [vmem:[%s362 + $0x8] sm:$0xff]
      %v377 = vadd.f32 %v373, %v375
      %v378 = vadd.f32 %v374, %v376
      %v379 = vld [vmem:[%s5] sm:$0x1]
      %v380 = vld [vmem:[%s6] sm:$0x1]
      %381 = vadd.xlane.f32.xlu0 %v377
      %v382 = vpop.xlane.xlu0 %381
      %383 = vadd.xlane.f32.xlu0 %v378
      %v384 = vpop.xlane.xlu0 %383
      %v385 = vrcp.pop 32.0
      %v386 = vmul.f32 32.0, %v385
      %v387 = vsub.f32 1.0, %v386
      %v388 = vmul.f32 %v385, %v387
      %v389 = vadd.f32 %v385, %v388
      %vm390 = vweird.f32 %v385
      %v391 = vsel %vm390, %v385, %v389
      %v392 = vmul.f32 %v382, %v391
      %v393 = vmul.f32 %v384, %v391
      %v394 = vmul.f32 %v377, %v377
      %v395 = vmul.f32 %v378, %v378
      %396 = vadd.xlane.f32.xlu0 %v394
      %v397 = vpop.xlane.xlu0 %396
      %398 = vadd.xlane.f32.xlu0 %v395
      %v399 = vpop.xlane.xlu0 %398
      %v400 = vmul.f32 %v397, %v391
      %v401 = vmul.f32 %v399, %v391
      %v402 = vmul.f32 %v392, %v392
      %v403 = vmul.f32 %v393, %v393
      %v404 = vsub.f32 %v400, %v402
      %v405 = vsub.f32 %v401, %v403
      %v406 = vsub.f32 %v377, %v392
      %v407 = vsub.f32 %v378, %v393
      %v408 = vadd.f32 %v404, 1e-05
      %v409 = vadd.f32 %v405, 1e-05
      %v410 = vrsqrt.pop %v408
      %v411 = vmul.f32 %v410, %v408
      %v412 = vmul.f32 %v411, %v410
      %v413 = vmul.f32 0.5, %v412
      %v414 = vsub.f32 1.5, %v413
      %v415 = vmul.f32 %v410, %v414
      %vm416 = vweird.f32 %v408
      %vm417 = vweird.f32 %v410
      %vm418 = vmor %vm416, %vm417
      %v419 = vsel %vm418, %v410, %v415
      %v420 = vrsqrt.pop %v409
      %v421 = vmul.f32 %v420, %v409
      %v422 = vmul.f32 %v421, %v420
      %v423 = vmul.f32 0.5, %v422
      %v424 = vsub.f32 1.5, %v423
      %v425 = vmul.f32 %v420, %v424
      %vm426 = vweird.f32 %v409
      %vm427 = vweird.f32 %v420
      %vm428 = vmor %vm426, %vm427
      %v429 = vsel %vm428, %v420, %v425
      %v430 = vmul.f32 %v406, %v419
      %v431 = vmul.f32 %v407, %v429
      %v433 = vperm.slane %v379, 0
      %v435 = vmul.f32 %v430, %v433
      %v436 = vmul.f32 %v431, %v433
      %v438 = vperm.slane %v380, 0
      %v440 = vadd.f32 %v435, %v438
      %v441 = vadd.f32 %v436, %v438
      %v442 = vld [vmem:[%s357] sm:$0xff]
      %v443 = vld [vmem:[%s357 + $0x8] sm:$0xff]
      %v444 = vld [vmem:[%s3] sm:$0xff]
      %v445 = vld [vmem:[%s3 + $0x8] sm:$0xff]
      %v446 = vld [vmem:[%s3 + $0x10] sm:$0xff]
      %v447 = vld [vmem:[%s3 + $0x18] sm:$0xff]
      %v448 = vld [vmem:[%s3 + $0x20] sm:$0xff]
      %v449 = vld [vmem:[%s3 + $0x28] sm:$0xff]
      %v450 = vld [vmem:[%s3 + $0x30] sm:$0xff]
      %v451 = vld [vmem:[%s3 + $0x38] sm:$0xff]
      %v452 = vld [vmem:[%s3 + $0x40] sm:$0xff]
      %v453 = vld [vmem:[%s3 + $0x48] sm:$0xff]
      %v454 = vld [vmem:[%s3 + $0x50] sm:$0xff]
      %v455 = vld [vmem:[%s3 + $0x58] sm:$0xff]
      %v456 = vld [vmem:[%s3 + $0x60] sm:$0xff]
      %v457 = vld [vmem:[%s3 + $0x68] sm:$0xff]
      %v458 = vld [vmem:[%s3 + $0x70] sm:$0xff]
      %v459 = vld [vmem:[%s3 + $0x78] sm:$0xff]
      %v460 = vld [vmem:[%s4] sm:$0x1]
      %vm461 = vcmask 130048
      %v462 = vsel %vm461, %v442, 0.0
      %463 = vadd.xlane.f32.xlu0 %v462
      %v464 = vpop.xlane.xlu0 %463
      %v465 = vsel %vm461, %v443, 0.0
      %466 = vadd.xlane.f32.xlu0 %v465
      %v467 = vpop.xlane.xlu0 %466
      %v468 = vmax.f32 %v464, 1e-12
      %v469 = vmax.f32 %v467, 1e-12
      %v470 = vrcp.pop %v468
      %v471 = vrcp.pop %v469
      %v472 = vmul.f32 %v440, %v470
      %v473 = vmul.f32 %v441, %v471
      %v475 = vsel %vm461, %v442, 0
      %v478 = vsel %vm461, %v443, 0
      %480 = vmatpush.msra.mxu0 0.0
      %481 = vmatpush.msra.mxu0 0.0
      %482 = vmatpush.msra.mxu0 0.0
      %483 = vmatpush.msra.mxu0 0.0
      %484 = vmatpush.msra.mxu0 0.0
      %485 = vmatpush.msra.mxu0 0.0
      %486 = vmatpush.msra.mxu0 0.0
      %487 = vmatpush.msra.mxu0 0.0
      %488 = vmatpush.msra.mxu0 0.0
      %489 = vmatpush.msra.mxu0 0.0
      %490 = vmatpush.msra.mxu0 0.0
      %491 = vmatpush.msra.mxu0 0.0
      %492 = vmatpush.msra.mxu0 0.0
      %493 = vmatpush.msra.mxu0 0.0
      %494 = vmatpush.msra.mxu0 %v473
      %495 = vmatpush.msra.mxu0 %v472
      %496 = vmatmul.f32.gmra.mxu0 %v475
      %v497 = vpop.f32.mrf.mxu0
      %v498 = vadd.f32 0.0, %v497
      %499 = vmatmul.f32.gmra.mxu0 %v478
      %v500 = vpop.f32.mrf.mxu0
      %v501 = vadd.f32 0.0, %v500
      %502 = vdwg.mxu0
      %v504 = vperm.slane %v460, 0
      %506 = vmatpush.msra.mxu0 %v459
      %507 = vmatpush.msra.mxu0 %v458
      %508 = vmatpush.msra.mxu0 %v457
      %509 = vmatpush.msra.mxu0 %v456
      %510 = vmatpush.msra.mxu0 %v455
      %511 = vmatpush.msra.mxu0 %v454
      %512 = vmatpush.msra.mxu0 %v453
      %513 = vmatpush.msra.mxu0 %v452
      %514 = vmatpush.msra.mxu0 %v451
      %515 = vmatpush.msra.mxu0 %v450
      %516 = vmatpush.msra.mxu0 %v449
      %517 = vmatpush.msra.mxu0 %v448
      %518 = vmatpush.msra.mxu0 %v447
      %519 = vmatpush.msra.mxu0 %v446
      %520 = vmatpush.msra.mxu0 %v445
      %521 = vmatpush.msra.mxu0 %v444
      %522 = vmatmul.f32.gmra.mxu0 %v498
      %v523 = vpop.f32.mrf.mxu0
      %v524 = vadd.f32 %v504, %v523
      %525 = vmatmul.f32.gmra.mxu0 %v501
      %v526 = vpop.f32.mrf.mxu0
      %v527 = vadd.f32 %v504, %v526
      %528 = vdwg.mxu0
      %vm529 = vcmp.gt.f32.partialorder %v524, 0.0
      %vm530 = vcmp.gt.f32.partialorder %v527, 0.0
      %v531 = vmin.f32 %v524, 0.0
      %v532 = vmin.f32 %v527, 0.0
      %v533 = vmul.f32 %v531, 1.442695
      %v534 = vpow.pop %v533
      %v535 = vmul.f32 %v532, 1.442695
      %v536 = vpow.pop %v535
      %v537 = vsub.f32 %v534, 1.0
      %v538 = vsub.f32 %v536, 1.0
      %v539 = vsel %vm529, %v524, %v537
      %v540 = vsel %vm530, %v527, %v538
      %v541 = vadd.f32 %v539, %v440
      %v542 = vadd.f32 %v540, %v441
      %v543 = vld [vmem:[%s7] sm:$0x1]
      %v544 = vld [vmem:[%s8] sm:$0x1]
      %545 = vadd.xlane.f32.xlu0 %v541
      %v546 = vpop.xlane.xlu0 %545
      %547 = vadd.xlane.f32.xlu0 %v542
      %v548 = vpop.xlane.xlu0 %547
      %v549 = vmul.f32 %v546, %v391
      %v550 = vmul.f32 %v548, %v391
      %v551 = vmul.f32 %v541, %v541
      %v552 = vmul.f32 %v542, %v542
      %553 = vadd.xlane.f32.xlu0 %v551
      %v554 = vpop.xlane.xlu0 %553
      %555 = vadd.xlane.f32.xlu0 %v552
      %v556 = vpop.xlane.xlu0 %555
      %v557 = vmul.f32 %v554, %v391
      %v558 = vmul.f32 %v556, %v391
      %v559 = vmul.f32 %v549, %v549
      %v560 = vmul.f32 %v550, %v550
      %v561 = vsub.f32 %v557, %v559
      %v562 = vsub.f32 %v558, %v560
      %v563 = vsub.f32 %v541, %v549
      %v564 = vsub.f32 %v542, %v550
      %v565 = vadd.f32 %v561, 1e-05
      %v566 = vadd.f32 %v562, 1e-05
      %v567 = vrsqrt.pop %v565
      %v568 = vmul.f32 %v567, %v565
      %v569 = vmul.f32 %v568, %v567
      %v570 = vmul.f32 0.5, %v569
      %v571 = vsub.f32 1.5, %v570
      %v572 = vmul.f32 %v567, %v571
      %vm573 = vweird.f32 %v565
      %vm574 = vweird.f32 %v567
      %vm575 = vmor %vm573, %vm574
      %v576 = vsel %vm575, %v567, %v572
      %v577 = vrsqrt.pop %v566
      %v578 = vmul.f32 %v577, %v566
      %v579 = vmul.f32 %v578, %v577
      %v580 = vmul.f32 0.5, %v579
      %v581 = vsub.f32 1.5, %v580
      %v582 = vmul.f32 %v577, %v581
      %vm583 = vweird.f32 %v566
      %vm584 = vweird.f32 %v577
      %vm585 = vmor %vm583, %vm584
      %v586 = vsel %vm585, %v577, %v582
      %v587 = vmul.f32 %v563, %v576
      %v588 = vmul.f32 %v564, %v586
      %v590 = vperm.slane %v543, 0
      %v592 = vmul.f32 %v587, %v590
      %v593 = vmul.f32 %v588, %v590
      %v595 = vperm.slane %v544, 0
      %v597 = vadd.f32 %v592, %v595
      %v598 = vadd.f32 %v593, %v595
      %599 = vst [vmem:[%s372] sm:$0xff] %v597
      %600 = vst [vmem:[%s372 + $0x8] sm:$0xff] %v598
      %p601 = scmp.lt.s32.totalorder %s20, 1
      %s602 = scalar_select %p601, %s20, 1
      %s603 = smul.addr %s602, 2
      %s604 = smul.addr %s603, 8
      %s605 = scalar_lea.vmem %s9, %s604
      // Predicated region
      $region57: #{_lambda_.17} parent=55 // pred_check
        %p606 = pneg %p242
      $region58: #{_lambda_.17} parent=55 // pred_check_branch
        %608 = sbr.rel (%p606) target = $region60
      $region59: #{_lambda_.17} parent=55 // pred_region
        _
      $region60: #{_lambda_.17} parent=55 // pred_fallthru
        _
    $region56: #{_lambda_.17} parent=5 // pred_fallthru
      _
    %p609 = scmp.le.s32.totalorder 2, %s15
    // Predicated region
    $region61: #{_lambda_.17} parent=5 // pred_check
      %p610 = pneg %p609
    $region62: #{_lambda_.17} parent=5 // pred_check_branch
      %612 = sbr.rel (%p610) target = $region64
    $region63: #{_lambda_.17} parent=5 // pred_region
      %s613 = ssub.s32 %s15, 2
      // Predicated region
      $region65: #{_lambda_.17} parent=63 // pred_check
        %p614 = pneg %p248
      $region66: #{_lambda_.17} parent=63 // pred_check_branch
        %616 = sbr.rel (%p614) target = $region68
      $region67: #{_lambda_.17} parent=63 // pred_region
        %p617 = scmp.lt.s32.totalorder %s21, 1
        %s618 = scalar_select %p617, %s21, 1
        %s619 = smul.addr %s618, 2
        %s620 = smul.addr %s619, 8
        %s621 = scalar_lea.vmem %s9, %s620
      $region68: #{_lambda_.17} parent=63 // pred_fallthru
        _
    $region64: #{_lambda_.17} parent=5 // pred_fallthru
      _
  $region6: #{_lambda_.17} parent=0 // loop_footer
    %s19 = sadd.s32 1, %s15
  $region7: #{_lambda_.17} parent=0 // loop_footer_branch
    %14 = sbr.rel target = $region3
  $region8: #{_lambda_.17} parent=0 // loop_exit
    _

// kernel: _lambda_.18
$region0: #{_lambda_.18}
  #allocation0 [shape = 'u32[]', space=smem, size = 0x4, offset = 0x4, fixed_abs, tag = 'smem constant byte address 0x4 - core index']
  #allocation1 [shape = 'u32[72,128]{1,0:T(1,128)}', space=vmem, size = 0x9000, scoped, tag = 'internal scratch']
  %s0 = inlined_call_operand.vmem [shape: f32[2,16,128], index: 0, kind: input, shape index: {}]
  %s1 = inlined_call_operand.vmem [shape: f32[2,16,128], index: 1, kind: input, shape index: {}]
  %s2 = inlined_call_operand.vmem [shape: f32[2,16,128], index: 2, kind: input, shape index: {}]
  %s3 = inlined_call_operand.vmem [shape: f32[1,128], index: 3, kind: input, shape index: {}]
  %s4 = inlined_call_operand.vmem [shape: f32[1,128], index: 4, kind: input, shape index: {}]
  %s5 = inlined_call_operand.vmem [shape: f32[1,128], index: 5, kind: input, shape index: {}]
  %s6 = inlined_call_operand.vmem [shape: f32[1,128], index: 6, kind: input, shape index: {}]
  %s7 = inlined_call_operand.vmem [shape: f32[128,128], index: 7, kind: input, shape index: {}]
  %s8 = inlined_call_operand.vmem [shape: f32[1,128], index: 8, kind: input, shape index: {}]
  %s9 = inlined_call_operand.vmem [shape: f32[128,128], index: 9, kind: input, shape index: {}]
  %s10 = inlined_call_operand.vmem [shape: f32[1,128], index: 10, kind: input, shape index: {}]
  %s11 = inlined_call_operand.vmem [shape: f32[2,16,16], index: 11, kind: output, shape index: {}]
  %s12 = sld [smem:[#allocation0]]
  $region77: #{_lambda_.18} parent=0
    _
  %s14 = ssub.s32 1, %s12
  %s15 = scalar_select 0, %s14, %s12
  loop: start=0, step=1, limit=4
  $region2: #{_lambda_.18} parent=0 // loop_pre_header
    _
  $region3: #{_lambda_.18} parent=0 // loop_header
    %s17 = sphi 0, %s21
    %p18 = scmp.ge.s32.totalorder %s17, 4
    %s27 = sphi 0, %s29
    %s30 = sphi 0, %s27
    %s31 = sphi 0, %s30
    %s47 = sphi 0, %s31
    %s53 = sphi 0, %s55
    %s56 = sphi 0, %s53
    %s57 = sphi 0, %s56
    %s73 = sphi 0, %s57
    %s79 = sphi 0, %s81
    %s82 = sphi 0, %s79
    %s83 = sphi 0, %s82
    %s99 = sphi 0, %s83
    %s103 = sphi 0, %s103
    %s105 = sphi 0, %s103
    %s106 = sphi 0, %s105
    %s120 = sphi 0, %s106
    %s124 = sphi 0, %s124
    %s126 = sphi 0, %s124
    %s127 = sphi 0, %s126
    %s141 = sphi 0, %s127
    %s145 = sphi 0, %s145
    %s147 = sphi 0, %s145
    %s148 = sphi 0, %s147
    %s162 = sphi 0, %s148
    %s166 = sphi 0, %s166
    %s168 = sphi 0, %s166
    %s169 = sphi 0, %s168
    %s183 = sphi 0, %s169
    %s187 = sphi 0, %s187
    %s189 = sphi 0, %s187
    %s190 = sphi 0, %s189
    %s204 = sphi 0, %s190
    %s208 = sphi 0, %s208
    %s210 = sphi 0, %s208
    %s211 = sphi 0, %s210
    %s225 = sphi 0, %s211
    %s229 = sphi 0, %s229
    %s231 = sphi 0, %s229
    %s232 = sphi 0, %s231
    %s246 = sphi 0, %s232
    %s250 = sphi 0, %s250
    %s252 = sphi 0, %s250
    %s253 = sphi 0, %s252
    %s267 = sphi 0, %s253
    %s273 = sphi 0, %s275
    %s276 = sphi 0, %s273
    %s277 = sphi 0, %s276
    %s293 = sphi 0, %s277
  $region4: #{_lambda_.18} parent=0 // loop_header_branch
    %20 = sbr.rel (%p18) target = $region8
  $region5: #{_lambda_.18} parent=0 // loop_body
    %s22 = ssub.s32 %s17, 1
    %s23 = ssub.s32 %s17, 2
    %s24 = sadd.s32 %s17, 1
    %s25 = ssub.s32 %s17, %s24
    %p26 = scmp.eq.s32.totalorder %s25, 0
    %s28 = sadd.s32 %s27, 1
    %s29 = scalar_select %p26, %s27, %s28
    %p32 = pneg %p26
    %p33 = scmp.eq.s32.totalorder %s17, 1
    %p34 = por %p32, %p33
    %p35 = scmp.ne.s32.totalorder %s27, %s30
    %p36 = scmp.eq.s32.totalorder %s17, 0
    %p37 = por %p35, %p36
    %p38 = scmp.ne.s32.totalorder %s27, %s30
    %p39 = scmp.eq.s32.totalorder %s22, 1
    %p40 = por %p38, %p39
    %p41 = scmp.ne.s32.totalorder %s30, %s31
    %p42 = scmp.eq.s32.totalorder %s22, 0
    %p43 = por %p41, %p42
    %p44 = scmp.ne.s32.totalorder %s30, %s31
    %p45 = scmp.eq.s32.totalorder %s23, 1
    %p46 = por %p44, %p45
    %p48 = scmp.ne.s32.totalorder %s31, %s47
    %p49 = scmp.eq.s32.totalorder %s23, 0
    %p50 = por %p48, %p49
    %s51 = ssub.s32 %s17, %s24
    %p52 = scmp.eq.s32.totalorder %s51, 0
    %s54 = sadd.s32 %s53, 1
    %s55 = scalar_select %p52, %s53, %s54
    %p58 = pneg %p52
    %p59 = scmp.eq.s32.totalorder %s17, 1
    %p60 = por %p58, %p59
    %p61 = scmp.ne.s32.totalorder %s53, %s56
    %p62 = scmp.eq.s32.totalorder %s17, 0
    %p63 = por %p61, %p62
    %p64 = scmp.ne.s32.totalorder %s53, %s56
    %p65 = scmp.eq.s32.totalorder %s22, 1
    %p66 = por %p64, %p65
    %p67 = scmp.ne.s32.totalorder %s56, %s57
    %p68 = scmp.eq.s32.totalorder %s22, 0
    %p69 = por %p67, %p68
    %p70 = scmp.ne.s32.totalorder %s56, %s57
    %p71 = scmp.eq.s32.totalorder %s23, 1
    %p72 = por %p70, %p71
    %p74 = scmp.ne.s32.totalorder %s57, %s73
    %p75 = scmp.eq.s32.totalorder %s23, 0
    %p76 = por %p74, %p75
    %s77 = ssub.s32 %s17, %s24
    %p78 = scmp.eq.s32.totalorder %s77, 0
    %s80 = sadd.s32 %s79, 1
    %s81 = scalar_select %p78, %s79, %s80
    %p84 = pneg %p78
    %p85 = scmp.eq.s32.totalorder %s17, 1
    %p86 = por %p84, %p85
    %p87 = scmp.ne.s32.totalorder %s79, %s82
    %p88 = scmp.eq.s32.totalorder %s17, 0
    %p89 = por %p87, %p88
    %p90 = scmp.ne.s32.totalorder %s79, %s82
    %p91 = scmp.eq.s32.totalorder %s22, 1
    %p92 = por %p90, %p91
    %p93 = scmp.ne.s32.totalorder %s82, %s83
    %p94 = scmp.eq.s32.totalorder %s22, 0
    %p95 = por %p93, %p94
    %p96 = scmp.ne.s32.totalorder %s82, %s83
    %p97 = scmp.eq.s32.totalorder %s23, 1
    %p98 = por %p96, %p97
    %p100 = scmp.ne.s32.totalorder %s83, %s99
    %p101 = scmp.eq.s32.totalorder %s23, 0
    %p102 = por %p100, %p101
    %s104 = sadd.s32 %s103, 1
    %p107 = scmp.eq.s32.totalorder %s17, 1
    %p108 = scmp.ne.s32.totalorder %s103, %s105
    %p109 = scmp.eq.s32.totalorder %s17, 0
    %p110 = por %p108, %p109
    %p111 = scmp.ne.s32.totalorder %s103, %s105
    %p112 = scmp.eq.s32.totalorder %s22, 1
    %p113 = por %p111, %p112
    %p114 = scmp.ne.s32.totalorder %s105, %s106
    %p115 = scmp.eq.s32.totalorder %s22, 0
    %p116 = por %p114, %p115
    %p117 = scmp.ne.s32.totalorder %s105, %s106
    %p118 = scmp.eq.s32.totalorder %s23, 1
    %p119 = por %p117, %p118
    %p121 = scmp.ne.s32.totalorder %s106, %s120
    %p122 = scmp.eq.s32.totalorder %s23, 0
    %p123 = por %p121, %p122
    %s125 = sadd.s32 %s124, 1
    %p128 = scmp.eq.s32.totalorder %s17, 1
    %p129 = scmp.ne.s32.totalorder %s124, %s126
    %p130 = scmp.eq.s32.totalorder %s17, 0
    %p131 = por %p129, %p130
    %p132 = scmp.ne.s32.totalorder %s124, %s126
    %p133 = scmp.eq.s32.totalorder %s22, 1
    %p134 = por %p132, %p133
    %p135 = scmp.ne.s32.totalorder %s126, %s127
    %p136 = scmp.eq.s32.totalorder %s22, 0
    %p137 = por %p135, %p136
    %p138 = scmp.ne.s32.totalorder %s126, %s127
    %p139 = scmp.eq.s32.totalorder %s23, 1
    %p140 = por %p138, %p139
    %p142 = scmp.ne.s32.totalorder %s127, %s141
    %p143 = scmp.eq.s32.totalorder %s23, 0
    %p144 = por %p142, %p143
    %s146 = sadd.s32 %s145, 1
    %p149 = scmp.eq.s32.totalorder %s17, 1
    %p150 = scmp.ne.s32.totalorder %s145, %s147
    %p151 = scmp.eq.s32.totalorder %s17, 0
    %p152 = por %p150, %p151
    %p153 = scmp.ne.s32.totalorder %s145, %s147
    %p154 = scmp.eq.s32.totalorder %s22, 1
    %p155 = por %p153, %p154
    %p156 = scmp.ne.s32.totalorder %s147, %s148
    %p157 = scmp.eq.s32.totalorder %s22, 0
    %p158 = por %p156, %p157
    %p159 = scmp.ne.s32.totalorder %s147, %s148
    %p160 = scmp.eq.s32.totalorder %s23, 1
    %p161 = por %p159, %p160
    %p163 = scmp.ne.s32.totalorder %s148, %s162
    %p164 = scmp.eq.s32.totalorder %s23, 0
    %p165 = por %p163, %p164
    %s167 = sadd.s32 %s166, 1
    %p170 = scmp.eq.s32.totalorder %s17, 1
    %p171 = scmp.ne.s32.totalorder %s166, %s168
    %p172 = scmp.eq.s32.totalorder %s17, 0
    %p173 = por %p171, %p172
    %p174 = scmp.ne.s32.totalorder %s166, %s168
    %p175 = scmp.eq.s32.totalorder %s22, 1
    %p176 = por %p174, %p175
    %p177 = scmp.ne.s32.totalorder %s168, %s169
    %p178 = scmp.eq.s32.totalorder %s22, 0
    %p179 = por %p177, %p178
    %p180 = scmp.ne.s32.totalorder %s168, %s169
    %p181 = scmp.eq.s32.totalorder %s23, 1
    %p182 = por %p180, %p181
    %p184 = scmp.ne.s32.totalorder %s169, %s183
    %p185 = scmp.eq.s32.totalorder %s23, 0
    %p186 = por %p184, %p185
    %s188 = sadd.s32 %s187, 1
    %p191 = scmp.eq.s32.totalorder %s17, 1
    %p192 = scmp.ne.s32.totalorder %s187, %s189
    %p193 = scmp.eq.s32.totalorder %s17, 0
    %p194 = por %p192, %p193
    %p195 = scmp.ne.s32.totalorder %s187, %s189
    %p196 = scmp.eq.s32.totalorder %s22, 1
    %p197 = por %p195, %p196
    %p198 = scmp.ne.s32.totalorder %s189, %s190
    %p199 = scmp.eq.s32.totalorder %s22, 0
    %p200 = por %p198, %p199
    %p201 = scmp.ne.s32.totalorder %s189, %s190
    %p202 = scmp.eq.s32.totalorder %s23, 1
    %p203 = por %p201, %p202
    %p205 = scmp.ne.s32.totalorder %s190, %s204
    %p206 = scmp.eq.s32.totalorder %s23, 0
    %p207 = por %p205, %p206
    %s209 = sadd.s32 %s208, 1
    %p212 = scmp.eq.s32.totalorder %s17, 1
    %p213 = scmp.ne.s32.totalorder %s208, %s210
    %p214 = scmp.eq.s32.totalorder %s17, 0
    %p215 = por %p213, %p214
    %p216 = scmp.ne.s32.totalorder %s208, %s210
    %p217 = scmp.eq.s32.totalorder %s22, 1
    %p218 = por %p216, %p217
    %p219 = scmp.ne.s32.totalorder %s210, %s211
    %p220 = scmp.eq.s32.totalorder %s22, 0
    %p221 = por %p219, %p220
    %p222 = scmp.ne.s32.totalorder %s210, %s211
    %p223 = scmp.eq.s32.totalorder %s23, 1
    %p224 = por %p222, %p223
    %p226 = scmp.ne.s32.totalorder %s211, %s225
    %p227 = scmp.eq.s32.totalorder %s23, 0
    %p228 = por %p226, %p227
    %s230 = sadd.s32 %s229, 1
    %p233 = scmp.eq.s32.totalorder %s17, 1
    %p234 = scmp.ne.s32.totalorder %s229, %s231
    %p235 = scmp.eq.s32.totalorder %s17, 0
    %p236 = por %p234, %p235
    %p237 = scmp.ne.s32.totalorder %s229, %s231
    %p238 = scmp.eq.s32.totalorder %s22, 1
    %p239 = por %p237, %p238
    %p240 = scmp.ne.s32.totalorder %s231, %s232
    %p241 = scmp.eq.s32.totalorder %s22, 0
    %p242 = por %p240, %p241
    %p243 = scmp.ne.s32.totalorder %s231, %s232
    %p244 = scmp.eq.s32.totalorder %s23, 1
    %p245 = por %p243, %p244
    %p247 = scmp.ne.s32.totalorder %s232, %s246
    %p248 = scmp.eq.s32.totalorder %s23, 0
    %p249 = por %p247, %p248
    %s251 = sadd.s32 %s250, 1
    %p254 = scmp.eq.s32.totalorder %s17, 1
    %p255 = scmp.ne.s32.totalorder %s250, %s252
    %p256 = scmp.eq.s32.totalorder %s17, 0
    %p257 = por %p255, %p256
    %p258 = scmp.ne.s32.totalorder %s250, %s252
    %p259 = scmp.eq.s32.totalorder %s22, 1
    %p260 = por %p258, %p259
    %p261 = scmp.ne.s32.totalorder %s252, %s253
    %p262 = scmp.eq.s32.totalorder %s22, 0
    %p263 = por %p261, %p262
    %p264 = scmp.ne.s32.totalorder %s252, %s253
    %p265 = scmp.eq.s32.totalorder %s23, 1
    %p266 = por %p264, %p265
    %p268 = scmp.ne.s32.totalorder %s253, %s267
    %p269 = scmp.eq.s32.totalorder %s23, 0
    %p270 = por %p268, %p269
    %s271 = ssub.s32 %s17, %s24
    %p272 = scmp.eq.s32.totalorder %s271, 0
    %s274 = sadd.s32 %s273, 1
    %s275 = scalar_select %p272, %s273, %s274
    %p278 = pneg %p272
    %p279 = scmp.eq.s32.totalorder %s17, 1
    %p280 = por %p278, %p279
    %p281 = scmp.ne.s32.totalorder %s273, %s276
    %p282 = scmp.eq.s32.totalorder %s17, 0
    %p283 = por %p281, %p282
    %p284 = scmp.ne.s32.totalorder %s273, %s276
    %p285 = scmp.eq.s32.totalorder %s22, 1
    %p286 = por %p284, %p285
    %p287 = scmp.ne.s32.totalorder %s276, %s277
    %p288 = scmp.eq.s32.totalorder %s22, 0
    %p289 = por %p287, %p288
    %p290 = scmp.ne.s32.totalorder %s276, %s277
    %p291 = scmp.eq.s32.totalorder %s23, 1
    %p292 = por %p290, %p291
    %p294 = scmp.ne.s32.totalorder %s277, %s293
    %p295 = scmp.eq.s32.totalorder %s23, 0
    %p296 = por %p294, %p295
    %p297 = scmp.le.s32.totalorder 1, %s17
    %p298 = scmp.lt.s32.totalorder %s17, 3
    %p299 = pnand %p297, %p298
    %p300 = pneg %p299
    // Predicated region
    $region9: #{_lambda_.18} parent=5 // pred_check
      _
    $region10: #{_lambda_.18} parent=5 // pred_check_branch
      %302 = sbr.rel (%p299) target = $region12
    $region11: #{_lambda_.18} parent=5 // pred_region
      %s303 = ssub.s32 %s17, 1
      // Predicated region
      $region13: #{_lambda_.18} parent=11 // pred_check
        %p304 = pneg %p116
      $region14: #{_lambda_.18} parent=11 // pred_check_branch
        %306 = sbr.rel (%p304) target = $region16
      $region15: #{_lambda_.18} parent=11 // pred_region
        _
      $region16: #{_lambda_.18} parent=11 // pred_fallthru
        _
      // Predicated region
      $region17: #{_lambda_.18} parent=11 // pred_check
        %p307 = pneg %p137
      $region18: #{_lambda_.18} parent=11 // pred_check_branch
        %309 = sbr.rel (%p307) target = $region20
      $region19: #{_lambda_.18} parent=11 // pred_region
        _
      $region20: #{_lambda_.18} parent=11 // pred_fallthru
        _
      // Predicated region
      $region21: #{_lambda_.18} parent=11 // pred_check
        %p310 = pneg %p158
      $region22: #{_lambda_.18} parent=11 // pred_check_branch
        %312 = sbr.rel (%p310) target = $region24
      $region23: #{_lambda_.18} parent=11 // pred_region
        _
      $region24: #{_lambda_.18} parent=11 // pred_fallthru
        _
      // Predicated region
      $region25: #{_lambda_.18} parent=11 // pred_check
        %p313 = pneg %p179
      $region26: #{_lambda_.18} parent=11 // pred_check_branch
        %315 = sbr.rel (%p313) target = $region28
      $region27: #{_lambda_.18} parent=11 // pred_region
        _
      $region28: #{_lambda_.18} parent=11 // pred_fallthru
        _
      // Predicated region
      $region29: #{_lambda_.18} parent=11 // pred_check
        %p316 = pneg %p200
      $region30: #{_lambda_.18} parent=11 // pred_check_branch
        %318 = sbr.rel (%p316) target = $region32
      $region31: #{_lambda_.18} parent=11 // pred_region
        _
      $region32: #{_lambda_.18} parent=11 // pred_fallthru
        _
      // Predicated region
      $region33: #{_lambda_.18} parent=11 // pred_check
        %p319 = pneg %p221
      $region34: #{_lambda_.18} parent=11 // pred_check_branch
        %321 = sbr.rel (%p319) target = $region36
      $region35: #{_lambda_.18} parent=11 // pred_region
        _
      $region36: #{_lambda_.18} parent=11 // pred_fallthru
        _
      // Predicated region
      $region37: #{_lambda_.18} parent=11 // pred_check
        %p322 = pneg %p242
      $region38: #{_lambda_.18} parent=11 // pred_check_branch
        %324 = sbr.rel (%p322) target = $region40
      $region39: #{_lambda_.18} parent=11 // pred_region
        _
      $region40: #{_lambda_.18} parent=11 // pred_fallthru
        _
      // Predicated region
      $region41: #{_lambda_.18} parent=11 // pred_check
        %p325 = pneg %p263
      $region42: #{_lambda_.18} parent=11 // pred_check_branch
        %327 = sbr.rel (%p325) target = $region44
      $region43: #{_lambda_.18} parent=11 // pred_region
        _
      $region44: #{_lambda_.18} parent=11 // pred_fallthru
        _
    $region12: #{_lambda_.18} parent=5 // pred_fallthru
      _
    %p328 = scmp.lt.s32.totalorder %s17, 2
    // Predicated region
    $region45: #{_lambda_.18} parent=5 // pred_check
      %p329 = pneg %p328
    $region46: #{_lambda_.18} parent=5 // pred_check_branch
      %331 = sbr.rel (%p329) target = $region48
    $region47: #{_lambda_.18} parent=5 // pred_region
      // Predicated region
      $region49: #{_lambda_.18} parent=47 // pred_check
        %p332 = pneg %p37
      $region50: #{_lambda_.18} parent=47 // pred_check_branch
        %334 = sbr.rel (%p332) target = $region52
      $region51: #{_lambda_.18} parent=47 // pred_region
        %p335 = scmp.lt.s32.totalorder %s17, 1
        %s336 = scalar_select %p335, %s17, 1
        %s337 = smul.addr %s336, 2
        %s338 = smul.addr %s337, 8
        %s339 = scalar_lea.vmem %s0, %s338
      $region52: #{_lambda_.18} parent=47 // pred_fallthru
        _
      // Predicated region
      $region53: #{_lambda_.18} parent=47 // pred_check
        %p340 = pneg %p63
      $region54: #{_lambda_.18} parent=47 // pred_check_branch
        %342 = sbr.rel (%p340) target = $region56
      $region55: #{_lambda_.18} parent=47 // pred_region
        %p343 = scmp.lt.s32.totalorder %s17, 1
        %s344 = scalar_select %p343, %s17, 1
        %s345 = smul.addr %s344, 2
        %s346 = smul.addr %s345, 8
        %s347 = scalar_lea.vmem %s1, %s346
      $region56: #{_lambda_.18} parent=47 // pred_fallthru
        _
      // Predicated region
      $region57: #{_lambda_.18} parent=47 // pred_check
        %p348 = pneg %p89
      $region58: #{_lambda_.18} parent=47 // pred_check_branch
        %350 = sbr.rel (%p348) target = $region60
      $region59: #{_lambda_.18} parent=47 // pred_region
        %p351 = scmp.lt.s32.totalorder %s17, 1
        %s352 = scalar_select %p351, %s17, 1
        %s353 = smul.addr %s352, 2
        %s354 = smul.addr %s353, 8
        %s355 = scalar_lea.vmem %s2, %s354
      $region60: #{_lambda_.18} parent=47 // pred_fallthru
        _
    $region48: #{_lambda_.18} parent=5 // pred_fallthru
      _
    %p356 = scmp.le.s32.totalorder 1, %s17
    %p357 = scmp.lt.s32.totalorder %s17, 3
    %p358 = pnand %p356, %p357
    %p359 = pneg %p358
    // Predicated region
    $region61: #{_lambda_.18} parent=5 // pred_check
      _
    $region62: #{_lambda_.18} parent=5 // pred_check_branch
      %361 = sbr.rel (%p358) target = $region64
    $region63: #{_lambda_.18} parent=5 // pred_region
      %s362 = ssub.s32 %s17, 1
      %p363 = scmp.lt.s32.totalorder %s22, 1
      %s364 = scalar_select %p363, %s22, 1
      %s365 = smul.addr %s364, 2
      %s366 = smul.addr %s365, 8
      %s367 = scalar_lea.vmem %s0, %s366
      %p368 = pneg %p43
      %p369 = pneg %p40
      %p370 = scmp.lt.s32.totalorder %s22, 1
      %s371 = scalar_select %p370, %s22, 1
      %s372 = smul.addr %s371, 2
      %s373 = smul.addr %s372, 8
      %s374 = scalar_lea.vmem %s1, %s373
      %p375 = pneg %p69
      %p376 = pneg %p66
      %p377 = scmp.lt.s32.totalorder %s22, 1
      %s378 = scalar_select %p377, %s22, 1
      %s379 = smul.addr %s378, 2
      %s380 = smul.addr %s379, 8
      %s381 = scalar_lea.vmem %s2, %s380
      %p382 = pneg %p95
      %p383 = pneg %p92
      %p384 = pneg %p116
      %p385 = pneg %p113
      %p386 = pneg %p137
      %p387 = pneg %p134
      %p388 = pneg %p158
      %p389 = pneg %p155
      %p390 = pneg %p179
      %p391 = pneg %p176
      %p392 = pneg %p200
      %p393 = pneg %p197
      %p394 = pneg %p221
      %p395 = pneg %p218
      %p396 = pneg %p242
      %p397 = pneg %p239
      %p398 = pneg %p263
      %p399 = pneg %p260
      %p400 = pneg %p289
      %p401 = pneg %p286
      %p402 = scmp.lt.s32.totalorder %s22, 1
      %s403 = scalar_select %p402, %s22, 1
      %s404 = smul.addr %s403, 2
      %s405 = smul.addr %s404, 8
      %s406 = scalar_lea.vmem %s11, %s405
      %p407 = scmp.lt.s32.totalorder %s22, 1
      %s408 = scalar_select %p407, %s22, 1
      %s409 = smul.addr %s408, 2
      %s410 = smul.addr %s409, 8
      %s411 = scalar_lea.vmem %s0, %s410
      %p412 = scmp.lt.s32.totalorder %s22, 1
      %s413 = scalar_select %p412, %s22, 1
      %s414 = smul.addr %s413, 2
      %s415 = smul.addr %s414, 8
      %s416 = scalar_lea.vmem %s1, %s415
      %p417 = scmp.lt.s32.totalorder %s22, 1
      %s418 = scalar_select %p417, %s22, 1
      %s419 = smul.addr %s418, 2
      %s420 = smul.addr %s419, 8
      %s421 = scalar_lea.vmem %s2, %s420
      %p422 = scmp.lt.s32.totalorder %s22, 1
      %s423 = scalar_select %p422, %s22, 1
      %s424 = smul.addr %s423, 2
      %s425 = smul.addr %s424, 8
      %s426 = scalar_lea.vmem %s11, %s425
      %v427 = vld [vmem:[%s421] sm:$0xff]
      %v428 = vld [vmem:[%s421 + $0x8] sm:$0xff]
      %v429 = vld [vmem:[%s411] sm:$0xff]
      %v430 = vld [vmem:[%s411 + $0x8] sm:$0xff]
      %v431 = vadd.f32 %v429, %v427
      %v432 = vadd.f32 %v430, %v428
      %v433 = vld [vmem:[%s3] sm:$0x1]
      %v434 = vld [vmem:[%s4] sm:$0x1]
      %435 = vadd.xlane.f32.xlu0 %v431
      %v436 = vpop.xlane.xlu0 %435
      %437 = vadd.xlane.f32.xlu0 %v432
      %v438 = vpop.xlane.xlu0 %437
      %v439 = vrcp.pop 32.0
      %v440 = vmul.f32 32.0, %v439
      %v441 = vsub.f32 1.0, %v440
      %v442 = vmul.f32 %v439, %v441
      %v443 = vadd.f32 %v439, %v442
      %vm444 = vweird.f32 %v439
      %v445 = vsel %vm444, %v439, %v443
      %v446 = vmul.f32 %v436, %v445
      %v447 = vmul.f32 %v438, %v445
      %v448 = vmul.f32 %v431, %v431
      %v449 = vmul.f32 %v432, %v432
      %450 = vadd.xlane.f32.xlu0 %v448
      %v451 = vpop.xlane.xlu0 %450
      %452 = vadd.xlane.f32.xlu0 %v449
      %v453 = vpop.xlane.xlu0 %452
      %v454 = vmul.f32 %v451, %v445
      %v455 = vmul.f32 %v453, %v445
      %v456 = vmul.f32 %v446, %v446
      %v457 = vmul.f32 %v447, %v447
      %v458 = vsub.f32 %v454, %v456
      %v459 = vsub.f32 %v455, %v457
      %v460 = vsub.f32 %v431, %v446
      %v461 = vsub.f32 %v432, %v447
      %v462 = vadd.f32 %v458, 1e-05
      %v463 = vadd.f32 %v459, 1e-05
      %v464 = vrsqrt.pop %v462
      %v465 = vmul.f32 %v464, %v462
      %v466 = vmul.f32 %v465, %v464
      %v467 = vmul.f32 0.5, %v466
      %v468 = vsub.f32 1.5, %v467
      %v469 = vmul.f32 %v464, %v468
      %vm470 = vweird.f32 %v462
      %vm471 = vweird.f32 %v464
      %vm472 = vmor %vm470, %vm471
      %v473 = vsel %vm472, %v464, %v469
      %v474 = vrsqrt.pop %v463
      %v475 = vmul.f32 %v474, %v463
      %v476 = vmul.f32 %v475, %v474
      %v477 = vmul.f32 0.5, %v476
      %v478 = vsub.f32 1.5, %v477
      %v479 = vmul.f32 %v474, %v478
      %vm480 = vweird.f32 %v463
      %vm481 = vweird.f32 %v474
      %vm482 = vmor %vm480, %vm481
      %v483 = vsel %vm482, %v474, %v479
      %v484 = vmul.f32 %v460, %v473
      %v485 = vmul.f32 %v461, %v483
      %v487 = vperm.slane %v433, 0
      %v489 = vmul.f32 %v484, %v487
      %v490 = vmul.f32 %v485, %v487
      %v492 = vperm.slane %v434, 0
      %v494 = vadd.f32 %v489, %v492
      %v495 = vadd.f32 %v490, %v492
      %v496 = vld [vmem:[%s416] sm:$0xff]
      %v497 = vld [vmem:[%s416 + $0x8] sm:$0xff]
      %v498 = vadd.f32 %v496, %v427
      %v499 = vadd.f32 %v497, %v428
      %v500 = vld [vmem:[%s5] sm:$0x1]
      %v501 = vld [vmem:[%s6] sm:$0x1]
      %502 = vadd.xlane.f32.xlu0 %v498
      %v503 = vpop.xlane.xlu0 %502
      %504 = vadd.xlane.f32.xlu0 %v499
      %v505 = vpop.xlane.xlu0 %504
      %v506 = vmul.f32 %v503, %v445
      %v507 = vmul.f32 %v505, %v445
      %v508 = vmul.f32 %v498, %v498
      %v509 = vmul.f32 %v499, %v499
      %510 = vadd.xlane.f32.xlu0 %v508
      %v511 = vpop.xlane.xlu0 %510
      %512 = vadd.xlane.f32.xlu0 %v509
      %v513 = vpop.xlane.xlu0 %512
      %v514 = vmul.f32 %v511, %v445
      %v515 = vmul.f32 %v513, %v445
      %v516 = vmul.f32 %v506, %v506
      %v517 = vmul.f32 %v507, %v507
      %v518 = vsub.f32 %v514, %v516
      %v519 = vsub.f32 %v515, %v517
      %v520 = vsub.f32 %v498, %v506
      %v521 = vsub.f32 %v499, %v507
      %v522 = vadd.f32 %v518, 1e-05
      %v523 = vadd.f32 %v519, 1e-05
      %v524 = vrsqrt.pop %v522
      %v525 = vmul.f32 %v524, %v522
      %v526 = vmul.f32 %v525, %v524
      %v527 = vmul.f32 0.5, %v526
      %v528 = vsub.f32 1.5, %v527
      %v529 = vmul.f32 %v524, %v528
      %vm530 = vweird.f32 %v522
      %vm531 = vweird.f32 %v524
      %vm532 = vmor %vm530, %vm531
      %v533 = vsel %vm532, %v524, %v529
      %v534 = vrsqrt.pop %v523
      %v535 = vmul.f32 %v534, %v523
      %v536 = vmul.f32 %v535, %v534
      %v537 = vmul.f32 0.5, %v536
      %v538 = vsub.f32 1.5, %v537
      %v539 = vmul.f32 %v534, %v538
      %vm540 = vweird.f32 %v523
      %vm541 = vweird.f32 %v534
      %vm542 = vmor %vm540, %vm541
      %v543 = vsel %vm542, %v534, %v539
      %v544 = vmul.f32 %v520, %v533
      %v545 = vmul.f32 %v521, %v543
      %v547 = vperm.slane %v500, 0
      %v549 = vmul.f32 %v544, %v547
      %v550 = vmul.f32 %v545, %v547
      %v552 = vperm.slane %v501, 0
      %v554 = vadd.f32 %v549, %v552
      %v555 = vadd.f32 %v550, %v552
      %v556 = vld [vmem:[%s7] sm:$0xff]
      %v557 = vld [vmem:[%s7 + $0x8] sm:$0xff]
      %v558 = vld [vmem:[%s7 + $0x10] sm:$0xff]
      %v559 = vld [vmem:[%s7 + $0x18] sm:$0xff]
      %v560 = vld [vmem:[%s7 + $0x20] sm:$0xff]
      %v561 = vld [vmem:[%s7 + $0x28] sm:$0xff]
      %v562 = vld [vmem:[%s7 + $0x30] sm:$0xff]
      %v563 = vld [vmem:[%s7 + $0x38] sm:$0xff]
      %v564 = vld [vmem:[%s7 + $0x40] sm:$0xff]
      %v565 = vld [vmem:[%s7 + $0x48] sm:$0xff]
      %v566 = vld [vmem:[%s7 + $0x50] sm:$0xff]
      %v567 = vld [vmem:[%s7 + $0x58] sm:$0xff]
      %v568 = vld [vmem:[%s7 + $0x60] sm:$0xff]
      %v569 = vld [vmem:[%s7 + $0x68] sm:$0xff]
      %v570 = vld [vmem:[%s7 + $0x70] sm:$0xff]
      %v571 = vld [vmem:[%s7 + $0x78] sm:$0xff]
      %v572 = vld [vmem:[%s8] sm:$0x1]
      %v574 = vperm.slane %v572, 0
      %576 = vmatpush.msra.mxu0 %v571
      %577 = vmatpush.msra.mxu0 %v570
      %578 = vmatpush.msra.mxu0 %v569
      %579 = vmatpush.msra.mxu0 %v568
      %580 = vmatpush.msra.mxu0 %v567
      %581 = vmatpush.msra.mxu0 %v566
      %582 = vmatpush.msra.mxu0 %v565
      %583 = vmatpush.msra.mxu0 %v564
      %584 = vmatpush.msra.mxu0 %v563
      %585 = vmatpush.msra.mxu0 %v562
      %586 = vmatpush.msra.mxu0 %v561
      %587 = vmatpush.msra.mxu0 %v560
      %588 = vmatpush.msra.mxu0 %v559
      %589 = vmatpush.msra.mxu0 %v558
      %590 = vmatpush.msra.mxu0 %v557
      %591 = vmatpush.msra.mxu0 %v556
      %592 = vmatmul.f32.gmra.mxu0 %v494
      %v593 = vpop.f32.mrf.mxu0
      %v594 = vadd.f32 %v574, %v593
      %595 = vmatmul.f32.gmra.mxu0 %v495
      %v596 = vpop.f32.mrf.mxu0
      %v597 = vadd.f32 %v574, %v596
      %598 = vdwg.mxu0
      %v599 = vld [vmem:[%s9] sm:$0xff]
      %v600 = vld [vmem:[%s9 + $0x8] sm:$0xff]
      %v601 = vld [vmem:[%s9 + $0x10] sm:$0xff]
      %v602 = vld [vmem:[%s9 + $0x18] sm:$0xff]
      %v603 = vld [vmem:[%s9 + $0x20] sm:$0xff]
      %v604 = vld [vmem:[%s9 + $0x28] sm:$0xff]
      %v605 = vld [vmem:[%s9 + $0x30] sm:$0xff]
      %v606 = vld [vmem:[%s9 + $0x38] sm:$0xff]
      %v607 = vld [vmem:[%s9 + $0x40] sm:$0xff]
      %v608 = vld [vmem:[%s9 + $0x48] sm:$0xff]
      %v609 = vld [vmem:[%s9 + $0x50] sm:$0xff]
      %v610 = vld [vmem:[%s9 + $0x58] sm:$0xff]
      %v611 = vld [vmem:[%s9 + $0x60] sm:$0xff]
      %v612 = vld [vmem:[%s9 + $0x68] sm:$0xff]
      %v613 = vld [vmem:[%s9 + $0x70] sm:$0xff]
      %v614 = vld [vmem:[%s9 + $0x78] sm:$0xff]
      %v615 = vld [vmem:[%s10] sm:$0x1]
      %v617 = vperm.slane %v615, 0
      %619 = vmatpush.msra.mxu0 %v614
      %620 = vmatpush.msra.mxu0 %v613
      %621 = vmatpush.msra.mxu0 %v612
      %622 = vmatpush.msra.mxu0 %v611
      %623 = vmatpush.msra.mxu0 %v610
      %624 = vmatpush.msra.mxu0 %v609
      %625 = vmatpush.msra.mxu0 %v608
      %626 = vmatpush.msra.mxu0 %v607
      %627 = vmatpush.msra.mxu0 %v606
      %628 = vmatpush.msra.mxu0 %v605
      %629 = vmatpush.msra.mxu0 %v604
      %630 = vmatpush.msra.mxu0 %v603
      %631 = vmatpush.msra.mxu0 %v602
      %632 = vmatpush.msra.mxu0 %v601
      %633 = vmatpush.msra.mxu0 %v600
      %634 = vmatpush.msra.mxu0 %v599
      %635 = vmatmul.f32.gmra.mxu0 %v554
      %v636 = vpop.f32.mrf.mxu0
      %v637 = vadd.f32 %v617, %v636
      %638 = vmatmul.f32.gmra.mxu0 %v555
      %v639 = vpop.f32.mrf.mxu0
      %v640 = vadd.f32 %v617, %v639
      %641 = vdwg.mxu0
      %642 = vmatpush.xpose.msra.mxu0 0.0
      %643 = vmatpush.xpose.msra.mxu0 0.0
      %644 = vmatpush.xpose.msra.mxu0 0.0
      %645 = vmatpush.xpose.msra.mxu0 0.0
      %646 = vmatpush.xpose.msra.mxu0 0.0
      %647 = vmatpush.xpose.msra.mxu0 0.0
      %648 = vmatpush.xpose.msra.mxu0 0.0
      %649 = vmatpush.xpose.msra.mxu0 0.0
      %650 = vmatpush.xpose.msra.mxu0 0.0
      %651 = vmatpush.xpose.msra.mxu0 0.0
      %652 = vmatpush.xpose.msra.mxu0 0.0
      %653 = vmatpush.xpose.msra.mxu0 0.0
      %654 = vmatpush.xpose.msra.mxu0 0.0
      %655 = vmatpush.xpose.msra.mxu0 0.0
      %656 = vmatpush.xpose.msra.mxu0 %v640
      %657 = vmatpush.xpose.msra.mxu0 %v637
      %658 = vmatmul.f32.gmra.mxu0 %v594
      %v659 = vpop.f32.mrf.mxu0
      %v660 = vadd.f32 0.0, %v659
      %661 = vmatmul.f32.gmra.mxu0 %v597
      %v662 = vpop.f32.mrf.mxu0
      %v663 = vadd.f32 0.0, %v662
      %664 = vdwg.mxu0
      %v665 = vsub.f32 0.0, %v660
      %v666 = vsub.f32 0.0, %v663
      %v667 = vmul.f32 %v665, 1.442695
      %v668 = vpow.pop %v667
      %v669 = vmul.f32 %v666, 1.442695
      %v670 = vpow.pop %v669
      %v671 = vadd.f32 %v668, 1.0
      %v672 = vadd.f32 %v670, 1.0
      %v673 = vrcp.pop %v671
      %v674 = vmul.f32 %v671, %v673
      %v675 = vsub.f32 1.0, %v674
      %v676 = vmul.f32 %v673, %v675
      %v677 = vadd.f32 %v673, %v676
      %vm678 = vweird.f32 %v671
      %vm679 = vweird.f32 %v673
      %vm680 = vmor %vm678, %vm679
      %v681 = vsel %vm680, %v673, %v677
      %v682 = vand.u32 2147483647, %v671
      %vm683 = vcmp.eq.f32.partialorder %v682, 8.507059e+37
      %v684 = vand.u32 %v671, 2147483648
      %v685 = vor.u32 1.1754944e-38, %v684
      %v686 = vsel %vm683, %v685, %v681
      %v687 = vmul.f32 1.0, %v686
      %v688 = vrcp.pop %v672
      %v689 = vmul.f32 %v672, %v688
      %v690 = vsub.f32 1.0, %v689
      %v691 = vmul.f32 %v688, %v690
      %v692 = vadd.f32 %v688, %v691
      %vm693 = vweird.f32 %v672
      %vm694 = vweird.f32 %v688
      %vm695 = vmor %vm693, %vm694
      %v696 = vsel %vm695, %v688, %v692
      %v697 = vand.u32 2147483647, %v672
      %vm698 = vcmp.eq.f32.partialorder %v697, 8.507059e+37
      %v699 = vand.u32 %v672, 2147483648
      %v700 = vor.u32 1.1754944e-38, %v699
      %v701 = vsel %vm698, %v700, %v696
      %v702 = vmul.f32 1.0, %v701
      %vm703 = vcmask 130048
      %704 = vst.msk [vmem:[%s426] sm:$0xff] %vm703, %v687
      %705 = vst.msk [vmem:[%s426 + $0x8] sm:$0xff] %vm703, %v702
      %p706 = scmp.lt.s32.totalorder %s22, 1
      %s707 = scalar_select %p706, %s22, 1
      %s708 = smul.addr %s707, 2
      %s709 = smul.addr %s708, 8
      %s710 = scalar_lea.vmem %s11, %s709
      // Predicated region
      $region65: #{_lambda_.18} parent=63 // pred_check
        %p711 = pneg %p286
      $region66: #{_lambda_.18} parent=63 // pred_check_branch
        %713 = sbr.rel (%p711) target = $region68
      $region67: #{_lambda_.18} parent=63 // pred_region
        _
      $region68: #{_lambda_.18} parent=63 // pred_fallthru
        _
    $region64: #{_lambda_.18} parent=5 // pred_fallthru
      _
    %p714 = scmp.le.s32.totalorder 2, %s17
    // Predicated region
    $region69: #{_lambda_.18} parent=5 // pred_check
      %p715 = pneg %p714
    $region70: #{_lambda_.18} parent=5 // pred_check_branch
      %717 = sbr.rel (%p715) target = $region72
    $region71: #{_lambda_.18} parent=5 // pred_region
      %s718 = ssub.s32 %s17, 2
      // Predicated region
      $region73: #{_lambda_.18} parent=71 // pred_check
        %p719 = pneg %p292
      $region74: #{_lambda_.18} parent=71 // pred_check_branch
        %721 = sbr.rel (%p719) target = $region76
      $region75: #{_lambda_.18} parent=71 // pred_region
        %p722 = scmp.lt.s32.totalorder %s23, 1
        %s723 = scalar_select %p722, %s23, 1
        %s724 = smul.addr %s723, 2
        %s725 = smul.addr %s724, 8
        %s726 = scalar_lea.vmem %s11, %s725
      $region76: #{_lambda_.18} parent=71 // pred_fallthru
        _
    $region72: #{_lambda_.18} parent=5 // pred_fallthru
      _
  $region6: #{_lambda_.18} parent=0 // loop_footer
    %s21 = sadd.s32 1, %s17
  $region7: #{_lambda_.18} parent=0 // loop_footer_branch
    %16 = sbr.rel target = $region3
  $region8: #{_lambda_.18} parent=0 // loop_exit
    _

</llo_original>
